<compile_context>
chip_gen: v7x
topology: tpu7x:2x2x1
jax: 0.10.0
libtpu: 0.0.40
codegen_flags: <defaults>
</compile_context>

<pallas_src>
import numpy as np
import jax
import jax.numpy as jnp
from jax.experimental import pallas as pl
from jax.experimental.pallas import tpu as pltpu


def upsample_kernel(xp_ref, w_ref, b_ref, o_ref):
    # xp_ref: (bb, H+2, W+2, C)   zero-padded NHWC input block (native dtype)
    # w_ref : (4, 4*C, C)         fused per-phase taps, phase p = ph*2 + pw
    # b_ref : (1, C)              bias (f32)
    # o_ref : (bb, H, 2, W, 2*C)  interleave-friendly output block
    bb, H, _, W, two_c = o_ref.shape
    C = two_c // 2

    bias = b_ref[...].astype(jnp.float32).reshape(1, 1, 1, C)

    for ph in range(2):
        for pw in range(2):
            p = ph * 2 + pw
            # Four 2x2 tap windows, sliced from the ref and fused on the lane
            # (channel) axis -> one K = 4*C contraction per phase on the MXU.
            xs = jnp.concatenate(
                [xp_ref[:, ph + a:ph + a + H, pw + c:pw + c + W, :]
                 for a in range(2) for c in range(2)],
                axis=-1)                                     # (bb, H, W, 4C)
            acc = jnp.einsum('bhwi,io->bhwo', xs, w_ref[p],
                             preferred_element_type=jnp.float32)
            out = acc + bias
            # Phase (ph, pw) occupies lanes [pw*C, (pw+1)*C) of the (..., 2C)
            # minor dim -> sublane-dense store, no post-kernel phase shuffle.
            o_ref[:, :, ph, :, pw * C:(pw + 1) * C] = out.astype(o_ref.dtype)


def _pick_block_b(B, H, W, C, itemsize):
    """Largest divisor of B whose per-step working set fits a VMEM budget."""
    budget = 6 * 1024 * 1024          # per-step block budget (Pallas double-buffers)
    per_b = ((H + 2) * (W + 2) * C * itemsize   # padded input tile
             + 4 * H * W * C * 4                # f32 per-phase intermediates
             + 4 * H * W * C * itemsize)        # output tile
    bb = max(1, min(B, budget // max(per_b, 1)))
    while B % bb:
        bb -= 1
    return int(bb)


def upsample_forward(x_nchw, t, weight, bias, *, block_b=None):
    """Equivalent of Upsample.forward(x, t): t is ignored."""
    _ = t
    B, C, H, W = x_nchw.shape
    dt = x_nchw.dtype
    itemsize = jnp.dtype(dt).itemsize

    # NCHW -> NHWC (channels on lanes).
    # TODO(synk): keep activations NHWC end-to-end in the surrounding model so this
    # relayout (and the matching one on the 4x-sized output) disappears.
    x = jnp.transpose(x_nchw, (0, 2, 3, 1))
    # TODO(synk): fold the 1-px halo into the kernel (zero-bordered VMEM scratch or
    # element-offset index_map) to remove this extra HBM pass over the input.
    xp = jnp.pad(x, ((0, 0), (1, 1), (1, 1), (0, 0)))

    # Fused per-phase weights (4, 4*Cin, Cout): for phase p = ph*2+pw, row block
    # (a*2+c) holds ConvTranspose2d kernel element (3-ph-2a, 3-pw-2c) as (Cin, Cout),
    # matching the window offset (ph+a, pw+c) used in the kernel.
    wp = jnp.stack([
        jnp.concatenate(
            [weight[:, :, 3 - ph - 2 * a, 3 - pw - 2 * c]
             for a in range(2) for c in range(2)], axis=0)
        for ph in range(2) for pw in range(2)], axis=0).astype(dt)   # (4, 4C, C)
    bias2d = bias.reshape(1, C).astype(jnp.float32)

    if block_b is None:
        block_b = _pick_block_b(B, H, W, C, itemsize)
    grid = (B // block_b,)

    flops = 2 * 4 * B * H * W * (4 * C) * C
    bytes_accessed = int((xp.size + wp.size + 4 * B * H * W * C) * itemsize
                         + bias2d.size * 4)

    out = pl.pallas_call(
        upsample_kernel,
        out_shape=jax.ShapeDtypeStruct((B, H, 2, W, 2 * C), dt),
        grid=grid,
        in_specs=[
            pl.BlockSpec((block_b, H + 2, W + 2, C), lambda b: (b, 0, 0, 0)),
            pl.BlockSpec((4, 4 * C, C), lambda b: (0, 0, 0)),
            pl.BlockSpec((1, C), lambda b: (0, 0)),
        ],
        out_specs=pl.BlockSpec((block_b, H, 2, W, 2 * C),
                               lambda b: (b, 0, 0, 0, 0)),
        compiler_params=pltpu.CompilerParams(
            dimension_semantics=("parallel",),
            vmem_limit_bytes=32 * 1024 * 1024),
        cost_estimate=pl.CostEstimate(
            flops=flops, transcendentals=0, bytes_accessed=bytes_accessed),
    )(xp, wp, bias2d)

    # (B, H, 2, W, 2*C) is bit-identical (row-major) to (B, 2H, 2W, C): free reshape.
    out = out.reshape(B, 2 * H, 2 * W, C)
    return jnp.transpose(out, (0, 3, 1, 2))   # NHWC -> NCHW (single relayout)


def ref_conv_transpose2d(x, w, b):
    """NumPy reference for ConvTranspose2d(C, C, (4,4), (2,2), (1,1))."""
    x = np.asarray(x, np.float32)
    w = np.asarray(w, np.float32)
    b = np.asarray(b, np.float32)
    B, Ci, H, W = x.shape
    Co = w.shape[1]
    full = np.zeros((B, Co, 2 * H + 2, 2 * W + 2), np.float32)
    for kh in range(4):
        for kw in range(4):
            contrib = np.einsum('bchw,cd->bdhw', x, w[:, :, kh, kw])
            full[:, :, kh:kh + 2 * H:2, kw:kw + 2 * W:2] += contrib
    out = full[:, :, 1:1 + 2 * H, 1:1 + 2 * W]
    return out + b[None, :, None, None]


if __name__ == "__main__":
    B, C, H, W = 2, 4, 16, 16
    key = jax.random.PRNGKey(0)
    kx, kw, kb, kt = jax.random.split(key, 4)

    x = jax.random.normal(kx, (B, C, H, W), dtype=jnp.float32)
    t = jax.random.normal(kt, (B,), dtype=jnp.float32)  # unused, mirrors forward(x, t)
    weight = jax.random.normal(kw, (C, C, 4, 4), dtype=jnp.float32) * 0.1
    bias = jax.random.normal(kb, (C,), dtype=jnp.float32) * 0.1

    ref = ref_conv_transpose2d(x, weight, bias)

    # Auto block size (may cover the whole batch at this tiny shape).
    out = jax.block_until_ready(upsample_forward(x, t, weight, bias))
    assert out.shape == (B, C, 2 * H, 2 * W), out.shape
    np.testing.assert_allclose(np.asarray(out), ref, rtol=1e-4, atol=1e-4)

    # Explicit block_b=1 exercises the multi-step batch grid (grid=(2,), parallel).
    out2 = jax.block_until_ready(upsample_forward(x, t, weight, bias, block_b=1))
    np.testing.assert_allclose(np.asarray(out2), ref, rtol=1e-4, atol=1e-4)

    print("KERNEL_OK")
</pallas_src>

<mosaic_0001>
module attributes {stable_mosaic.version = 11 : i64} {
  func.func @upsample_kernel(%arg0: i32, %arg1: memref<2x18x18x4xf32, #tpu.memory_space<vmem>>, %arg2: memref<4x16x4xf32, #tpu.memory_space<vmem>>, %arg3: memref<1x4xf32, #tpu.memory_space<vmem>>, %arg4: memref<2x16x2x16x8xf32, #tpu.memory_space<vmem>>) attributes {dimension_semantics = [#tpu.dimension_semantics<parallel>], iteration_bounds = array<i64: 1>, scalar_prefetch = 0 : i64, scratch_operands = 0 : i64, tpu.core_type = #tpu.core_type<tc>, window_params = [{transform_indices = @transform_0, window_bounds = array<i64: 2, 18, 18, 4>}, {pipeline_mode = #tpu.pipeline_mode<synchronous>, transform_indices = @transform_1, window_bounds = array<i64: 4, 16, 4>}, {pipeline_mode = #tpu.pipeline_mode<synchronous>, transform_indices = @transform_2, window_bounds = array<i64: 1, 4>}, {transform_indices = @transform_3, window_bounds = array<i64: 2, 16, 2, 16, 8>}]} {
    %c0 = arith.constant 0 : index
    %c0_0 = arith.constant 0 : index
    %0 = vector.load %arg3[%c0, %c0_0] : memref<1x4xf32, #tpu.memory_space<vmem>>, vector<1x4xf32>
    %1 = vector.shape_cast %0 : vector<1x4xf32> to vector<1x1x1x4xf32>
    %c0_1 = arith.constant 0 : index
    %c0_2 = arith.constant 0 : index
    %c0_3 = arith.constant 0 : index
    %c0_4 = arith.constant 0 : index
    %2 = vector.load %arg1[%c0_1, %c0_2, %c0_3, %c0_4] : memref<2x18x18x4xf32, #tpu.memory_space<vmem>>, vector<2x16x16x4xf32>
    %c0_5 = arith.constant 0 : index
    %c0_6 = arith.constant 0 : index
    %c1 = arith.constant 1 : index
    %c0_7 = arith.constant 0 : index
    %3 = vector.load %arg1[%c0_5, %c0_6, %c1, %c0_7] : memref<2x18x18x4xf32, #tpu.memory_space<vmem>>, vector<2x16x16x4xf32>
    %c0_8 = arith.constant 0 : index
    %c1_9 = arith.constant 1 : index
    %c0_10 = arith.constant 0 : index
    %c0_11 = arith.constant 0 : index
    %4 = vector.load %arg1[%c0_8, %c1_9, %c0_10, %c0_11] : memref<2x18x18x4xf32, #tpu.memory_space<vmem>>, vector<2x16x16x4xf32>
    %c0_12 = arith.constant 0 : index
    %c1_13 = arith.constant 1 : index
    %c1_14 = arith.constant 1 : index
    %c0_15 = arith.constant 0 : index
    %5 = vector.load %arg1[%c0_12, %c1_13, %c1_14, %c0_15] : memref<2x18x18x4xf32, #tpu.memory_space<vmem>>, vector<2x16x16x4xf32>
    %6 = tpu.concatenate %2, %3, %4, %5 in 3 : vector<2x16x16x4xf32>, vector<2x16x16x4xf32>, vector<2x16x16x4xf32>, vector<2x16x16x4xf32> -> vector<2x16x16x16xf32>
    %c0_16 = arith.constant 0 : index
    %c0_17 = arith.constant 0 : index
    %c0_18 = arith.constant 0 : index
    %7 = vector.load %arg2[%c0_16, %c0_17, %c0_18] : memref<4x16x4xf32, #tpu.memory_space<vmem>>, vector<1x16x4xf32>
    %8 = vector.shape_cast %7 : vector<1x16x4xf32> to vector<16x4xf32>
    "tpu.trace_start"() <{level = 10 : i32, message = "bhwi,io->bhwo"}> : () -> ()
    %cst = arith.constant dense<0.000000e+00> : vector<2x16x16x4xf32>
    %9 = tpu.matmul %6, %8, %cst {dimension_numbers = #tpu.dot_dimension_numbers<[3], [0], [0, 1, 2], [1], [0, 0, 0, 1, 0, 2, 1, 1], [], []>} : vector<2x16x16x16xf32>, vector<16x4xf32>, vector<2x16x16x4xf32> -> vector<2x16x16x4xf32>
    "tpu.trace_stop"() : () -> ()
    %10 = vector.broadcast %1 : vector<1x1x1x4xf32> to vector<2x16x16x4xf32>
    %11 = arith.addf %9, %10 : vector<2x16x16x4xf32>
    %c0_19 = arith.constant 0 : index
    %c0_20 = arith.constant 0 : index
    %c0_21 = arith.constant 0 : index
    %c0_22 = arith.constant 0 : index
    %c0_23 = arith.constant 0 : index
    %12 = vector.load %arg4[%c0_19, %c0_20, %c0_21, %c0_22, %c0_23] : memref<2x16x2x16x8xf32, #tpu.memory_space<vmem>>, vector<2x16x1x16x4xf32>
    %13 = vector.shape_cast %12 : vector<2x16x1x16x4xf32> to vector<2x16x16x4xf32>
    %14 = vector.shape_cast %11 : vector<2x16x16x4xf32> to vector<2x16x1x16x4xf32>
    tpu.vector_store %arg4[%c0_19, %c0_20, %c0_21, %c0_22, %c0_23], %14 {strides = array<i32>} : memref<2x16x2x16x8xf32, #tpu.memory_space<vmem>>, vector<2x16x1x16x4xf32>,
    %c0_24 = arith.constant 0 : index
    %c0_25 = arith.constant 0 : index
    %c1_26 = arith.constant 1 : index
    %c0_27 = arith.constant 0 : index
    %15 = vector.load %arg1[%c0_24, %c0_25, %c1_26, %c0_27] : memref<2x18x18x4xf32, #tpu.memory_space<vmem>>, vector<2x16x16x4xf32>
    %c0_28 = arith.constant 0 : index
    %c0_29 = arith.constant 0 : index
    %c2 = arith.constant 2 : index
    %c0_30 = arith.constant 0 : index
    %16 = vector.load %arg1[%c0_28, %c0_29, %c2, %c0_30] : memref<2x18x18x4xf32, #tpu.memory_space<vmem>>, vector<2x16x16x4xf32>
    %c0_31 = arith.constant 0 : index
    %c1_32 = arith.constant 1 : index
    %c1_33 = arith.constant 1 : index
    %c0_34 = arith.constant 0 : index
    %17 = vector.load %arg1[%c0_31, %c1_32, %c1_33, %c0_34] : memref<2x18x18x4xf32, #tpu.memory_space<vmem>>, vector<2x16x16x4xf32>
    %c0_35 = arith.constant 0 : index
    %c1_36 = arith.constant 1 : index
    %c2_37 = arith.constant 2 : index
    %c0_38 = arith.constant 0 : index
    %18 = vector.load %arg1[%c0_35, %c1_36, %c2_37, %c0_38] : memref<2x18x18x4xf32, #tpu.memory_space<vmem>>, vector<2x16x16x4xf32>
    %19 = tpu.concatenate %15, %16, %17, %18 in 3 : vector<2x16x16x4xf32>, vector<2x16x16x4xf32>, vector<2x16x16x4xf32>, vector<2x16x16x4xf32> -> vector<2x16x16x16xf32>
    %c1_39 = arith.constant 1 : index
    %c0_40 = arith.constant 0 : index
    %c0_41 = arith.constant 0 : index
    %20 = vector.load %arg2[%c1_39, %c0_40, %c0_41] : memref<4x16x4xf32, #tpu.memory_space<vmem>>, vector<1x16x4xf32>
    %21 = vector.shape_cast %20 : vector<1x16x4xf32> to vector<16x4xf32>
    "tpu.trace_start"() <{level = 10 : i32, message = "bhwi,io->bhwo"}> : () -> ()
    %cst_42 = arith.constant dense<0.000000e+00> : vector<2x16x16x4xf32>
    %22 = tpu.matmul %19, %21, %cst_42 {dimension_numbers = #tpu.dot_dimension_numbers<[3], [0], [0, 1, 2], [1], [0, 0, 0, 1, 0, 2, 1, 1], [], []>} : vector<2x16x16x16xf32>, vector<16x4xf32>, vector<2x16x16x4xf32> -> vector<2x16x16x4xf32>
    "tpu.trace_stop"() : () -> ()
    %23 = vector.broadcast %1 : vector<1x1x1x4xf32> to vector<2x16x16x4xf32>
    %24 = arith.addf %22, %23 : vector<2x16x16x4xf32>
    %c0_43 = arith.constant 0 : index
    %c0_44 = arith.constant 0 : index
    %c0_45 = arith.constant 0 : index
    %c0_46 = arith.constant 0 : index
    %c4 = arith.constant 4 : index
    %25 = vector.load %arg4[%c0_43, %c0_44, %c0_45, %c0_46, %c4] : memref<2x16x2x16x8xf32, #tpu.memory_space<vmem>>, vector<2x16x1x16x4xf32>
    %26 = vector.shape_cast %25 : vector<2x16x1x16x4xf32> to vector<2x16x16x4xf32>
    %27 = vector.shape_cast %24 : vector<2x16x16x4xf32> to vector<2x16x1x16x4xf32>
    tpu.vector_store %arg4[%c0_43, %c0_44, %c0_45, %c0_46, %c4], %27 {strides = array<i32>} : memref<2x16x2x16x8xf32, #tpu.memory_space<vmem>>, vector<2x16x1x16x4xf32>,
    %c0_47 = arith.constant 0 : index
    %c1_48 = arith.constant 1 : index
    %c0_49 = arith.constant 0 : index
    %c0_50 = arith.constant 0 : index
    %28 = vector.load %arg1[%c0_47, %c1_48, %c0_49, %c0_50] : memref<2x18x18x4xf32, #tpu.memory_space<vmem>>, vector<2x16x16x4xf32>
    %c0_51 = arith.constant 0 : index
    %c1_52 = arith.constant 1 : index
    %c1_53 = arith.constant 1 : index
    %c0_54 = arith.constant 0 : index
    %29 = vector.load %arg1[%c0_51, %c1_52, %c1_53, %c0_54] : memref<2x18x18x4xf32, #tpu.memory_space<vmem>>, vector<2x16x16x4xf32>
    %c0_55 = arith.constant 0 : index
    %c2_56 = arith.constant 2 : index
    %c0_57 = arith.constant 0 : index
    %c0_58 = arith.constant 0 : index
    %30 = vector.load %arg1[%c0_55, %c2_56, %c0_57, %c0_58] : memref<2x18x18x4xf32, #tpu.memory_space<vmem>>, vector<2x16x16x4xf32>
    %c0_59 = arith.constant 0 : index
    %c2_60 = arith.constant 2 : index
    %c1_61 = arith.constant 1 : index
    %c0_62 = arith.constant 0 : index
    %31 = vector.load %arg1[%c0_59, %c2_60, %c1_61, %c0_62] : memref<2x18x18x4xf32, #tpu.memory_space<vmem>>, vector<2x16x16x4xf32>
    %32 = tpu.concatenate %28, %29, %30, %31 in 3 : vector<2x16x16x4xf32>, vector<2x16x16x4xf32>, vector<2x16x16x4xf32>, vector<2x16x16x4xf32> -> vector<2x16x16x16xf32>
    %c2_63 = arith.constant 2 : index
    %c0_64 = arith.constant 0 : index
    %c0_65 = arith.constant 0 : index
    %33 = vector.load %arg2[%c2_63, %c0_64, %c0_65] : memref<4x16x4xf32, #tpu.memory_space<vmem>>, vector<1x16x4xf32>
    %34 = vector.shape_cast %33 : vector<1x16x4xf32> to vector<16x4xf32>
    "tpu.trace_start"() <{level = 10 : i32, message = "bhwi,io->bhwo"}> : () -> ()
    %cst_66 = arith.constant dense<0.000000e+00> : vector<2x16x16x4xf32>
    %35 = tpu.matmul %32, %34, %cst_66 {dimension_numbers = #tpu.dot_dimension_numbers<[3], [0], [0, 1, 2], [1], [0, 0, 0, 1, 0, 2, 1, 1], [], []>} : vector<2x16x16x16xf32>, vector<16x4xf32>, vector<2x16x16x4xf32> -> vector<2x16x16x4xf32>
    "tpu.trace_stop"() : () -> ()
    %36 = vector.broadcast %1 : vector<1x1x1x4xf32> to vector<2x16x16x4xf32>
    %37 = arith.addf %35, %36 : vector<2x16x16x4xf32>
    %c0_67 = arith.constant 0 : index
    %c0_68 = arith.constant 0 : index
    %c1_69 = arith.constant 1 : index
    %c0_70 = arith.constant 0 : index
    %c0_71 = arith.constant 0 : index
    %38 = vector.load %arg4[%c0_67, %c0_68, %c1_69, %c0_70, %c0_71] : memref<2x16x2x16x8xf32, #tpu.memory_space<vmem>>, vector<2x16x1x16x4xf32>
    %39 = vector.shape_cast %38 : vector<2x16x1x16x4xf32> to vector<2x16x16x4xf32>
    %40 = vector.shape_cast %37 : vector<2x16x16x4xf32> to vector<2x16x1x16x4xf32>
    tpu.vector_store %arg4[%c0_67, %c0_68, %c1_69, %c0_70, %c0_71], %40 {strides = array<i32>} : memref<2x16x2x16x8xf32, #tpu.memory_space<vmem>>, vector<2x16x1x16x4xf32>,
    %c0_72 = arith.constant 0 : index
    %c1_73 = arith.constant 1 : index
    %c1_74 = arith.constant 1 : index
    %c0_75 = arith.constant 0 : index
    %41 = vector.load %arg1[%c0_72, %c1_73, %c1_74, %c0_75] : memref<2x18x18x4xf32, #tpu.memory_space<vmem>>, vector<2x16x16x4xf32>
    %c0_76 = arith.constant 0 : index
    %c1_77 = arith.constant 1 : index
    %c2_78 = arith.constant 2 : index
    %c0_79 = arith.constant 0 : index
    %42 = vector.load %arg1[%c0_76, %c1_77, %c2_78, %c0_79] : memref<2x18x18x4xf32, #tpu.memory_space<vmem>>, vector<2x16x16x4xf32>
    %c0_80 = arith.constant 0 : index
    %c2_81 = arith.constant 2 : index
    %c1_82 = arith.constant 1 : index
    %c0_83 = arith.constant 0 : index
    %43 = vector.load %arg1[%c0_80, %c2_81, %c1_82, %c0_83] : memref<2x18x18x4xf32, #tpu.memory_space<vmem>>, vector<2x16x16x4xf32>
    %c0_84 = arith.constant 0 : index
    %c2_85 = arith.constant 2 : index
    %c2_86 = arith.constant 2 : index
    %c0_87 = arith.constant 0 : index
    %44 = vector.load %arg1[%c0_84, %c2_85, %c2_86, %c0_87] : memref<2x18x18x4xf32, #tpu.memory_space<vmem>>, vector<2x16x16x4xf32>
    %45 = tpu.concatenate %41, %42, %43, %44 in 3 : vector<2x16x16x4xf32>, vector<2x16x16x4xf32>, vector<2x16x16x4xf32>, vector<2x16x16x4xf32> -> vector<2x16x16x16xf32>
    %c3 = arith.constant 3 : index
    %c0_88 = arith.constant 0 : index
    %c0_89 = arith.constant 0 : index
    %46 = vector.load %arg2[%c3, %c0_88, %c0_89] : memref<4x16x4xf32, #tpu.memory_space<vmem>>, vector<1x16x4xf32>
    %47 = vector.shape_cast %46 : vector<1x16x4xf32> to vector<16x4xf32>
    "tpu.trace_start"() <{level = 10 : i32, message = "bhwi,io->bhwo"}> : () -> ()
    %cst_90 = arith.constant dense<0.000000e+00> : vector<2x16x16x4xf32>
    %48 = tpu.matmul %45, %47, %cst_90 {dimension_numbers = #tpu.dot_dimension_numbers<[3], [0], [0, 1, 2], [1], [0, 0, 0, 1, 0, 2, 1, 1], [], []>} : vector<2x16x16x16xf32>, vector<16x4xf32>, vector<2x16x16x4xf32> -> vector<2x16x16x4xf32>
    "tpu.trace_stop"() : () -> ()
    %49 = vector.broadcast %1 : vector<1x1x1x4xf32> to vector<2x16x16x4xf32>
    %50 = arith.addf %48, %49 : vector<2x16x16x4xf32>
    %c0_91 = arith.constant 0 : index
    %c0_92 = arith.constant 0 : index
    %c1_93 = arith.constant 1 : index
    %c0_94 = arith.constant 0 : index
    %c4_95 = arith.constant 4 : index
    %51 = vector.load %arg4[%c0_91, %c0_92, %c1_93, %c0_94, %c4_95] : memref<2x16x2x16x8xf32, #tpu.memory_space<vmem>>, vector<2x16x1x16x4xf32>
    %52 = vector.shape_cast %51 : vector<2x16x1x16x4xf32> to vector<2x16x16x4xf32>
    %53 = vector.shape_cast %50 : vector<2x16x16x4xf32> to vector<2x16x1x16x4xf32>
    tpu.vector_store %arg4[%c0_91, %c0_92, %c1_93, %c0_94, %c4_95], %53 {strides = array<i32>} : memref<2x16x2x16x8xf32, #tpu.memory_space<vmem>>, vector<2x16x1x16x4xf32>,
    return
  }
  func.func @transform_0(%arg0: i32) -> (i32, i32, i32, i32) {
    %c0_i32 = arith.constant 0 : i32
    %c0_i32_0 = arith.constant 0 : i32
    %c0_i32_1 = arith.constant 0 : i32
    %c0_i32_2 = arith.constant 0 : i32
    return %arg0, %c0_i32, %c0_i32_0, %c0_i32_1 : i32, i32, i32, i32
  }
  func.func @transform_1(%arg0: i32) -> (i32, i32, i32) {
    %c0_i32 = arith.constant 0 : i32
    %c0_i32_0 = arith.constant 0 : i32
    %c0_i32_1 = arith.constant 0 : i32
    %c0_i32_2 = arith.constant 0 : i32
    return %c0_i32, %c0_i32_0, %c0_i32_1 : i32, i32, i32
  }
  func.func @transform_2(%arg0: i32) -> (i32, i32) {
    %c0_i32 = arith.constant 0 : i32
    %c0_i32_0 = arith.constant 0 : i32
    %c0_i32_1 = arith.constant 0 : i32
    return %c0_i32, %c0_i32_0 : i32, i32
  }
  func.func @transform_3(%arg0: i32) -> (i32, i32, i32, i32, i32) {
    %c0_i32 = arith.constant 0 : i32
    %c0_i32_0 = arith.constant 0 : i32
    %c0_i32_1 = arith.constant 0 : i32
    %c0_i32_2 = arith.constant 0 : i32
    %c0_i32_3 = arith.constant 0 : i32
    return %arg0, %c0_i32, %c0_i32_0, %c0_i32_1, %c0_i32_2 : i32, i32, i32, i32, i32
  }
}

</mosaic_0001>

<llo_original>
// kernel: tpu_custom_call.1
$region0: #{tpu_custom_call.1}
  #allocation0 [shape = 'u32[]', space=smem, size = 0x4, offset = 0x4, fixed_abs, tag = 'smem constant byte address 0x4 - core index']
  #allocation1 [shape = 'u32[144,128]{1,0:T(1,128)}', space=vmem, size = 0x12000, scoped, tag = 'internal scratch']
  %s0 = inlined_call_operand.vmem [shape: f32[2,18,18,4], index: 0, kind: input, shape index: {}]
  %s1 = inlined_call_operand.vmem [shape: f32[4,16,4], index: 1, kind: input, shape index: {}]
  %s2 = inlined_call_operand.vmem [shape: f32[1,4], index: 2, kind: input, shape index: {}]
  %s3 = inlined_call_operand.vmem [shape: f32[2,16,2,16,8], index: 3, kind: output, shape index: {}]
  %s4 = sld [smem:[#allocation0]]
  $region22: #{tpu_custom_call.1} parent=0
    _
  %s6 = ssub.s32 1, %s4
  %s7 = scalar_select 0, %s6, %s4
  // Predicated region
  $region2: #{tpu_custom_call.1} parent=0 // pred_check
    _
  $region3: #{tpu_custom_call.1} parent=0 // pred_check_branch
    %9 = sbr.rel (0) target = $region5
  $region4: #{tpu_custom_call.1} parent=0 // pred_region
    _
  $region5: #{tpu_custom_call.1} parent=0 // pred_fallthru
    _
  // Predicated region
  $region6: #{tpu_custom_call.1} parent=0 // pred_check
    _
  $region7: #{tpu_custom_call.1} parent=0 // pred_check_branch
    %11 = sbr.rel (0) target = $region9
  $region8: #{tpu_custom_call.1} parent=0 // pred_region
    _
  $region9: #{tpu_custom_call.1} parent=0 // pred_fallthru
    _
  // Predicated region
  $region10: #{tpu_custom_call.1} parent=0 // pred_check
    _
  $region11: #{tpu_custom_call.1} parent=0 // pred_check_branch
    %13 = sbr.rel (0) target = $region13
  $region12: #{tpu_custom_call.1} parent=0 // pred_region
    _
  $region13: #{tpu_custom_call.1} parent=0 // pred_fallthru
    _
  %v14 = vld [vmem:[%s2] sm:$0x1]
  %v15 = vld [vmem:[%s0] sm:$0xff]
  %v16 = vld [vmem:[%s0 + $0x8] sm:$0xff]
  %v17 = vld [vmem:[%s0 + $0x18] sm:$0xff]
  %v18 = vld [vmem:[%s0 + $0x20] sm:$0xff]
  %v19 = vld [vmem:[%s0 + $0x30] sm:$0xff]
  %v20 = vld [vmem:[%s0 + $0x38] sm:$0xff]
  %v21 = vld [vmem:[%s0 + $0x48] sm:$0xff]
  %v22 = vld [vmem:[%s0 + $0x50] sm:$0xff]
  %v23 = vld [vmem:[%s0 + $0x60] sm:$0xff]
  %v24 = vld [vmem:[%s0 + $0x68] sm:$0xff]
  %v25 = vld [vmem:[%s0 + $0x78] sm:$0xff]
  %v26 = vld [vmem:[%s0 + $0x80] sm:$0xff]
  %v27 = vld [vmem:[%s0 + $0x90] sm:$0xff]
  %v28 = vld [vmem:[%s0 + $0x98] sm:$0xff]
  %v29 = vld [vmem:[%s0 + $0xa8] sm:$0xff]
  %v30 = vld [vmem:[%s0 + $0xb0] sm:$0xff]
  %v31 = vld [vmem:[%s0 + $0xc0] sm:$0xff]
  %v32 = vld [vmem:[%s0 + $0xc8] sm:$0xff]
  %v33 = vld [vmem:[%s0 + $0xd8] sm:$0xff]
  %v34 = vld [vmem:[%s0 + $0xe0] sm:$0xff]
  %v35 = vld [vmem:[%s0 + $0xf0] sm:$0xff]
  %v36 = vld [vmem:[%s0 + $0xf8] sm:$0xff]
  %v37 = vld [vmem:[%s0 + $0x108] sm:$0xff]
  %v38 = vld [vmem:[%s0 + $0x110] sm:$0xff]
  %v39 = vld [vmem:[%s0 + $0x120] sm:$0xff]
  %v40 = vld [vmem:[%s0 + $0x128] sm:$0xff]
  %v41 = vld [vmem:[%s0 + $0x138] sm:$0xff]
  %v42 = vld [vmem:[%s0 + $0x140] sm:$0xff]
  %v43 = vld [vmem:[%s0 + $0x150] sm:$0xff]
  %v44 = vld [vmem:[%s0 + $0x158] sm:$0xff]
  %v45 = vld [vmem:[%s0 + $0x168] sm:$0xff]
  %v46 = vld [vmem:[%s0 + $0x170] sm:$0xff]
  %v47 = vld [vmem:[%s0 + $0x1b0] sm:$0xff]
  %v48 = vld [vmem:[%s0 + $0x1b8] sm:$0xff]
  %v49 = vld [vmem:[%s0 + $0x1c8] sm:$0xff]
  %v50 = vld [vmem:[%s0 + $0x1d0] sm:$0xff]
  %v51 = vld [vmem:[%s0 + $0x1e0] sm:$0xff]
  %v52 = vld [vmem:[%s0 + $0x1e8] sm:$0xff]
  %v53 = vld [vmem:[%s0 + $0x1f8] sm:$0xff]
  %v54 = vld [vmem:[%s0 + $0x200] sm:$0xff]
  %v55 = vld [vmem:[%s0 + $0x210] sm:$0xff]
  %v56 = vld [vmem:[%s0 + $0x218] sm:$0xff]
  %v57 = vld [vmem:[%s0 + $0x228] sm:$0xff]
  %v58 = vld [vmem:[%s0 + $0x230] sm:$0xff]
  %v59 = vld [vmem:[%s0 + $0x240] sm:$0xff]
  %v60 = vld [vmem:[%s0 + $0x248] sm:$0xff]
  %v61 = vld [vmem:[%s0 + $0x258] sm:$0xff]
  %v62 = vld [vmem:[%s0 + $0x260] sm:$0xff]
  %v63 = vld [vmem:[%s0 + $0x270] sm:$0xff]
  %v64 = vld [vmem:[%s0 + $0x278] sm:$0xff]
  %v65 = vld [vmem:[%s0 + $0x288] sm:$0xff]
  %v66 = vld [vmem:[%s0 + $0x290] sm:$0xff]
  %v67 = vld [vmem:[%s0 + $0x2a0] sm:$0xff]
  %v68 = vld [vmem:[%s0 + $0x2a8] sm:$0xff]
  %v69 = vld [vmem:[%s0 + $0x2b8] sm:$0xff]
  %v70 = vld [vmem:[%s0 + $0x2c0] sm:$0xff]
  %v71 = vld [vmem:[%s0 + $0x2d0] sm:$0xff]
  %v72 = vld [vmem:[%s0 + $0x2d8] sm:$0xff]
  %v73 = vld [vmem:[%s0 + $0x2e8] sm:$0xff]
  %v74 = vld [vmem:[%s0 + $0x2f0] sm:$0xff]
  %v75 = vld [vmem:[%s0 + $0x300] sm:$0xff]
  %v76 = vld [vmem:[%s0 + $0x308] sm:$0xff]
  %v77 = vld [vmem:[%s0 + $0x318] sm:$0xff]
  %v78 = vld [vmem:[%s0 + $0x320] sm:$0xff]
  %v79 = vld [vmem:[%s0 + $0x1] sm:$0xff]
  %v80 = vld [vmem:[%s0 + $0x9] sm:$0xff]
  %v81 = vld [vmem:[%s0 + $0x19] sm:$0xff]
  %v82 = vld [vmem:[%s0 + $0x21] sm:$0xff]
  %v83 = vld [vmem:[%s0 + $0x31] sm:$0xff]
  %v84 = vld [vmem:[%s0 + $0x39] sm:$0xff]
  %v85 = vld [vmem:[%s0 + $0x49] sm:$0xff]
  %v86 = vld [vmem:[%s0 + $0x51] sm:$0xff]
  %v87 = vld [vmem:[%s0 + $0x61] sm:$0xff]
  %v88 = vld [vmem:[%s0 + $0x69] sm:$0xff]
  %v89 = vld [vmem:[%s0 + $0x79] sm:$0xff]
  %v90 = vld [vmem:[%s0 + $0x81] sm:$0xff]
  %v91 = vld [vmem:[%s0 + $0x91] sm:$0xff]
  %v92 = vld [vmem:[%s0 + $0x99] sm:$0xff]
  %v93 = vld [vmem:[%s0 + $0xa9] sm:$0xff]
  %v94 = vld [vmem:[%s0 + $0xb1] sm:$0xff]
  %v95 = vld [vmem:[%s0 + $0xc1] sm:$0xff]
  %v96 = vld [vmem:[%s0 + $0xc9] sm:$0xff]
  %v97 = vld [vmem:[%s0 + $0xd9] sm:$0xff]
  %v98 = vld [vmem:[%s0 + $0xe1] sm:$0xff]
  %v99 = vld [vmem:[%s0 + $0xf1] sm:$0xff]
  %v100 = vld [vmem:[%s0 + $0xf9] sm:$0xff]
  %v101 = vld [vmem:[%s0 + $0x109] sm:$0xff]
  %v102 = vld [vmem:[%s0 + $0x111] sm:$0xff]
  %v103 = vld [vmem:[%s0 + $0x121] sm:$0xff]
  %v104 = vld [vmem:[%s0 + $0x129] sm:$0xff]
  %v105 = vld [vmem:[%s0 + $0x139] sm:$0xff]
  %v106 = vld [vmem:[%s0 + $0x141] sm:$0xff]
  %v107 = vld [vmem:[%s0 + $0x151] sm:$0xff]
  %v108 = vld [vmem:[%s0 + $0x159] sm:$0xff]
  %v109 = vld [vmem:[%s0 + $0x169] sm:$0xff]
  %v110 = vld [vmem:[%s0 + $0x171] sm:$0xff]
  %v111 = vld [vmem:[%s0 + $0x1b1] sm:$0xff]
  %v112 = vld [vmem:[%s0 + $0x1b9] sm:$0xff]
  %v113 = vld [vmem:[%s0 + $0x1c9] sm:$0xff]
  %v114 = vld [vmem:[%s0 + $0x1d1] sm:$0xff]
  %v115 = vld [vmem:[%s0 + $0x1e1] sm:$0xff]
  %v116 = vld [vmem:[%s0 + $0x1e9] sm:$0xff]
  %v117 = vld [vmem:[%s0 + $0x1f9] sm:$0xff]
  %v118 = vld [vmem:[%s0 + $0x201] sm:$0xff]
  %v119 = vld [vmem:[%s0 + $0x211] sm:$0xff]
  %v120 = vld [vmem:[%s0 + $0x219] sm:$0xff]
  %v121 = vld [vmem:[%s0 + $0x229] sm:$0xff]
  %v122 = vld [vmem:[%s0 + $0x231] sm:$0xff]
  %v123 = vld [vmem:[%s0 + $0x241] sm:$0xff]
  %v124 = vld [vmem:[%s0 + $0x249] sm:$0xff]
  %v125 = vld [vmem:[%s0 + $0x259] sm:$0xff]
  %v126 = vld [vmem:[%s0 + $0x261] sm:$0xff]
  %v127 = vld [vmem:[%s0 + $0x271] sm:$0xff]
  %v128 = vld [vmem:[%s0 + $0x279] sm:$0xff]
  %v129 = vld [vmem:[%s0 + $0x289] sm:$0xff]
  %v130 = vld [vmem:[%s0 + $0x291] sm:$0xff]
  %v131 = vld [vmem:[%s0 + $0x2a1] sm:$0xff]
  %v132 = vld [vmem:[%s0 + $0x2a9] sm:$0xff]
  %v133 = vld [vmem:[%s0 + $0x2b9] sm:$0xff]
  %v134 = vld [vmem:[%s0 + $0x2c1] sm:$0xff]
  %v135 = vld [vmem:[%s0 + $0x2d1] sm:$0xff]
  %v136 = vld [vmem:[%s0 + $0x2d9] sm:$0xff]
  %v137 = vld [vmem:[%s0 + $0x2e9] sm:$0xff]
  %v138 = vld [vmem:[%s0 + $0x2f1] sm:$0xff]
  %v139 = vld [vmem:[%s0 + $0x301] sm:$0xff]
  %v140 = vld [vmem:[%s0 + $0x309] sm:$0xff]
  %v141 = vld [vmem:[%s0 + $0x319] sm:$0xff]
  %v142 = vld [vmem:[%s0 + $0x321] sm:$0xff]
  %s143 = scalar_lea.vmem %s0, 24
  %v144 = vld [vmem:[%s143] sm:$0xff]
  %v145 = vld [vmem:[%s143 + $0x8] sm:$0xff]
  %v146 = vld [vmem:[%s143 + $0x18] sm:$0xff]
  %v147 = vld [vmem:[%s143 + $0x20] sm:$0xff]
  %v148 = vld [vmem:[%s143 + $0x30] sm:$0xff]
  %v149 = vld [vmem:[%s143 + $0x38] sm:$0xff]
  %v150 = vld [vmem:[%s143 + $0x48] sm:$0xff]
  %v151 = vld [vmem:[%s143 + $0x50] sm:$0xff]
  %v152 = vld [vmem:[%s143 + $0x60] sm:$0xff]
  %v153 = vld [vmem:[%s143 + $0x68] sm:$0xff]
  %v154 = vld [vmem:[%s143 + $0x78] sm:$0xff]
  %v155 = vld [vmem:[%s143 + $0x80] sm:$0xff]
  %v156 = vld [vmem:[%s143 + $0x90] sm:$0xff]
  %v157 = vld [vmem:[%s143 + $0x98] sm:$0xff]
  %v158 = vld [vmem:[%s143 + $0xa8] sm:$0xff]
  %v159 = vld [vmem:[%s143 + $0xb0] sm:$0xff]
  %v160 = vld [vmem:[%s143 + $0xc0] sm:$0xff]
  %v161 = vld [vmem:[%s143 + $0xc8] sm:$0xff]
  %v162 = vld [vmem:[%s143 + $0xd8] sm:$0xff]
  %v163 = vld [vmem:[%s143 + $0xe0] sm:$0xff]
  %v164 = vld [vmem:[%s143 + $0xf0] sm:$0xff]
  %v165 = vld [vmem:[%s143 + $0xf8] sm:$0xff]
  %v166 = vld [vmem:[%s143 + $0x108] sm:$0xff]
  %v167 = vld [vmem:[%s143 + $0x110] sm:$0xff]
  %v168 = vld [vmem:[%s143 + $0x120] sm:$0xff]
  %v169 = vld [vmem:[%s143 + $0x128] sm:$0xff]
  %v170 = vld [vmem:[%s143 + $0x138] sm:$0xff]
  %v171 = vld [vmem:[%s143 + $0x140] sm:$0xff]
  %v172 = vld [vmem:[%s143 + $0x150] sm:$0xff]
  %v173 = vld [vmem:[%s143 + $0x158] sm:$0xff]
  %v174 = vld [vmem:[%s143 + $0x168] sm:$0xff]
  %v175 = vld [vmem:[%s143 + $0x170] sm:$0xff]
  %v176 = vld [vmem:[%s143 + $0x1b0] sm:$0xff]
  %v177 = vld [vmem:[%s143 + $0x1b8] sm:$0xff]
  %v178 = vld [vmem:[%s143 + $0x1c8] sm:$0xff]
  %v179 = vld [vmem:[%s143 + $0x1d0] sm:$0xff]
  %v180 = vld [vmem:[%s143 + $0x1e0] sm:$0xff]
  %v181 = vld [vmem:[%s143 + $0x1e8] sm:$0xff]
  %v182 = vld [vmem:[%s143 + $0x1f8] sm:$0xff]
  %v183 = vld [vmem:[%s143 + $0x200] sm:$0xff]
  %v184 = vld [vmem:[%s143 + $0x210] sm:$0xff]
  %v185 = vld [vmem:[%s143 + $0x218] sm:$0xff]
  %v186 = vld [vmem:[%s143 + $0x228] sm:$0xff]
  %v187 = vld [vmem:[%s143 + $0x230] sm:$0xff]
  %v188 = vld [vmem:[%s143 + $0x240] sm:$0xff]
  %v189 = vld [vmem:[%s143 + $0x248] sm:$0xff]
  %v190 = vld [vmem:[%s143 + $0x258] sm:$0xff]
  %v191 = vld [vmem:[%s143 + $0x260] sm:$0xff]
  %v192 = vld [vmem:[%s143 + $0x270] sm:$0xff]
  %v193 = vld [vmem:[%s143 + $0x278] sm:$0xff]
  %v194 = vld [vmem:[%s143 + $0x288] sm:$0xff]
  %v195 = vld [vmem:[%s143 + $0x290] sm:$0xff]
  %v196 = vld [vmem:[%s143 + $0x2a0] sm:$0xff]
  %v197 = vld [vmem:[%s143 + $0x2a8] sm:$0xff]
  %v198 = vld [vmem:[%s143 + $0x2b8] sm:$0xff]
  %v199 = vld [vmem:[%s143 + $0x2c0] sm:$0xff]
  %v200 = vld [vmem:[%s143 + $0x2d0] sm:$0xff]
  %v201 = vld [vmem:[%s143 + $0x2d8] sm:$0xff]
  %v202 = vld [vmem:[%s143 + $0x2e8] sm:$0xff]
  %v203 = vld [vmem:[%s143 + $0x2f0] sm:$0xff]
  %v204 = vld [vmem:[%s143 + $0x300] sm:$0xff]
  %v205 = vld [vmem:[%s143 + $0x308] sm:$0xff]
  %v206 = vld [vmem:[%s143 + $0x318] sm:$0xff]
  %v207 = vld [vmem:[%s143 + $0x320] sm:$0xff]
  %v208 = vld [vmem:[%s143 + $0x1] sm:$0xff]
  %v209 = vld [vmem:[%s143 + $0x9] sm:$0xff]
  %v210 = vld [vmem:[%s143 + $0x19] sm:$0xff]
  %v211 = vld [vmem:[%s143 + $0x21] sm:$0xff]
  %v212 = vld [vmem:[%s143 + $0x31] sm:$0xff]
  %v213 = vld [vmem:[%s143 + $0x39] sm:$0xff]
  %v214 = vld [vmem:[%s143 + $0x49] sm:$0xff]
  %v215 = vld [vmem:[%s143 + $0x51] sm:$0xff]
  %v216 = vld [vmem:[%s143 + $0x61] sm:$0xff]
  %v217 = vld [vmem:[%s143 + $0x69] sm:$0xff]
  %v218 = vld [vmem:[%s143 + $0x79] sm:$0xff]
  %v219 = vld [vmem:[%s143 + $0x81] sm:$0xff]
  %v220 = vld [vmem:[%s143 + $0x91] sm:$0xff]
  %v221 = vld [vmem:[%s143 + $0x99] sm:$0xff]
  %v222 = vld [vmem:[%s143 + $0xa9] sm:$0xff]
  %v223 = vld [vmem:[%s143 + $0xb1] sm:$0xff]
  %v224 = vld [vmem:[%s143 + $0xc1] sm:$0xff]
  %v225 = vld [vmem:[%s143 + $0xc9] sm:$0xff]
  %v226 = vld [vmem:[%s143 + $0xd9] sm:$0xff]
  %v227 = vld [vmem:[%s143 + $0xe1] sm:$0xff]
  %v228 = vld [vmem:[%s143 + $0xf1] sm:$0xff]
  %v229 = vld [vmem:[%s143 + $0xf9] sm:$0xff]
  %v230 = vld [vmem:[%s143 + $0x109] sm:$0xff]
  %v231 = vld [vmem:[%s143 + $0x111] sm:$0xff]
  %v232 = vld [vmem:[%s143 + $0x121] sm:$0xff]
  %v233 = vld [vmem:[%s143 + $0x129] sm:$0xff]
  %v234 = vld [vmem:[%s143 + $0x139] sm:$0xff]
  %v235 = vld [vmem:[%s143 + $0x141] sm:$0xff]
  %v236 = vld [vmem:[%s143 + $0x151] sm:$0xff]
  %v237 = vld [vmem:[%s143 + $0x159] sm:$0xff]
  %v238 = vld [vmem:[%s143 + $0x169] sm:$0xff]
  %v239 = vld [vmem:[%s143 + $0x171] sm:$0xff]
  %v240 = vld [vmem:[%s143 + $0x1b1] sm:$0xff]
  %v241 = vld [vmem:[%s143 + $0x1b9] sm:$0xff]
  %v242 = vld [vmem:[%s143 + $0x1c9] sm:$0xff]
  %v243 = vld [vmem:[%s143 + $0x1d1] sm:$0xff]
  %v244 = vld [vmem:[%s143 + $0x1e1] sm:$0xff]
  %v245 = vld [vmem:[%s143 + $0x1e9] sm:$0xff]
  %v246 = vld [vmem:[%s143 + $0x1f9] sm:$0xff]
  %v247 = vld [vmem:[%s143 + $0x201] sm:$0xff]
  %v248 = vld [vmem:[%s143 + $0x211] sm:$0xff]
  %v249 = vld [vmem:[%s143 + $0x219] sm:$0xff]
  %v250 = vld [vmem:[%s143 + $0x229] sm:$0xff]
  %v251 = vld [vmem:[%s143 + $0x231] sm:$0xff]
  %v252 = vld [vmem:[%s143 + $0x241] sm:$0xff]
  %v253 = vld [vmem:[%s143 + $0x249] sm:$0xff]
  %v254 = vld [vmem:[%s143 + $0x259] sm:$0xff]
  %v255 = vld [vmem:[%s143 + $0x261] sm:$0xff]
  %v256 = vld [vmem:[%s143 + $0x271] sm:$0xff]
  %v257 = vld [vmem:[%s143 + $0x279] sm:$0xff]
  %v258 = vld [vmem:[%s143 + $0x289] sm:$0xff]
  %v259 = vld [vmem:[%s143 + $0x291] sm:$0xff]
  %v260 = vld [vmem:[%s143 + $0x2a1] sm:$0xff]
  %v261 = vld [vmem:[%s143 + $0x2a9] sm:$0xff]
  %v262 = vld [vmem:[%s143 + $0x2b9] sm:$0xff]
  %v263 = vld [vmem:[%s143 + $0x2c1] sm:$0xff]
  %v264 = vld [vmem:[%s143 + $0x2d1] sm:$0xff]
  %v265 = vld [vmem:[%s143 + $0x2d9] sm:$0xff]
  %v266 = vld [vmem:[%s143 + $0x2e9] sm:$0xff]
  %v267 = vld [vmem:[%s143 + $0x2f1] sm:$0xff]
  %v268 = vld [vmem:[%s143 + $0x301] sm:$0xff]
  %v269 = vld [vmem:[%s143 + $0x309] sm:$0xff]
  %v270 = vld [vmem:[%s143 + $0x319] sm:$0xff]
  %v271 = vld [vmem:[%s143 + $0x321] sm:$0xff]
  %336 = vrot.lane.b32.xlu0 %v79, 4
  %v337 = vpop.permute.xlu0 %336
  %338 = vrot.lane.b32.xlu0 %v80, 4
  %v339 = vpop.permute.xlu0 %338
  %340 = vrot.lane.b32.xlu0 %v81, 4
  %v341 = vpop.permute.xlu0 %340
  %342 = vrot.lane.b32.xlu0 %v82, 4
  %v343 = vpop.permute.xlu0 %342
  %344 = vrot.lane.b32.xlu0 %v83, 4
  %v345 = vpop.permute.xlu0 %344
  %346 = vrot.lane.b32.xlu0 %v84, 4
  %v347 = vpop.permute.xlu0 %346
  %348 = vrot.lane.b32.xlu0 %v85, 4
  %v349 = vpop.permute.xlu0 %348
  %350 = vrot.lane.b32.xlu0 %v86, 4
  %v351 = vpop.permute.xlu0 %350
  %352 = vrot.lane.b32.xlu0 %v87, 4
  %v353 = vpop.permute.xlu0 %352
  %354 = vrot.lane.b32.xlu0 %v88, 4
  %v355 = vpop.permute.xlu0 %354
  %356 = vrot.lane.b32.xlu0 %v89, 4
  %v357 = vpop.permute.xlu0 %356
  %358 = vrot.lane.b32.xlu0 %v90, 4
  %v359 = vpop.permute.xlu0 %358
  %360 = vrot.lane.b32.xlu0 %v91, 4
  %v361 = vpop.permute.xlu0 %360
  %362 = vrot.lane.b32.xlu0 %v92, 4
  %v363 = vpop.permute.xlu0 %362
  %364 = vrot.lane.b32.xlu0 %v93, 4
  %v365 = vpop.permute.xlu0 %364
  %366 = vrot.lane.b32.xlu0 %v94, 4
  %v367 = vpop.permute.xlu0 %366
  %368 = vrot.lane.b32.xlu0 %v95, 4
  %v369 = vpop.permute.xlu0 %368
  %370 = vrot.lane.b32.xlu0 %v96, 4
  %v371 = vpop.permute.xlu0 %370
  %372 = vrot.lane.b32.xlu0 %v97, 4
  %v373 = vpop.permute.xlu0 %372
  %374 = vrot.lane.b32.xlu0 %v98, 4
  %v375 = vpop.permute.xlu0 %374
  %376 = vrot.lane.b32.xlu0 %v99, 4
  %v377 = vpop.permute.xlu0 %376
  %378 = vrot.lane.b32.xlu0 %v100, 4
  %v379 = vpop.permute.xlu0 %378
  %380 = vrot.lane.b32.xlu0 %v101, 4
  %v381 = vpop.permute.xlu0 %380
  %382 = vrot.lane.b32.xlu0 %v102, 4
  %v383 = vpop.permute.xlu0 %382
  %384 = vrot.lane.b32.xlu0 %v103, 4
  %v385 = vpop.permute.xlu0 %384
  %386 = vrot.lane.b32.xlu0 %v104, 4
  %v387 = vpop.permute.xlu0 %386
  %388 = vrot.lane.b32.xlu0 %v105, 4
  %v389 = vpop.permute.xlu0 %388
  %390 = vrot.lane.b32.xlu0 %v106, 4
  %v391 = vpop.permute.xlu0 %390
  %392 = vrot.lane.b32.xlu0 %v107, 4
  %v393 = vpop.permute.xlu0 %392
  %394 = vrot.lane.b32.xlu0 %v108, 4
  %v395 = vpop.permute.xlu0 %394
  %396 = vrot.lane.b32.xlu0 %v109, 4
  %v397 = vpop.permute.xlu0 %396
  %398 = vrot.lane.b32.xlu0 %v110, 4
  %v399 = vpop.permute.xlu0 %398
  %400 = vrot.lane.b32.xlu0 %v111, 4
  %v401 = vpop.permute.xlu0 %400
  %402 = vrot.lane.b32.xlu0 %v112, 4
  %v403 = vpop.permute.xlu0 %402
  %404 = vrot.lane.b32.xlu0 %v113, 4
  %v405 = vpop.permute.xlu0 %404
  %406 = vrot.lane.b32.xlu0 %v114, 4
  %v407 = vpop.permute.xlu0 %406
  %408 = vrot.lane.b32.xlu0 %v115, 4
  %v409 = vpop.permute.xlu0 %408
  %410 = vrot.lane.b32.xlu0 %v116, 4
  %v411 = vpop.permute.xlu0 %410
  %412 = vrot.lane.b32.xlu0 %v117, 4
  %v413 = vpop.permute.xlu0 %412
  %414 = vrot.lane.b32.xlu0 %v118, 4
  %v415 = vpop.permute.xlu0 %414
  %416 = vrot.lane.b32.xlu0 %v119, 4
  %v417 = vpop.permute.xlu0 %416
  %418 = vrot.lane.b32.xlu0 %v120, 4
  %v419 = vpop.permute.xlu0 %418
  %420 = vrot.lane.b32.xlu0 %v121, 4
  %v421 = vpop.permute.xlu0 %420
  %422 = vrot.lane.b32.xlu0 %v122, 4
  %v423 = vpop.permute.xlu0 %422
  %424 = vrot.lane.b32.xlu0 %v123, 4
  %v425 = vpop.permute.xlu0 %424
  %426 = vrot.lane.b32.xlu0 %v124, 4
  %v427 = vpop.permute.xlu0 %426
  %428 = vrot.lane.b32.xlu0 %v125, 4
  %v429 = vpop.permute.xlu0 %428
  %430 = vrot.lane.b32.xlu0 %v126, 4
  %v431 = vpop.permute.xlu0 %430
  %432 = vrot.lane.b32.xlu0 %v127, 4
  %v433 = vpop.permute.xlu0 %432
  %434 = vrot.lane.b32.xlu0 %v128, 4
  %v435 = vpop.permute.xlu0 %434
  %436 = vrot.lane.b32.xlu0 %v129, 4
  %v437 = vpop.permute.xlu0 %436
  %438 = vrot.lane.b32.xlu0 %v130, 4
  %v439 = vpop.permute.xlu0 %438
  %440 = vrot.lane.b32.xlu0 %v131, 4
  %v441 = vpop.permute.xlu0 %440
  %442 = vrot.lane.b32.xlu0 %v132, 4
  %v443 = vpop.permute.xlu0 %442
  %444 = vrot.lane.b32.xlu0 %v133, 4
  %v445 = vpop.permute.xlu0 %444
  %446 = vrot.lane.b32.xlu0 %v134, 4
  %v447 = vpop.permute.xlu0 %446
  %448 = vrot.lane.b32.xlu0 %v135, 4
  %v449 = vpop.permute.xlu0 %448
  %450 = vrot.lane.b32.xlu0 %v136, 4
  %v451 = vpop.permute.xlu0 %450
  %452 = vrot.lane.b32.xlu0 %v137, 4
  %v453 = vpop.permute.xlu0 %452
  %454 = vrot.lane.b32.xlu0 %v138, 4
  %v455 = vpop.permute.xlu0 %454
  %456 = vrot.lane.b32.xlu0 %v139, 4
  %v457 = vpop.permute.xlu0 %456
  %458 = vrot.lane.b32.xlu0 %v140, 4
  %v459 = vpop.permute.xlu0 %458
  %460 = vrot.lane.b32.xlu0 %v141, 4
  %v461 = vpop.permute.xlu0 %460
  %462 = vrot.lane.b32.xlu0 %v142, 4
  %v463 = vpop.permute.xlu0 %462
  %592 = vrot.lane.b32.xlu0 %v144, 8
  %v593 = vpop.permute.xlu0 %592
  %594 = vrot.lane.b32.xlu0 %v145, 8
  %v595 = vpop.permute.xlu0 %594
  %596 = vrot.lane.b32.xlu0 %v146, 8
  %v597 = vpop.permute.xlu0 %596
  %598 = vrot.lane.b32.xlu0 %v147, 8
  %v599 = vpop.permute.xlu0 %598
  %600 = vrot.lane.b32.xlu0 %v148, 8
  %v601 = vpop.permute.xlu0 %600
  %602 = vrot.lane.b32.xlu0 %v149, 8
  %v603 = vpop.permute.xlu0 %602
  %604 = vrot.lane.b32.xlu0 %v150, 8
  %v605 = vpop.permute.xlu0 %604
  %606 = vrot.lane.b32.xlu0 %v151, 8
  %v607 = vpop.permute.xlu0 %606
  %608 = vrot.lane.b32.xlu0 %v152, 8
  %v609 = vpop.permute.xlu0 %608
  %610 = vrot.lane.b32.xlu0 %v153, 8
  %v611 = vpop.permute.xlu0 %610
  %612 = vrot.lane.b32.xlu0 %v154, 8
  %v613 = vpop.permute.xlu0 %612
  %614 = vrot.lane.b32.xlu0 %v155, 8
  %v615 = vpop.permute.xlu0 %614
  %616 = vrot.lane.b32.xlu0 %v156, 8
  %v617 = vpop.permute.xlu0 %616
  %618 = vrot.lane.b32.xlu0 %v157, 8
  %v619 = vpop.permute.xlu0 %618
  %620 = vrot.lane.b32.xlu0 %v158, 8
  %v621 = vpop.permute.xlu0 %620
  %622 = vrot.lane.b32.xlu0 %v159, 8
  %v623 = vpop.permute.xlu0 %622
  %624 = vrot.lane.b32.xlu0 %v160, 8
  %v625 = vpop.permute.xlu0 %624
  %626 = vrot.lane.b32.xlu0 %v161, 8
  %v627 = vpop.permute.xlu0 %626
  %628 = vrot.lane.b32.xlu0 %v162, 8
  %v629 = vpop.permute.xlu0 %628
  %630 = vrot.lane.b32.xlu0 %v163, 8
  %v631 = vpop.permute.xlu0 %630
  %632 = vrot.lane.b32.xlu0 %v164, 8
  %v633 = vpop.permute.xlu0 %632
  %634 = vrot.lane.b32.xlu0 %v165, 8
  %v635 = vpop.permute.xlu0 %634
  %636 = vrot.lane.b32.xlu0 %v166, 8
  %v637 = vpop.permute.xlu0 %636
  %638 = vrot.lane.b32.xlu0 %v167, 8
  %v639 = vpop.permute.xlu0 %638
  %640 = vrot.lane.b32.xlu0 %v168, 8
  %v641 = vpop.permute.xlu0 %640
  %642 = vrot.lane.b32.xlu0 %v169, 8
  %v643 = vpop.permute.xlu0 %642
  %644 = vrot.lane.b32.xlu0 %v170, 8
  %v645 = vpop.permute.xlu0 %644
  %646 = vrot.lane.b32.xlu0 %v171, 8
  %v647 = vpop.permute.xlu0 %646
  %648 = vrot.lane.b32.xlu0 %v172, 8
  %v649 = vpop.permute.xlu0 %648
  %650 = vrot.lane.b32.xlu0 %v173, 8
  %v651 = vpop.permute.xlu0 %650
  %652 = vrot.lane.b32.xlu0 %v174, 8
  %v653 = vpop.permute.xlu0 %652
  %654 = vrot.lane.b32.xlu0 %v175, 8
  %v655 = vpop.permute.xlu0 %654
  %656 = vrot.lane.b32.xlu0 %v176, 8
  %v657 = vpop.permute.xlu0 %656
  %658 = vrot.lane.b32.xlu0 %v177, 8
  %v659 = vpop.permute.xlu0 %658
  %660 = vrot.lane.b32.xlu0 %v178, 8
  %v661 = vpop.permute.xlu0 %660
  %662 = vrot.lane.b32.xlu0 %v179, 8
  %v663 = vpop.permute.xlu0 %662
  %664 = vrot.lane.b32.xlu0 %v180, 8
  %v665 = vpop.permute.xlu0 %664
  %666 = vrot.lane.b32.xlu0 %v181, 8
  %v667 = vpop.permute.xlu0 %666
  %668 = vrot.lane.b32.xlu0 %v182, 8
  %v669 = vpop.permute.xlu0 %668
  %670 = vrot.lane.b32.xlu0 %v183, 8
  %v671 = vpop.permute.xlu0 %670
  %672 = vrot.lane.b32.xlu0 %v184, 8
  %v673 = vpop.permute.xlu0 %672
  %674 = vrot.lane.b32.xlu0 %v185, 8
  %v675 = vpop.permute.xlu0 %674
  %676 = vrot.lane.b32.xlu0 %v186, 8
  %v677 = vpop.permute.xlu0 %676
  %678 = vrot.lane.b32.xlu0 %v187, 8
  %v679 = vpop.permute.xlu0 %678
  %680 = vrot.lane.b32.xlu0 %v188, 8
  %v681 = vpop.permute.xlu0 %680
  %682 = vrot.lane.b32.xlu0 %v189, 8
  %v683 = vpop.permute.xlu0 %682
  %684 = vrot.lane.b32.xlu0 %v190, 8
  %v685 = vpop.permute.xlu0 %684
  %686 = vrot.lane.b32.xlu0 %v191, 8
  %v687 = vpop.permute.xlu0 %686
  %688 = vrot.lane.b32.xlu0 %v192, 8
  %v689 = vpop.permute.xlu0 %688
  %690 = vrot.lane.b32.xlu0 %v193, 8
  %v691 = vpop.permute.xlu0 %690
  %692 = vrot.lane.b32.xlu0 %v194, 8
  %v693 = vpop.permute.xlu0 %692
  %694 = vrot.lane.b32.xlu0 %v195, 8
  %v695 = vpop.permute.xlu0 %694
  %696 = vrot.lane.b32.xlu0 %v196, 8
  %v697 = vpop.permute.xlu0 %696
  %698 = vrot.lane.b32.xlu0 %v197, 8
  %v699 = vpop.permute.xlu0 %698
  %700 = vrot.lane.b32.xlu0 %v198, 8
  %v701 = vpop.permute.xlu0 %700
  %702 = vrot.lane.b32.xlu0 %v199, 8
  %v703 = vpop.permute.xlu0 %702
  %704 = vrot.lane.b32.xlu0 %v200, 8
  %v705 = vpop.permute.xlu0 %704
  %706 = vrot.lane.b32.xlu0 %v201, 8
  %v707 = vpop.permute.xlu0 %706
  %708 = vrot.lane.b32.xlu0 %v202, 8
  %v709 = vpop.permute.xlu0 %708
  %710 = vrot.lane.b32.xlu0 %v203, 8
  %v711 = vpop.permute.xlu0 %710
  %712 = vrot.lane.b32.xlu0 %v204, 8
  %v713 = vpop.permute.xlu0 %712
  %714 = vrot.lane.b32.xlu0 %v205, 8
  %v715 = vpop.permute.xlu0 %714
  %716 = vrot.lane.b32.xlu0 %v206, 8
  %v717 = vpop.permute.xlu0 %716
  %718 = vrot.lane.b32.xlu0 %v207, 8
  %v719 = vpop.permute.xlu0 %718
  %848 = vrot.lane.b32.xlu0 %v208, 12
  %v849 = vpop.permute.xlu0 %848
  %850 = vrot.lane.b32.xlu0 %v209, 12
  %v851 = vpop.permute.xlu0 %850
  %852 = vrot.lane.b32.xlu0 %v210, 12
  %v853 = vpop.permute.xlu0 %852
  %854 = vrot.lane.b32.xlu0 %v211, 12
  %v855 = vpop.permute.xlu0 %854
  %856 = vrot.lane.b32.xlu0 %v212, 12
  %v857 = vpop.permute.xlu0 %856
  %858 = vrot.lane.b32.xlu0 %v213, 12
  %v859 = vpop.permute.xlu0 %858
  %860 = vrot.lane.b32.xlu0 %v214, 12
  %v861 = vpop.permute.xlu0 %860
  %862 = vrot.lane.b32.xlu0 %v215, 12
  %v863 = vpop.permute.xlu0 %862
  %864 = vrot.lane.b32.xlu0 %v216, 12
  %v865 = vpop.permute.xlu0 %864
  %866 = vrot.lane.b32.xlu0 %v217, 12
  %v867 = vpop.permute.xlu0 %866
  %868 = vrot.lane.b32.xlu0 %v218, 12
  %v869 = vpop.permute.xlu0 %868
  %870 = vrot.lane.b32.xlu0 %v219, 12
  %v871 = vpop.permute.xlu0 %870
  %872 = vrot.lane.b32.xlu0 %v220, 12
  %v873 = vpop.permute.xlu0 %872
  %874 = vrot.lane.b32.xlu0 %v221, 12
  %v875 = vpop.permute.xlu0 %874
  %876 = vrot.lane.b32.xlu0 %v222, 12
  %v877 = vpop.permute.xlu0 %876
  %878 = vrot.lane.b32.xlu0 %v223, 12
  %v879 = vpop.permute.xlu0 %878
  %880 = vrot.lane.b32.xlu0 %v224, 12
  %v881 = vpop.permute.xlu0 %880
  %882 = vrot.lane.b32.xlu0 %v225, 12
  %v883 = vpop.permute.xlu0 %882
  %884 = vrot.lane.b32.xlu0 %v226, 12
  %v885 = vpop.permute.xlu0 %884
  %886 = vrot.lane.b32.xlu0 %v227, 12
  %v887 = vpop.permute.xlu0 %886
  %888 = vrot.lane.b32.xlu0 %v228, 12
  %v889 = vpop.permute.xlu0 %888
  %890 = vrot.lane.b32.xlu0 %v229, 12
  %v891 = vpop.permute.xlu0 %890
  %892 = vrot.lane.b32.xlu0 %v230, 12
  %v893 = vpop.permute.xlu0 %892
  %894 = vrot.lane.b32.xlu0 %v231, 12
  %v895 = vpop.permute.xlu0 %894
  %896 = vrot.lane.b32.xlu0 %v232, 12
  %v897 = vpop.permute.xlu0 %896
  %898 = vrot.lane.b32.xlu0 %v233, 12
  %v899 = vpop.permute.xlu0 %898
  %900 = vrot.lane.b32.xlu0 %v234, 12
  %v901 = vpop.permute.xlu0 %900
  %902 = vrot.lane.b32.xlu0 %v235, 12
  %v903 = vpop.permute.xlu0 %902
  %904 = vrot.lane.b32.xlu0 %v236, 12
  %v905 = vpop.permute.xlu0 %904
  %906 = vrot.lane.b32.xlu0 %v237, 12
  %v907 = vpop.permute.xlu0 %906
  %908 = vrot.lane.b32.xlu0 %v238, 12
  %v909 = vpop.permute.xlu0 %908
  %910 = vrot.lane.b32.xlu0 %v239, 12
  %v911 = vpop.permute.xlu0 %910
  %912 = vrot.lane.b32.xlu0 %v240, 12
  %v913 = vpop.permute.xlu0 %912
  %914 = vrot.lane.b32.xlu0 %v241, 12
  %v915 = vpop.permute.xlu0 %914
  %916 = vrot.lane.b32.xlu0 %v242, 12
  %v917 = vpop.permute.xlu0 %916
  %918 = vrot.lane.b32.xlu0 %v243, 12
  %v919 = vpop.permute.xlu0 %918
  %920 = vrot.lane.b32.xlu0 %v244, 12
  %v921 = vpop.permute.xlu0 %920
  %922 = vrot.lane.b32.xlu0 %v245, 12
  %v923 = vpop.permute.xlu0 %922
  %924 = vrot.lane.b32.xlu0 %v246, 12
  %v925 = vpop.permute.xlu0 %924
  %926 = vrot.lane.b32.xlu0 %v247, 12
  %v927 = vpop.permute.xlu0 %926
  %928 = vrot.lane.b32.xlu0 %v248, 12
  %v929 = vpop.permute.xlu0 %928
  %930 = vrot.lane.b32.xlu0 %v249, 12
  %v931 = vpop.permute.xlu0 %930
  %932 = vrot.lane.b32.xlu0 %v250, 12
  %v933 = vpop.permute.xlu0 %932
  %934 = vrot.lane.b32.xlu0 %v251, 12
  %v935 = vpop.permute.xlu0 %934
  %936 = vrot.lane.b32.xlu0 %v252, 12
  %v937 = vpop.permute.xlu0 %936
  %938 = vrot.lane.b32.xlu0 %v253, 12
  %v939 = vpop.permute.xlu0 %938
  %940 = vrot.lane.b32.xlu0 %v254, 12
  %v941 = vpop.permute.xlu0 %940
  %942 = vrot.lane.b32.xlu0 %v255, 12
  %v943 = vpop.permute.xlu0 %942
  %944 = vrot.lane.b32.xlu0 %v256, 12
  %v945 = vpop.permute.xlu0 %944
  %946 = vrot.lane.b32.xlu0 %v257, 12
  %v947 = vpop.permute.xlu0 %946
  %948 = vrot.lane.b32.xlu0 %v258, 12
  %v949 = vpop.permute.xlu0 %948
  %950 = vrot.lane.b32.xlu0 %v259, 12
  %v951 = vpop.permute.xlu0 %950
  %952 = vrot.lane.b32.xlu0 %v260, 12
  %v953 = vpop.permute.xlu0 %952
  %954 = vrot.lane.b32.xlu0 %v261, 12
  %v955 = vpop.permute.xlu0 %954
  %956 = vrot.lane.b32.xlu0 %v262, 12
  %v957 = vpop.permute.xlu0 %956
  %958 = vrot.lane.b32.xlu0 %v263, 12
  %v959 = vpop.permute.xlu0 %958
  %960 = vrot.lane.b32.xlu0 %v264, 12
  %v961 = vpop.permute.xlu0 %960
  %962 = vrot.lane.b32.xlu0 %v265, 12
  %v963 = vpop.permute.xlu0 %962
  %964 = vrot.lane.b32.xlu0 %v266, 12
  %v965 = vpop.permute.xlu0 %964
  %966 = vrot.lane.b32.xlu0 %v267, 12
  %v967 = vpop.permute.xlu0 %966
  %968 = vrot.lane.b32.xlu0 %v268, 12
  %v969 = vpop.permute.xlu0 %968
  %970 = vrot.lane.b32.xlu0 %v269, 12
  %v971 = vpop.permute.xlu0 %970
  %972 = vrot.lane.b32.xlu0 %v270, 12
  %v973 = vpop.permute.xlu0 %972
  %974 = vrot.lane.b32.xlu0 %v271, 12
  %v975 = vpop.permute.xlu0 %974
  %vm1040 = vcmask 31744
  %v1041 = vsel %vm1040, %v15, %v337
  %v1042 = vsel %vm1040, %v16, %v339
  %v1043 = vsel %vm1040, %v17, %v341
  %v1044 = vsel %vm1040, %v18, %v343
  %v1045 = vsel %vm1040, %v19, %v345
  %v1046 = vsel %vm1040, %v20, %v347
  %v1047 = vsel %vm1040, %v21, %v349
  %v1048 = vsel %vm1040, %v22, %v351
  %v1049 = vsel %vm1040, %v23, %v353
  %v1050 = vsel %vm1040, %v24, %v355
  %v1051 = vsel %vm1040, %v25, %v357
  %v1052 = vsel %vm1040, %v26, %v359
  %v1053 = vsel %vm1040, %v27, %v361
  %v1054 = vsel %vm1040, %v28, %v363
  %v1055 = vsel %vm1040, %v29, %v365
  %v1056 = vsel %vm1040, %v30, %v367
  %v1057 = vsel %vm1040, %v31, %v369
  %v1058 = vsel %vm1040, %v32, %v371
  %v1059 = vsel %vm1040, %v33, %v373
  %v1060 = vsel %vm1040, %v34, %v375
  %v1061 = vsel %vm1040, %v35, %v377
  %v1062 = vsel %vm1040, %v36, %v379
  %v1063 = vsel %vm1040, %v37, %v381
  %v1064 = vsel %vm1040, %v38, %v383
  %v1065 = vsel %vm1040, %v39, %v385
  %v1066 = vsel %vm1040, %v40, %v387
  %v1067 = vsel %vm1040, %v41, %v389
  %v1068 = vsel %vm1040, %v42, %v391
  %v1069 = vsel %vm1040, %v43, %v393
  %v1070 = vsel %vm1040, %v44, %v395
  %v1071 = vsel %vm1040, %v45, %v397
  %v1072 = vsel %vm1040, %v46, %v399
  %v1073 = vsel %vm1040, %v47, %v401
  %v1074 = vsel %vm1040, %v48, %v403
  %v1075 = vsel %vm1040, %v49, %v405
  %v1076 = vsel %vm1040, %v50, %v407
  %v1077 = vsel %vm1040, %v51, %v409
  %v1078 = vsel %vm1040, %v52, %v411
  %v1079 = vsel %vm1040, %v53, %v413
  %v1080 = vsel %vm1040, %v54, %v415
  %v1081 = vsel %vm1040, %v55, %v417
  %v1082 = vsel %vm1040, %v56, %v419
  %v1083 = vsel %vm1040, %v57, %v421
  %v1084 = vsel %vm1040, %v58, %v423
  %v1085 = vsel %vm1040, %v59, %v425
  %v1086 = vsel %vm1040, %v60, %v427
  %v1087 = vsel %vm1040, %v61, %v429
  %v1088 = vsel %vm1040, %v62, %v431
  %v1089 = vsel %vm1040, %v63, %v433
  %v1090 = vsel %vm1040, %v64, %v435
  %v1091 = vsel %vm1040, %v65, %v437
  %v1092 = vsel %vm1040, %v66, %v439
  %v1093 = vsel %vm1040, %v67, %v441
  %v1094 = vsel %vm1040, %v68, %v443
  %v1095 = vsel %vm1040, %v69, %v445
  %v1096 = vsel %vm1040, %v70, %v447
  %v1097 = vsel %vm1040, %v71, %v449
  %v1098 = vsel %vm1040, %v72, %v451
  %v1099 = vsel %vm1040, %v73, %v453
  %v1100 = vsel %vm1040, %v74, %v455
  %v1101 = vsel %vm1040, %v75, %v457
  %v1102 = vsel %vm1040, %v76, %v459
  %v1103 = vsel %vm1040, %v77, %v461
  %v1104 = vsel %vm1040, %v78, %v463
  %vm1105 = vcmask 64512
  %v1106 = vsel %vm1105, %v1041, %v593
  %v1107 = vsel %vm1105, %v1042, %v595
  %v1108 = vsel %vm1105, %v1043, %v597
  %v1109 = vsel %vm1105, %v1044, %v599
  %v1110 = vsel %vm1105, %v1045, %v601
  %v1111 = vsel %vm1105, %v1046, %v603
  %v1112 = vsel %vm1105, %v1047, %v605
  %v1113 = vsel %vm1105, %v1048, %v607
  %v1114 = vsel %vm1105, %v1049, %v609
  %v1115 = vsel %vm1105, %v1050, %v611
  %v1116 = vsel %vm1105, %v1051, %v613
  %v1117 = vsel %vm1105, %v1052, %v615
  %v1118 = vsel %vm1105, %v1053, %v617
  %v1119 = vsel %vm1105, %v1054, %v619
  %v1120 = vsel %vm1105, %v1055, %v621
  %v1121 = vsel %vm1105, %v1056, %v623
  %v1122 = vsel %vm1105, %v1057, %v625
  %v1123 = vsel %vm1105, %v1058, %v627
  %v1124 = vsel %vm1105, %v1059, %v629
  %v1125 = vsel %vm1105, %v1060, %v631
  %v1126 = vsel %vm1105, %v1061, %v633
  %v1127 = vsel %vm1105, %v1062, %v635
  %v1128 = vsel %vm1105, %v1063, %v637
  %v1129 = vsel %vm1105, %v1064, %v639
  %v1130 = vsel %vm1105, %v1065, %v641
  %v1131 = vsel %vm1105, %v1066, %v643
  %v1132 = vsel %vm1105, %v1067, %v645
  %v1133 = vsel %vm1105, %v1068, %v647
  %v1134 = vsel %vm1105, %v1069, %v649
  %v1135 = vsel %vm1105, %v1070, %v651
  %v1136 = vsel %vm1105, %v1071, %v653
  %v1137 = vsel %vm1105, %v1072, %v655
  %v1138 = vsel %vm1105, %v1073, %v657
  %v1139 = vsel %vm1105, %v1074, %v659
  %v1140 = vsel %vm1105, %v1075, %v661
  %v1141 = vsel %vm1105, %v1076, %v663
  %v1142 = vsel %vm1105, %v1077, %v665
  %v1143 = vsel %vm1105, %v1078, %v667
  %v1144 = vsel %vm1105, %v1079, %v669
  %v1145 = vsel %vm1105, %v1080, %v671
  %v1146 = vsel %vm1105, %v1081, %v673
  %v1147 = vsel %vm1105, %v1082, %v675
  %v1148 = vsel %vm1105, %v1083, %v677
  %v1149 = vsel %vm1105, %v1084, %v679
  %v1150 = vsel %vm1105, %v1085, %v681
  %v1151 = vsel %vm1105, %v1086, %v683
  %v1152 = vsel %vm1105, %v1087, %v685
  %v1153 = vsel %vm1105, %v1088, %v687
  %v1154 = vsel %vm1105, %v1089, %v689
  %v1155 = vsel %vm1105, %v1090, %v691
  %v1156 = vsel %vm1105, %v1091, %v693
  %v1157 = vsel %vm1105, %v1092, %v695
  %v1158 = vsel %vm1105, %v1093, %v697
  %v1159 = vsel %vm1105, %v1094, %v699
  %v1160 = vsel %vm1105, %v1095, %v701
  %v1161 = vsel %vm1105, %v1096, %v703
  %v1162 = vsel %vm1105, %v1097, %v705
  %v1163 = vsel %vm1105, %v1098, %v707
  %v1164 = vsel %vm1105, %v1099, %v709
  %v1165 = vsel %vm1105, %v1100, %v711
  %v1166 = vsel %vm1105, %v1101, %v713
  %v1167 = vsel %vm1105, %v1102, %v715
  %v1168 = vsel %vm1105, %v1103, %v717
  %v1169 = vsel %vm1105, %v1104, %v719
  %vm1170 = vcmask 97280
  %v1171 = vsel %vm1170, %v1106, %v849
  %v1172 = vsel %vm1170, %v1107, %v851
  %v1173 = vsel %vm1170, %v1108, %v853
  %v1174 = vsel %vm1170, %v1109, %v855
  %v1175 = vsel %vm1170, %v1110, %v857
  %v1176 = vsel %vm1170, %v1111, %v859
  %v1177 = vsel %vm1170, %v1112, %v861
  %v1178 = vsel %vm1170, %v1113, %v863
  %v1179 = vsel %vm1170, %v1114, %v865
  %v1180 = vsel %vm1170, %v1115, %v867
  %v1181 = vsel %vm1170, %v1116, %v869
  %v1182 = vsel %vm1170, %v1117, %v871
  %v1183 = vsel %vm1170, %v1118, %v873
  %v1184 = vsel %vm1170, %v1119, %v875
  %v1185 = vsel %vm1170, %v1120, %v877
  %v1186 = vsel %vm1170, %v1121, %v879
  %v1187 = vsel %vm1170, %v1122, %v881
  %v1188 = vsel %vm1170, %v1123, %v883
  %v1189 = vsel %vm1170, %v1124, %v885
  %v1190 = vsel %vm1170, %v1125, %v887
  %v1191 = vsel %vm1170, %v1126, %v889
  %v1192 = vsel %vm1170, %v1127, %v891
  %v1193 = vsel %vm1170, %v1128, %v893
  %v1194 = vsel %vm1170, %v1129, %v895
  %v1195 = vsel %vm1170, %v1130, %v897
  %v1196 = vsel %vm1170, %v1131, %v899
  %v1197 = vsel %vm1170, %v1132, %v901
  %v1198 = vsel %vm1170, %v1133, %v903
  %v1199 = vsel %vm1170, %v1134, %v905
  %v1200 = vsel %vm1170, %v1135, %v907
  %v1201 = vsel %vm1170, %v1136, %v909
  %v1202 = vsel %vm1170, %v1137, %v911
  %v1203 = vsel %vm1170, %v1138, %v913
  %v1204 = vsel %vm1170, %v1139, %v915
  %v1205 = vsel %vm1170, %v1140, %v917
  %v1206 = vsel %vm1170, %v1141, %v919
  %v1207 = vsel %vm1170, %v1142, %v921
  %v1208 = vsel %vm1170, %v1143, %v923
  %v1209 = vsel %vm1170, %v1144, %v925
  %v1210 = vsel %vm1170, %v1145, %v927
  %v1211 = vsel %vm1170, %v1146, %v929
  %v1212 = vsel %vm1170, %v1147, %v931
  %v1213 = vsel %vm1170, %v1148, %v933
  %v1214 = vsel %vm1170, %v1149, %v935
  %v1215 = vsel %vm1170, %v1150, %v937
  %v1216 = vsel %vm1170, %v1151, %v939
  %v1217 = vsel %vm1170, %v1152, %v941
  %v1218 = vsel %vm1170, %v1153, %v943
  %v1219 = vsel %vm1170, %v1154, %v945
  %v1220 = vsel %vm1170, %v1155, %v947
  %v1221 = vsel %vm1170, %v1156, %v949
  %v1222 = vsel %vm1170, %v1157, %v951
  %v1223 = vsel %vm1170, %v1158, %v953
  %v1224 = vsel %vm1170, %v1159, %v955
  %v1225 = vsel %vm1170, %v1160, %v957
  %v1226 = vsel %vm1170, %v1161, %v959
  %v1227 = vsel %vm1170, %v1162, %v961
  %v1228 = vsel %vm1170, %v1163, %v963
  %v1229 = vsel %vm1170, %v1164, %v965
  %v1230 = vsel %vm1170, %v1165, %v967
  %v1231 = vsel %vm1170, %v1166, %v969
  %v1232 = vsel %vm1170, %v1167, %v971
  %v1233 = vsel %vm1170, %v1168, %v973
  %v1234 = vsel %vm1170, %v1169, %v975
  %v1235 = vld [vmem:[%s1] sm:$0xff]
  %v1236 = vld [vmem:[%s1 + $0x8] sm:$0xff]
  %v1238 = vlaneseq
  %v1239 = vshrl.u32 %v1238, 7
  %v1240 = vsub.s32 0, %v1239
  %v1241 = vrot.slane %v14, %v1240
  %vm1243 = vcmask 130048
  %v1245 = vsel %vm1243, %v1171, 0
  %v1248 = vsel %vm1243, %v1172, 0
  %v1251 = vsel %vm1243, %v1173, 0
  %v1254 = vsel %vm1243, %v1174, 0
  %v1257 = vsel %vm1243, %v1175, 0
  %v1260 = vsel %vm1243, %v1176, 0
  %v1263 = vsel %vm1243, %v1177, 0
  %v1266 = vsel %vm1243, %v1178, 0
  %v1269 = vsel %vm1243, %v1179, 0
  %v1272 = vsel %vm1243, %v1180, 0
  %v1275 = vsel %vm1243, %v1181, 0
  %v1278 = vsel %vm1243, %v1182, 0
  %v1281 = vsel %vm1243, %v1183, 0
  %v1284 = vsel %vm1243, %v1184, 0
  %v1287 = vsel %vm1243, %v1185, 0
  %v1290 = vsel %vm1243, %v1186, 0
  %v1293 = vsel %vm1243, %v1187, 0
  %v1296 = vsel %vm1243, %v1188, 0
  %v1299 = vsel %vm1243, %v1189, 0
  %v1302 = vsel %vm1243, %v1190, 0
  %v1305 = vsel %vm1243, %v1191, 0
  %v1308 = vsel %vm1243, %v1192, 0
  %v1311 = vsel %vm1243, %v1193, 0
  %v1314 = vsel %vm1243, %v1194, 0
  %v1317 = vsel %vm1243, %v1195, 0
  %v1320 = vsel %vm1243, %v1196, 0
  %v1323 = vsel %vm1243, %v1197, 0
  %v1326 = vsel %vm1243, %v1198, 0
  %v1329 = vsel %vm1243, %v1199, 0
  %v1332 = vsel %vm1243, %v1200, 0
  %v1335 = vsel %vm1243, %v1201, 0
  %v1338 = vsel %vm1243, %v1202, 0
  %v1341 = vsel %vm1243, %v1203, 0
  %v1344 = vsel %vm1243, %v1204, 0
  %v1347 = vsel %vm1243, %v1205, 0
  %v1350 = vsel %vm1243, %v1206, 0
  %v1353 = vsel %vm1243, %v1207, 0
  %v1356 = vsel %vm1243, %v1208, 0
  %v1359 = vsel %vm1243, %v1209, 0
  %v1362 = vsel %vm1243, %v1210, 0
  %v1365 = vsel %vm1243, %v1211, 0
  %v1368 = vsel %vm1243, %v1212, 0
  %v1371 = vsel %vm1243, %v1213, 0
  %v1374 = vsel %vm1243, %v1214, 0
  %v1377 = vsel %vm1243, %v1215, 0
  %v1380 = vsel %vm1243, %v1216, 0
  %v1383 = vsel %vm1243, %v1217, 0
  %v1386 = vsel %vm1243, %v1218, 0
  %v1389 = vsel %vm1243, %v1219, 0
  %v1392 = vsel %vm1243, %v1220, 0
  %v1395 = vsel %vm1243, %v1221, 0
  %v1398 = vsel %vm1243, %v1222, 0
  %v1401 = vsel %vm1243, %v1223, 0
  %v1404 = vsel %vm1243, %v1224, 0
  %v1407 = vsel %vm1243, %v1225, 0
  %v1410 = vsel %vm1243, %v1226, 0
  %v1413 = vsel %vm1243, %v1227, 0
  %v1416 = vsel %vm1243, %v1228, 0
  %v1419 = vsel %vm1243, %v1229, 0
  %v1422 = vsel %vm1243, %v1230, 0
  %v1425 = vsel %vm1243, %v1231, 0
  %v1428 = vsel %vm1243, %v1232, 0
  %v1431 = vsel %vm1243, %v1233, 0
  %v1434 = vsel %vm1243, %v1234, 0
  %1436 = vmatprep.subr.mxu0 0.0
  %1437 = vmatpush1.msra.mxu0 %v1235
  %1438 = vmatprep.subr.mxu0 0.0
  %1439 = vmatpush1.msra.mxu0 %v1236
  %1440 = vmatprep.subr.mxu0 0.0
  %1441 = vmatpush1.msra.mxu0 0.0
  %1442 = vmatprep.subr.mxu0 0.0
  %1443 = vmatpush1.msra.mxu0 0.0
  %1444 = vmatprep.subr.mxu0 0.0
  %1445 = vmatpush1.msra.mxu0 0.0
  %1446 = vmatprep.subr.mxu0 0.0
  %1447 = vmatpush1.msra.mxu0 0.0
  %1448 = vmatprep.subr.mxu0 0.0
  %1449 = vmatpush1.msra.mxu0 0.0
  %1450 = vmatprep.subr.mxu0 0.0
  %1451 = vmatpush1.msra.mxu0 0.0
  %1452 = vmatprep.subr.mxu0 0.0
  %1453 = vmatpush1.msra.mxu0 0.0
  %1454 = vmatprep.subr.mxu0 0.0
  %1455 = vmatpush1.msra.mxu0 0.0
  %1456 = vmatprep.subr.mxu0 0.0
  %1457 = vmatpush1.msra.mxu0 0.0
  %1458 = vmatprep.subr.mxu0 0.0
  %1459 = vmatpush1.msra.mxu0 0.0
  %1460 = vmatprep.subr.mxu0 0.0
  %1461 = vmatpush1.msra.mxu0 0.0
  %1462 = vmatprep.subr.mxu0 0.0
  %1463 = vmatpush1.msra.mxu0 0.0
  %1464 = vmatprep.subr.mxu0 0.0
  %1465 = vmatpush1.msra.mxu0 0.0
  %1466 = vmatprep.subr.mxu0 0.0
  %1467 = vmatpush1.msra.mxu0 0.0
  %1468 = vmatprep.subr.mxu0 0.0
  %1469 = vmatpush1.msra.mxu0 0.0
  %1470 = vmatprep.subr.mxu0 0.0
  %1471 = vmatpush1.msra.mxu0 0.0
  %1472 = vmatprep.subr.mxu0 0.0
  %1473 = vmatpush1.msra.mxu0 0.0
  %1474 = vmatprep.subr.mxu0 0.0
  %1475 = vmatpush1.msra.mxu0 0.0
  %1476 = vmatprep.subr.mxu0 0.0
  %1477 = vmatpush1.msra.mxu0 0.0
  %1478 = vmatprep.subr.mxu0 0.0
  %1479 = vmatpush1.msra.mxu0 0.0
  %1480 = vmatprep.subr.mxu0 0.0
  %1481 = vmatpush1.msra.mxu0 0.0
  %1482 = vmatprep.subr.mxu0 0.0
  %1483 = vmatpush1.msra.mxu0 0.0
  %1484 = vmatprep.subr.mxu0 0.0
  %1485 = vmatpush1.msra.mxu0 0.0
  %1486 = vmatprep.subr.mxu0 0.0
  %1487 = vmatpush1.msra.mxu0 0.0
  %1488 = vmatprep.subr.mxu0 0.0
  %1489 = vmatpush1.msra.mxu0 0.0
  %1490 = vmatprep.subr.mxu0 0.0
  %1491 = vmatpush1.msra.mxu0 0.0
  %1492 = vmatprep.subr.mxu0 0.0
  %1493 = vmatpush1.msra.mxu0 0.0
  %1494 = vmatprep.subr.mxu0 0.0
  %1495 = vmatpush1.msra.mxu0 0.0
  %1496 = vmatprep.subr.mxu0 0.0
  %1497 = vmatpush1.msra.mxu0 0.0
  %1498 = vmatprep.subr.mxu0 0.0
  %1499 = vmatpush1.msra.mxu0 0.0
  %1500 = vmatprep.mubr.f32.mxu0 0.0
  %1501 = vmatmul.mubr.f32.gmra.mrb[0].mxu0 %v1245
  %v1502 = vpop.f32.mrb[0].mxu0
  %v1503 = vadd.f32 %v1241, %v1502
  %v1504 = vpop.f32.mrb[0].mxu0
  %1505 = vmatprep.mubr.f32.mxu0 0.0
  %1506 = vmatmul.mubr.f32.gmra.mrb[0].mxu0 %v1248
  %v1507 = vpop.f32.mrb[0].mxu0
  %v1508 = vadd.f32 %v1241, %v1507
  %v1509 = vpop.f32.mrb[0].mxu0
  %1510 = vmatprep.mubr.f32.mxu0 0.0
  %1511 = vmatmul.mubr.f32.gmra.mrb[0].mxu0 %v1251
  %v1512 = vpop.f32.mrb[0].mxu0
  %v1513 = vadd.f32 %v1241, %v1512
  %v1514 = vpop.f32.mrb[0].mxu0
  %1515 = vmatprep.mubr.f32.mxu0 0.0
  %1516 = vmatmul.mubr.f32.gmra.mrb[0].mxu0 %v1254
  %v1517 = vpop.f32.mrb[0].mxu0
  %v1518 = vadd.f32 %v1241, %v1517
  %v1519 = vpop.f32.mrb[0].mxu0
  %1520 = vmatprep.mubr.f32.mxu0 0.0
  %1521 = vmatmul.mubr.f32.gmra.mrb[0].mxu0 %v1257
  %v1522 = vpop.f32.mrb[0].mxu0
  %v1523 = vadd.f32 %v1241, %v1522
  %v1524 = vpop.f32.mrb[0].mxu0
  %1525 = vmatprep.mubr.f32.mxu0 0.0
  %1526 = vmatmul.mubr.f32.gmra.mrb[0].mxu0 %v1260
  %v1527 = vpop.f32.mrb[0].mxu0
  %v1528 = vadd.f32 %v1241, %v1527
  %v1529 = vpop.f32.mrb[0].mxu0
  %1530 = vmatprep.mubr.f32.mxu0 0.0
  %1531 = vmatmul.mubr.f32.gmra.mrb[0].mxu0 %v1263
  %v1532 = vpop.f32.mrb[0].mxu0
  %v1533 = vadd.f32 %v1241, %v1532
  %v1534 = vpop.f32.mrb[0].mxu0
  %1535 = vmatprep.mubr.f32.mxu0 0.0
  %1536 = vmatmul.mubr.f32.gmra.mrb[0].mxu0 %v1266
  %v1537 = vpop.f32.mrb[0].mxu0
  %v1538 = vadd.f32 %v1241, %v1537
  %v1539 = vpop.f32.mrb[0].mxu0
  %1540 = vmatprep.mubr.f32.mxu0 0.0
  %1541 = vmatmul.mubr.f32.gmra.mrb[0].mxu0 %v1269
  %v1542 = vpop.f32.mrb[0].mxu0
  %v1543 = vadd.f32 %v1241, %v1542
  %v1544 = vpop.f32.mrb[0].mxu0
  %1545 = vmatprep.mubr.f32.mxu0 0.0
  %1546 = vmatmul.mubr.f32.gmra.mrb[0].mxu0 %v1272
  %v1547 = vpop.f32.mrb[0].mxu0
  %v1548 = vadd.f32 %v1241, %v1547
  %v1549 = vpop.f32.mrb[0].mxu0
  %1550 = vmatprep.mubr.f32.mxu0 0.0
  %1551 = vmatmul.mubr.f32.gmra.mrb[0].mxu0 %v1275
  %v1552 = vpop.f32.mrb[0].mxu0
  %v1553 = vadd.f32 %v1241, %v1552
  %v1554 = vpop.f32.mrb[0].mxu0
  %1555 = vmatprep.mubr.f32.mxu0 0.0
  %1556 = vmatmul.mubr.f32.gmra.mrb[0].mxu0 %v1278
  %v1557 = vpop.f32.mrb[0].mxu0
  %v1558 = vadd.f32 %v1241, %v1557
  %v1559 = vpop.f32.mrb[0].mxu0
  %1560 = vmatprep.mubr.f32.mxu0 0.0
  %1561 = vmatmul.mubr.f32.gmra.mrb[0].mxu0 %v1281
  %v1562 = vpop.f32.mrb[0].mxu0
  %v1563 = vadd.f32 %v1241, %v1562
  %v1564 = vpop.f32.mrb[0].mxu0
  %1565 = vmatprep.mubr.f32.mxu0 0.0
  %1566 = vmatmul.mubr.f32.gmra.mrb[0].mxu0 %v1284
  %v1567 = vpop.f32.mrb[0].mxu0
  %v1568 = vadd.f32 %v1241, %v1567
  %v1569 = vpop.f32.mrb[0].mxu0
  %1570 = vmatprep.mubr.f32.mxu0 0.0
  %1571 = vmatmul.mubr.f32.gmra.mrb[0].mxu0 %v1287
  %v1572 = vpop.f32.mrb[0].mxu0
  %v1573 = vadd.f32 %v1241, %v1572
  %v1574 = vpop.f32.mrb[0].mxu0
  %1575 = vmatprep.mubr.f32.mxu0 0.0
  %1576 = vmatmul.mubr.f32.gmra.mrb[0].mxu0 %v1290
  %v1577 = vpop.f32.mrb[0].mxu0
  %v1578 = vadd.f32 %v1241, %v1577
  %v1579 = vpop.f32.mrb[0].mxu0
  %1580 = vmatprep.mubr.f32.mxu0 0.0
  %1581 = vmatmul.mubr.f32.gmra.mrb[0].mxu0 %v1293
  %v1582 = vpop.f32.mrb[0].mxu0
  %v1583 = vadd.f32 %v1241, %v1582
  %v1584 = vpop.f32.mrb[0].mxu0
  %1585 = vmatprep.mubr.f32.mxu0 0.0
  %1586 = vmatmul.mubr.f32.gmra.mrb[0].mxu0 %v1296
  %v1587 = vpop.f32.mrb[0].mxu0
  %v1588 = vadd.f32 %v1241, %v1587
  %v1589 = vpop.f32.mrb[0].mxu0
  %1590 = vmatprep.mubr.f32.mxu0 0.0
  %1591 = vmatmul.mubr.f32.gmra.mrb[0].mxu0 %v1299
  %v1592 = vpop.f32.mrb[0].mxu0
  %v1593 = vadd.f32 %v1241, %v1592
  %v1594 = vpop.f32.mrb[0].mxu0
  %1595 = vmatprep.mubr.f32.mxu0 0.0
  %1596 = vmatmul.mubr.f32.gmra.mrb[0].mxu0 %v1302
  %v1597 = vpop.f32.mrb[0].mxu0
  %v1598 = vadd.f32 %v1241, %v1597
  %v1599 = vpop.f32.mrb[0].mxu0
  %1600 = vmatprep.mubr.f32.mxu0 0.0
  %1601 = vmatmul.mubr.f32.gmra.mrb[0].mxu0 %v1305
  %v1602 = vpop.f32.mrb[0].mxu0
  %v1603 = vadd.f32 %v1241, %v1602
  %v1604 = vpop.f32.mrb[0].mxu0
  %1605 = vmatprep.mubr.f32.mxu0 0.0
  %1606 = vmatmul.mubr.f32.gmra.mrb[0].mxu0 %v1308
  %v1607 = vpop.f32.mrb[0].mxu0
  %v1608 = vadd.f32 %v1241, %v1607
  %v1609 = vpop.f32.mrb[0].mxu0
  %1610 = vmatprep.mubr.f32.mxu0 0.0
  %1611 = vmatmul.mubr.f32.gmra.mrb[0].mxu0 %v1311
  %v1612 = vpop.f32.mrb[0].mxu0
  %v1613 = vadd.f32 %v1241, %v1612
  %v1614 = vpop.f32.mrb[0].mxu0
  %1615 = vmatprep.mubr.f32.mxu0 0.0
  %1616 = vmatmul.mubr.f32.gmra.mrb[0].mxu0 %v1314
  %v1617 = vpop.f32.mrb[0].mxu0
  %v1618 = vadd.f32 %v1241, %v1617
  %v1619 = vpop.f32.mrb[0].mxu0
  %1620 = vmatprep.mubr.f32.mxu0 0.0
  %1621 = vmatmul.mubr.f32.gmra.mrb[0].mxu0 %v1317
  %v1622 = vpop.f32.mrb[0].mxu0
  %v1623 = vadd.f32 %v1241, %v1622
  %v1624 = vpop.f32.mrb[0].mxu0
  %1625 = vmatprep.mubr.f32.mxu0 0.0
  %1626 = vmatmul.mubr.f32.gmra.mrb[0].mxu0 %v1320
  %v1627 = vpop.f32.mrb[0].mxu0
  %v1628 = vadd.f32 %v1241, %v1627
  %v1629 = vpop.f32.mrb[0].mxu0
  %1630 = vmatprep.mubr.f32.mxu0 0.0
  %1631 = vmatmul.mubr.f32.gmra.mrb[0].mxu0 %v1323
  %v1632 = vpop.f32.mrb[0].mxu0
  %v1633 = vadd.f32 %v1241, %v1632
  %v1634 = vpop.f32.mrb[0].mxu0
  %1635 = vmatprep.mubr.f32.mxu0 0.0
  %1636 = vmatmul.mubr.f32.gmra.mrb[0].mxu0 %v1326
  %v1637 = vpop.f32.mrb[0].mxu0
  %v1638 = vadd.f32 %v1241, %v1637
  %v1639 = vpop.f32.mrb[0].mxu0
  %1640 = vmatprep.mubr.f32.mxu0 0.0
  %1641 = vmatmul.mubr.f32.gmra.mrb[0].mxu0 %v1329
  %v1642 = vpop.f32.mrb[0].mxu0
  %v1643 = vadd.f32 %v1241, %v1642
  %v1644 = vpop.f32.mrb[0].mxu0
  %1645 = vmatprep.mubr.f32.mxu0 0.0
  %1646 = vmatmul.mubr.f32.gmra.mrb[0].mxu0 %v1332
  %v1647 = vpop.f32.mrb[0].mxu0
  %v1648 = vadd.f32 %v1241, %v1647
  %v1649 = vpop.f32.mrb[0].mxu0
  %1650 = vmatprep.mubr.f32.mxu0 0.0
  %1651 = vmatmul.mubr.f32.gmra.mrb[0].mxu0 %v1335
  %v1652 = vpop.f32.mrb[0].mxu0
  %v1653 = vadd.f32 %v1241, %v1652
  %v1654 = vpop.f32.mrb[0].mxu0
  %1655 = vmatprep.mubr.f32.mxu0 0.0
  %1656 = vmatmul.mubr.f32.gmra.mrb[0].mxu0 %v1338
  %v1657 = vpop.f32.mrb[0].mxu0
  %v1658 = vadd.f32 %v1241, %v1657
  %v1659 = vpop.f32.mrb[0].mxu0
  %1660 = vmatprep.mubr.f32.mxu0 0.0
  %1661 = vmatmul.mubr.f32.gmra.mrb[0].mxu0 %v1341
  %v1662 = vpop.f32.mrb[0].mxu0
  %v1663 = vadd.f32 %v1241, %v1662
  %v1664 = vpop.f32.mrb[0].mxu0
  %1665 = vmatprep.mubr.f32.mxu0 0.0
  %1666 = vmatmul.mubr.f32.gmra.mrb[0].mxu0 %v1344
  %v1667 = vpop.f32.mrb[0].mxu0
  %v1668 = vadd.f32 %v1241, %v1667
  %v1669 = vpop.f32.mrb[0].mxu0
  %1670 = vmatprep.mubr.f32.mxu0 0.0
  %1671 = vmatmul.mubr.f32.gmra.mrb[0].mxu0 %v1347
  %v1672 = vpop.f32.mrb[0].mxu0
  %v1673 = vadd.f32 %v1241, %v1672
  %v1674 = vpop.f32.mrb[0].mxu0
  %1675 = vmatprep.mubr.f32.mxu0 0.0
  %1676 = vmatmul.mubr.f32.gmra.mrb[0].mxu0 %v1350
  %v1677 = vpop.f32.mrb[0].mxu0
  %v1678 = vadd.f32 %v1241, %v1677
  %v1679 = vpop.f32.mrb[0].mxu0
  %1680 = vmatprep.mubr.f32.mxu0 0.0
  %1681 = vmatmul.mubr.f32.gmra.mrb[0].mxu0 %v1353
  %v1682 = vpop.f32.mrb[0].mxu0
  %v1683 = vadd.f32 %v1241, %v1682
  %v1684 = vpop.f32.mrb[0].mxu0
  %1685 = vmatprep.mubr.f32.mxu0 0.0
  %1686 = vmatmul.mubr.f32.gmra.mrb[0].mxu0 %v1356
  %v1687 = vpop.f32.mrb[0].mxu0
  %v1688 = vadd.f32 %v1241, %v1687
  %v1689 = vpop.f32.mrb[0].mxu0
  %1690 = vmatprep.mubr.f32.mxu0 0.0
  %1691 = vmatmul.mubr.f32.gmra.mrb[0].mxu0 %v1359
  %v1692 = vpop.f32.mrb[0].mxu0
  %v1693 = vadd.f32 %v1241, %v1692
  %v1694 = vpop.f32.mrb[0].mxu0
  %1695 = vmatprep.mubr.f32.mxu0 0.0
  %1696 = vmatmul.mubr.f32.gmra.mrb[0].mxu0 %v1362
  %v1697 = vpop.f32.mrb[0].mxu0
  %v1698 = vadd.f32 %v1241, %v1697
  %v1699 = vpop.f32.mrb[0].mxu0
  %1700 = vmatprep.mubr.f32.mxu0 0.0
  %1701 = vmatmul.mubr.f32.gmra.mrb[0].mxu0 %v1365
  %v1702 = vpop.f32.mrb[0].mxu0
  %v1703 = vadd.f32 %v1241, %v1702
  %v1704 = vpop.f32.mrb[0].mxu0
  %1705 = vmatprep.mubr.f32.mxu0 0.0
  %1706 = vmatmul.mubr.f32.gmra.mrb[0].mxu0 %v1368
  %v1707 = vpop.f32.mrb[0].mxu0
  %v1708 = vadd.f32 %v1241, %v1707
  %v1709 = vpop.f32.mrb[0].mxu0
  %1710 = vmatprep.mubr.f32.mxu0 0.0
  %1711 = vmatmul.mubr.f32.gmra.mrb[0].mxu0 %v1371
  %v1712 = vpop.f32.mrb[0].mxu0
  %v1713 = vadd.f32 %v1241, %v1712
  %v1714 = vpop.f32.mrb[0].mxu0
  %1715 = vmatprep.mubr.f32.mxu0 0.0
  %1716 = vmatmul.mubr.f32.gmra.mrb[0].mxu0 %v1374
  %v1717 = vpop.f32.mrb[0].mxu0
  %v1718 = vadd.f32 %v1241, %v1717
  %v1719 = vpop.f32.mrb[0].mxu0
  %1720 = vmatprep.mubr.f32.mxu0 0.0
  %1721 = vmatmul.mubr.f32.gmra.mrb[0].mxu0 %v1377
  %v1722 = vpop.f32.mrb[0].mxu0
  %v1723 = vadd.f32 %v1241, %v1722
  %v1724 = vpop.f32.mrb[0].mxu0
  %1725 = vmatprep.mubr.f32.mxu0 0.0
  %1726 = vmatmul.mubr.f32.gmra.mrb[0].mxu0 %v1380
  %v1727 = vpop.f32.mrb[0].mxu0
  %v1728 = vadd.f32 %v1241, %v1727
  %v1729 = vpop.f32.mrb[0].mxu0
  %1730 = vmatprep.mubr.f32.mxu0 0.0
  %1731 = vmatmul.mubr.f32.gmra.mrb[0].mxu0 %v1383
  %v1732 = vpop.f32.mrb[0].mxu0
  %v1733 = vadd.f32 %v1241, %v1732
  %v1734 = vpop.f32.mrb[0].mxu0
  %1735 = vmatprep.mubr.f32.mxu0 0.0
  %1736 = vmatmul.mubr.f32.gmra.mrb[0].mxu0 %v1386
  %v1737 = vpop.f32.mrb[0].mxu0
  %v1738 = vadd.f32 %v1241, %v1737
  %v1739 = vpop.f32.mrb[0].mxu0
  %1740 = vmatprep.mubr.f32.mxu0 0.0
  %1741 = vmatmul.mubr.f32.gmra.mrb[0].mxu0 %v1389
  %v1742 = vpop.f32.mrb[0].mxu0
  %v1743 = vadd.f32 %v1241, %v1742
  %v1744 = vpop.f32.mrb[0].mxu0
  %1745 = vmatprep.mubr.f32.mxu0 0.0
  %1746 = vmatmul.mubr.f32.gmra.mrb[0].mxu0 %v1392
  %v1747 = vpop.f32.mrb[0].mxu0
  %v1748 = vadd.f32 %v1241, %v1747
  %v1749 = vpop.f32.mrb[0].mxu0
  %1750 = vmatprep.mubr.f32.mxu0 0.0
  %1751 = vmatmul.mubr.f32.gmra.mrb[0].mxu0 %v1395
  %v1752 = vpop.f32.mrb[0].mxu0
  %v1753 = vadd.f32 %v1241, %v1752
  %v1754 = vpop.f32.mrb[0].mxu0
  %1755 = vmatprep.mubr.f32.mxu0 0.0
  %1756 = vmatmul.mubr.f32.gmra.mrb[0].mxu0 %v1398
  %v1757 = vpop.f32.mrb[0].mxu0
  %v1758 = vadd.f32 %v1241, %v1757
  %v1759 = vpop.f32.mrb[0].mxu0
  %1760 = vmatprep.mubr.f32.mxu0 0.0
  %1761 = vmatmul.mubr.f32.gmra.mrb[0].mxu0 %v1401
  %v1762 = vpop.f32.mrb[0].mxu0
  %v1763 = vadd.f32 %v1241, %v1762
  %v1764 = vpop.f32.mrb[0].mxu0
  %1765 = vmatprep.mubr.f32.mxu0 0.0
  %1766 = vmatmul.mubr.f32.gmra.mrb[0].mxu0 %v1404
  %v1767 = vpop.f32.mrb[0].mxu0
  %v1768 = vadd.f32 %v1241, %v1767
  %v1769 = vpop.f32.mrb[0].mxu0
  %1770 = vmatprep.mubr.f32.mxu0 0.0
  %1771 = vmatmul.mubr.f32.gmra.mrb[0].mxu0 %v1407
  %v1772 = vpop.f32.mrb[0].mxu0
  %v1773 = vadd.f32 %v1241, %v1772
  %v1774 = vpop.f32.mrb[0].mxu0
  %1775 = vmatprep.mubr.f32.mxu0 0.0
  %1776 = vmatmul.mubr.f32.gmra.mrb[0].mxu0 %v1410
  %v1777 = vpop.f32.mrb[0].mxu0
  %v1778 = vadd.f32 %v1241, %v1777
  %v1779 = vpop.f32.mrb[0].mxu0
  %1780 = vmatprep.mubr.f32.mxu0 0.0
  %1781 = vmatmul.mubr.f32.gmra.mrb[0].mxu0 %v1413
  %v1782 = vpop.f32.mrb[0].mxu0
  %v1783 = vadd.f32 %v1241, %v1782
  %v1784 = vpop.f32.mrb[0].mxu0
  %1785 = vmatprep.mubr.f32.mxu0 0.0
  %1786 = vmatmul.mubr.f32.gmra.mrb[0].mxu0 %v1416
  %v1787 = vpop.f32.mrb[0].mxu0
  %v1788 = vadd.f32 %v1241, %v1787
  %v1789 = vpop.f32.mrb[0].mxu0
  %1790 = vmatprep.mubr.f32.mxu0 0.0
  %1791 = vmatmul.mubr.f32.gmra.mrb[0].mxu0 %v1419
  %v1792 = vpop.f32.mrb[0].mxu0
  %v1793 = vadd.f32 %v1241, %v1792
  %v1794 = vpop.f32.mrb[0].mxu0
  %1795 = vmatprep.mubr.f32.mxu0 0.0
  %1796 = vmatmul.mubr.f32.gmra.mrb[0].mxu0 %v1422
  %v1797 = vpop.f32.mrb[0].mxu0
  %v1798 = vadd.f32 %v1241, %v1797
  %v1799 = vpop.f32.mrb[0].mxu0
  %1800 = vmatprep.mubr.f32.mxu0 0.0
  %1801 = vmatmul.mubr.f32.gmra.mrb[0].mxu0 %v1425
  %v1802 = vpop.f32.mrb[0].mxu0
  %v1803 = vadd.f32 %v1241, %v1802
  %v1804 = vpop.f32.mrb[0].mxu0
  %1805 = vmatprep.mubr.f32.mxu0 0.0
  %1806 = vmatmul.mubr.f32.gmra.mrb[0].mxu0 %v1428
  %v1807 = vpop.f32.mrb[0].mxu0
  %v1808 = vadd.f32 %v1241, %v1807
  %v1809 = vpop.f32.mrb[0].mxu0
  %1810 = vmatprep.mubr.f32.mxu0 0.0
  %1811 = vmatmul.mubr.f32.gmra.mrb[0].mxu0 %v1431
  %v1812 = vpop.f32.mrb[0].mxu0
  %v1813 = vadd.f32 %v1241, %v1812
  %v1814 = vpop.f32.mrb[0].mxu0
  %1815 = vmatprep.mubr.f32.mxu0 0.0
  %1816 = vmatmul.mubr.f32.gmra.mrb[0].mxu0 %v1434
  %v1817 = vpop.f32.mrb[0].mxu0
  %v1818 = vadd.f32 %v1241, %v1817
  %v1819 = vpop.f32.mrb[0].mxu0
  %1820 = vdwg.mxu0
  %1821 = vst.msk [vmem:[%s3] sm:$0xff] %vm1040, %v1503
  %1822 = vst.msk [vmem:[%s3 + $0x8] sm:$0xff] %vm1040, %v1508
  %1823 = vst.msk [vmem:[%s3 + $0x20] sm:$0xff] %vm1040, %v1513
  %1824 = vst.msk [vmem:[%s3 + $0x28] sm:$0xff] %vm1040, %v1518
  %1825 = vst.msk [vmem:[%s3 + $0x40] sm:$0xff] %vm1040, %v1523
  %1826 = vst.msk [vmem:[%s3 + $0x48] sm:$0xff] %vm1040, %v1528
  %1827 = vst.msk [vmem:[%s3 + $0x60] sm:$0xff] %vm1040, %v1533
  %1828 = vst.msk [vmem:[%s3 + $0x68] sm:$0xff] %vm1040, %v1538
  %1829 = vst.msk [vmem:[%s3 + $0x80] sm:$0xff] %vm1040, %v1543
  %1830 = vst.msk [vmem:[%s3 + $0x88] sm:$0xff] %vm1040, %v1548
  %1831 = vst.msk [vmem:[%s3 + $0xa0] sm:$0xff] %vm1040, %v1553
  %1832 = vst.msk [vmem:[%s3 + $0xa8] sm:$0xff] %vm1040, %v1558
  %1833 = vst.msk [vmem:[%s3 + $0xc0] sm:$0xff] %vm1040, %v1563
  %1834 = vst.msk [vmem:[%s3 + $0xc8] sm:$0xff] %vm1040, %v1568
  %1835 = vst.msk [vmem:[%s3 + $0xe0] sm:$0xff] %vm1040, %v1573
  %1836 = vst.msk [vmem:[%s3 + $0xe8] sm:$0xff] %vm1040, %v1578
  %1837 = vst.msk [vmem:[%s3 + $0x100] sm:$0xff] %vm1040, %v1583
  %1838 = vst.msk [vmem:[%s3 + $0x108] sm:$0xff] %vm1040, %v1588
  %1839 = vst.msk [vmem:[%s3 + $0x120] sm:$0xff] %vm1040, %v1593
  %1840 = vst.msk [vmem:[%s3 + $0x128] sm:$0xff] %vm1040, %v1598
  %1841 = vst.msk [vmem:[%s3 + $0x140] sm:$0xff] %vm1040, %v1603
  %1842 = vst.msk [vmem:[%s3 + $0x148] sm:$0xff] %vm1040, %v1608
  %1843 = vst.msk [vmem:[%s3 + $0x160] sm:$0xff] %vm1040, %v1613
  %1844 = vst.msk [vmem:[%s3 + $0x168] sm:$0xff] %vm1040, %v1618
  %1845 = vst.msk [vmem:[%s3 + $0x180] sm:$0xff] %vm1040, %v1623
  %1846 = vst.msk [vmem:[%s3 + $0x188] sm:$0xff] %vm1040, %v1628
  %1847 = vst.msk [vmem:[%s3 + $0x1a0] sm:$0xff] %vm1040, %v1633
  %1848 = vst.msk [vmem:[%s3 + $0x1a8] sm:$0xff] %vm1040, %v1638
  %1849 = vst.msk [vmem:[%s3 + $0x1c0] sm:$0xff] %vm1040, %v1643
  %1850 = vst.msk [vmem:[%s3 + $0x1c8] sm:$0xff] %vm1040, %v1648
  %1851 = vst.msk [vmem:[%s3 + $0x1e0] sm:$0xff] %vm1040, %v1653
  %1852 = vst.msk [vmem:[%s3 + $0x1e8] sm:$0xff] %vm1040, %v1658
  %1853 = vst.msk [vmem:[%s3 + $0x200] sm:$0xff] %vm1040, %v1663
  %1854 = vst.msk [vmem:[%s3 + $0x208] sm:$0xff] %vm1040, %v1668
  %1855 = vst.msk [vmem:[%s3 + $0x220] sm:$0xff] %vm1040, %v1673
  %1856 = vst.msk [vmem:[%s3 + $0x228] sm:$0xff] %vm1040, %v1678
  %1857 = vst.msk [vmem:[%s3 + $0x240] sm:$0xff] %vm1040, %v1683
  %1858 = vst.msk [vmem:[%s3 + $0x248] sm:$0xff] %vm1040, %v1688
  %1859 = vst.msk [vmem:[%s3 + $0x260] sm:$0xff] %vm1040, %v1693
  %1860 = vst.msk [vmem:[%s3 + $0x268] sm:$0xff] %vm1040, %v1698
  %1861 = vst.msk [vmem:[%s3 + $0x280] sm:$0xff] %vm1040, %v1703
  %1862 = vst.msk [vmem:[%s3 + $0x288] sm:$0xff] %vm1040, %v1708
  %1863 = vst.msk [vmem:[%s3 + $0x2a0] sm:$0xff] %vm1040, %v1713
  %1864 = vst.msk [vmem:[%s3 + $0x2a8] sm:$0xff] %vm1040, %v1718
  %1865 = vst.msk [vmem:[%s3 + $0x2c0] sm:$0xff] %vm1040, %v1723
  %1866 = vst.msk [vmem:[%s3 + $0x2c8] sm:$0xff] %vm1040, %v1728
  %1867 = vst.msk [vmem:[%s3 + $0x2e0] sm:$0xff] %vm1040, %v1733
  %1868 = vst.msk [vmem:[%s3 + $0x2e8] sm:$0xff] %vm1040, %v1738
  %1869 = vst.msk [vmem:[%s3 + $0x300] sm:$0xff] %vm1040, %v1743
  %1870 = vst.msk [vmem:[%s3 + $0x308] sm:$0xff] %vm1040, %v1748
  %1871 = vst.msk [vmem:[%s3 + $0x320] sm:$0xff] %vm1040, %v1753
  %1872 = vst.msk [vmem:[%s3 + $0x328] sm:$0xff] %vm1040, %v1758
  %1873 = vst.msk [vmem:[%s3 + $0x340] sm:$0xff] %vm1040, %v1763
  %1874 = vst.msk [vmem:[%s3 + $0x348] sm:$0xff] %vm1040, %v1768
  %1875 = vst.msk [vmem:[%s3 + $0x360] sm:$0xff] %vm1040, %v1773
  %1876 = vst.msk [vmem:[%s3 + $0x368] sm:$0xff] %vm1040, %v1778
  %1877 = vst.msk [vmem:[%s3 + $0x380] sm:$0xff] %vm1040, %v1783
  %1878 = vst.msk [vmem:[%s3 + $0x388] sm:$0xff] %vm1040, %v1788
  %1879 = vst.msk [vmem:[%s3 + $0x3a0] sm:$0xff] %vm1040, %v1793
  %1880 = vst.msk [vmem:[%s3 + $0x3a8] sm:$0xff] %vm1040, %v1798
  %1881 = vst.msk [vmem:[%s3 + $0x3c0] sm:$0xff] %vm1040, %v1803
  %1882 = vst.msk [vmem:[%s3 + $0x3c8] sm:$0xff] %vm1040, %v1808
  %1883 = vst.msk [vmem:[%s3 + $0x3e0] sm:$0xff] %vm1040, %v1813
  %1884 = vst.msk [vmem:[%s3 + $0x3e8] sm:$0xff] %vm1040, %v1818
  %v1885 = vld [vmem:[%s0 + $0x1] sm:$0xff]
  %v1886 = vld [vmem:[%s0 + $0x9] sm:$0xff]
  %v1887 = vld [vmem:[%s0 + $0x19] sm:$0xff]
  %v1888 = vld [vmem:[%s0 + $0x21] sm:$0xff]
  %v1889 = vld [vmem:[%s0 + $0x31] sm:$0xff]
  %v1890 = vld [vmem:[%s0 + $0x39] sm:$0xff]
  %v1891 = vld [vmem:[%s0 + $0x49] sm:$0xff]
  %v1892 = vld [vmem:[%s0 + $0x51] sm:$0xff]
  %v1893 = vld [vmem:[%s0 + $0x61] sm:$0xff]
  %v1894 = vld [vmem:[%s0 + $0x69] sm:$0xff]
  %v1895 = vld [vmem:[%s0 + $0x79] sm:$0xff]
  %v1896 = vld [vmem:[%s0 + $0x81] sm:$0xff]
  %v1897 = vld [vmem:[%s0 + $0x91] sm:$0xff]
  %v1898 = vld [vmem:[%s0 + $0x99] sm:$0xff]
  %v1899 = vld [vmem:[%s0 + $0xa9] sm:$0xff]
  %v1900 = vld [vmem:[%s0 + $0xb1] sm:$0xff]
  %v1901 = vld [vmem:[%s0 + $0xc1] sm:$0xff]
  %v1902 = vld [vmem:[%s0 + $0xc9] sm:$0xff]
  %v1903 = vld [vmem:[%s0 + $0xd9] sm:$0xff]
  %v1904 = vld [vmem:[%s0 + $0xe1] sm:$0xff]
  %v1905 = vld [vmem:[%s0 + $0xf1] sm:$0xff]
  %v1906 = vld [vmem:[%s0 + $0xf9] sm:$0xff]
  %v1907 = vld [vmem:[%s0 + $0x109] sm:$0xff]
  %v1908 = vld [vmem:[%s0 + $0x111] sm:$0xff]
  %v1909 = vld [vmem:[%s0 + $0x121] sm:$0xff]
  %v1910 = vld [vmem:[%s0 + $0x129] sm:$0xff]
  %v1911 = vld [vmem:[%s0 + $0x139] sm:$0xff]
  %v1912 = vld [vmem:[%s0 + $0x141] sm:$0xff]
  %v1913 = vld [vmem:[%s0 + $0x151] sm:$0xff]
  %v1914 = vld [vmem:[%s0 + $0x159] sm:$0xff]
  %v1915 = vld [vmem:[%s0 + $0x169] sm:$0xff]
  %v1916 = vld [vmem:[%s0 + $0x171] sm:$0xff]
  %v1917 = vld [vmem:[%s0 + $0x1b1] sm:$0xff]
  %v1918 = vld [vmem:[%s0 + $0x1b9] sm:$0xff]
  %v1919 = vld [vmem:[%s0 + $0x1c9] sm:$0xff]
  %v1920 = vld [vmem:[%s0 + $0x1d1] sm:$0xff]
  %v1921 = vld [vmem:[%s0 + $0x1e1] sm:$0xff]
  %v1922 = vld [vmem:[%s0 + $0x1e9] sm:$0xff]
  %v1923 = vld [vmem:[%s0 + $0x1f9] sm:$0xff]
  %v1924 = vld [vmem:[%s0 + $0x201] sm:$0xff]
  %v1925 = vld [vmem:[%s0 + $0x211] sm:$0xff]
  %v1926 = vld [vmem:[%s0 + $0x219] sm:$0xff]
  %v1927 = vld [vmem:[%s0 + $0x229] sm:$0xff]
  %v1928 = vld [vmem:[%s0 + $0x231] sm:$0xff]
  %v1929 = vld [vmem:[%s0 + $0x241] sm:$0xff]
  %v1930 = vld [vmem:[%s0 + $0x249] sm:$0xff]
  %v1931 = vld [vmem:[%s0 + $0x259] sm:$0xff]
  %v1932 = vld [vmem:[%s0 + $0x261] sm:$0xff]
  %v1933 = vld [vmem:[%s0 + $0x271] sm:$0xff]
  %v1934 = vld [vmem:[%s0 + $0x279] sm:$0xff]
  %v1935 = vld [vmem:[%s0 + $0x289] sm:$0xff]
  %v1936 = vld [vmem:[%s0 + $0x291] sm:$0xff]
  %v1937 = vld [vmem:[%s0 + $0x2a1] sm:$0xff]
  %v1938 = vld [vmem:[%s0 + $0x2a9] sm:$0xff]
  %v1939 = vld [vmem:[%s0 + $0x2b9] sm:$0xff]
  %v1940 = vld [vmem:[%s0 + $0x2c1] sm:$0xff]
  %v1941 = vld [vmem:[%s0 + $0x2d1] sm:$0xff]
  %v1942 = vld [vmem:[%s0 + $0x2d9] sm:$0xff]
  %v1943 = vld [vmem:[%s0 + $0x2e9] sm:$0xff]
  %v1944 = vld [vmem:[%s0 + $0x2f1] sm:$0xff]
  %v1945 = vld [vmem:[%s0 + $0x301] sm:$0xff]
  %v1946 = vld [vmem:[%s0 + $0x309] sm:$0xff]
  %v1947 = vld [vmem:[%s0 + $0x319] sm:$0xff]
  %v1948 = vld [vmem:[%s0 + $0x321] sm:$0xff]
  %v1949 = vld [vmem:[%s0 + $0x2] sm:$0xff]
  %v1950 = vld [vmem:[%s0 + $0xa] sm:$0xff]
  %v1951 = vld [vmem:[%s0 + $0x1a] sm:$0xff]
  %v1952 = vld [vmem:[%s0 + $0x22] sm:$0xff]
  %v1953 = vld [vmem:[%s0 + $0x32] sm:$0xff]
  %v1954 = vld [vmem:[%s0 + $0x3a] sm:$0xff]
  %v1955 = vld [vmem:[%s0 + $0x4a] sm:$0xff]
  %v1956 = vld [vmem:[%s0 + $0x52] sm:$0xff]
  %v1957 = vld [vmem:[%s0 + $0x62] sm:$0xff]
  %v1958 = vld [vmem:[%s0 + $0x6a] sm:$0xff]
  %v1959 = vld [vmem:[%s0 + $0x7a] sm:$0xff]
  %v1960 = vld [vmem:[%s0 + $0x82] sm:$0xff]
  %v1961 = vld [vmem:[%s0 + $0x92] sm:$0xff]
  %v1962 = vld [vmem:[%s0 + $0x9a] sm:$0xff]
  %v1963 = vld [vmem:[%s0 + $0xaa] sm:$0xff]
  %v1964 = vld [vmem:[%s0 + $0xb2] sm:$0xff]
  %v1965 = vld [vmem:[%s0 + $0xc2] sm:$0xff]
  %v1966 = vld [vmem:[%s0 + $0xca] sm:$0xff]
  %v1967 = vld [vmem:[%s0 + $0xda] sm:$0xff]
  %v1968 = vld [vmem:[%s0 + $0xe2] sm:$0xff]
  %v1969 = vld [vmem:[%s0 + $0xf2] sm:$0xff]
  %v1970 = vld [vmem:[%s0 + $0xfa] sm:$0xff]
  %v1971 = vld [vmem:[%s0 + $0x10a] sm:$0xff]
  %v1972 = vld [vmem:[%s0 + $0x112] sm:$0xff]
  %v1973 = vld [vmem:[%s0 + $0x122] sm:$0xff]
  %v1974 = vld [vmem:[%s0 + $0x12a] sm:$0xff]
  %v1975 = vld [vmem:[%s0 + $0x13a] sm:$0xff]
  %v1976 = vld [vmem:[%s0 + $0x142] sm:$0xff]
  %v1977 = vld [vmem:[%s0 + $0x152] sm:$0xff]
  %v1978 = vld [vmem:[%s0 + $0x15a] sm:$0xff]
  %v1979 = vld [vmem:[%s0 + $0x16a] sm:$0xff]
  %v1980 = vld [vmem:[%s0 + $0x172] sm:$0xff]
  %v1981 = vld [vmem:[%s0 + $0x1b2] sm:$0xff]
  %v1982 = vld [vmem:[%s0 + $0x1ba] sm:$0xff]
  %v1983 = vld [vmem:[%s0 + $0x1ca] sm:$0xff]
  %v1984 = vld [vmem:[%s0 + $0x1d2] sm:$0xff]
  %v1985 = vld [vmem:[%s0 + $0x1e2] sm:$0xff]
  %v1986 = vld [vmem:[%s0 + $0x1ea] sm:$0xff]
  %v1987 = vld [vmem:[%s0 + $0x1fa] sm:$0xff]
  %v1988 = vld [vmem:[%s0 + $0x202] sm:$0xff]
  %v1989 = vld [vmem:[%s0 + $0x212] sm:$0xff]
  %v1990 = vld [vmem:[%s0 + $0x21a] sm:$0xff]
  %v1991 = vld [vmem:[%s0 + $0x22a] sm:$0xff]
  %v1992 = vld [vmem:[%s0 + $0x232] sm:$0xff]
  %v1993 = vld [vmem:[%s0 + $0x242] sm:$0xff]
  %v1994 = vld [vmem:[%s0 + $0x24a] sm:$0xff]
  %v1995 = vld [vmem:[%s0 + $0x25a] sm:$0xff]
  %v1996 = vld [vmem:[%s0 + $0x262] sm:$0xff]
  %v1997 = vld [vmem:[%s0 + $0x272] sm:$0xff]
  %v1998 = vld [vmem:[%s0 + $0x27a] sm:$0xff]
  %v1999 = vld [vmem:[%s0 + $0x28a] sm:$0xff]
  %v2000 = vld [vmem:[%s0 + $0x292] sm:$0xff]
  %v2001 = vld [vmem:[%s0 + $0x2a2] sm:$0xff]
  %v2002 = vld [vmem:[%s0 + $0x2aa] sm:$0xff]
  %v2003 = vld [vmem:[%s0 + $0x2ba] sm:$0xff]
  %v2004 = vld [vmem:[%s0 + $0x2c2] sm:$0xff]
  %v2005 = vld [vmem:[%s0 + $0x2d2] sm:$0xff]
  %v2006 = vld [vmem:[%s0 + $0x2da] sm:$0xff]
  %v2007 = vld [vmem:[%s0 + $0x2ea] sm:$0xff]
  %v2008 = vld [vmem:[%s0 + $0x2f2] sm:$0xff]
  %v2009 = vld [vmem:[%s0 + $0x302] sm:$0xff]
  %v2010 = vld [vmem:[%s0 + $0x30a] sm:$0xff]
  %v2011 = vld [vmem:[%s0 + $0x31a] sm:$0xff]
  %v2012 = vld [vmem:[%s0 + $0x322] sm:$0xff]
  %v2013 = vld [vmem:[%s143 + $0x1] sm:$0xff]
  %v2014 = vld [vmem:[%s143 + $0x9] sm:$0xff]
  %v2015 = vld [vmem:[%s143 + $0x19] sm:$0xff]
  %v2016 = vld [vmem:[%s143 + $0x21] sm:$0xff]
  %v2017 = vld [vmem:[%s143 + $0x31] sm:$0xff]
  %v2018 = vld [vmem:[%s143 + $0x39] sm:$0xff]
  %v2019 = vld [vmem:[%s143 + $0x49] sm:$0xff]
  %v2020 = vld [vmem:[%s143 + $0x51] sm:$0xff]
  %v2021 = vld [vmem:[%s143 + $0x61] sm:$0xff]
  %v2022 = vld [vmem:[%s143 + $0x69] sm:$0xff]
  %v2023 = vld [vmem:[%s143 + $0x79] sm:$0xff]
  %v2024 = vld [vmem:[%s143 + $0x81] sm:$0xff]
  %v2025 = vld [vmem:[%s143 + $0x91] sm:$0xff]
  %v2026 = vld [vmem:[%s143 + $0x99] sm:$0xff]
  %v2027 = vld [vmem:[%s143 + $0xa9] sm:$0xff]
  %v2028 = vld [vmem:[%s143 + $0xb1] sm:$0xff]
  %v2029 = vld [vmem:[%s143 + $0xc1] sm:$0xff]
  %v2030 = vld [vmem:[%s143 + $0xc9] sm:$0xff]
  %v2031 = vld [vmem:[%s143 + $0xd9] sm:$0xff]
  %v2032 = vld [vmem:[%s143 + $0xe1] sm:$0xff]
  %v2033 = vld [vmem:[%s143 + $0xf1] sm:$0xff]
  %v2034 = vld [vmem:[%s143 + $0xf9] sm:$0xff]
  %v2035 = vld [vmem:[%s143 + $0x109] sm:$0xff]
  %v2036 = vld [vmem:[%s143 + $0x111] sm:$0xff]
  %v2037 = vld [vmem:[%s143 + $0x121] sm:$0xff]
  %v2038 = vld [vmem:[%s143 + $0x129] sm:$0xff]
  %v2039 = vld [vmem:[%s143 + $0x139] sm:$0xff]
  %v2040 = vld [vmem:[%s143 + $0x141] sm:$0xff]
  %v2041 = vld [vmem:[%s143 + $0x151] sm:$0xff]
  %v2042 = vld [vmem:[%s143 + $0x159] sm:$0xff]
  %v2043 = vld [vmem:[%s143 + $0x169] sm:$0xff]
  %v2044 = vld [vmem:[%s143 + $0x171] sm:$0xff]
  %v2045 = vld [vmem:[%s143 + $0x1b1] sm:$0xff]
  %v2046 = vld [vmem:[%s143 + $0x1b9] sm:$0xff]
  %v2047 = vld [vmem:[%s143 + $0x1c9] sm:$0xff]
  %v2048 = vld [vmem:[%s143 + $0x1d1] sm:$0xff]
  %v2049 = vld [vmem:[%s143 + $0x1e1] sm:$0xff]
  %v2050 = vld [vmem:[%s143 + $0x1e9] sm:$0xff]
  %v2051 = vld [vmem:[%s143 + $0x1f9] sm:$0xff]
  %v2052 = vld [vmem:[%s143 + $0x201] sm:$0xff]
  %v2053 = vld [vmem:[%s143 + $0x211] sm:$0xff]
  %v2054 = vld [vmem:[%s143 + $0x219] sm:$0xff]
  %v2055 = vld [vmem:[%s143 + $0x229] sm:$0xff]
  %v2056 = vld [vmem:[%s143 + $0x231] sm:$0xff]
  %v2057 = vld [vmem:[%s143 + $0x241] sm:$0xff]
  %v2058 = vld [vmem:[%s143 + $0x249] sm:$0xff]
  %v2059 = vld [vmem:[%s143 + $0x259] sm:$0xff]
  %v2060 = vld [vmem:[%s143 + $0x261] sm:$0xff]
  %v2061 = vld [vmem:[%s143 + $0x271] sm:$0xff]
  %v2062 = vld [vmem:[%s143 + $0x279] sm:$0xff]
  %v2063 = vld [vmem:[%s143 + $0x289] sm:$0xff]
  %v2064 = vld [vmem:[%s143 + $0x291] sm:$0xff]
  %v2065 = vld [vmem:[%s143 + $0x2a1] sm:$0xff]
  %v2066 = vld [vmem:[%s143 + $0x2a9] sm:$0xff]
  %v2067 = vld [vmem:[%s143 + $0x2b9] sm:$0xff]
  %v2068 = vld [vmem:[%s143 + $0x2c1] sm:$0xff]
  %v2069 = vld [vmem:[%s143 + $0x2d1] sm:$0xff]
  %v2070 = vld [vmem:[%s143 + $0x2d9] sm:$0xff]
  %v2071 = vld [vmem:[%s143 + $0x2e9] sm:$0xff]
  %v2072 = vld [vmem:[%s143 + $0x2f1] sm:$0xff]
  %v2073 = vld [vmem:[%s143 + $0x301] sm:$0xff]
  %v2074 = vld [vmem:[%s143 + $0x309] sm:$0xff]
  %v2075 = vld [vmem:[%s143 + $0x319] sm:$0xff]
  %v2076 = vld [vmem:[%s143 + $0x321] sm:$0xff]
  %v2077 = vld [vmem:[%s143 + $0x2] sm:$0xff]
  %v2078 = vld [vmem:[%s143 + $0xa] sm:$0xff]
  %v2079 = vld [vmem:[%s143 + $0x1a] sm:$0xff]
  %v2080 = vld [vmem:[%s143 + $0x22] sm:$0xff]
  %v2081 = vld [vmem:[%s143 + $0x32] sm:$0xff]
  %v2082 = vld [vmem:[%s143 + $0x3a] sm:$0xff]
  %v2083 = vld [vmem:[%s143 + $0x4a] sm:$0xff]
  %v2084 = vld [vmem:[%s143 + $0x52] sm:$0xff]
  %v2085 = vld [vmem:[%s143 + $0x62] sm:$0xff]
  %v2086 = vld [vmem:[%s143 + $0x6a] sm:$0xff]
  %v2087 = vld [vmem:[%s143 + $0x7a] sm:$0xff]
  %v2088 = vld [vmem:[%s143 + $0x82] sm:$0xff]
  %v2089 = vld [vmem:[%s143 + $0x92] sm:$0xff]
  %v2090 = vld [vmem:[%s143 + $0x9a] sm:$0xff]
  %v2091 = vld [vmem:[%s143 + $0xaa] sm:$0xff]
  %v2092 = vld [vmem:[%s143 + $0xb2] sm:$0xff]
  %v2093 = vld [vmem:[%s143 + $0xc2] sm:$0xff]
  %v2094 = vld [vmem:[%s143 + $0xca] sm:$0xff]
  %v2095 = vld [vmem:[%s143 + $0xda] sm:$0xff]
  %v2096 = vld [vmem:[%s143 + $0xe2] sm:$0xff]
  %v2097 = vld [vmem:[%s143 + $0xf2] sm:$0xff]
  %v2098 = vld [vmem:[%s143 + $0xfa] sm:$0xff]
  %v2099 = vld [vmem:[%s143 + $0x10a] sm:$0xff]
  %v2100 = vld [vmem:[%s143 + $0x112] sm:$0xff]
  %v2101 = vld [vmem:[%s143 + $0x122] sm:$0xff]
  %v2102 = vld [vmem:[%s143 + $0x12a] sm:$0xff]
  %v2103 = vld [vmem:[%s143 + $0x13a] sm:$0xff]
  %v2104 = vld [vmem:[%s143 + $0x142] sm:$0xff]
  %v2105 = vld [vmem:[%s143 + $0x152] sm:$0xff]
  %v2106 = vld [vmem:[%s143 + $0x15a] sm:$0xff]
  %v2107 = vld [vmem:[%s143 + $0x16a] sm:$0xff]
  %v2108 = vld [vmem:[%s143 + $0x172] sm:$0xff]
  %v2109 = vld [vmem:[%s143 + $0x1b2] sm:$0xff]
  %v2110 = vld [vmem:[%s143 + $0x1ba] sm:$0xff]
  %v2111 = vld [vmem:[%s143 + $0x1ca] sm:$0xff]
  %v2112 = vld [vmem:[%s143 + $0x1d2] sm:$0xff]
  %v2113 = vld [vmem:[%s143 + $0x1e2] sm:$0xff]
  %v2114 = vld [vmem:[%s143 + $0x1ea] sm:$0xff]
  %v2115 = vld [vmem:[%s143 + $0x1fa] sm:$0xff]
  %v2116 = vld [vmem:[%s143 + $0x202] sm:$0xff]
  %v2117 = vld [vmem:[%s143 + $0x212] sm:$0xff]
  %v2118 = vld [vmem:[%s143 + $0x21a] sm:$0xff]
  %v2119 = vld [vmem:[%s143 + $0x22a] sm:$0xff]
  %v2120 = vld [vmem:[%s143 + $0x232] sm:$0xff]
  %v2121 = vld [vmem:[%s143 + $0x242] sm:$0xff]
  %v2122 = vld [vmem:[%s143 + $0x24a] sm:$0xff]
  %v2123 = vld [vmem:[%s143 + $0x25a] sm:$0xff]
  %v2124 = vld [vmem:[%s143 + $0x262] sm:$0xff]
  %v2125 = vld [vmem:[%s143 + $0x272] sm:$0xff]
  %v2126 = vld [vmem:[%s143 + $0x27a] sm:$0xff]
  %v2127 = vld [vmem:[%s143 + $0x28a] sm:$0xff]
  %v2128 = vld [vmem:[%s143 + $0x292] sm:$0xff]
  %v2129 = vld [vmem:[%s143 + $0x2a2] sm:$0xff]
  %v2130 = vld [vmem:[%s143 + $0x2aa] sm:$0xff]
  %v2131 = vld [vmem:[%s143 + $0x2ba] sm:$0xff]
  %v2132 = vld [vmem:[%s143 + $0x2c2] sm:$0xff]
  %v2133 = vld [vmem:[%s143 + $0x2d2] sm:$0xff]
  %v2134 = vld [vmem:[%s143 + $0x2da] sm:$0xff]
  %v2135 = vld [vmem:[%s143 + $0x2ea] sm:$0xff]
  %v2136 = vld [vmem:[%s143 + $0x2f2] sm:$0xff]
  %v2137 = vld [vmem:[%s143 + $0x302] sm:$0xff]
  %v2138 = vld [vmem:[%s143 + $0x30a] sm:$0xff]
  %v2139 = vld [vmem:[%s143 + $0x31a] sm:$0xff]
  %v2140 = vld [vmem:[%s143 + $0x322] sm:$0xff]
  %2205 = vrot.lane.b32.xlu0 %v1949, 4
  %v2206 = vpop.permute.xlu0 %2205
  %2207 = vrot.lane.b32.xlu0 %v1950, 4
  %v2208 = vpop.permute.xlu0 %2207
  %2209 = vrot.lane.b32.xlu0 %v1951, 4
  %v2210 = vpop.permute.xlu0 %2209
  %2211 = vrot.lane.b32.xlu0 %v1952, 4
  %v2212 = vpop.permute.xlu0 %2211
  %2213 = vrot.lane.b32.xlu0 %v1953, 4
  %v2214 = vpop.permute.xlu0 %2213
  %2215 = vrot.lane.b32.xlu0 %v1954, 4
  %v2216 = vpop.permute.xlu0 %2215
  %2217 = vrot.lane.b32.xlu0 %v1955, 4
  %v2218 = vpop.permute.xlu0 %2217
  %2219 = vrot.lane.b32.xlu0 %v1956, 4
  %v2220 = vpop.permute.xlu0 %2219
  %2221 = vrot.lane.b32.xlu0 %v1957, 4
  %v2222 = vpop.permute.xlu0 %2221
  %2223 = vrot.lane.b32.xlu0 %v1958, 4
  %v2224 = vpop.permute.xlu0 %2223
  %2225 = vrot.lane.b32.xlu0 %v1959, 4
  %v2226 = vpop.permute.xlu0 %2225
  %2227 = vrot.lane.b32.xlu0 %v1960, 4
  %v2228 = vpop.permute.xlu0 %2227
  %2229 = vrot.lane.b32.xlu0 %v1961, 4
  %v2230 = vpop.permute.xlu0 %2229
  %2231 = vrot.lane.b32.xlu0 %v1962, 4
  %v2232 = vpop.permute.xlu0 %2231
  %2233 = vrot.lane.b32.xlu0 %v1963, 4
  %v2234 = vpop.permute.xlu0 %2233
  %2235 = vrot.lane.b32.xlu0 %v1964, 4
  %v2236 = vpop.permute.xlu0 %2235
  %2237 = vrot.lane.b32.xlu0 %v1965, 4
  %v2238 = vpop.permute.xlu0 %2237
  %2239 = vrot.lane.b32.xlu0 %v1966, 4
  %v2240 = vpop.permute.xlu0 %2239
  %2241 = vrot.lane.b32.xlu0 %v1967, 4
  %v2242 = vpop.permute.xlu0 %2241
  %2243 = vrot.lane.b32.xlu0 %v1968, 4
  %v2244 = vpop.permute.xlu0 %2243
  %2245 = vrot.lane.b32.xlu0 %v1969, 4
  %v2246 = vpop.permute.xlu0 %2245
  %2247 = vrot.lane.b32.xlu0 %v1970, 4
  %v2248 = vpop.permute.xlu0 %2247
  %2249 = vrot.lane.b32.xlu0 %v1971, 4
  %v2250 = vpop.permute.xlu0 %2249
  %2251 = vrot.lane.b32.xlu0 %v1972, 4
  %v2252 = vpop.permute.xlu0 %2251
  %2253 = vrot.lane.b32.xlu0 %v1973, 4
  %v2254 = vpop.permute.xlu0 %2253
  %2255 = vrot.lane.b32.xlu0 %v1974, 4
  %v2256 = vpop.permute.xlu0 %2255
  %2257 = vrot.lane.b32.xlu0 %v1975, 4
  %v2258 = vpop.permute.xlu0 %2257
  %2259 = vrot.lane.b32.xlu0 %v1976, 4
  %v2260 = vpop.permute.xlu0 %2259
  %2261 = vrot.lane.b32.xlu0 %v1977, 4
  %v2262 = vpop.permute.xlu0 %2261
  %2263 = vrot.lane.b32.xlu0 %v1978, 4
  %v2264 = vpop.permute.xlu0 %2263
  %2265 = vrot.lane.b32.xlu0 %v1979, 4
  %v2266 = vpop.permute.xlu0 %2265
  %2267 = vrot.lane.b32.xlu0 %v1980, 4
  %v2268 = vpop.permute.xlu0 %2267
  %2269 = vrot.lane.b32.xlu0 %v1981, 4
  %v2270 = vpop.permute.xlu0 %2269
  %2271 = vrot.lane.b32.xlu0 %v1982, 4
  %v2272 = vpop.permute.xlu0 %2271
  %2273 = vrot.lane.b32.xlu0 %v1983, 4
  %v2274 = vpop.permute.xlu0 %2273
  %2275 = vrot.lane.b32.xlu0 %v1984, 4
  %v2276 = vpop.permute.xlu0 %2275
  %2277 = vrot.lane.b32.xlu0 %v1985, 4
  %v2278 = vpop.permute.xlu0 %2277
  %2279 = vrot.lane.b32.xlu0 %v1986, 4
  %v2280 = vpop.permute.xlu0 %2279
  %2281 = vrot.lane.b32.xlu0 %v1987, 4
  %v2282 = vpop.permute.xlu0 %2281
  %2283 = vrot.lane.b32.xlu0 %v1988, 4
  %v2284 = vpop.permute.xlu0 %2283
  %2285 = vrot.lane.b32.xlu0 %v1989, 4
  %v2286 = vpop.permute.xlu0 %2285
  %2287 = vrot.lane.b32.xlu0 %v1990, 4
  %v2288 = vpop.permute.xlu0 %2287
  %2289 = vrot.lane.b32.xlu0 %v1991, 4
  %v2290 = vpop.permute.xlu0 %2289
  %2291 = vrot.lane.b32.xlu0 %v1992, 4
  %v2292 = vpop.permute.xlu0 %2291
  %2293 = vrot.lane.b32.xlu0 %v1993, 4
  %v2294 = vpop.permute.xlu0 %2293
  %2295 = vrot.lane.b32.xlu0 %v1994, 4
  %v2296 = vpop.permute.xlu0 %2295
  %2297 = vrot.lane.b32.xlu0 %v1995, 4
  %v2298 = vpop.permute.xlu0 %2297
  %2299 = vrot.lane.b32.xlu0 %v1996, 4
  %v2300 = vpop.permute.xlu0 %2299
  %2301 = vrot.lane.b32.xlu0 %v1997, 4
  %v2302 = vpop.permute.xlu0 %2301
  %2303 = vrot.lane.b32.xlu0 %v1998, 4
  %v2304 = vpop.permute.xlu0 %2303
  %2305 = vrot.lane.b32.xlu0 %v1999, 4
  %v2306 = vpop.permute.xlu0 %2305
  %2307 = vrot.lane.b32.xlu0 %v2000, 4
  %v2308 = vpop.permute.xlu0 %2307
  %2309 = vrot.lane.b32.xlu0 %v2001, 4
  %v2310 = vpop.permute.xlu0 %2309
  %2311 = vrot.lane.b32.xlu0 %v2002, 4
  %v2312 = vpop.permute.xlu0 %2311
  %2313 = vrot.lane.b32.xlu0 %v2003, 4
  %v2314 = vpop.permute.xlu0 %2313
  %2315 = vrot.lane.b32.xlu0 %v2004, 4
  %v2316 = vpop.permute.xlu0 %2315
  %2317 = vrot.lane.b32.xlu0 %v2005, 4
  %v2318 = vpop.permute.xlu0 %2317
  %2319 = vrot.lane.b32.xlu0 %v2006, 4
  %v2320 = vpop.permute.xlu0 %2319
  %2321 = vrot.lane.b32.xlu0 %v2007, 4
  %v2322 = vpop.permute.xlu0 %2321
  %2323 = vrot.lane.b32.xlu0 %v2008, 4
  %v2324 = vpop.permute.xlu0 %2323
  %2325 = vrot.lane.b32.xlu0 %v2009, 4
  %v2326 = vpop.permute.xlu0 %2325
  %2327 = vrot.lane.b32.xlu0 %v2010, 4
  %v2328 = vpop.permute.xlu0 %2327
  %2329 = vrot.lane.b32.xlu0 %v2011, 4
  %v2330 = vpop.permute.xlu0 %2329
  %2331 = vrot.lane.b32.xlu0 %v2012, 4
  %v2332 = vpop.permute.xlu0 %2331
  %2461 = vrot.lane.b32.xlu0 %v2013, 8
  %v2462 = vpop.permute.xlu0 %2461
  %2463 = vrot.lane.b32.xlu0 %v2014, 8
  %v2464 = vpop.permute.xlu0 %2463
  %2465 = vrot.lane.b32.xlu0 %v2015, 8
  %v2466 = vpop.permute.xlu0 %2465
  %2467 = vrot.lane.b32.xlu0 %v2016, 8
  %v2468 = vpop.permute.xlu0 %2467
  %2469 = vrot.lane.b32.xlu0 %v2017, 8
  %v2470 = vpop.permute.xlu0 %2469
  %2471 = vrot.lane.b32.xlu0 %v2018, 8
  %v2472 = vpop.permute.xlu0 %2471
  %2473 = vrot.lane.b32.xlu0 %v2019, 8
  %v2474 = vpop.permute.xlu0 %2473
  %2475 = vrot.lane.b32.xlu0 %v2020, 8
  %v2476 = vpop.permute.xlu0 %2475
  %2477 = vrot.lane.b32.xlu0 %v2021, 8
  %v2478 = vpop.permute.xlu0 %2477
  %2479 = vrot.lane.b32.xlu0 %v2022, 8
  %v2480 = vpop.permute.xlu0 %2479
  %2481 = vrot.lane.b32.xlu0 %v2023, 8
  %v2482 = vpop.permute.xlu0 %2481
  %2483 = vrot.lane.b32.xlu0 %v2024, 8
  %v2484 = vpop.permute.xlu0 %2483
  %2485 = vrot.lane.b32.xlu0 %v2025, 8
  %v2486 = vpop.permute.xlu0 %2485
  %2487 = vrot.lane.b32.xlu0 %v2026, 8
  %v2488 = vpop.permute.xlu0 %2487
  %2489 = vrot.lane.b32.xlu0 %v2027, 8
  %v2490 = vpop.permute.xlu0 %2489
  %2491 = vrot.lane.b32.xlu0 %v2028, 8
  %v2492 = vpop.permute.xlu0 %2491
  %2493 = vrot.lane.b32.xlu0 %v2029, 8
  %v2494 = vpop.permute.xlu0 %2493
  %2495 = vrot.lane.b32.xlu0 %v2030, 8
  %v2496 = vpop.permute.xlu0 %2495
  %2497 = vrot.lane.b32.xlu0 %v2031, 8
  %v2498 = vpop.permute.xlu0 %2497
  %2499 = vrot.lane.b32.xlu0 %v2032, 8
  %v2500 = vpop.permute.xlu0 %2499
  %2501 = vrot.lane.b32.xlu0 %v2033, 8
  %v2502 = vpop.permute.xlu0 %2501
  %2503 = vrot.lane.b32.xlu0 %v2034, 8
  %v2504 = vpop.permute.xlu0 %2503
  %2505 = vrot.lane.b32.xlu0 %v2035, 8
  %v2506 = vpop.permute.xlu0 %2505
  %2507 = vrot.lane.b32.xlu0 %v2036, 8
  %v2508 = vpop.permute.xlu0 %2507
  %2509 = vrot.lane.b32.xlu0 %v2037, 8
  %v2510 = vpop.permute.xlu0 %2509
  %2511 = vrot.lane.b32.xlu0 %v2038, 8
  %v2512 = vpop.permute.xlu0 %2511
  %2513 = vrot.lane.b32.xlu0 %v2039, 8
  %v2514 = vpop.permute.xlu0 %2513
  %2515 = vrot.lane.b32.xlu0 %v2040, 8
  %v2516 = vpop.permute.xlu0 %2515
  %2517 = vrot.lane.b32.xlu0 %v2041, 8
  %v2518 = vpop.permute.xlu0 %2517
  %2519 = vrot.lane.b32.xlu0 %v2042, 8
  %v2520 = vpop.permute.xlu0 %2519
  %2521 = vrot.lane.b32.xlu0 %v2043, 8
  %v2522 = vpop.permute.xlu0 %2521
  %2523 = vrot.lane.b32.xlu0 %v2044, 8
  %v2524 = vpop.permute.xlu0 %2523
  %2525 = vrot.lane.b32.xlu0 %v2045, 8
  %v2526 = vpop.permute.xlu0 %2525
  %2527 = vrot.lane.b32.xlu0 %v2046, 8
  %v2528 = vpop.permute.xlu0 %2527
  %2529 = vrot.lane.b32.xlu0 %v2047, 8
  %v2530 = vpop.permute.xlu0 %2529
  %2531 = vrot.lane.b32.xlu0 %v2048, 8
  %v2532 = vpop.permute.xlu0 %2531
  %2533 = vrot.lane.b32.xlu0 %v2049, 8
  %v2534 = vpop.permute.xlu0 %2533
  %2535 = vrot.lane.b32.xlu0 %v2050, 8
  %v2536 = vpop.permute.xlu0 %2535
  %2537 = vrot.lane.b32.xlu0 %v2051, 8
  %v2538 = vpop.permute.xlu0 %2537
  %2539 = vrot.lane.b32.xlu0 %v2052, 8
  %v2540 = vpop.permute.xlu0 %2539
  %2541 = vrot.lane.b32.xlu0 %v2053, 8
  %v2542 = vpop.permute.xlu0 %2541
  %2543 = vrot.lane.b32.xlu0 %v2054, 8
  %v2544 = vpop.permute.xlu0 %2543
  %2545 = vrot.lane.b32.xlu0 %v2055, 8
  %v2546 = vpop.permute.xlu0 %2545
  %2547 = vrot.lane.b32.xlu0 %v2056, 8
  %v2548 = vpop.permute.xlu0 %2547
  %2549 = vrot.lane.b32.xlu0 %v2057, 8
  %v2550 = vpop.permute.xlu0 %2549
  %2551 = vrot.lane.b32.xlu0 %v2058, 8
  %v2552 = vpop.permute.xlu0 %2551
  %2553 = vrot.lane.b32.xlu0 %v2059, 8
  %v2554 = vpop.permute.xlu0 %2553
  %2555 = vrot.lane.b32.xlu0 %v2060, 8
  %v2556 = vpop.permute.xlu0 %2555
  %2557 = vrot.lane.b32.xlu0 %v2061, 8
  %v2558 = vpop.permute.xlu0 %2557
  %2559 = vrot.lane.b32.xlu0 %v2062, 8
  %v2560 = vpop.permute.xlu0 %2559
  %2561 = vrot.lane.b32.xlu0 %v2063, 8
  %v2562 = vpop.permute.xlu0 %2561
  %2563 = vrot.lane.b32.xlu0 %v2064, 8
  %v2564 = vpop.permute.xlu0 %2563
  %2565 = vrot.lane.b32.xlu0 %v2065, 8
  %v2566 = vpop.permute.xlu0 %2565
  %2567 = vrot.lane.b32.xlu0 %v2066, 8
  %v2568 = vpop.permute.xlu0 %2567
  %2569 = vrot.lane.b32.xlu0 %v2067, 8
  %v2570 = vpop.permute.xlu0 %2569
  %2571 = vrot.lane.b32.xlu0 %v2068, 8
  %v2572 = vpop.permute.xlu0 %2571
  %2573 = vrot.lane.b32.xlu0 %v2069, 8
  %v2574 = vpop.permute.xlu0 %2573
  %2575 = vrot.lane.b32.xlu0 %v2070, 8
  %v2576 = vpop.permute.xlu0 %2575
  %2577 = vrot.lane.b32.xlu0 %v2071, 8
  %v2578 = vpop.permute.xlu0 %2577
  %2579 = vrot.lane.b32.xlu0 %v2072, 8
  %v2580 = vpop.permute.xlu0 %2579
  %2581 = vrot.lane.b32.xlu0 %v2073, 8
  %v2582 = vpop.permute.xlu0 %2581
  %2583 = vrot.lane.b32.xlu0 %v2074, 8
  %v2584 = vpop.permute.xlu0 %2583
  %2585 = vrot.lane.b32.xlu0 %v2075, 8
  %v2586 = vpop.permute.xlu0 %2585
  %2587 = vrot.lane.b32.xlu0 %v2076, 8
  %v2588 = vpop.permute.xlu0 %2587
  %2717 = vrot.lane.b32.xlu0 %v2077, 12
  %v2718 = vpop.permute.xlu0 %2717
  %2719 = vrot.lane.b32.xlu0 %v2078, 12
  %v2720 = vpop.permute.xlu0 %2719
  %2721 = vrot.lane.b32.xlu0 %v2079, 12
  %v2722 = vpop.permute.xlu0 %2721
  %2723 = vrot.lane.b32.xlu0 %v2080, 12
  %v2724 = vpop.permute.xlu0 %2723
  %2725 = vrot.lane.b32.xlu0 %v2081, 12
  %v2726 = vpop.permute.xlu0 %2725
  %2727 = vrot.lane.b32.xlu0 %v2082, 12
  %v2728 = vpop.permute.xlu0 %2727
  %2729 = vrot.lane.b32.xlu0 %v2083, 12
  %v2730 = vpop.permute.xlu0 %2729
  %2731 = vrot.lane.b32.xlu0 %v2084, 12
  %v2732 = vpop.permute.xlu0 %2731
  %2733 = vrot.lane.b32.xlu0 %v2085, 12
  %v2734 = vpop.permute.xlu0 %2733
  %2735 = vrot.lane.b32.xlu0 %v2086, 12
  %v2736 = vpop.permute.xlu0 %2735
  %2737 = vrot.lane.b32.xlu0 %v2087, 12
  %v2738 = vpop.permute.xlu0 %2737
  %2739 = vrot.lane.b32.xlu0 %v2088, 12
  %v2740 = vpop.permute.xlu0 %2739
  %2741 = vrot.lane.b32.xlu0 %v2089, 12
  %v2742 = vpop.permute.xlu0 %2741
  %2743 = vrot.lane.b32.xlu0 %v2090, 12
  %v2744 = vpop.permute.xlu0 %2743
  %2745 = vrot.lane.b32.xlu0 %v2091, 12
  %v2746 = vpop.permute.xlu0 %2745
  %2747 = vrot.lane.b32.xlu0 %v2092, 12
  %v2748 = vpop.permute.xlu0 %2747
  %2749 = vrot.lane.b32.xlu0 %v2093, 12
  %v2750 = vpop.permute.xlu0 %2749
  %2751 = vrot.lane.b32.xlu0 %v2094, 12
  %v2752 = vpop.permute.xlu0 %2751
  %2753 = vrot.lane.b32.xlu0 %v2095, 12
  %v2754 = vpop.permute.xlu0 %2753
  %2755 = vrot.lane.b32.xlu0 %v2096, 12
  %v2756 = vpop.permute.xlu0 %2755
  %2757 = vrot.lane.b32.xlu0 %v2097, 12
  %v2758 = vpop.permute.xlu0 %2757
  %2759 = vrot.lane.b32.xlu0 %v2098, 12
  %v2760 = vpop.permute.xlu0 %2759
  %2761 = vrot.lane.b32.xlu0 %v2099, 12
  %v2762 = vpop.permute.xlu0 %2761
  %2763 = vrot.lane.b32.xlu0 %v2100, 12
  %v2764 = vpop.permute.xlu0 %2763
  %2765 = vrot.lane.b32.xlu0 %v2101, 12
  %v2766 = vpop.permute.xlu0 %2765
  %2767 = vrot.lane.b32.xlu0 %v2102, 12
  %v2768 = vpop.permute.xlu0 %2767
  %2769 = vrot.lane.b32.xlu0 %v2103, 12
  %v2770 = vpop.permute.xlu0 %2769
  %2771 = vrot.lane.b32.xlu0 %v2104, 12
  %v2772 = vpop.permute.xlu0 %2771
  %2773 = vrot.lane.b32.xlu0 %v2105, 12
  %v2774 = vpop.permute.xlu0 %2773
  %2775 = vrot.lane.b32.xlu0 %v2106, 12
  %v2776 = vpop.permute.xlu0 %2775
  %2777 = vrot.lane.b32.xlu0 %v2107, 12
  %v2778 = vpop.permute.xlu0 %2777
  %2779 = vrot.lane.b32.xlu0 %v2108, 12
  %v2780 = vpop.permute.xlu0 %2779
  %2781 = vrot.lane.b32.xlu0 %v2109, 12
  %v2782 = vpop.permute.xlu0 %2781
  %2783 = vrot.lane.b32.xlu0 %v2110, 12
  %v2784 = vpop.permute.xlu0 %2783
  %2785 = vrot.lane.b32.xlu0 %v2111, 12
  %v2786 = vpop.permute.xlu0 %2785
  %2787 = vrot.lane.b32.xlu0 %v2112, 12
  %v2788 = vpop.permute.xlu0 %2787
  %2789 = vrot.lane.b32.xlu0 %v2113, 12
  %v2790 = vpop.permute.xlu0 %2789
  %2791 = vrot.lane.b32.xlu0 %v2114, 12
  %v2792 = vpop.permute.xlu0 %2791
  %2793 = vrot.lane.b32.xlu0 %v2115, 12
  %v2794 = vpop.permute.xlu0 %2793
  %2795 = vrot.lane.b32.xlu0 %v2116, 12
  %v2796 = vpop.permute.xlu0 %2795
  %2797 = vrot.lane.b32.xlu0 %v2117, 12
  %v2798 = vpop.permute.xlu0 %2797
  %2799 = vrot.lane.b32.xlu0 %v2118, 12
  %v2800 = vpop.permute.xlu0 %2799
  %2801 = vrot.lane.b32.xlu0 %v2119, 12
  %v2802 = vpop.permute.xlu0 %2801
  %2803 = vrot.lane.b32.xlu0 %v2120, 12
  %v2804 = vpop.permute.xlu0 %2803
  %2805 = vrot.lane.b32.xlu0 %v2121, 12
  %v2806 = vpop.permute.xlu0 %2805
  %2807 = vrot.lane.b32.xlu0 %v2122, 12
  %v2808 = vpop.permute.xlu0 %2807
  %2809 = vrot.lane.b32.xlu0 %v2123, 12
  %v2810 = vpop.permute.xlu0 %2809
  %2811 = vrot.lane.b32.xlu0 %v2124, 12
  %v2812 = vpop.permute.xlu0 %2811
  %2813 = vrot.lane.b32.xlu0 %v2125, 12
  %v2814 = vpop.permute.xlu0 %2813
  %2815 = vrot.lane.b32.xlu0 %v2126, 12
  %v2816 = vpop.permute.xlu0 %2815
  %2817 = vrot.lane.b32.xlu0 %v2127, 12
  %v2818 = vpop.permute.xlu0 %2817
  %2819 = vrot.lane.b32.xlu0 %v2128, 12
  %v2820 = vpop.permute.xlu0 %2819
  %2821 = vrot.lane.b32.xlu0 %v2129, 12
  %v2822 = vpop.permute.xlu0 %2821
  %2823 = vrot.lane.b32.xlu0 %v2130, 12
  %v2824 = vpop.permute.xlu0 %2823
  %2825 = vrot.lane.b32.xlu0 %v2131, 12
  %v2826 = vpop.permute.xlu0 %2825
  %2827 = vrot.lane.b32.xlu0 %v2132, 12
  %v2828 = vpop.permute.xlu0 %2827
  %2829 = vrot.lane.b32.xlu0 %v2133, 12
  %v2830 = vpop.permute.xlu0 %2829
  %2831 = vrot.lane.b32.xlu0 %v2134, 12
  %v2832 = vpop.permute.xlu0 %2831
  %2833 = vrot.lane.b32.xlu0 %v2135, 12
  %v2834 = vpop.permute.xlu0 %2833
  %2835 = vrot.lane.b32.xlu0 %v2136, 12
  %v2836 = vpop.permute.xlu0 %2835
  %2837 = vrot.lane.b32.xlu0 %v2137, 12
  %v2838 = vpop.permute.xlu0 %2837
  %2839 = vrot.lane.b32.xlu0 %v2138, 12
  %v2840 = vpop.permute.xlu0 %2839
  %2841 = vrot.lane.b32.xlu0 %v2139, 12
  %v2842 = vpop.permute.xlu0 %2841
  %2843 = vrot.lane.b32.xlu0 %v2140, 12
  %v2844 = vpop.permute.xlu0 %2843
  %v2909 = vsel %vm1040, %v1885, %v2206
  %v2910 = vsel %vm1040, %v1886, %v2208
  %v2911 = vsel %vm1040, %v1887, %v2210
  %v2912 = vsel %vm1040, %v1888, %v2212
  %v2913 = vsel %vm1040, %v1889, %v2214
  %v2914 = vsel %vm1040, %v1890, %v2216
  %v2915 = vsel %vm1040, %v1891, %v2218
  %v2916 = vsel %vm1040, %v1892, %v2220
  %v2917 = vsel %vm1040, %v1893, %v2222
  %v2918 = vsel %vm1040, %v1894, %v2224
  %v2919 = vsel %vm1040, %v1895, %v2226
  %v2920 = vsel %vm1040, %v1896, %v2228
  %v2921 = vsel %vm1040, %v1897, %v2230
  %v2922 = vsel %vm1040, %v1898, %v2232
  %v2923 = vsel %vm1040, %v1899, %v2234
  %v2924 = vsel %vm1040, %v1900, %v2236
  %v2925 = vsel %vm1040, %v1901, %v2238
  %v2926 = vsel %vm1040, %v1902, %v2240
  %v2927 = vsel %vm1040, %v1903, %v2242
  %v2928 = vsel %vm1040, %v1904, %v2244
  %v2929 = vsel %vm1040, %v1905, %v2246
  %v2930 = vsel %vm1040, %v1906, %v2248
  %v2931 = vsel %vm1040, %v1907, %v2250
  %v2932 = vsel %vm1040, %v1908, %v2252
  %v2933 = vsel %vm1040, %v1909, %v2254
  %v2934 = vsel %vm1040, %v1910, %v2256
  %v2935 = vsel %vm1040, %v1911, %v2258
  %v2936 = vsel %vm1040, %v1912, %v2260
  %v2937 = vsel %vm1040, %v1913, %v2262
  %v2938 = vsel %vm1040, %v1914, %v2264
  %v2939 = vsel %vm1040, %v1915, %v2266
  %v2940 = vsel %vm1040, %v1916, %v2268
  %v2941 = vsel %vm1040, %v1917, %v2270
  %v2942 = vsel %vm1040, %v1918, %v2272
  %v2943 = vsel %vm1040, %v1919, %v2274
  %v2944 = vsel %vm1040, %v1920, %v2276
  %v2945 = vsel %vm1040, %v1921, %v2278
  %v2946 = vsel %vm1040, %v1922, %v2280
  %v2947 = vsel %vm1040, %v1923, %v2282
  %v2948 = vsel %vm1040, %v1924, %v2284
  %v2949 = vsel %vm1040, %v1925, %v2286
  %v2950 = vsel %vm1040, %v1926, %v2288
  %v2951 = vsel %vm1040, %v1927, %v2290
  %v2952 = vsel %vm1040, %v1928, %v2292
  %v2953 = vsel %vm1040, %v1929, %v2294
  %v2954 = vsel %vm1040, %v1930, %v2296
  %v2955 = vsel %vm1040, %v1931, %v2298
  %v2956 = vsel %vm1040, %v1932, %v2300
  %v2957 = vsel %vm1040, %v1933, %v2302
  %v2958 = vsel %vm1040, %v1934, %v2304
  %v2959 = vsel %vm1040, %v1935, %v2306
  %v2960 = vsel %vm1040, %v1936, %v2308
  %v2961 = vsel %vm1040, %v1937, %v2310
  %v2962 = vsel %vm1040, %v1938, %v2312
  %v2963 = vsel %vm1040, %v1939, %v2314
  %v2964 = vsel %vm1040, %v1940, %v2316
  %v2965 = vsel %vm1040, %v1941, %v2318
  %v2966 = vsel %vm1040, %v1942, %v2320
  %v2967 = vsel %vm1040, %v1943, %v2322
  %v2968 = vsel %vm1040, %v1944, %v2324
  %v2969 = vsel %vm1040, %v1945, %v2326
  %v2970 = vsel %vm1040, %v1946, %v2328
  %v2971 = vsel %vm1040, %v1947, %v2330
  %v2972 = vsel %vm1040, %v1948, %v2332
  %v2973 = vsel %vm1105, %v2909, %v2462
  %v2974 = vsel %vm1105, %v2910, %v2464
  %v2975 = vsel %vm1105, %v2911, %v2466
  %v2976 = vsel %vm1105, %v2912, %v2468
  %v2977 = vsel %vm1105, %v2913, %v2470
  %v2978 = vsel %vm1105, %v2914, %v2472
  %v2979 = vsel %vm1105, %v2915, %v2474
  %v2980 = vsel %vm1105, %v2916, %v2476
  %v2981 = vsel %vm1105, %v2917, %v2478
  %v2982 = vsel %vm1105, %v2918, %v2480
  %v2983 = vsel %vm1105, %v2919, %v2482
  %v2984 = vsel %vm1105, %v2920, %v2484
  %v2985 = vsel %vm1105, %v2921, %v2486
  %v2986 = vsel %vm1105, %v2922, %v2488
  %v2987 = vsel %vm1105, %v2923, %v2490
  %v2988 = vsel %vm1105, %v2924, %v2492
  %v2989 = vsel %vm1105, %v2925, %v2494
  %v2990 = vsel %vm1105, %v2926, %v2496
  %v2991 = vsel %vm1105, %v2927, %v2498
  %v2992 = vsel %vm1105, %v2928, %v2500
  %v2993 = vsel %vm1105, %v2929, %v2502
  %v2994 = vsel %vm1105, %v2930, %v2504
  %v2995 = vsel %vm1105, %v2931, %v2506
  %v2996 = vsel %vm1105, %v2932, %v2508
  %v2997 = vsel %vm1105, %v2933, %v2510
  %v2998 = vsel %vm1105, %v2934, %v2512
  %v2999 = vsel %vm1105, %v2935, %v2514
  %v3000 = vsel %vm1105, %v2936, %v2516
  %v3001 = vsel %vm1105, %v2937, %v2518
  %v3002 = vsel %vm1105, %v2938, %v2520
  %v3003 = vsel %vm1105, %v2939, %v2522
  %v3004 = vsel %vm1105, %v2940, %v2524
  %v3005 = vsel %vm1105, %v2941, %v2526
  %v3006 = vsel %vm1105, %v2942, %v2528
  %v3007 = vsel %vm1105, %v2943, %v2530
  %v3008 = vsel %vm1105, %v2944, %v2532
  %v3009 = vsel %vm1105, %v2945, %v2534
  %v3010 = vsel %vm1105, %v2946, %v2536
  %v3011 = vsel %vm1105, %v2947, %v2538
  %v3012 = vsel %vm1105, %v2948, %v2540
  %v3013 = vsel %vm1105, %v2949, %v2542
  %v3014 = vsel %vm1105, %v2950, %v2544
  %v3015 = vsel %vm1105, %v2951, %v2546
  %v3016 = vsel %vm1105, %v2952, %v2548
  %v3017 = vsel %vm1105, %v2953, %v2550
  %v3018 = vsel %vm1105, %v2954, %v2552
  %v3019 = vsel %vm1105, %v2955, %v2554
  %v3020 = vsel %vm1105, %v2956, %v2556
  %v3021 = vsel %vm1105, %v2957, %v2558
  %v3022 = vsel %vm1105, %v2958, %v2560
  %v3023 = vsel %vm1105, %v2959, %v2562
  %v3024 = vsel %vm1105, %v2960, %v2564
  %v3025 = vsel %vm1105, %v2961, %v2566
  %v3026 = vsel %vm1105, %v2962, %v2568
  %v3027 = vsel %vm1105, %v2963, %v2570
  %v3028 = vsel %vm1105, %v2964, %v2572
  %v3029 = vsel %vm1105, %v2965, %v2574
  %v3030 = vsel %vm1105, %v2966, %v2576
  %v3031 = vsel %vm1105, %v2967, %v2578
  %v3032 = vsel %vm1105, %v2968, %v2580
  %v3033 = vsel %vm1105, %v2969, %v2582
  %v3034 = vsel %vm1105, %v2970, %v2584
  %v3035 = vsel %vm1105, %v2971, %v2586
  %v3036 = vsel %vm1105, %v2972, %v2588
  %v3037 = vsel %vm1170, %v2973, %v2718
  %v3038 = vsel %vm1170, %v2974, %v2720
  %v3039 = vsel %vm1170, %v2975, %v2722
  %v3040 = vsel %vm1170, %v2976, %v2724
  %v3041 = vsel %vm1170, %v2977, %v2726
  %v3042 = vsel %vm1170, %v2978, %v2728
  %v3043 = vsel %vm1170, %v2979, %v2730
  %v3044 = vsel %vm1170, %v2980, %v2732
  %v3045 = vsel %vm1170, %v2981, %v2734
  %v3046 = vsel %vm1170, %v2982, %v2736
  %v3047 = vsel %vm1170, %v2983, %v2738
  %v3048 = vsel %vm1170, %v2984, %v2740
  %v3049 = vsel %vm1170, %v2985, %v2742
  %v3050 = vsel %vm1170, %v2986, %v2744
  %v3051 = vsel %vm1170, %v2987, %v2746
  %v3052 = vsel %vm1170, %v2988, %v2748
  %v3053 = vsel %vm1170, %v2989, %v2750
  %v3054 = vsel %vm1170, %v2990, %v2752
  %v3055 = vsel %vm1170, %v2991, %v2754
  %v3056 = vsel %vm1170, %v2992, %v2756
  %v3057 = vsel %vm1170, %v2993, %v2758
  %v3058 = vsel %vm1170, %v2994, %v2760
  %v3059 = vsel %vm1170, %v2995, %v2762
  %v3060 = vsel %vm1170, %v2996, %v2764
  %v3061 = vsel %vm1170, %v2997, %v2766
  %v3062 = vsel %vm1170, %v2998, %v2768
  %v3063 = vsel %vm1170, %v2999, %v2770
  %v3064 = vsel %vm1170, %v3000, %v2772
  %v3065 = vsel %vm1170, %v3001, %v2774
  %v3066 = vsel %vm1170, %v3002, %v2776
  %v3067 = vsel %vm1170, %v3003, %v2778
  %v3068 = vsel %vm1170, %v3004, %v2780
  %v3069 = vsel %vm1170, %v3005, %v2782
  %v3070 = vsel %vm1170, %v3006, %v2784
  %v3071 = vsel %vm1170, %v3007, %v2786
  %v3072 = vsel %vm1170, %v3008, %v2788
  %v3073 = vsel %vm1170, %v3009, %v2790
  %v3074 = vsel %vm1170, %v3010, %v2792
  %v3075 = vsel %vm1170, %v3011, %v2794
  %v3076 = vsel %vm1170, %v3012, %v2796
  %v3077 = vsel %vm1170, %v3013, %v2798
  %v3078 = vsel %vm1170, %v3014, %v2800
  %v3079 = vsel %vm1170, %v3015, %v2802
  %v3080 = vsel %vm1170, %v3016, %v2804
  %v3081 = vsel %vm1170, %v3017, %v2806
  %v3082 = vsel %vm1170, %v3018, %v2808
  %v3083 = vsel %vm1170, %v3019, %v2810
  %v3084 = vsel %vm1170, %v3020, %v2812
  %v3085 = vsel %vm1170, %v3021, %v2814
  %v3086 = vsel %vm1170, %v3022, %v2816
  %v3087 = vsel %vm1170, %v3023, %v2818
  %v3088 = vsel %vm1170, %v3024, %v2820
  %v3089 = vsel %vm1170, %v3025, %v2822
  %v3090 = vsel %vm1170, %v3026, %v2824
  %v3091 = vsel %vm1170, %v3027, %v2826
  %v3092 = vsel %vm1170, %v3028, %v2828
  %v3093 = vsel %vm1170, %v3029, %v2830
  %v3094 = vsel %vm1170, %v3030, %v2832
  %v3095 = vsel %vm1170, %v3031, %v2834
  %v3096 = vsel %vm1170, %v3032, %v2836
  %v3097 = vsel %vm1170, %v3033, %v2838
  %v3098 = vsel %vm1170, %v3034, %v2840
  %v3099 = vsel %vm1170, %v3035, %v2842
  %v3100 = vsel %vm1170, %v3036, %v2844
  %s3101 = scalar_lea.vmem %s1, 16
  %v3102 = vld [vmem:[%s3101] sm:$0xff]
  %v3103 = vld [vmem:[%s3101 + $0x8] sm:$0xff]
  %v3105 = vsel %vm1243, %v3037, 0
  %v3108 = vsel %vm1243, %v3038, 0
  %v3111 = vsel %vm1243, %v3039, 0
  %v3114 = vsel %vm1243, %v3040, 0
  %v3117 = vsel %vm1243, %v3041, 0
  %v3120 = vsel %vm1243, %v3042, 0
  %v3123 = vsel %vm1243, %v3043, 0
  %v3126 = vsel %vm1243, %v3044, 0
  %v3129 = vsel %vm1243, %v3045, 0
  %v3132 = vsel %vm1243, %v3046, 0
  %v3135 = vsel %vm1243, %v3047, 0
  %v3138 = vsel %vm1243, %v3048, 0
  %v3141 = vsel %vm1243, %v3049, 0
  %v3144 = vsel %vm1243, %v3050, 0
  %v3147 = vsel %vm1243, %v3051, 0
  %v3150 = vsel %vm1243, %v3052, 0
  %v3153 = vsel %vm1243, %v3053, 0
  %v3156 = vsel %vm1243, %v3054, 0
  %v3159 = vsel %vm1243, %v3055, 0
  %v3162 = vsel %vm1243, %v3056, 0
  %v3165 = vsel %vm1243, %v3057, 0
  %v3168 = vsel %vm1243, %v3058, 0
  %v3171 = vsel %vm1243, %v3059, 0
  %v3174 = vsel %vm1243, %v3060, 0
  %v3177 = vsel %vm1243, %v3061, 0
  %v3180 = vsel %vm1243, %v3062, 0
  %v3183 = vsel %vm1243, %v3063, 0
  %v3186 = vsel %vm1243, %v3064, 0
  %v3189 = vsel %vm1243, %v3065, 0
  %v3192 = vsel %vm1243, %v3066, 0
  %v3195 = vsel %vm1243, %v3067, 0
  %v3198 = vsel %vm1243, %v3068, 0
  %v3201 = vsel %vm1243, %v3069, 0
  %v3204 = vsel %vm1243, %v3070, 0
  %v3207 = vsel %vm1243, %v3071, 0
  %v3210 = vsel %vm1243, %v3072, 0
  %v3213 = vsel %vm1243, %v3073, 0
  %v3216 = vsel %vm1243, %v3074, 0
  %v3219 = vsel %vm1243, %v3075, 0
  %v3222 = vsel %vm1243, %v3076, 0
  %v3225 = vsel %vm1243, %v3077, 0
  %v3228 = vsel %vm1243, %v3078, 0
  %v3231 = vsel %vm1243, %v3079, 0
  %v3234 = vsel %vm1243, %v3080, 0
  %v3237 = vsel %vm1243, %v3081, 0
  %v3240 = vsel %vm1243, %v3082, 0
  %v3243 = vsel %vm1243, %v3083, 0
  %v3246 = vsel %vm1243, %v3084, 0
  %v3249 = vsel %vm1243, %v3085, 0
  %v3252 = vsel %vm1243, %v3086, 0
  %v3255 = vsel %vm1243, %v3087, 0
  %v3258 = vsel %vm1243, %v3088, 0
  %v3261 = vsel %vm1243, %v3089, 0
  %v3264 = vsel %vm1243, %v3090, 0
  %v3267 = vsel %vm1243, %v3091, 0
  %v3270 = vsel %vm1243, %v3092, 0
  %v3273 = vsel %vm1243, %v3093, 0
  %v3276 = vsel %vm1243, %v3094, 0
  %v3279 = vsel %vm1243, %v3095, 0
  %v3282 = vsel %vm1243, %v3096, 0
  %v3285 = vsel %vm1243, %v3097, 0
  %v3288 = vsel %vm1243, %v3098, 0
  %v3291 = vsel %vm1243, %v3099, 0
  %v3294 = vsel %vm1243, %v3100, 0
  %3296 = vmatprep.subr.mxu0 0.0
  %3297 = vmatpush1.msra.mxu0 %v3102
  %3298 = vmatprep.subr.mxu0 0.0
  %3299 = vmatpush1.msra.mxu0 %v3103
  %3300 = vmatprep.subr.mxu0 0.0
  %3301 = vmatpush1.msra.mxu0 0.0
  %3302 = vmatprep.subr.mxu0 0.0
  %3303 = vmatpush1.msra.mxu0 0.0
  %3304 = vmatprep.subr.mxu0 0.0
  %3305 = vmatpush1.msra.mxu0 0.0
  %3306 = vmatprep.subr.mxu0 0.0
  %3307 = vmatpush1.msra.mxu0 0.0
  %3308 = vmatprep.subr.mxu0 0.0
  %3309 = vmatpush1.msra.mxu0 0.0
  %3310 = vmatprep.subr.mxu0 0.0
  %3311 = vmatpush1.msra.mxu0 0.0
  %3312 = vmatprep.subr.mxu0 0.0
  %3313 = vmatpush1.msra.mxu0 0.0
  %3314 = vmatprep.subr.mxu0 0.0
  %3315 = vmatpush1.msra.mxu0 0.0
  %3316 = vmatprep.subr.mxu0 0.0
  %3317 = vmatpush1.msra.mxu0 0.0
  %3318 = vmatprep.subr.mxu0 0.0
  %3319 = vmatpush1.msra.mxu0 0.0
  %3320 = vmatprep.subr.mxu0 0.0
  %3321 = vmatpush1.msra.mxu0 0.0
  %3322 = vmatprep.subr.mxu0 0.0
  %3323 = vmatpush1.msra.mxu0 0.0
  %3324 = vmatprep.subr.mxu0 0.0
  %3325 = vmatpush1.msra.mxu0 0.0
  %3326 = vmatprep.subr.mxu0 0.0
  %3327 = vmatpush1.msra.mxu0 0.0
  %3328 = vmatprep.subr.mxu0 0.0
  %3329 = vmatpush1.msra.mxu0 0.0
  %3330 = vmatprep.subr.mxu0 0.0
  %3331 = vmatpush1.msra.mxu0 0.0
  %3332 = vmatprep.subr.mxu0 0.0
  %3333 = vmatpush1.msra.mxu0 0.0
  %3334 = vmatprep.subr.mxu0 0.0
  %3335 = vmatpush1.msra.mxu0 0.0
  %3336 = vmatprep.subr.mxu0 0.0
  %3337 = vmatpush1.msra.mxu0 0.0
  %3338 = vmatprep.subr.mxu0 0.0
  %3339 = vmatpush1.msra.mxu0 0.0
  %3340 = vmatprep.subr.mxu0 0.0
  %3341 = vmatpush1.msra.mxu0 0.0
  %3342 = vmatprep.subr.mxu0 0.0
  %3343 = vmatpush1.msra.mxu0 0.0
  %3344 = vmatprep.subr.mxu0 0.0
  %3345 = vmatpush1.msra.mxu0 0.0
  %3346 = vmatprep.subr.mxu0 0.0
  %3347 = vmatpush1.msra.mxu0 0.0
  %3348 = vmatprep.subr.mxu0 0.0
  %3349 = vmatpush1.msra.mxu0 0.0
  %3350 = vmatprep.subr.mxu0 0.0
  %3351 = vmatpush1.msra.mxu0 0.0
  %3352 = vmatprep.subr.mxu0 0.0
  %3353 = vmatpush1.msra.mxu0 0.0
  %3354 = vmatprep.subr.mxu0 0.0
  %3355 = vmatpush1.msra.mxu0 0.0
  %3356 = vmatprep.subr.mxu0 0.0
  %3357 = vmatpush1.msra.mxu0 0.0
  %3358 = vmatprep.subr.mxu0 0.0
  %3359 = vmatpush1.msra.mxu0 0.0
  %3360 = vmatprep.mubr.f32.mxu0 0.0
  %3361 = vmatmul.mubr.f32.gmra.mrb[0].mxu0 %v3105
  %v3362 = vpop.f32.mrb[0].mxu0
  %v3363 = vadd.f32 %v1241, %v3362
  %v3364 = vpop.f32.mrb[0].mxu0
  %3365 = vmatprep.mubr.f32.mxu0 0.0
  %3366 = vmatmul.mubr.f32.gmra.mrb[0].mxu0 %v3108
  %v3367 = vpop.f32.mrb[0].mxu0
  %v3368 = vadd.f32 %v1241, %v3367
  %v3369 = vpop.f32.mrb[0].mxu0
  %3370 = vmatprep.mubr.f32.mxu0 0.0
  %3371 = vmatmul.mubr.f32.gmra.mrb[0].mxu0 %v3111
  %v3372 = vpop.f32.mrb[0].mxu0
  %v3373 = vadd.f32 %v1241, %v3372
  %v3374 = vpop.f32.mrb[0].mxu0
  %3375 = vmatprep.mubr.f32.mxu0 0.0
  %3376 = vmatmul.mubr.f32.gmra.mrb[0].mxu0 %v3114
  %v3377 = vpop.f32.mrb[0].mxu0
  %v3378 = vadd.f32 %v1241, %v3377
  %v3379 = vpop.f32.mrb[0].mxu0
  %3380 = vmatprep.mubr.f32.mxu0 0.0
  %3381 = vmatmul.mubr.f32.gmra.mrb[0].mxu0 %v3117
  %v3382 = vpop.f32.mrb[0].mxu0
  %v3383 = vadd.f32 %v1241, %v3382
  %v3384 = vpop.f32.mrb[0].mxu0
  %3385 = vmatprep.mubr.f32.mxu0 0.0
  %3386 = vmatmul.mubr.f32.gmra.mrb[0].mxu0 %v3120
  %v3387 = vpop.f32.mrb[0].mxu0
  %v3388 = vadd.f32 %v1241, %v3387
  %v3389 = vpop.f32.mrb[0].mxu0
  %3390 = vmatprep.mubr.f32.mxu0 0.0
  %3391 = vmatmul.mubr.f32.gmra.mrb[0].mxu0 %v3123
  %v3392 = vpop.f32.mrb[0].mxu0
  %v3393 = vadd.f32 %v1241, %v3392
  %v3394 = vpop.f32.mrb[0].mxu0
  %3395 = vmatprep.mubr.f32.mxu0 0.0
  %3396 = vmatmul.mubr.f32.gmra.mrb[0].mxu0 %v3126
  %v3397 = vpop.f32.mrb[0].mxu0
  %v3398 = vadd.f32 %v1241, %v3397
  %v3399 = vpop.f32.mrb[0].mxu0
  %3400 = vmatprep.mubr.f32.mxu0 0.0
  %3401 = vmatmul.mubr.f32.gmra.mrb[0].mxu0 %v3129
  %v3402 = vpop.f32.mrb[0].mxu0
  %v3403 = vadd.f32 %v1241, %v3402
  %v3404 = vpop.f32.mrb[0].mxu0
  %3405 = vmatprep.mubr.f32.mxu0 0.0
  %3406 = vmatmul.mubr.f32.gmra.mrb[0].mxu0 %v3132
  %v3407 = vpop.f32.mrb[0].mxu0
  %v3408 = vadd.f32 %v1241, %v3407
  %v3409 = vpop.f32.mrb[0].mxu0
  %3410 = vmatprep.mubr.f32.mxu0 0.0
  %3411 = vmatmul.mubr.f32.gmra.mrb[0].mxu0 %v3135
  %v3412 = vpop.f32.mrb[0].mxu0
  %v3413 = vadd.f32 %v1241, %v3412
  %v3414 = vpop.f32.mrb[0].mxu0
  %3415 = vmatprep.mubr.f32.mxu0 0.0
  %3416 = vmatmul.mubr.f32.gmra.mrb[0].mxu0 %v3138
  %v3417 = vpop.f32.mrb[0].mxu0
  %v3418 = vadd.f32 %v1241, %v3417
  %v3419 = vpop.f32.mrb[0].mxu0
  %3420 = vmatprep.mubr.f32.mxu0 0.0
  %3421 = vmatmul.mubr.f32.gmra.mrb[0].mxu0 %v3141
  %v3422 = vpop.f32.mrb[0].mxu0
  %v3423 = vadd.f32 %v1241, %v3422
  %v3424 = vpop.f32.mrb[0].mxu0
  %3425 = vmatprep.mubr.f32.mxu0 0.0
  %3426 = vmatmul.mubr.f32.gmra.mrb[0].mxu0 %v3144
  %v3427 = vpop.f32.mrb[0].mxu0
  %v3428 = vadd.f32 %v1241, %v3427
  %v3429 = vpop.f32.mrb[0].mxu0
  %3430 = vmatprep.mubr.f32.mxu0 0.0
  %3431 = vmatmul.mubr.f32.gmra.mrb[0].mxu0 %v3147
  %v3432 = vpop.f32.mrb[0].mxu0
  %v3433 = vadd.f32 %v1241, %v3432
  %v3434 = vpop.f32.mrb[0].mxu0
  %3435 = vmatprep.mubr.f32.mxu0 0.0
  %3436 = vmatmul.mubr.f32.gmra.mrb[0].mxu0 %v3150
  %v3437 = vpop.f32.mrb[0].mxu0
  %v3438 = vadd.f32 %v1241, %v3437
  %v3439 = vpop.f32.mrb[0].mxu0
  %3440 = vmatprep.mubr.f32.mxu0 0.0
  %3441 = vmatmul.mubr.f32.gmra.mrb[0].mxu0 %v3153
  %v3442 = vpop.f32.mrb[0].mxu0
  %v3443 = vadd.f32 %v1241, %v3442
  %v3444 = vpop.f32.mrb[0].mxu0
  %3445 = vmatprep.mubr.f32.mxu0 0.0
  %3446 = vmatmul.mubr.f32.gmra.mrb[0].mxu0 %v3156
  %v3447 = vpop.f32.mrb[0].mxu0
  %v3448 = vadd.f32 %v1241, %v3447
  %v3449 = vpop.f32.mrb[0].mxu0
  %3450 = vmatprep.mubr.f32.mxu0 0.0
  %3451 = vmatmul.mubr.f32.gmra.mrb[0].mxu0 %v3159
  %v3452 = vpop.f32.mrb[0].mxu0
  %v3453 = vadd.f32 %v1241, %v3452
  %v3454 = vpop.f32.mrb[0].mxu0
  %3455 = vmatprep.mubr.f32.mxu0 0.0
  %3456 = vmatmul.mubr.f32.gmra.mrb[0].mxu0 %v3162
  %v3457 = vpop.f32.mrb[0].mxu0
  %v3458 = vadd.f32 %v1241, %v3457
  %v3459 = vpop.f32.mrb[0].mxu0
  %3460 = vmatprep.mubr.f32.mxu0 0.0
  %3461 = vmatmul.mubr.f32.gmra.mrb[0].mxu0 %v3165
  %v3462 = vpop.f32.mrb[0].mxu0
  %v3463 = vadd.f32 %v1241, %v3462
  %v3464 = vpop.f32.mrb[0].mxu0
  %3465 = vmatprep.mubr.f32.mxu0 0.0
  %3466 = vmatmul.mubr.f32.gmra.mrb[0].mxu0 %v3168
  %v3467 = vpop.f32.mrb[0].mxu0
  %v3468 = vadd.f32 %v1241, %v3467
  %v3469 = vpop.f32.mrb[0].mxu0
  %3470 = vmatprep.mubr.f32.mxu0 0.0
  %3471 = vmatmul.mubr.f32.gmra.mrb[0].mxu0 %v3171
  %v3472 = vpop.f32.mrb[0].mxu0
  %v3473 = vadd.f32 %v1241, %v3472
  %v3474 = vpop.f32.mrb[0].mxu0
  %3475 = vmatprep.mubr.f32.mxu0 0.0
  %3476 = vmatmul.mubr.f32.gmra.mrb[0].mxu0 %v3174
  %v3477 = vpop.f32.mrb[0].mxu0
  %v3478 = vadd.f32 %v1241, %v3477
  %v3479 = vpop.f32.mrb[0].mxu0
  %3480 = vmatprep.mubr.f32.mxu0 0.0
  %3481 = vmatmul.mubr.f32.gmra.mrb[0].mxu0 %v3177
  %v3482 = vpop.f32.mrb[0].mxu0
  %v3483 = vadd.f32 %v1241, %v3482
  %v3484 = vpop.f32.mrb[0].mxu0
  %3485 = vmatprep.mubr.f32.mxu0 0.0
  %3486 = vmatmul.mubr.f32.gmra.mrb[0].mxu0 %v3180
  %v3487 = vpop.f32.mrb[0].mxu0
  %v3488 = vadd.f32 %v1241, %v3487
  %v3489 = vpop.f32.mrb[0].mxu0
  %3490 = vmatprep.mubr.f32.mxu0 0.0
  %3491 = vmatmul.mubr.f32.gmra.mrb[0].mxu0 %v3183
  %v3492 = vpop.f32.mrb[0].mxu0
  %v3493 = vadd.f32 %v1241, %v3492
  %v3494 = vpop.f32.mrb[0].mxu0
  %3495 = vmatprep.mubr.f32.mxu0 0.0
  %3496 = vmatmul.mubr.f32.gmra.mrb[0].mxu0 %v3186
  %v3497 = vpop.f32.mrb[0].mxu0
  %v3498 = vadd.f32 %v1241, %v3497
  %v3499 = vpop.f32.mrb[0].mxu0
  %3500 = vmatprep.mubr.f32.mxu0 0.0
  %3501 = vmatmul.mubr.f32.gmra.mrb[0].mxu0 %v3189
  %v3502 = vpop.f32.mrb[0].mxu0
  %v3503 = vadd.f32 %v1241, %v3502
  %v3504 = vpop.f32.mrb[0].mxu0
  %3505 = vmatprep.mubr.f32.mxu0 0.0
  %3506 = vmatmul.mubr.f32.gmra.mrb[0].mxu0 %v3192
  %v3507 = vpop.f32.mrb[0].mxu0
  %v3508 = vadd.f32 %v1241, %v3507
  %v3509 = vpop.f32.mrb[0].mxu0
  %3510 = vmatprep.mubr.f32.mxu0 0.0
  %3511 = vmatmul.mubr.f32.gmra.mrb[0].mxu0 %v3195
  %v3512 = vpop.f32.mrb[0].mxu0
  %v3513 = vadd.f32 %v1241, %v3512
  %v3514 = vpop.f32.mrb[0].mxu0
  %3515 = vmatprep.mubr.f32.mxu0 0.0
  %3516 = vmatmul.mubr.f32.gmra.mrb[0].mxu0 %v3198
  %v3517 = vpop.f32.mrb[0].mxu0
  %v3518 = vadd.f32 %v1241, %v3517
  %v3519 = vpop.f32.mrb[0].mxu0
  %3520 = vmatprep.mubr.f32.mxu0 0.0
  %3521 = vmatmul.mubr.f32.gmra.mrb[0].mxu0 %v3201
  %v3522 = vpop.f32.mrb[0].mxu0
  %v3523 = vadd.f32 %v1241, %v3522
  %v3524 = vpop.f32.mrb[0].mxu0
  %3525 = vmatprep.mubr.f32.mxu0 0.0
  %3526 = vmatmul.mubr.f32.gmra.mrb[0].mxu0 %v3204
  %v3527 = vpop.f32.mrb[0].mxu0
  %v3528 = vadd.f32 %v1241, %v3527
  %v3529 = vpop.f32.mrb[0].mxu0
  %3530 = vmatprep.mubr.f32.mxu0 0.0
  %3531 = vmatmul.mubr.f32.gmra.mrb[0].mxu0 %v3207
  %v3532 = vpop.f32.mrb[0].mxu0
  %v3533 = vadd.f32 %v1241, %v3532
  %v3534 = vpop.f32.mrb[0].mxu0
  %3535 = vmatprep.mubr.f32.mxu0 0.0
  %3536 = vmatmul.mubr.f32.gmra.mrb[0].mxu0 %v3210
  %v3537 = vpop.f32.mrb[0].mxu0
  %v3538 = vadd.f32 %v1241, %v3537
  %v3539 = vpop.f32.mrb[0].mxu0
  %3540 = vmatprep.mubr.f32.mxu0 0.0
  %3541 = vmatmul.mubr.f32.gmra.mrb[0].mxu0 %v3213
  %v3542 = vpop.f32.mrb[0].mxu0
  %v3543 = vadd.f32 %v1241, %v3542
  %v3544 = vpop.f32.mrb[0].mxu0
  %3545 = vmatprep.mubr.f32.mxu0 0.0
  %3546 = vmatmul.mubr.f32.gmra.mrb[0].mxu0 %v3216
  %v3547 = vpop.f32.mrb[0].mxu0
  %v3548 = vadd.f32 %v1241, %v3547
  %v3549 = vpop.f32.mrb[0].mxu0
  %3550 = vmatprep.mubr.f32.mxu0 0.0
  %3551 = vmatmul.mubr.f32.gmra.mrb[0].mxu0 %v3219
  %v3552 = vpop.f32.mrb[0].mxu0
  %v3553 = vadd.f32 %v1241, %v3552
  %v3554 = vpop.f32.mrb[0].mxu0
  %3555 = vmatprep.mubr.f32.mxu0 0.0
  %3556 = vmatmul.mubr.f32.gmra.mrb[0].mxu0 %v3222
  %v3557 = vpop.f32.mrb[0].mxu0
  %v3558 = vadd.f32 %v1241, %v3557
  %v3559 = vpop.f32.mrb[0].mxu0
  %3560 = vmatprep.mubr.f32.mxu0 0.0
  %3561 = vmatmul.mubr.f32.gmra.mrb[0].mxu0 %v3225
  %v3562 = vpop.f32.mrb[0].mxu0
  %v3563 = vadd.f32 %v1241, %v3562
  %v3564 = vpop.f32.mrb[0].mxu0
  %3565 = vmatprep.mubr.f32.mxu0 0.0
  %3566 = vmatmul.mubr.f32.gmra.mrb[0].mxu0 %v3228
  %v3567 = vpop.f32.mrb[0].mxu0
  %v3568 = vadd.f32 %v1241, %v3567
  %v3569 = vpop.f32.mrb[0].mxu0
  %3570 = vmatprep.mubr.f32.mxu0 0.0
  %3571 = vmatmul.mubr.f32.gmra.mrb[0].mxu0 %v3231
  %v3572 = vpop.f32.mrb[0].mxu0
  %v3573 = vadd.f32 %v1241, %v3572
  %v3574 = vpop.f32.mrb[0].mxu0
  %3575 = vmatprep.mubr.f32.mxu0 0.0
  %3576 = vmatmul.mubr.f32.gmra.mrb[0].mxu0 %v3234
  %v3577 = vpop.f32.mrb[0].mxu0
  %v3578 = vadd.f32 %v1241, %v3577
  %v3579 = vpop.f32.mrb[0].mxu0
  %3580 = vmatprep.mubr.f32.mxu0 0.0
  %3581 = vmatmul.mubr.f32.gmra.mrb[0].mxu0 %v3237
  %v3582 = vpop.f32.mrb[0].mxu0
  %v3583 = vadd.f32 %v1241, %v3582
  %v3584 = vpop.f32.mrb[0].mxu0
  %3585 = vmatprep.mubr.f32.mxu0 0.0
  %3586 = vmatmul.mubr.f32.gmra.mrb[0].mxu0 %v3240
  %v3587 = vpop.f32.mrb[0].mxu0
  %v3588 = vadd.f32 %v1241, %v3587
  %v3589 = vpop.f32.mrb[0].mxu0
  %3590 = vmatprep.mubr.f32.mxu0 0.0
  %3591 = vmatmul.mubr.f32.gmra.mrb[0].mxu0 %v3243
  %v3592 = vpop.f32.mrb[0].mxu0
  %v3593 = vadd.f32 %v1241, %v3592
  %v3594 = vpop.f32.mrb[0].mxu0
  %3595 = vmatprep.mubr.f32.mxu0 0.0
  %3596 = vmatmul.mubr.f32.gmra.mrb[0].mxu0 %v3246
  %v3597 = vpop.f32.mrb[0].mxu0
  %v3598 = vadd.f32 %v1241, %v3597
  %v3599 = vpop.f32.mrb[0].mxu0
  %3600 = vmatprep.mubr.f32.mxu0 0.0
  %3601 = vmatmul.mubr.f32.gmra.mrb[0].mxu0 %v3249
  %v3602 = vpop.f32.mrb[0].mxu0
  %v3603 = vadd.f32 %v1241, %v3602
  %v3604 = vpop.f32.mrb[0].mxu0
  %3605 = vmatprep.mubr.f32.mxu0 0.0
  %3606 = vmatmul.mubr.f32.gmra.mrb[0].mxu0 %v3252
  %v3607 = vpop.f32.mrb[0].mxu0
  %v3608 = vadd.f32 %v1241, %v3607
  %v3609 = vpop.f32.mrb[0].mxu0
  %3610 = vmatprep.mubr.f32.mxu0 0.0
  %3611 = vmatmul.mubr.f32.gmra.mrb[0].mxu0 %v3255
  %v3612 = vpop.f32.mrb[0].mxu0
  %v3613 = vadd.f32 %v1241, %v3612
  %v3614 = vpop.f32.mrb[0].mxu0
  %3615 = vmatprep.mubr.f32.mxu0 0.0
  %3616 = vmatmul.mubr.f32.gmra.mrb[0].mxu0 %v3258
  %v3617 = vpop.f32.mrb[0].mxu0
  %v3618 = vadd.f32 %v1241, %v3617
  %v3619 = vpop.f32.mrb[0].mxu0
  %3620 = vmatprep.mubr.f32.mxu0 0.0
  %3621 = vmatmul.mubr.f32.gmra.mrb[0].mxu0 %v3261
  %v3622 = vpop.f32.mrb[0].mxu0
  %v3623 = vadd.f32 %v1241, %v3622
  %v3624 = vpop.f32.mrb[0].mxu0
  %3625 = vmatprep.mubr.f32.mxu0 0.0
  %3626 = vmatmul.mubr.f32.gmra.mrb[0].mxu0 %v3264
  %v3627 = vpop.f32.mrb[0].mxu0
  %v3628 = vadd.f32 %v1241, %v3627
  %v3629 = vpop.f32.mrb[0].mxu0
  %3630 = vmatprep.mubr.f32.mxu0 0.0
  %3631 = vmatmul.mubr.f32.gmra.mrb[0].mxu0 %v3267
  %v3632 = vpop.f32.mrb[0].mxu0
  %v3633 = vadd.f32 %v1241, %v3632
  %v3634 = vpop.f32.mrb[0].mxu0
  %3635 = vmatprep.mubr.f32.mxu0 0.0
  %3636 = vmatmul.mubr.f32.gmra.mrb[0].mxu0 %v3270
  %v3637 = vpop.f32.mrb[0].mxu0
  %v3638 = vadd.f32 %v1241, %v3637
  %v3639 = vpop.f32.mrb[0].mxu0
  %3640 = vmatprep.mubr.f32.mxu0 0.0
  %3641 = vmatmul.mubr.f32.gmra.mrb[0].mxu0 %v3273
  %v3642 = vpop.f32.mrb[0].mxu0
  %v3643 = vadd.f32 %v1241, %v3642
  %v3644 = vpop.f32.mrb[0].mxu0
  %3645 = vmatprep.mubr.f32.mxu0 0.0
  %3646 = vmatmul.mubr.f32.gmra.mrb[0].mxu0 %v3276
  %v3647 = vpop.f32.mrb[0].mxu0
  %v3648 = vadd.f32 %v1241, %v3647
  %v3649 = vpop.f32.mrb[0].mxu0
  %3650 = vmatprep.mubr.f32.mxu0 0.0
  %3651 = vmatmul.mubr.f32.gmra.mrb[0].mxu0 %v3279
  %v3652 = vpop.f32.mrb[0].mxu0
  %v3653 = vadd.f32 %v1241, %v3652
  %v3654 = vpop.f32.mrb[0].mxu0
  %3655 = vmatprep.mubr.f32.mxu0 0.0
  %3656 = vmatmul.mubr.f32.gmra.mrb[0].mxu0 %v3282
  %v3657 = vpop.f32.mrb[0].mxu0
  %v3658 = vadd.f32 %v1241, %v3657
  %v3659 = vpop.f32.mrb[0].mxu0
  %3660 = vmatprep.mubr.f32.mxu0 0.0
  %3661 = vmatmul.mubr.f32.gmra.mrb[0].mxu0 %v3285
  %v3662 = vpop.f32.mrb[0].mxu0
  %v3663 = vadd.f32 %v1241, %v3662
  %v3664 = vpop.f32.mrb[0].mxu0
  %3665 = vmatprep.mubr.f32.mxu0 0.0
  %3666 = vmatmul.mubr.f32.gmra.mrb[0].mxu0 %v3288
  %v3667 = vpop.f32.mrb[0].mxu0
  %v3668 = vadd.f32 %v1241, %v3667
  %v3669 = vpop.f32.mrb[0].mxu0
  %3670 = vmatprep.mubr.f32.mxu0 0.0
  %3671 = vmatmul.mubr.f32.gmra.mrb[0].mxu0 %v3291
  %v3672 = vpop.f32.mrb[0].mxu0
  %v3673 = vadd.f32 %v1241, %v3672
  %v3674 = vpop.f32.mrb[0].mxu0
  %3675 = vmatprep.mubr.f32.mxu0 0.0
  %3676 = vmatmul.mubr.f32.gmra.mrb[0].mxu0 %v3294
  %v3677 = vpop.f32.mrb[0].mxu0
  %v3678 = vadd.f32 %v1241, %v3677
  %v3679 = vpop.f32.mrb[0].mxu0
  %3680 = vdwg.mxu0
  %3745 = vrot.lane.b32.xlu0 %v3363, 4
  %v3746 = vpop.permute.xlu0 %3745
  %3747 = vrot.lane.b32.xlu0 %v3368, 4
  %v3748 = vpop.permute.xlu0 %3747
  %3749 = vrot.lane.b32.xlu0 %v3373, 4
  %v3750 = vpop.permute.xlu0 %3749
  %3751 = vrot.lane.b32.xlu0 %v3378, 4
  %v3752 = vpop.permute.xlu0 %3751
  %3753 = vrot.lane.b32.xlu0 %v3383, 4
  %v3754 = vpop.permute.xlu0 %3753
  %3755 = vrot.lane.b32.xlu0 %v3388, 4
  %v3756 = vpop.permute.xlu0 %3755
  %3757 = vrot.lane.b32.xlu0 %v3393, 4
  %v3758 = vpop.permute.xlu0 %3757
  %3759 = vrot.lane.b32.xlu0 %v3398, 4
  %v3760 = vpop.permute.xlu0 %3759
  %3761 = vrot.lane.b32.xlu0 %v3403, 4
  %v3762 = vpop.permute.xlu0 %3761
  %3763 = vrot.lane.b32.xlu0 %v3408, 4
  %v3764 = vpop.permute.xlu0 %3763
  %3765 = vrot.lane.b32.xlu0 %v3413, 4
  %v3766 = vpop.permute.xlu0 %3765
  %3767 = vrot.lane.b32.xlu0 %v3418, 4
  %v3768 = vpop.permute.xlu0 %3767
  %3769 = vrot.lane.b32.xlu0 %v3423, 4
  %v3770 = vpop.permute.xlu0 %3769
  %3771 = vrot.lane.b32.xlu0 %v3428, 4
  %v3772 = vpop.permute.xlu0 %3771
  %3773 = vrot.lane.b32.xlu0 %v3433, 4
  %v3774 = vpop.permute.xlu0 %3773
  %3775 = vrot.lane.b32.xlu0 %v3438, 4
  %v3776 = vpop.permute.xlu0 %3775
  %3777 = vrot.lane.b32.xlu0 %v3443, 4
  %v3778 = vpop.permute.xlu0 %3777
  %3779 = vrot.lane.b32.xlu0 %v3448, 4
  %v3780 = vpop.permute.xlu0 %3779
  %3781 = vrot.lane.b32.xlu0 %v3453, 4
  %v3782 = vpop.permute.xlu0 %3781
  %3783 = vrot.lane.b32.xlu0 %v3458, 4
  %v3784 = vpop.permute.xlu0 %3783
  %3785 = vrot.lane.b32.xlu0 %v3463, 4
  %v3786 = vpop.permute.xlu0 %3785
  %3787 = vrot.lane.b32.xlu0 %v3468, 4
  %v3788 = vpop.permute.xlu0 %3787
  %3789 = vrot.lane.b32.xlu0 %v3473, 4
  %v3790 = vpop.permute.xlu0 %3789
  %3791 = vrot.lane.b32.xlu0 %v3478, 4
  %v3792 = vpop.permute.xlu0 %3791
  %3793 = vrot.lane.b32.xlu0 %v3483, 4
  %v3794 = vpop.permute.xlu0 %3793
  %3795 = vrot.lane.b32.xlu0 %v3488, 4
  %v3796 = vpop.permute.xlu0 %3795
  %3797 = vrot.lane.b32.xlu0 %v3493, 4
  %v3798 = vpop.permute.xlu0 %3797
  %3799 = vrot.lane.b32.xlu0 %v3498, 4
  %v3800 = vpop.permute.xlu0 %3799
  %3801 = vrot.lane.b32.xlu0 %v3503, 4
  %v3802 = vpop.permute.xlu0 %3801
  %3803 = vrot.lane.b32.xlu0 %v3508, 4
  %v3804 = vpop.permute.xlu0 %3803
  %3805 = vrot.lane.b32.xlu0 %v3513, 4
  %v3806 = vpop.permute.xlu0 %3805
  %3807 = vrot.lane.b32.xlu0 %v3518, 4
  %v3808 = vpop.permute.xlu0 %3807
  %3809 = vrot.lane.b32.xlu0 %v3523, 4
  %v3810 = vpop.permute.xlu0 %3809
  %3811 = vrot.lane.b32.xlu0 %v3528, 4
  %v3812 = vpop.permute.xlu0 %3811
  %3813 = vrot.lane.b32.xlu0 %v3533, 4
  %v3814 = vpop.permute.xlu0 %3813
  %3815 = vrot.lane.b32.xlu0 %v3538, 4
  %v3816 = vpop.permute.xlu0 %3815
  %3817 = vrot.lane.b32.xlu0 %v3543, 4
  %v3818 = vpop.permute.xlu0 %3817
  %3819 = vrot.lane.b32.xlu0 %v3548, 4
  %v3820 = vpop.permute.xlu0 %3819
  %3821 = vrot.lane.b32.xlu0 %v3553, 4
  %v3822 = vpop.permute.xlu0 %3821
  %3823 = vrot.lane.b32.xlu0 %v3558, 4
  %v3824 = vpop.permute.xlu0 %3823
  %3825 = vrot.lane.b32.xlu0 %v3563, 4
  %v3826 = vpop.permute.xlu0 %3825
  %3827 = vrot.lane.b32.xlu0 %v3568, 4
  %v3828 = vpop.permute.xlu0 %3827
  %3829 = vrot.lane.b32.xlu0 %v3573, 4
  %v3830 = vpop.permute.xlu0 %3829
  %3831 = vrot.lane.b32.xlu0 %v3578, 4
  %v3832 = vpop.permute.xlu0 %3831
  %3833 = vrot.lane.b32.xlu0 %v3583, 4
  %v3834 = vpop.permute.xlu0 %3833
  %3835 = vrot.lane.b32.xlu0 %v3588, 4
  %v3836 = vpop.permute.xlu0 %3835
  %3837 = vrot.lane.b32.xlu0 %v3593, 4
  %v3838 = vpop.permute.xlu0 %3837
  %3839 = vrot.lane.b32.xlu0 %v3598, 4
  %v3840 = vpop.permute.xlu0 %3839
  %3841 = vrot.lane.b32.xlu0 %v3603, 4
  %v3842 = vpop.permute.xlu0 %3841
  %3843 = vrot.lane.b32.xlu0 %v3608, 4
  %v3844 = vpop.permute.xlu0 %3843
  %3845 = vrot.lane.b32.xlu0 %v3613, 4
  %v3846 = vpop.permute.xlu0 %3845
  %3847 = vrot.lane.b32.xlu0 %v3618, 4
  %v3848 = vpop.permute.xlu0 %3847
  %3849 = vrot.lane.b32.xlu0 %v3623, 4
  %v3850 = vpop.permute.xlu0 %3849
  %3851 = vrot.lane.b32.xlu0 %v3628, 4
  %v3852 = vpop.permute.xlu0 %3851
  %3853 = vrot.lane.b32.xlu0 %v3633, 4
  %v3854 = vpop.permute.xlu0 %3853
  %3855 = vrot.lane.b32.xlu0 %v3638, 4
  %v3856 = vpop.permute.xlu0 %3855
  %3857 = vrot.lane.b32.xlu0 %v3643, 4
  %v3858 = vpop.permute.xlu0 %3857
  %3859 = vrot.lane.b32.xlu0 %v3648, 4
  %v3860 = vpop.permute.xlu0 %3859
  %3861 = vrot.lane.b32.xlu0 %v3653, 4
  %v3862 = vpop.permute.xlu0 %3861
  %3863 = vrot.lane.b32.xlu0 %v3658, 4
  %v3864 = vpop.permute.xlu0 %3863
  %3865 = vrot.lane.b32.xlu0 %v3663, 4
  %v3866 = vpop.permute.xlu0 %3865
  %3867 = vrot.lane.b32.xlu0 %v3668, 4
  %v3868 = vpop.permute.xlu0 %3867
  %3869 = vrot.lane.b32.xlu0 %v3673, 4
  %v3870 = vpop.permute.xlu0 %3869
  %3871 = vrot.lane.b32.xlu0 %v3678, 4
  %v3872 = vpop.permute.xlu0 %3871
  %vm3937 = vcmask 64544
  %3938 = vst.msk [vmem:[%s3] sm:$0xff] %vm3937, %v3746
  %3939 = vst.msk [vmem:[%s3 + $0x8] sm:$0xff] %vm3937, %v3748
  %3940 = vst.msk [vmem:[%s3 + $0x20] sm:$0xff] %vm3937, %v3750
  %3941 = vst.msk [vmem:[%s3 + $0x28] sm:$0xff] %vm3937, %v3752
  %3942 = vst.msk [vmem:[%s3 + $0x40] sm:$0xff] %vm3937, %v3754
  %3943 = vst.msk [vmem:[%s3 + $0x48] sm:$0xff] %vm3937, %v3756
  %3944 = vst.msk [vmem:[%s3 + $0x60] sm:$0xff] %vm3937, %v3758
  %3945 = vst.msk [vmem:[%s3 + $0x68] sm:$0xff] %vm3937, %v3760
  %3946 = vst.msk [vmem:[%s3 + $0x80] sm:$0xff] %vm3937, %v3762
  %3947 = vst.msk [vmem:[%s3 + $0x88] sm:$0xff] %vm3937, %v3764
  %3948 = vst.msk [vmem:[%s3 + $0xa0] sm:$0xff] %vm3937, %v3766
  %3949 = vst.msk [vmem:[%s3 + $0xa8] sm:$0xff] %vm3937, %v3768
  %3950 = vst.msk [vmem:[%s3 + $0xc0] sm:$0xff] %vm3937, %v3770
  %3951 = vst.msk [vmem:[%s3 + $0xc8] sm:$0xff] %vm3937, %v3772
  %3952 = vst.msk [vmem:[%s3 + $0xe0] sm:$0xff] %vm3937, %v3774
  %3953 = vst.msk [vmem:[%s3 + $0xe8] sm:$0xff] %vm3937, %v3776
  %3954 = vst.msk [vmem:[%s3 + $0x100] sm:$0xff] %vm3937, %v3778
  %3955 = vst.msk [vmem:[%s3 + $0x108] sm:$0xff] %vm3937, %v3780
  %3956 = vst.msk [vmem:[%s3 + $0x120] sm:$0xff] %vm3937, %v3782
  %3957 = vst.msk [vmem:[%s3 + $0x128] sm:$0xff] %vm3937, %v3784
  %3958 = vst.msk [vmem:[%s3 + $0x140] sm:$0xff] %vm3937, %v3786
  %3959 = vst.msk [vmem:[%s3 + $0x148] sm:$0xff] %vm3937, %v3788
  %3960 = vst.msk [vmem:[%s3 + $0x160] sm:$0xff] %vm3937, %v3790
  %3961 = vst.msk [vmem:[%s3 + $0x168] sm:$0xff] %vm3937, %v3792
  %3962 = vst.msk [vmem:[%s3 + $0x180] sm:$0xff] %vm3937, %v3794
  %3963 = vst.msk [vmem:[%s3 + $0x188] sm:$0xff] %vm3937, %v3796
  %3964 = vst.msk [vmem:[%s3 + $0x1a0] sm:$0xff] %vm3937, %v3798
  %3965 = vst.msk [vmem:[%s3 + $0x1a8] sm:$0xff] %vm3937, %v3800
  %3966 = vst.msk [vmem:[%s3 + $0x1c0] sm:$0xff] %vm3937, %v3802
  %3967 = vst.msk [vmem:[%s3 + $0x1c8] sm:$0xff] %vm3937, %v3804
  %3968 = vst.msk [vmem:[%s3 + $0x1e0] sm:$0xff] %vm3937, %v3806
  %3969 = vst.msk [vmem:[%s3 + $0x1e8] sm:$0xff] %vm3937, %v3808
  %3970 = vst.msk [vmem:[%s3 + $0x200] sm:$0xff] %vm3937, %v3810
  %3971 = vst.msk [vmem:[%s3 + $0x208] sm:$0xff] %vm3937, %v3812
  %3972 = vst.msk [vmem:[%s3 + $0x220] sm:$0xff] %vm3937, %v3814
  %3973 = vst.msk [vmem:[%s3 + $0x228] sm:$0xff] %vm3937, %v3816
  %3974 = vst.msk [vmem:[%s3 + $0x240] sm:$0xff] %vm3937, %v3818
  %3975 = vst.msk [vmem:[%s3 + $0x248] sm:$0xff] %vm3937, %v3820
  %3976 = vst.msk [vmem:[%s3 + $0x260] sm:$0xff] %vm3937, %v3822
  %3977 = vst.msk [vmem:[%s3 + $0x268] sm:$0xff] %vm3937, %v3824
  %3978 = vst.msk [vmem:[%s3 + $0x280] sm:$0xff] %vm3937, %v3826
  %3979 = vst.msk [vmem:[%s3 + $0x288] sm:$0xff] %vm3937, %v3828
  %3980 = vst.msk [vmem:[%s3 + $0x2a0] sm:$0xff] %vm3937, %v3830
  %3981 = vst.msk [vmem:[%s3 + $0x2a8] sm:$0xff] %vm3937, %v3832
  %3982 = vst.msk [vmem:[%s3 + $0x2c0] sm:$0xff] %vm3937, %v3834
  %3983 = vst.msk [vmem:[%s3 + $0x2c8] sm:$0xff] %vm3937, %v3836
  %3984 = vst.msk [vmem:[%s3 + $0x2e0] sm:$0xff] %vm3937, %v3838
  %3985 = vst.msk [vmem:[%s3 + $0x2e8] sm:$0xff] %vm3937, %v3840
  %3986 = vst.msk [vmem:[%s3 + $0x300] sm:$0xff] %vm3937, %v3842
  %3987 = vst.msk [vmem:[%s3 + $0x308] sm:$0xff] %vm3937, %v3844
  %3988 = vst.msk [vmem:[%s3 + $0x320] sm:$0xff] %vm3937, %v3846
  %3989 = vst.msk [vmem:[%s3 + $0x328] sm:$0xff] %vm3937, %v3848
  %3990 = vst.msk [vmem:[%s3 + $0x340] sm:$0xff] %vm3937, %v3850
  %3991 = vst.msk [vmem:[%s3 + $0x348] sm:$0xff] %vm3937, %v3852
  %3992 = vst.msk [vmem:[%s3 + $0x360] sm:$0xff] %vm3937, %v3854
  %3993 = vst.msk [vmem:[%s3 + $0x368] sm:$0xff] %vm3937, %v3856
  %3994 = vst.msk [vmem:[%s3 + $0x380] sm:$0xff] %vm3937, %v3858
  %3995 = vst.msk [vmem:[%s3 + $0x388] sm:$0xff] %vm3937, %v3860
  %3996 = vst.msk [vmem:[%s3 + $0x3a0] sm:$0xff] %vm3937, %v3862
  %3997 = vst.msk [vmem:[%s3 + $0x3a8] sm:$0xff] %vm3937, %v3864
  %3998 = vst.msk [vmem:[%s3 + $0x3c0] sm:$0xff] %vm3937, %v3866
  %3999 = vst.msk [vmem:[%s3 + $0x3c8] sm:$0xff] %vm3937, %v3868
  %4000 = vst.msk [vmem:[%s3 + $0x3e0] sm:$0xff] %vm3937, %v3870
  %4001 = vst.msk [vmem:[%s3 + $0x3e8] sm:$0xff] %vm3937, %v3872
  %v4002 = vld [vmem:[%s143] sm:$0xff]
  %v4003 = vld [vmem:[%s143 + $0x8] sm:$0xff]
  %v4004 = vld [vmem:[%s143 + $0x18] sm:$0xff]
  %v4005 = vld [vmem:[%s143 + $0x20] sm:$0xff]
  %v4006 = vld [vmem:[%s143 + $0x30] sm:$0xff]
  %v4007 = vld [vmem:[%s143 + $0x38] sm:$0xff]
  %v4008 = vld [vmem:[%s143 + $0x48] sm:$0xff]
  %v4009 = vld [vmem:[%s143 + $0x50] sm:$0xff]
  %v4010 = vld [vmem:[%s143 + $0x60] sm:$0xff]
  %v4011 = vld [vmem:[%s143 + $0x68] sm:$0xff]
  %v4012 = vld [vmem:[%s143 + $0x78] sm:$0xff]
  %v4013 = vld [vmem:[%s143 + $0x80] sm:$0xff]
  %v4014 = vld [vmem:[%s143 + $0x90] sm:$0xff]
  %v4015 = vld [vmem:[%s143 + $0x98] sm:$0xff]
  %v4016 = vld [vmem:[%s143 + $0xa8] sm:$0xff]
  %v4017 = vld [vmem:[%s143 + $0xb0] sm:$0xff]
  %v4018 = vld [vmem:[%s143 + $0xc0] sm:$0xff]
  %v4019 = vld [vmem:[%s143 + $0xc8] sm:$0xff]
  %v4020 = vld [vmem:[%s143 + $0xd8] sm:$0xff]
  %v4021 = vld [vmem:[%s143 + $0xe0] sm:$0xff]
  %v4022 = vld [vmem:[%s143 + $0xf0] sm:$0xff]
  %v4023 = vld [vmem:[%s143 + $0xf8] sm:$0xff]
  %v4024 = vld [vmem:[%s143 + $0x108] sm:$0xff]
  %v4025 = vld [vmem:[%s143 + $0x110] sm:$0xff]
  %v4026 = vld [vmem:[%s143 + $0x120] sm:$0xff]
  %v4027 = vld [vmem:[%s143 + $0x128] sm:$0xff]
  %v4028 = vld [vmem:[%s143 + $0x138] sm:$0xff]
  %v4029 = vld [vmem:[%s143 + $0x140] sm:$0xff]
  %v4030 = vld [vmem:[%s143 + $0x150] sm:$0xff]
  %v4031 = vld [vmem:[%s143 + $0x158] sm:$0xff]
  %v4032 = vld [vmem:[%s143 + $0x168] sm:$0xff]
  %v4033 = vld [vmem:[%s143 + $0x170] sm:$0xff]
  %v4034 = vld [vmem:[%s143 + $0x1b0] sm:$0xff]
  %v4035 = vld [vmem:[%s143 + $0x1b8] sm:$0xff]
  %v4036 = vld [vmem:[%s143 + $0x1c8] sm:$0xff]
  %v4037 = vld [vmem:[%s143 + $0x1d0] sm:$0xff]
  %v4038 = vld [vmem:[%s143 + $0x1e0] sm:$0xff]
  %v4039 = vld [vmem:[%s143 + $0x1e8] sm:$0xff]
  %v4040 = vld [vmem:[%s143 + $0x1f8] sm:$0xff]
  %v4041 = vld [vmem:[%s143 + $0x200] sm:$0xff]
  %v4042 = vld [vmem:[%s143 + $0x210] sm:$0xff]
  %v4043 = vld [vmem:[%s143 + $0x218] sm:$0xff]
  %v4044 = vld [vmem:[%s143 + $0x228] sm:$0xff]
  %v4045 = vld [vmem:[%s143 + $0x230] sm:$0xff]
  %v4046 = vld [vmem:[%s143 + $0x240] sm:$0xff]
  %v4047 = vld [vmem:[%s143 + $0x248] sm:$0xff]
  %v4048 = vld [vmem:[%s143 + $0x258] sm:$0xff]
  %v4049 = vld [vmem:[%s143 + $0x260] sm:$0xff]
  %v4050 = vld [vmem:[%s143 + $0x270] sm:$0xff]
  %v4051 = vld [vmem:[%s143 + $0x278] sm:$0xff]
  %v4052 = vld [vmem:[%s143 + $0x288] sm:$0xff]
  %v4053 = vld [vmem:[%s143 + $0x290] sm:$0xff]
  %v4054 = vld [vmem:[%s143 + $0x2a0] sm:$0xff]
  %v4055 = vld [vmem:[%s143 + $0x2a8] sm:$0xff]
  %v4056 = vld [vmem:[%s143 + $0x2b8] sm:$0xff]
  %v4057 = vld [vmem:[%s143 + $0x2c0] sm:$0xff]
  %v4058 = vld [vmem:[%s143 + $0x2d0] sm:$0xff]
  %v4059 = vld [vmem:[%s143 + $0x2d8] sm:$0xff]
  %v4060 = vld [vmem:[%s143 + $0x2e8] sm:$0xff]
  %v4061 = vld [vmem:[%s143 + $0x2f0] sm:$0xff]
  %v4062 = vld [vmem:[%s143 + $0x300] sm:$0xff]
  %v4063 = vld [vmem:[%s143 + $0x308] sm:$0xff]
  %v4064 = vld [vmem:[%s143 + $0x318] sm:$0xff]
  %v4065 = vld [vmem:[%s143 + $0x320] sm:$0xff]
  %v4066 = vld [vmem:[%s143 + $0x1] sm:$0xff]
  %v4067 = vld [vmem:[%s143 + $0x9] sm:$0xff]
  %v4068 = vld [vmem:[%s143 + $0x19] sm:$0xff]
  %v4069 = vld [vmem:[%s143 + $0x21] sm:$0xff]
  %v4070 = vld [vmem:[%s143 + $0x31] sm:$0xff]
  %v4071 = vld [vmem:[%s143 + $0x39] sm:$0xff]
  %v4072 = vld [vmem:[%s143 + $0x49] sm:$0xff]
  %v4073 = vld [vmem:[%s143 + $0x51] sm:$0xff]
  %v4074 = vld [vmem:[%s143 + $0x61] sm:$0xff]
  %v4075 = vld [vmem:[%s143 + $0x69] sm:$0xff]
  %v4076 = vld [vmem:[%s143 + $0x79] sm:$0xff]
  %v4077 = vld [vmem:[%s143 + $0x81] sm:$0xff]
  %v4078 = vld [vmem:[%s143 + $0x91] sm:$0xff]
  %v4079 = vld [vmem:[%s143 + $0x99] sm:$0xff]
  %v4080 = vld [vmem:[%s143 + $0xa9] sm:$0xff]
  %v4081 = vld [vmem:[%s143 + $0xb1] sm:$0xff]
  %v4082 = vld [vmem:[%s143 + $0xc1] sm:$0xff]
  %v4083 = vld [vmem:[%s143 + $0xc9] sm:$0xff]
  %v4084 = vld [vmem:[%s143 + $0xd9] sm:$0xff]
  %v4085 = vld [vmem:[%s143 + $0xe1] sm:$0xff]
  %v4086 = vld [vmem:[%s143 + $0xf1] sm:$0xff]
  %v4087 = vld [vmem:[%s143 + $0xf9] sm:$0xff]
  %v4088 = vld [vmem:[%s143 + $0x109] sm:$0xff]
  %v4089 = vld [vmem:[%s143 + $0x111] sm:$0xff]
  %v4090 = vld [vmem:[%s143 + $0x121] sm:$0xff]
  %v4091 = vld [vmem:[%s143 + $0x129] sm:$0xff]
  %v4092 = vld [vmem:[%s143 + $0x139] sm:$0xff]
  %v4093 = vld [vmem:[%s143 + $0x141] sm:$0xff]
  %v4094 = vld [vmem:[%s143 + $0x151] sm:$0xff]
  %v4095 = vld [vmem:[%s143 + $0x159] sm:$0xff]
  %v4096 = vld [vmem:[%s143 + $0x169] sm:$0xff]
  %v4097 = vld [vmem:[%s143 + $0x171] sm:$0xff]
  %v4098 = vld [vmem:[%s143 + $0x1b1] sm:$0xff]
  %v4099 = vld [vmem:[%s143 + $0x1b9] sm:$0xff]
  %v4100 = vld [vmem:[%s143 + $0x1c9] sm:$0xff]
  %v4101 = vld [vmem:[%s143 + $0x1d1] sm:$0xff]
  %v4102 = vld [vmem:[%s143 + $0x1e1] sm:$0xff]
  %v4103 = vld [vmem:[%s143 + $0x1e9] sm:$0xff]
  %v4104 = vld [vmem:[%s143 + $0x1f9] sm:$0xff]
  %v4105 = vld [vmem:[%s143 + $0x201] sm:$0xff]
  %v4106 = vld [vmem:[%s143 + $0x211] sm:$0xff]
  %v4107 = vld [vmem:[%s143 + $0x219] sm:$0xff]
  %v4108 = vld [vmem:[%s143 + $0x229] sm:$0xff]
  %v4109 = vld [vmem:[%s143 + $0x231] sm:$0xff]
  %v4110 = vld [vmem:[%s143 + $0x241] sm:$0xff]
  %v4111 = vld [vmem:[%s143 + $0x249] sm:$0xff]
  %v4112 = vld [vmem:[%s143 + $0x259] sm:$0xff]
  %v4113 = vld [vmem:[%s143 + $0x261] sm:$0xff]
  %v4114 = vld [vmem:[%s143 + $0x271] sm:$0xff]
  %v4115 = vld [vmem:[%s143 + $0x279] sm:$0xff]
  %v4116 = vld [vmem:[%s143 + $0x289] sm:$0xff]
  %v4117 = vld [vmem:[%s143 + $0x291] sm:$0xff]
  %v4118 = vld [vmem:[%s143 + $0x2a1] sm:$0xff]
  %v4119 = vld [vmem:[%s143 + $0x2a9] sm:$0xff]
  %v4120 = vld [vmem:[%s143 + $0x2b9] sm:$0xff]
  %v4121 = vld [vmem:[%s143 + $0x2c1] sm:$0xff]
  %v4122 = vld [vmem:[%s143 + $0x2d1] sm:$0xff]
  %v4123 = vld [vmem:[%s143 + $0x2d9] sm:$0xff]
  %v4124 = vld [vmem:[%s143 + $0x2e9] sm:$0xff]
  %v4125 = vld [vmem:[%s143 + $0x2f1] sm:$0xff]
  %v4126 = vld [vmem:[%s143 + $0x301] sm:$0xff]
  %v4127 = vld [vmem:[%s143 + $0x309] sm:$0xff]
  %v4128 = vld [vmem:[%s143 + $0x319] sm:$0xff]
  %v4129 = vld [vmem:[%s143 + $0x321] sm:$0xff]
  %s4130 = scalar_lea.vmem %s0, 48
  %v4131 = vld [vmem:[%s4130] sm:$0xff]
  %v4132 = vld [vmem:[%s4130 + $0x8] sm:$0xff]
  %v4133 = vld [vmem:[%s4130 + $0x18] sm:$0xff]
  %v4134 = vld [vmem:[%s4130 + $0x20] sm:$0xff]
  %v4135 = vld [vmem:[%s4130 + $0x30] sm:$0xff]
  %v4136 = vld [vmem:[%s4130 + $0x38] sm:$0xff]
  %v4137 = vld [vmem:[%s4130 + $0x48] sm:$0xff]
  %v4138 = vld [vmem:[%s4130 + $0x50] sm:$0xff]
  %v4139 = vld [vmem:[%s4130 + $0x60] sm:$0xff]
  %v4140 = vld [vmem:[%s4130 + $0x68] sm:$0xff]
  %v4141 = vld [vmem:[%s4130 + $0x78] sm:$0xff]
  %v4142 = vld [vmem:[%s4130 + $0x80] sm:$0xff]
  %v4143 = vld [vmem:[%s4130 + $0x90] sm:$0xff]
  %v4144 = vld [vmem:[%s4130 + $0x98] sm:$0xff]
  %v4145 = vld [vmem:[%s4130 + $0xa8] sm:$0xff]
  %v4146 = vld [vmem:[%s4130 + $0xb0] sm:$0xff]
  %v4147 = vld [vmem:[%s4130 + $0xc0] sm:$0xff]
  %v4148 = vld [vmem:[%s4130 + $0xc8] sm:$0xff]
  %v4149 = vld [vmem:[%s4130 + $0xd8] sm:$0xff]
  %v4150 = vld [vmem:[%s4130 + $0xe0] sm:$0xff]
  %v4151 = vld [vmem:[%s4130 + $0xf0] sm:$0xff]
  %v4152 = vld [vmem:[%s4130 + $0xf8] sm:$0xff]
  %v4153 = vld [vmem:[%s4130 + $0x108] sm:$0xff]
  %v4154 = vld [vmem:[%s4130 + $0x110] sm:$0xff]
  %v4155 = vld [vmem:[%s4130 + $0x120] sm:$0xff]
  %v4156 = vld [vmem:[%s4130 + $0x128] sm:$0xff]
  %v4157 = vld [vmem:[%s4130 + $0x138] sm:$0xff]
  %v4158 = vld [vmem:[%s4130 + $0x140] sm:$0xff]
  %v4159 = vld [vmem:[%s4130 + $0x150] sm:$0xff]
  %v4160 = vld [vmem:[%s4130 + $0x158] sm:$0xff]
  %v4161 = vld [vmem:[%s4130 + $0x168] sm:$0xff]
  %v4162 = vld [vmem:[%s4130 + $0x170] sm:$0xff]
  %v4163 = vld [vmem:[%s4130 + $0x1b0] sm:$0xff]
  %v4164 = vld [vmem:[%s4130 + $0x1b8] sm:$0xff]
  %v4165 = vld [vmem:[%s4130 + $0x1c8] sm:$0xff]
  %v4166 = vld [vmem:[%s4130 + $0x1d0] sm:$0xff]
  %v4167 = vld [vmem:[%s4130 + $0x1e0] sm:$0xff]
  %v4168 = vld [vmem:[%s4130 + $0x1e8] sm:$0xff]
  %v4169 = vld [vmem:[%s4130 + $0x1f8] sm:$0xff]
  %v4170 = vld [vmem:[%s4130 + $0x200] sm:$0xff]
  %v4171 = vld [vmem:[%s4130 + $0x210] sm:$0xff]
  %v4172 = vld [vmem:[%s4130 + $0x218] sm:$0xff]
  %v4173 = vld [vmem:[%s4130 + $0x228] sm:$0xff]
  %v4174 = vld [vmem:[%s4130 + $0x230] sm:$0xff]
  %v4175 = vld [vmem:[%s4130 + $0x240] sm:$0xff]
  %v4176 = vld [vmem:[%s4130 + $0x248] sm:$0xff]
  %v4177 = vld [vmem:[%s4130 + $0x258] sm:$0xff]
  %v4178 = vld [vmem:[%s4130 + $0x260] sm:$0xff]
  %v4179 = vld [vmem:[%s4130 + $0x270] sm:$0xff]
  %v4180 = vld [vmem:[%s4130 + $0x278] sm:$0xff]
  %v4181 = vld [vmem:[%s4130 + $0x288] sm:$0xff]
  %v4182 = vld [vmem:[%s4130 + $0x290] sm:$0xff]
  %v4183 = vld [vmem:[%s4130 + $0x2a0] sm:$0xff]
  %v4184 = vld [vmem:[%s4130 + $0x2a8] sm:$0xff]
  %v4185 = vld [vmem:[%s4130 + $0x2b8] sm:$0xff]
  %v4186 = vld [vmem:[%s4130 + $0x2c0] sm:$0xff]
  %v4187 = vld [vmem:[%s4130 + $0x2d0] sm:$0xff]
  %v4188 = vld [vmem:[%s4130 + $0x2d8] sm:$0xff]
  %v4189 = vld [vmem:[%s4130 + $0x2e8] sm:$0xff]
  %v4190 = vld [vmem:[%s4130 + $0x2f0] sm:$0xff]
  %v4191 = vld [vmem:[%s4130 + $0x300] sm:$0xff]
  %v4192 = vld [vmem:[%s4130 + $0x308] sm:$0xff]
  %v4193 = vld [vmem:[%s4130 + $0x318] sm:$0xff]
  %v4194 = vld [vmem:[%s4130 + $0x320] sm:$0xff]
  %v4195 = vld [vmem:[%s4130 + $0x1] sm:$0xff]
  %v4196 = vld [vmem:[%s4130 + $0x9] sm:$0xff]
  %v4197 = vld [vmem:[%s4130 + $0x19] sm:$0xff]
  %v4198 = vld [vmem:[%s4130 + $0x21] sm:$0xff]
  %v4199 = vld [vmem:[%s4130 + $0x31] sm:$0xff]
  %v4200 = vld [vmem:[%s4130 + $0x39] sm:$0xff]
  %v4201 = vld [vmem:[%s4130 + $0x49] sm:$0xff]
  %v4202 = vld [vmem:[%s4130 + $0x51] sm:$0xff]
  %v4203 = vld [vmem:[%s4130 + $0x61] sm:$0xff]
  %v4204 = vld [vmem:[%s4130 + $0x69] sm:$0xff]
  %v4205 = vld [vmem:[%s4130 + $0x79] sm:$0xff]
  %v4206 = vld [vmem:[%s4130 + $0x81] sm:$0xff]
  %v4207 = vld [vmem:[%s4130 + $0x91] sm:$0xff]
  %v4208 = vld [vmem:[%s4130 + $0x99] sm:$0xff]
  %v4209 = vld [vmem:[%s4130 + $0xa9] sm:$0xff]
  %v4210 = vld [vmem:[%s4130 + $0xb1] sm:$0xff]
  %v4211 = vld [vmem:[%s4130 + $0xc1] sm:$0xff]
  %v4212 = vld [vmem:[%s4130 + $0xc9] sm:$0xff]
  %v4213 = vld [vmem:[%s4130 + $0xd9] sm:$0xff]
  %v4214 = vld [vmem:[%s4130 + $0xe1] sm:$0xff]
  %v4215 = vld [vmem:[%s4130 + $0xf1] sm:$0xff]
  %v4216 = vld [vmem:[%s4130 + $0xf9] sm:$0xff]
  %v4217 = vld [vmem:[%s4130 + $0x109] sm:$0xff]
  %v4218 = vld [vmem:[%s4130 + $0x111] sm:$0xff]
  %v4219 = vld [vmem:[%s4130 + $0x121] sm:$0xff]
  %v4220 = vld [vmem:[%s4130 + $0x129] sm:$0xff]
  %v4221 = vld [vmem:[%s4130 + $0x139] sm:$0xff]
  %v4222 = vld [vmem:[%s4130 + $0x141] sm:$0xff]
  %v4223 = vld [vmem:[%s4130 + $0x151] sm:$0xff]
  %v4224 = vld [vmem:[%s4130 + $0x159] sm:$0xff]
  %v4225 = vld [vmem:[%s4130 + $0x169] sm:$0xff]
  %v4226 = vld [vmem:[%s4130 + $0x171] sm:$0xff]
  %v4227 = vld [vmem:[%s4130 + $0x1b1] sm:$0xff]
  %v4228 = vld [vmem:[%s4130 + $0x1b9] sm:$0xff]
  %v4229 = vld [vmem:[%s4130 + $0x1c9] sm:$0xff]
  %v4230 = vld [vmem:[%s4130 + $0x1d1] sm:$0xff]
  %v4231 = vld [vmem:[%s4130 + $0x1e1] sm:$0xff]
  %v4232 = vld [vmem:[%s4130 + $0x1e9] sm:$0xff]
  %v4233 = vld [vmem:[%s4130 + $0x1f9] sm:$0xff]
  %v4234 = vld [vmem:[%s4130 + $0x201] sm:$0xff]
  %v4235 = vld [vmem:[%s4130 + $0x211] sm:$0xff]
  %v4236 = vld [vmem:[%s4130 + $0x219] sm:$0xff]
  %v4237 = vld [vmem:[%s4130 + $0x229] sm:$0xff]
  %v4238 = vld [vmem:[%s4130 + $0x231] sm:$0xff]
  %v4239 = vld [vmem:[%s4130 + $0x241] sm:$0xff]
  %v4240 = vld [vmem:[%s4130 + $0x249] sm:$0xff]
  %v4241 = vld [vmem:[%s4130 + $0x259] sm:$0xff]
  %v4242 = vld [vmem:[%s4130 + $0x261] sm:$0xff]
  %v4243 = vld [vmem:[%s4130 + $0x271] sm:$0xff]
  %v4244 = vld [vmem:[%s4130 + $0x279] sm:$0xff]
  %v4245 = vld [vmem:[%s4130 + $0x289] sm:$0xff]
  %v4246 = vld [vmem:[%s4130 + $0x291] sm:$0xff]
  %v4247 = vld [vmem:[%s4130 + $0x2a1] sm:$0xff]
  %v4248 = vld [vmem:[%s4130 + $0x2a9] sm:$0xff]
  %v4249 = vld [vmem:[%s4130 + $0x2b9] sm:$0xff]
  %v4250 = vld [vmem:[%s4130 + $0x2c1] sm:$0xff]
  %v4251 = vld [vmem:[%s4130 + $0x2d1] sm:$0xff]
  %v4252 = vld [vmem:[%s4130 + $0x2d9] sm:$0xff]
  %v4253 = vld [vmem:[%s4130 + $0x2e9] sm:$0xff]
  %v4254 = vld [vmem:[%s4130 + $0x2f1] sm:$0xff]
  %v4255 = vld [vmem:[%s4130 + $0x301] sm:$0xff]
  %v4256 = vld [vmem:[%s4130 + $0x309] sm:$0xff]
  %v4257 = vld [vmem:[%s4130 + $0x319] sm:$0xff]
  %v4258 = vld [vmem:[%s4130 + $0x321] sm:$0xff]
  %4323 = vrot.lane.b32.xlu0 %v4066, 4
  %v4324 = vpop.permute.xlu0 %4323
  %4325 = vrot.lane.b32.xlu0 %v4067, 4
  %v4326 = vpop.permute.xlu0 %4325
  %4327 = vrot.lane.b32.xlu0 %v4068, 4
  %v4328 = vpop.permute.xlu0 %4327
  %4329 = vrot.lane.b32.xlu0 %v4069, 4
  %v4330 = vpop.permute.xlu0 %4329
  %4331 = vrot.lane.b32.xlu0 %v4070, 4
  %v4332 = vpop.permute.xlu0 %4331
  %4333 = vrot.lane.b32.xlu0 %v4071, 4
  %v4334 = vpop.permute.xlu0 %4333
  %4335 = vrot.lane.b32.xlu0 %v4072, 4
  %v4336 = vpop.permute.xlu0 %4335
  %4337 = vrot.lane.b32.xlu0 %v4073, 4
  %v4338 = vpop.permute.xlu0 %4337
  %4339 = vrot.lane.b32.xlu0 %v4074, 4
  %v4340 = vpop.permute.xlu0 %4339
  %4341 = vrot.lane.b32.xlu0 %v4075, 4
  %v4342 = vpop.permute.xlu0 %4341
  %4343 = vrot.lane.b32.xlu0 %v4076, 4
  %v4344 = vpop.permute.xlu0 %4343
  %4345 = vrot.lane.b32.xlu0 %v4077, 4
  %v4346 = vpop.permute.xlu0 %4345
  %4347 = vrot.lane.b32.xlu0 %v4078, 4
  %v4348 = vpop.permute.xlu0 %4347
  %4349 = vrot.lane.b32.xlu0 %v4079, 4
  %v4350 = vpop.permute.xlu0 %4349
  %4351 = vrot.lane.b32.xlu0 %v4080, 4
  %v4352 = vpop.permute.xlu0 %4351
  %4353 = vrot.lane.b32.xlu0 %v4081, 4
  %v4354 = vpop.permute.xlu0 %4353
  %4355 = vrot.lane.b32.xlu0 %v4082, 4
  %v4356 = vpop.permute.xlu0 %4355
  %4357 = vrot.lane.b32.xlu0 %v4083, 4
  %v4358 = vpop.permute.xlu0 %4357
  %4359 = vrot.lane.b32.xlu0 %v4084, 4
  %v4360 = vpop.permute.xlu0 %4359
  %4361 = vrot.lane.b32.xlu0 %v4085, 4
  %v4362 = vpop.permute.xlu0 %4361
  %4363 = vrot.lane.b32.xlu0 %v4086, 4
  %v4364 = vpop.permute.xlu0 %4363
  %4365 = vrot.lane.b32.xlu0 %v4087, 4
  %v4366 = vpop.permute.xlu0 %4365
  %4367 = vrot.lane.b32.xlu0 %v4088, 4
  %v4368 = vpop.permute.xlu0 %4367
  %4369 = vrot.lane.b32.xlu0 %v4089, 4
  %v4370 = vpop.permute.xlu0 %4369
  %4371 = vrot.lane.b32.xlu0 %v4090, 4
  %v4372 = vpop.permute.xlu0 %4371
  %4373 = vrot.lane.b32.xlu0 %v4091, 4
  %v4374 = vpop.permute.xlu0 %4373
  %4375 = vrot.lane.b32.xlu0 %v4092, 4
  %v4376 = vpop.permute.xlu0 %4375
  %4377 = vrot.lane.b32.xlu0 %v4093, 4
  %v4378 = vpop.permute.xlu0 %4377
  %4379 = vrot.lane.b32.xlu0 %v4094, 4
  %v4380 = vpop.permute.xlu0 %4379
  %4381 = vrot.lane.b32.xlu0 %v4095, 4
  %v4382 = vpop.permute.xlu0 %4381
  %4383 = vrot.lane.b32.xlu0 %v4096, 4
  %v4384 = vpop.permute.xlu0 %4383
  %4385 = vrot.lane.b32.xlu0 %v4097, 4
  %v4386 = vpop.permute.xlu0 %4385
  %4387 = vrot.lane.b32.xlu0 %v4098, 4
  %v4388 = vpop.permute.xlu0 %4387
  %4389 = vrot.lane.b32.xlu0 %v4099, 4
  %v4390 = vpop.permute.xlu0 %4389
  %4391 = vrot.lane.b32.xlu0 %v4100, 4
  %v4392 = vpop.permute.xlu0 %4391
  %4393 = vrot.lane.b32.xlu0 %v4101, 4
  %v4394 = vpop.permute.xlu0 %4393
  %4395 = vrot.lane.b32.xlu0 %v4102, 4
  %v4396 = vpop.permute.xlu0 %4395
  %4397 = vrot.lane.b32.xlu0 %v4103, 4
  %v4398 = vpop.permute.xlu0 %4397
  %4399 = vrot.lane.b32.xlu0 %v4104, 4
  %v4400 = vpop.permute.xlu0 %4399
  %4401 = vrot.lane.b32.xlu0 %v4105, 4
  %v4402 = vpop.permute.xlu0 %4401
  %4403 = vrot.lane.b32.xlu0 %v4106, 4
  %v4404 = vpop.permute.xlu0 %4403
  %4405 = vrot.lane.b32.xlu0 %v4107, 4
  %v4406 = vpop.permute.xlu0 %4405
  %4407 = vrot.lane.b32.xlu0 %v4108, 4
  %v4408 = vpop.permute.xlu0 %4407
  %4409 = vrot.lane.b32.xlu0 %v4109, 4
  %v4410 = vpop.permute.xlu0 %4409
  %4411 = vrot.lane.b32.xlu0 %v4110, 4
  %v4412 = vpop.permute.xlu0 %4411
  %4413 = vrot.lane.b32.xlu0 %v4111, 4
  %v4414 = vpop.permute.xlu0 %4413
  %4415 = vrot.lane.b32.xlu0 %v4112, 4
  %v4416 = vpop.permute.xlu0 %4415
  %4417 = vrot.lane.b32.xlu0 %v4113, 4
  %v4418 = vpop.permute.xlu0 %4417
  %4419 = vrot.lane.b32.xlu0 %v4114, 4
  %v4420 = vpop.permute.xlu0 %4419
  %4421 = vrot.lane.b32.xlu0 %v4115, 4
  %v4422 = vpop.permute.xlu0 %4421
  %4423 = vrot.lane.b32.xlu0 %v4116, 4
  %v4424 = vpop.permute.xlu0 %4423
  %4425 = vrot.lane.b32.xlu0 %v4117, 4
  %v4426 = vpop.permute.xlu0 %4425
  %4427 = vrot.lane.b32.xlu0 %v4118, 4
  %v4428 = vpop.permute.xlu0 %4427
  %4429 = vrot.lane.b32.xlu0 %v4119, 4
  %v4430 = vpop.permute.xlu0 %4429
  %4431 = vrot.lane.b32.xlu0 %v4120, 4
  %v4432 = vpop.permute.xlu0 %4431
  %4433 = vrot.lane.b32.xlu0 %v4121, 4
  %v4434 = vpop.permute.xlu0 %4433
  %4435 = vrot.lane.b32.xlu0 %v4122, 4
  %v4436 = vpop.permute.xlu0 %4435
  %4437 = vrot.lane.b32.xlu0 %v4123, 4
  %v4438 = vpop.permute.xlu0 %4437
  %4439 = vrot.lane.b32.xlu0 %v4124, 4
  %v4440 = vpop.permute.xlu0 %4439
  %4441 = vrot.lane.b32.xlu0 %v4125, 4
  %v4442 = vpop.permute.xlu0 %4441
  %4443 = vrot.lane.b32.xlu0 %v4126, 4
  %v4444 = vpop.permute.xlu0 %4443
  %4445 = vrot.lane.b32.xlu0 %v4127, 4
  %v4446 = vpop.permute.xlu0 %4445
  %4447 = vrot.lane.b32.xlu0 %v4128, 4
  %v4448 = vpop.permute.xlu0 %4447
  %4449 = vrot.lane.b32.xlu0 %v4129, 4
  %v4450 = vpop.permute.xlu0 %4449
  %4579 = vrot.lane.b32.xlu0 %v4131, 8
  %v4580 = vpop.permute.xlu0 %4579
  %4581 = vrot.lane.b32.xlu0 %v4132, 8
  %v4582 = vpop.permute.xlu0 %4581
  %4583 = vrot.lane.b32.xlu0 %v4133, 8
  %v4584 = vpop.permute.xlu0 %4583
  %4585 = vrot.lane.b32.xlu0 %v4134, 8
  %v4586 = vpop.permute.xlu0 %4585
  %4587 = vrot.lane.b32.xlu0 %v4135, 8
  %v4588 = vpop.permute.xlu0 %4587
  %4589 = vrot.lane.b32.xlu0 %v4136, 8
  %v4590 = vpop.permute.xlu0 %4589
  %4591 = vrot.lane.b32.xlu0 %v4137, 8
  %v4592 = vpop.permute.xlu0 %4591
  %4593 = vrot.lane.b32.xlu0 %v4138, 8
  %v4594 = vpop.permute.xlu0 %4593
  %4595 = vrot.lane.b32.xlu0 %v4139, 8
  %v4596 = vpop.permute.xlu0 %4595
  %4597 = vrot.lane.b32.xlu0 %v4140, 8
  %v4598 = vpop.permute.xlu0 %4597
  %4599 = vrot.lane.b32.xlu0 %v4141, 8
  %v4600 = vpop.permute.xlu0 %4599
  %4601 = vrot.lane.b32.xlu0 %v4142, 8
  %v4602 = vpop.permute.xlu0 %4601
  %4603 = vrot.lane.b32.xlu0 %v4143, 8
  %v4604 = vpop.permute.xlu0 %4603
  %4605 = vrot.lane.b32.xlu0 %v4144, 8
  %v4606 = vpop.permute.xlu0 %4605
  %4607 = vrot.lane.b32.xlu0 %v4145, 8
  %v4608 = vpop.permute.xlu0 %4607
  %4609 = vrot.lane.b32.xlu0 %v4146, 8
  %v4610 = vpop.permute.xlu0 %4609
  %4611 = vrot.lane.b32.xlu0 %v4147, 8
  %v4612 = vpop.permute.xlu0 %4611
  %4613 = vrot.lane.b32.xlu0 %v4148, 8
  %v4614 = vpop.permute.xlu0 %4613
  %4615 = vrot.lane.b32.xlu0 %v4149, 8
  %v4616 = vpop.permute.xlu0 %4615
  %4617 = vrot.lane.b32.xlu0 %v4150, 8
  %v4618 = vpop.permute.xlu0 %4617
  %4619 = vrot.lane.b32.xlu0 %v4151, 8
  %v4620 = vpop.permute.xlu0 %4619
  %4621 = vrot.lane.b32.xlu0 %v4152, 8
  %v4622 = vpop.permute.xlu0 %4621
  %4623 = vrot.lane.b32.xlu0 %v4153, 8
  %v4624 = vpop.permute.xlu0 %4623
  %4625 = vrot.lane.b32.xlu0 %v4154, 8
  %v4626 = vpop.permute.xlu0 %4625
  %4627 = vrot.lane.b32.xlu0 %v4155, 8
  %v4628 = vpop.permute.xlu0 %4627
  %4629 = vrot.lane.b32.xlu0 %v4156, 8
  %v4630 = vpop.permute.xlu0 %4629
  %4631 = vrot.lane.b32.xlu0 %v4157, 8
  %v4632 = vpop.permute.xlu0 %4631
  %4633 = vrot.lane.b32.xlu0 %v4158, 8
  %v4634 = vpop.permute.xlu0 %4633
  %4635 = vrot.lane.b32.xlu0 %v4159, 8
  %v4636 = vpop.permute.xlu0 %4635
  %4637 = vrot.lane.b32.xlu0 %v4160, 8
  %v4638 = vpop.permute.xlu0 %4637
  %4639 = vrot.lane.b32.xlu0 %v4161, 8
  %v4640 = vpop.permute.xlu0 %4639
  %4641 = vrot.lane.b32.xlu0 %v4162, 8
  %v4642 = vpop.permute.xlu0 %4641
  %4643 = vrot.lane.b32.xlu0 %v4163, 8
  %v4644 = vpop.permute.xlu0 %4643
  %4645 = vrot.lane.b32.xlu0 %v4164, 8
  %v4646 = vpop.permute.xlu0 %4645
  %4647 = vrot.lane.b32.xlu0 %v4165, 8
  %v4648 = vpop.permute.xlu0 %4647
  %4649 = vrot.lane.b32.xlu0 %v4166, 8
  %v4650 = vpop.permute.xlu0 %4649
  %4651 = vrot.lane.b32.xlu0 %v4167, 8
  %v4652 = vpop.permute.xlu0 %4651
  %4653 = vrot.lane.b32.xlu0 %v4168, 8
  %v4654 = vpop.permute.xlu0 %4653
  %4655 = vrot.lane.b32.xlu0 %v4169, 8
  %v4656 = vpop.permute.xlu0 %4655
  %4657 = vrot.lane.b32.xlu0 %v4170, 8
  %v4658 = vpop.permute.xlu0 %4657
  %4659 = vrot.lane.b32.xlu0 %v4171, 8
  %v4660 = vpop.permute.xlu0 %4659
  %4661 = vrot.lane.b32.xlu0 %v4172, 8
  %v4662 = vpop.permute.xlu0 %4661
  %4663 = vrot.lane.b32.xlu0 %v4173, 8
  %v4664 = vpop.permute.xlu0 %4663
  %4665 = vrot.lane.b32.xlu0 %v4174, 8
  %v4666 = vpop.permute.xlu0 %4665
  %4667 = vrot.lane.b32.xlu0 %v4175, 8
  %v4668 = vpop.permute.xlu0 %4667
  %4669 = vrot.lane.b32.xlu0 %v4176, 8
  %v4670 = vpop.permute.xlu0 %4669
  %4671 = vrot.lane.b32.xlu0 %v4177, 8
  %v4672 = vpop.permute.xlu0 %4671
  %4673 = vrot.lane.b32.xlu0 %v4178, 8
  %v4674 = vpop.permute.xlu0 %4673
  %4675 = vrot.lane.b32.xlu0 %v4179, 8
  %v4676 = vpop.permute.xlu0 %4675
  %4677 = vrot.lane.b32.xlu0 %v4180, 8
  %v4678 = vpop.permute.xlu0 %4677
  %4679 = vrot.lane.b32.xlu0 %v4181, 8
  %v4680 = vpop.permute.xlu0 %4679
  %4681 = vrot.lane.b32.xlu0 %v4182, 8
  %v4682 = vpop.permute.xlu0 %4681
  %4683 = vrot.lane.b32.xlu0 %v4183, 8
  %v4684 = vpop.permute.xlu0 %4683
  %4685 = vrot.lane.b32.xlu0 %v4184, 8
  %v4686 = vpop.permute.xlu0 %4685
  %4687 = vrot.lane.b32.xlu0 %v4185, 8
  %v4688 = vpop.permute.xlu0 %4687
  %4689 = vrot.lane.b32.xlu0 %v4186, 8
  %v4690 = vpop.permute.xlu0 %4689
  %4691 = vrot.lane.b32.xlu0 %v4187, 8
  %v4692 = vpop.permute.xlu0 %4691
  %4693 = vrot.lane.b32.xlu0 %v4188, 8
  %v4694 = vpop.permute.xlu0 %4693
  %4695 = vrot.lane.b32.xlu0 %v4189, 8
  %v4696 = vpop.permute.xlu0 %4695
  %4697 = vrot.lane.b32.xlu0 %v4190, 8
  %v4698 = vpop.permute.xlu0 %4697
  %4699 = vrot.lane.b32.xlu0 %v4191, 8
  %v4700 = vpop.permute.xlu0 %4699
  %4701 = vrot.lane.b32.xlu0 %v4192, 8
  %v4702 = vpop.permute.xlu0 %4701
  %4703 = vrot.lane.b32.xlu0 %v4193, 8
  %v4704 = vpop.permute.xlu0 %4703
  %4705 = vrot.lane.b32.xlu0 %v4194, 8
  %v4706 = vpop.permute.xlu0 %4705
  %4835 = vrot.lane.b32.xlu0 %v4195, 12
  %v4836 = vpop.permute.xlu0 %4835
  %4837 = vrot.lane.b32.xlu0 %v4196, 12
  %v4838 = vpop.permute.xlu0 %4837
  %4839 = vrot.lane.b32.xlu0 %v4197, 12
  %v4840 = vpop.permute.xlu0 %4839
  %4841 = vrot.lane.b32.xlu0 %v4198, 12
  %v4842 = vpop.permute.xlu0 %4841
  %4843 = vrot.lane.b32.xlu0 %v4199, 12
  %v4844 = vpop.permute.xlu0 %4843
  %4845 = vrot.lane.b32.xlu0 %v4200, 12
  %v4846 = vpop.permute.xlu0 %4845
  %4847 = vrot.lane.b32.xlu0 %v4201, 12
  %v4848 = vpop.permute.xlu0 %4847
  %4849 = vrot.lane.b32.xlu0 %v4202, 12
  %v4850 = vpop.permute.xlu0 %4849
  %4851 = vrot.lane.b32.xlu0 %v4203, 12
  %v4852 = vpop.permute.xlu0 %4851
  %4853 = vrot.lane.b32.xlu0 %v4204, 12
  %v4854 = vpop.permute.xlu0 %4853
  %4855 = vrot.lane.b32.xlu0 %v4205, 12
  %v4856 = vpop.permute.xlu0 %4855
  %4857 = vrot.lane.b32.xlu0 %v4206, 12
  %v4858 = vpop.permute.xlu0 %4857
  %4859 = vrot.lane.b32.xlu0 %v4207, 12
  %v4860 = vpop.permute.xlu0 %4859
  %4861 = vrot.lane.b32.xlu0 %v4208, 12
  %v4862 = vpop.permute.xlu0 %4861
  %4863 = vrot.lane.b32.xlu0 %v4209, 12
  %v4864 = vpop.permute.xlu0 %4863
  %4865 = vrot.lane.b32.xlu0 %v4210, 12
  %v4866 = vpop.permute.xlu0 %4865
  %4867 = vrot.lane.b32.xlu0 %v4211, 12
  %v4868 = vpop.permute.xlu0 %4867
  %4869 = vrot.lane.b32.xlu0 %v4212, 12
  %v4870 = vpop.permute.xlu0 %4869
  %4871 = vrot.lane.b32.xlu0 %v4213, 12
  %v4872 = vpop.permute.xlu0 %4871
  %4873 = vrot.lane.b32.xlu0 %v4214, 12
  %v4874 = vpop.permute.xlu0 %4873
  %4875 = vrot.lane.b32.xlu0 %v4215, 12
  %v4876 = vpop.permute.xlu0 %4875
  %4877 = vrot.lane.b32.xlu0 %v4216, 12
  %v4878 = vpop.permute.xlu0 %4877
  %4879 = vrot.lane.b32.xlu0 %v4217, 12
  %v4880 = vpop.permute.xlu0 %4879
  %4881 = vrot.lane.b32.xlu0 %v4218, 12
  %v4882 = vpop.permute.xlu0 %4881
  %4883 = vrot.lane.b32.xlu0 %v4219, 12
  %v4884 = vpop.permute.xlu0 %4883
  %4885 = vrot.lane.b32.xlu0 %v4220, 12
  %v4886 = vpop.permute.xlu0 %4885
  %4887 = vrot.lane.b32.xlu0 %v4221, 12
  %v4888 = vpop.permute.xlu0 %4887
  %4889 = vrot.lane.b32.xlu0 %v4222, 12
  %v4890 = vpop.permute.xlu0 %4889
  %4891 = vrot.lane.b32.xlu0 %v4223, 12
  %v4892 = vpop.permute.xlu0 %4891
  %4893 = vrot.lane.b32.xlu0 %v4224, 12
  %v4894 = vpop.permute.xlu0 %4893
  %4895 = vrot.lane.b32.xlu0 %v4225, 12
  %v4896 = vpop.permute.xlu0 %4895
  %4897 = vrot.lane.b32.xlu0 %v4226, 12
  %v4898 = vpop.permute.xlu0 %4897
  %4899 = vrot.lane.b32.xlu0 %v4227, 12
  %v4900 = vpop.permute.xlu0 %4899
  %4901 = vrot.lane.b32.xlu0 %v4228, 12
  %v4902 = vpop.permute.xlu0 %4901
  %4903 = vrot.lane.b32.xlu0 %v4229, 12
  %v4904 = vpop.permute.xlu0 %4903
  %4905 = vrot.lane.b32.xlu0 %v4230, 12
  %v4906 = vpop.permute.xlu0 %4905
  %4907 = vrot.lane.b32.xlu0 %v4231, 12
  %v4908 = vpop.permute.xlu0 %4907
  %4909 = vrot.lane.b32.xlu0 %v4232, 12
  %v4910 = vpop.permute.xlu0 %4909
  %4911 = vrot.lane.b32.xlu0 %v4233, 12
  %v4912 = vpop.permute.xlu0 %4911
  %4913 = vrot.lane.b32.xlu0 %v4234, 12
  %v4914 = vpop.permute.xlu0 %4913
  %4915 = vrot.lane.b32.xlu0 %v4235, 12
  %v4916 = vpop.permute.xlu0 %4915
  %4917 = vrot.lane.b32.xlu0 %v4236, 12
  %v4918 = vpop.permute.xlu0 %4917
  %4919 = vrot.lane.b32.xlu0 %v4237, 12
  %v4920 = vpop.permute.xlu0 %4919
  %4921 = vrot.lane.b32.xlu0 %v4238, 12
  %v4922 = vpop.permute.xlu0 %4921
  %4923 = vrot.lane.b32.xlu0 %v4239, 12
  %v4924 = vpop.permute.xlu0 %4923
  %4925 = vrot.lane.b32.xlu0 %v4240, 12
  %v4926 = vpop.permute.xlu0 %4925
  %4927 = vrot.lane.b32.xlu0 %v4241, 12
  %v4928 = vpop.permute.xlu0 %4927
  %4929 = vrot.lane.b32.xlu0 %v4242, 12
  %v4930 = vpop.permute.xlu0 %4929
  %4931 = vrot.lane.b32.xlu0 %v4243, 12
  %v4932 = vpop.permute.xlu0 %4931
  %4933 = vrot.lane.b32.xlu0 %v4244, 12
  %v4934 = vpop.permute.xlu0 %4933
  %4935 = vrot.lane.b32.xlu0 %v4245, 12
  %v4936 = vpop.permute.xlu0 %4935
  %4937 = vrot.lane.b32.xlu0 %v4246, 12
  %v4938 = vpop.permute.xlu0 %4937
  %4939 = vrot.lane.b32.xlu0 %v4247, 12
  %v4940 = vpop.permute.xlu0 %4939
  %4941 = vrot.lane.b32.xlu0 %v4248, 12
  %v4942 = vpop.permute.xlu0 %4941
  %4943 = vrot.lane.b32.xlu0 %v4249, 12
  %v4944 = vpop.permute.xlu0 %4943
  %4945 = vrot.lane.b32.xlu0 %v4250, 12
  %v4946 = vpop.permute.xlu0 %4945
  %4947 = vrot.lane.b32.xlu0 %v4251, 12
  %v4948 = vpop.permute.xlu0 %4947
  %4949 = vrot.lane.b32.xlu0 %v4252, 12
  %v4950 = vpop.permute.xlu0 %4949
  %4951 = vrot.lane.b32.xlu0 %v4253, 12
  %v4952 = vpop.permute.xlu0 %4951
  %4953 = vrot.lane.b32.xlu0 %v4254, 12
  %v4954 = vpop.permute.xlu0 %4953
  %4955 = vrot.lane.b32.xlu0 %v4255, 12
  %v4956 = vpop.permute.xlu0 %4955
  %4957 = vrot.lane.b32.xlu0 %v4256, 12
  %v4958 = vpop.permute.xlu0 %4957
  %4959 = vrot.lane.b32.xlu0 %v4257, 12
  %v4960 = vpop.permute.xlu0 %4959
  %4961 = vrot.lane.b32.xlu0 %v4258, 12
  %v4962 = vpop.permute.xlu0 %4961
  %v5027 = vsel %vm1040, %v4002, %v4324
  %v5028 = vsel %vm1040, %v4003, %v4326
  %v5029 = vsel %vm1040, %v4004, %v4328
  %v5030 = vsel %vm1040, %v4005, %v4330
  %v5031 = vsel %vm1040, %v4006, %v4332
  %v5032 = vsel %vm1040, %v4007, %v4334
  %v5033 = vsel %vm1040, %v4008, %v4336
  %v5034 = vsel %vm1040, %v4009, %v4338
  %v5035 = vsel %vm1040, %v4010, %v4340
  %v5036 = vsel %vm1040, %v4011, %v4342
  %v5037 = vsel %vm1040, %v4012, %v4344
  %v5038 = vsel %vm1040, %v4013, %v4346
  %v5039 = vsel %vm1040, %v4014, %v4348
  %v5040 = vsel %vm1040, %v4015, %v4350
  %v5041 = vsel %vm1040, %v4016, %v4352
  %v5042 = vsel %vm1040, %v4017, %v4354
  %v5043 = vsel %vm1040, %v4018, %v4356
  %v5044 = vsel %vm1040, %v4019, %v4358
  %v5045 = vsel %vm1040, %v4020, %v4360
  %v5046 = vsel %vm1040, %v4021, %v4362
  %v5047 = vsel %vm1040, %v4022, %v4364
  %v5048 = vsel %vm1040, %v4023, %v4366
  %v5049 = vsel %vm1040, %v4024, %v4368
  %v5050 = vsel %vm1040, %v4025, %v4370
  %v5051 = vsel %vm1040, %v4026, %v4372
  %v5052 = vsel %vm1040, %v4027, %v4374
  %v5053 = vsel %vm1040, %v4028, %v4376
  %v5054 = vsel %vm1040, %v4029, %v4378
  %v5055 = vsel %vm1040, %v4030, %v4380
  %v5056 = vsel %vm1040, %v4031, %v4382
  %v5057 = vsel %vm1040, %v4032, %v4384
  %v5058 = vsel %vm1040, %v4033, %v4386
  %v5059 = vsel %vm1040, %v4034, %v4388
  %v5060 = vsel %vm1040, %v4035, %v4390
  %v5061 = vsel %vm1040, %v4036, %v4392
  %v5062 = vsel %vm1040, %v4037, %v4394
  %v5063 = vsel %vm1040, %v4038, %v4396
  %v5064 = vsel %vm1040, %v4039, %v4398
  %v5065 = vsel %vm1040, %v4040, %v4400
  %v5066 = vsel %vm1040, %v4041, %v4402
  %v5067 = vsel %vm1040, %v4042, %v4404
  %v5068 = vsel %vm1040, %v4043, %v4406
  %v5069 = vsel %vm1040, %v4044, %v4408
  %v5070 = vsel %vm1040, %v4045, %v4410
  %v5071 = vsel %vm1040, %v4046, %v4412
  %v5072 = vsel %vm1040, %v4047, %v4414
  %v5073 = vsel %vm1040, %v4048, %v4416
  %v5074 = vsel %vm1040, %v4049, %v4418
  %v5075 = vsel %vm1040, %v4050, %v4420
  %v5076 = vsel %vm1040, %v4051, %v4422
  %v5077 = vsel %vm1040, %v4052, %v4424
  %v5078 = vsel %vm1040, %v4053, %v4426
  %v5079 = vsel %vm1040, %v4054, %v4428
  %v5080 = vsel %vm1040, %v4055, %v4430
  %v5081 = vsel %vm1040, %v4056, %v4432
  %v5082 = vsel %vm1040, %v4057, %v4434
  %v5083 = vsel %vm1040, %v4058, %v4436
  %v5084 = vsel %vm1040, %v4059, %v4438
  %v5085 = vsel %vm1040, %v4060, %v4440
  %v5086 = vsel %vm1040, %v4061, %v4442
  %v5087 = vsel %vm1040, %v4062, %v4444
  %v5088 = vsel %vm1040, %v4063, %v4446
  %v5089 = vsel %vm1040, %v4064, %v4448
  %v5090 = vsel %vm1040, %v4065, %v4450
  %v5091 = vsel %vm1105, %v5027, %v4580
  %v5092 = vsel %vm1105, %v5028, %v4582
  %v5093 = vsel %vm1105, %v5029, %v4584
  %v5094 = vsel %vm1105, %v5030, %v4586
  %v5095 = vsel %vm1105, %v5031, %v4588
  %v5096 = vsel %vm1105, %v5032, %v4590
  %v5097 = vsel %vm1105, %v5033, %v4592
  %v5098 = vsel %vm1105, %v5034, %v4594
  %v5099 = vsel %vm1105, %v5035, %v4596
  %v5100 = vsel %vm1105, %v5036, %v4598
  %v5101 = vsel %vm1105, %v5037, %v4600
  %v5102 = vsel %vm1105, %v5038, %v4602
  %v5103 = vsel %vm1105, %v5039, %v4604
  %v5104 = vsel %vm1105, %v5040, %v4606
  %v5105 = vsel %vm1105, %v5041, %v4608
  %v5106 = vsel %vm1105, %v5042, %v4610
  %v5107 = vsel %vm1105, %v5043, %v4612
  %v5108 = vsel %vm1105, %v5044, %v4614
  %v5109 = vsel %vm1105, %v5045, %v4616
  %v5110 = vsel %vm1105, %v5046, %v4618
  %v5111 = vsel %vm1105, %v5047, %v4620
  %v5112 = vsel %vm1105, %v5048, %v4622
  %v5113 = vsel %vm1105, %v5049, %v4624
  %v5114 = vsel %vm1105, %v5050, %v4626
  %v5115 = vsel %vm1105, %v5051, %v4628
  %v5116 = vsel %vm1105, %v5052, %v4630
  %v5117 = vsel %vm1105, %v5053, %v4632
  %v5118 = vsel %vm1105, %v5054, %v4634
  %v5119 = vsel %vm1105, %v5055, %v4636
  %v5120 = vsel %vm1105, %v5056, %v4638
  %v5121 = vsel %vm1105, %v5057, %v4640
  %v5122 = vsel %vm1105, %v5058, %v4642
  %v5123 = vsel %vm1105, %v5059, %v4644
  %v5124 = vsel %vm1105, %v5060, %v4646
  %v5125 = vsel %vm1105, %v5061, %v4648
  %v5126 = vsel %vm1105, %v5062, %v4650
  %v5127 = vsel %vm1105, %v5063, %v4652
  %v5128 = vsel %vm1105, %v5064, %v4654
  %v5129 = vsel %vm1105, %v5065, %v4656
  %v5130 = vsel %vm1105, %v5066, %v4658
  %v5131 = vsel %vm1105, %v5067, %v4660
  %v5132 = vsel %vm1105, %v5068, %v4662
  %v5133 = vsel %vm1105, %v5069, %v4664
  %v5134 = vsel %vm1105, %v5070, %v4666
  %v5135 = vsel %vm1105, %v5071, %v4668
  %v5136 = vsel %vm1105, %v5072, %v4670
  %v5137 = vsel %vm1105, %v5073, %v4672
  %v5138 = vsel %vm1105, %v5074, %v4674
  %v5139 = vsel %vm1105, %v5075, %v4676
  %v5140 = vsel %vm1105, %v5076, %v4678
  %v5141 = vsel %vm1105, %v5077, %v4680
  %v5142 = vsel %vm1105, %v5078, %v4682
  %v5143 = vsel %vm1105, %v5079, %v4684
  %v5144 = vsel %vm1105, %v5080, %v4686
  %v5145 = vsel %vm1105, %v5081, %v4688
  %v5146 = vsel %vm1105, %v5082, %v4690
  %v5147 = vsel %vm1105, %v5083, %v4692
  %v5148 = vsel %vm1105, %v5084, %v4694
  %v5149 = vsel %vm1105, %v5085, %v4696
  %v5150 = vsel %vm1105, %v5086, %v4698
  %v5151 = vsel %vm1105, %v5087, %v4700
  %v5152 = vsel %vm1105, %v5088, %v4702
  %v5153 = vsel %vm1105, %v5089, %v4704
  %v5154 = vsel %vm1105, %v5090, %v4706
  %v5155 = vsel %vm1170, %v5091, %v4836
  %v5156 = vsel %vm1170, %v5092, %v4838
  %v5157 = vsel %vm1170, %v5093, %v4840
  %v5158 = vsel %vm1170, %v5094, %v4842
  %v5159 = vsel %vm1170, %v5095, %v4844
  %v5160 = vsel %vm1170, %v5096, %v4846
  %v5161 = vsel %vm1170, %v5097, %v4848
  %v5162 = vsel %vm1170, %v5098, %v4850
  %v5163 = vsel %vm1170, %v5099, %v4852
  %v5164 = vsel %vm1170, %v5100, %v4854
  %v5165 = vsel %vm1170, %v5101, %v4856
  %v5166 = vsel %vm1170, %v5102, %v4858
  %v5167 = vsel %vm1170, %v5103, %v4860
  %v5168 = vsel %vm1170, %v5104, %v4862
  %v5169 = vsel %vm1170, %v5105, %v4864
  %v5170 = vsel %vm1170, %v5106, %v4866
  %v5171 = vsel %vm1170, %v5107, %v4868
  %v5172 = vsel %vm1170, %v5108, %v4870
  %v5173 = vsel %vm1170, %v5109, %v4872
  %v5174 = vsel %vm1170, %v5110, %v4874
  %v5175 = vsel %vm1170, %v5111, %v4876
  %v5176 = vsel %vm1170, %v5112, %v4878
  %v5177 = vsel %vm1170, %v5113, %v4880
  %v5178 = vsel %vm1170, %v5114, %v4882
  %v5179 = vsel %vm1170, %v5115, %v4884
  %v5180 = vsel %vm1170, %v5116, %v4886
  %v5181 = vsel %vm1170, %v5117, %v4888
  %v5182 = vsel %vm1170, %v5118, %v4890
  %v5183 = vsel %vm1170, %v5119, %v4892
  %v5184 = vsel %vm1170, %v5120, %v4894
  %v5185 = vsel %vm1170, %v5121, %v4896
  %v5186 = vsel %vm1170, %v5122, %v4898
  %v5187 = vsel %vm1170, %v5123, %v4900
  %v5188 = vsel %vm1170, %v5124, %v4902
  %v5189 = vsel %vm1170, %v5125, %v4904
  %v5190 = vsel %vm1170, %v5126, %v4906
  %v5191 = vsel %vm1170, %v5127, %v4908
  %v5192 = vsel %vm1170, %v5128, %v4910
  %v5193 = vsel %vm1170, %v5129, %v4912
  %v5194 = vsel %vm1170, %v5130, %v4914
  %v5195 = vsel %vm1170, %v5131, %v4916
  %v5196 = vsel %vm1170, %v5132, %v4918
  %v5197 = vsel %vm1170, %v5133, %v4920
  %v5198 = vsel %vm1170, %v5134, %v4922
  %v5199 = vsel %vm1170, %v5135, %v4924
  %v5200 = vsel %vm1170, %v5136, %v4926
  %v5201 = vsel %vm1170, %v5137, %v4928
  %v5202 = vsel %vm1170, %v5138, %v4930
  %v5203 = vsel %vm1170, %v5139, %v4932
  %v5204 = vsel %vm1170, %v5140, %v4934
  %v5205 = vsel %vm1170, %v5141, %v4936
  %v5206 = vsel %vm1170, %v5142, %v4938
  %v5207 = vsel %vm1170, %v5143, %v4940
  %v5208 = vsel %vm1170, %v5144, %v4942
  %v5209 = vsel %vm1170, %v5145, %v4944
  %v5210 = vsel %vm1170, %v5146, %v4946
  %v5211 = vsel %vm1170, %v5147, %v4948
  %v5212 = vsel %vm1170, %v5148, %v4950
  %v5213 = vsel %vm1170, %v5149, %v4952
  %v5214 = vsel %vm1170, %v5150, %v4954
  %v5215 = vsel %vm1170, %v5151, %v4956
  %v5216 = vsel %vm1170, %v5152, %v4958
  %v5217 = vsel %vm1170, %v5153, %v4960
  %v5218 = vsel %vm1170, %v5154, %v4962
  %s5219 = scalar_lea.vmem %s1, 32
  %v5220 = vld [vmem:[%s5219] sm:$0xff]
  %v5221 = vld [vmem:[%s5219 + $0x8] sm:$0xff]
  %v5223 = vsel %vm1243, %v5155, 0
  %v5226 = vsel %vm1243, %v5156, 0
  %v5229 = vsel %vm1243, %v5157, 0
  %v5232 = vsel %vm1243, %v5158, 0
  %v5235 = vsel %vm1243, %v5159, 0
  %v5238 = vsel %vm1243, %v5160, 0
  %v5241 = vsel %vm1243, %v5161, 0
  %v5244 = vsel %vm1243, %v5162, 0
  %v5247 = vsel %vm1243, %v5163, 0
  %v5250 = vsel %vm1243, %v5164, 0
  %v5253 = vsel %vm1243, %v5165, 0
  %v5256 = vsel %vm1243, %v5166, 0
  %v5259 = vsel %vm1243, %v5167, 0
  %v5262 = vsel %vm1243, %v5168, 0
  %v5265 = vsel %vm1243, %v5169, 0
  %v5268 = vsel %vm1243, %v5170, 0
  %v5271 = vsel %vm1243, %v5171, 0
  %v5274 = vsel %vm1243, %v5172, 0
  %v5277 = vsel %vm1243, %v5173, 0
  %v5280 = vsel %vm1243, %v5174, 0
  %v5283 = vsel %vm1243, %v5175, 0
  %v5286 = vsel %vm1243, %v5176, 0
  %v5289 = vsel %vm1243, %v5177, 0
  %v5292 = vsel %vm1243, %v5178, 0
  %v5295 = vsel %vm1243, %v5179, 0
  %v5298 = vsel %vm1243, %v5180, 0
  %v5301 = vsel %vm1243, %v5181, 0
  %v5304 = vsel %vm1243, %v5182, 0
  %v5307 = vsel %vm1243, %v5183, 0
  %v5310 = vsel %vm1243, %v5184, 0
  %v5313 = vsel %vm1243, %v5185, 0
  %v5316 = vsel %vm1243, %v5186, 0
  %v5319 = vsel %vm1243, %v5187, 0
  %v5322 = vsel %vm1243, %v5188, 0
  %v5325 = vsel %vm1243, %v5189, 0
  %v5328 = vsel %vm1243, %v5190, 0
  %v5331 = vsel %vm1243, %v5191, 0
  %v5334 = vsel %vm1243, %v5192, 0
  %v5337 = vsel %vm1243, %v5193, 0
  %v5340 = vsel %vm1243, %v5194, 0
  %v5343 = vsel %vm1243, %v5195, 0
  %v5346 = vsel %vm1243, %v5196, 0
  %v5349 = vsel %vm1243, %v5197, 0
  %v5352 = vsel %vm1243, %v5198, 0
  %v5355 = vsel %vm1243, %v5199, 0
  %v5358 = vsel %vm1243, %v5200, 0
  %v5361 = vsel %vm1243, %v5201, 0
  %v5364 = vsel %vm1243, %v5202, 0
  %v5367 = vsel %vm1243, %v5203, 0
  %v5370 = vsel %vm1243, %v5204, 0
  %v5373 = vsel %vm1243, %v5205, 0
  %v5376 = vsel %vm1243, %v5206, 0
  %v5379 = vsel %vm1243, %v5207, 0
  %v5382 = vsel %vm1243, %v5208, 0
  %v5385 = vsel %vm1243, %v5209, 0
  %v5388 = vsel %vm1243, %v5210, 0
  %v5391 = vsel %vm1243, %v5211, 0
  %v5394 = vsel %vm1243, %v5212, 0
  %v5397 = vsel %vm1243, %v5213, 0
  %v5400 = vsel %vm1243, %v5214, 0
  %v5403 = vsel %vm1243, %v5215, 0
  %v5406 = vsel %vm1243, %v5216, 0
  %v5409 = vsel %vm1243, %v5217, 0
  %v5412 = vsel %vm1243, %v5218, 0
  %5414 = vmatprep.subr.mxu0 0.0
  %5415 = vmatpush1.msra.mxu0 %v5220
  %5416 = vmatprep.subr.mxu0 0.0
  %5417 = vmatpush1.msra.mxu0 %v5221
  %5418 = vmatprep.subr.mxu0 0.0
  %5419 = vmatpush1.msra.mxu0 0.0
  %5420 = vmatprep.subr.mxu0 0.0
  %5421 = vmatpush1.msra.mxu0 0.0
  %5422 = vmatprep.subr.mxu0 0.0
  %5423 = vmatpush1.msra.mxu0 0.0
  %5424 = vmatprep.subr.mxu0 0.0
  %5425 = vmatpush1.msra.mxu0 0.0
  %5426 = vmatprep.subr.mxu0 0.0
  %5427 = vmatpush1.msra.mxu0 0.0
  %5428 = vmatprep.subr.mxu0 0.0
  %5429 = vmatpush1.msra.mxu0 0.0
  %5430 = vmatprep.subr.mxu0 0.0
  %5431 = vmatpush1.msra.mxu0 0.0
  %5432 = vmatprep.subr.mxu0 0.0
  %5433 = vmatpush1.msra.mxu0 0.0
  %5434 = vmatprep.subr.mxu0 0.0
  %5435 = vmatpush1.msra.mxu0 0.0
  %5436 = vmatprep.subr.mxu0 0.0
  %5437 = vmatpush1.msra.mxu0 0.0
  %5438 = vmatprep.subr.mxu0 0.0
  %5439 = vmatpush1.msra.mxu0 0.0
  %5440 = vmatprep.subr.mxu0 0.0
  %5441 = vmatpush1.msra.mxu0 0.0
  %5442 = vmatprep.subr.mxu0 0.0
  %5443 = vmatpush1.msra.mxu0 0.0
  %5444 = vmatprep.subr.mxu0 0.0
  %5445 = vmatpush1.msra.mxu0 0.0
  %5446 = vmatprep.subr.mxu0 0.0
  %5447 = vmatpush1.msra.mxu0 0.0
  %5448 = vmatprep.subr.mxu0 0.0
  %5449 = vmatpush1.msra.mxu0 0.0
  %5450 = vmatprep.subr.mxu0 0.0
  %5451 = vmatpush1.msra.mxu0 0.0
  %5452 = vmatprep.subr.mxu0 0.0
  %5453 = vmatpush1.msra.mxu0 0.0
  %5454 = vmatprep.subr.mxu0 0.0
  %5455 = vmatpush1.msra.mxu0 0.0
  %5456 = vmatprep.subr.mxu0 0.0
  %5457 = vmatpush1.msra.mxu0 0.0
  %5458 = vmatprep.subr.mxu0 0.0
  %5459 = vmatpush1.msra.mxu0 0.0
  %5460 = vmatprep.subr.mxu0 0.0
  %5461 = vmatpush1.msra.mxu0 0.0
  %5462 = vmatprep.subr.mxu0 0.0
  %5463 = vmatpush1.msra.mxu0 0.0
  %5464 = vmatprep.subr.mxu0 0.0
  %5465 = vmatpush1.msra.mxu0 0.0
  %5466 = vmatprep.subr.mxu0 0.0
  %5467 = vmatpush1.msra.mxu0 0.0
  %5468 = vmatprep.subr.mxu0 0.0
  %5469 = vmatpush1.msra.mxu0 0.0
  %5470 = vmatprep.subr.mxu0 0.0
  %5471 = vmatpush1.msra.mxu0 0.0
  %5472 = vmatprep.subr.mxu0 0.0
  %5473 = vmatpush1.msra.mxu0 0.0
  %5474 = vmatprep.subr.mxu0 0.0
  %5475 = vmatpush1.msra.mxu0 0.0
  %5476 = vmatprep.subr.mxu0 0.0
  %5477 = vmatpush1.msra.mxu0 0.0
  %5478 = vmatprep.mubr.f32.mxu0 0.0
  %5479 = vmatmul.mubr.f32.gmra.mrb[0].mxu0 %v5223
  %v5480 = vpop.f32.mrb[0].mxu0
  %v5481 = vadd.f32 %v1241, %v5480
  %v5482 = vpop.f32.mrb[0].mxu0
  %5483 = vmatprep.mubr.f32.mxu0 0.0
  %5484 = vmatmul.mubr.f32.gmra.mrb[0].mxu0 %v5226
  %v5485 = vpop.f32.mrb[0].mxu0
  %v5486 = vadd.f32 %v1241, %v5485
  %v5487 = vpop.f32.mrb[0].mxu0
  %5488 = vmatprep.mubr.f32.mxu0 0.0
  %5489 = vmatmul.mubr.f32.gmra.mrb[0].mxu0 %v5229
  %v5490 = vpop.f32.mrb[0].mxu0
  %v5491 = vadd.f32 %v1241, %v5490
  %v5492 = vpop.f32.mrb[0].mxu0
  %5493 = vmatprep.mubr.f32.mxu0 0.0
  %5494 = vmatmul.mubr.f32.gmra.mrb[0].mxu0 %v5232
  %v5495 = vpop.f32.mrb[0].mxu0
  %v5496 = vadd.f32 %v1241, %v5495
  %v5497 = vpop.f32.mrb[0].mxu0
  %5498 = vmatprep.mubr.f32.mxu0 0.0
  %5499 = vmatmul.mubr.f32.gmra.mrb[0].mxu0 %v5235
  %v5500 = vpop.f32.mrb[0].mxu0
  %v5501 = vadd.f32 %v1241, %v5500
  %v5502 = vpop.f32.mrb[0].mxu0
  %5503 = vmatprep.mubr.f32.mxu0 0.0
  %5504 = vmatmul.mubr.f32.gmra.mrb[0].mxu0 %v5238
  %v5505 = vpop.f32.mrb[0].mxu0
  %v5506 = vadd.f32 %v1241, %v5505
  %v5507 = vpop.f32.mrb[0].mxu0
  %5508 = vmatprep.mubr.f32.mxu0 0.0
  %5509 = vmatmul.mubr.f32.gmra.mrb[0].mxu0 %v5241
  %v5510 = vpop.f32.mrb[0].mxu0
  %v5511 = vadd.f32 %v1241, %v5510
  %v5512 = vpop.f32.mrb[0].mxu0
  %5513 = vmatprep.mubr.f32.mxu0 0.0
  %5514 = vmatmul.mubr.f32.gmra.mrb[0].mxu0 %v5244
  %v5515 = vpop.f32.mrb[0].mxu0
  %v5516 = vadd.f32 %v1241, %v5515
  %v5517 = vpop.f32.mrb[0].mxu0
  %5518 = vmatprep.mubr.f32.mxu0 0.0
  %5519 = vmatmul.mubr.f32.gmra.mrb[0].mxu0 %v5247
  %v5520 = vpop.f32.mrb[0].mxu0
  %v5521 = vadd.f32 %v1241, %v5520
  %v5522 = vpop.f32.mrb[0].mxu0
  %5523 = vmatprep.mubr.f32.mxu0 0.0
  %5524 = vmatmul.mubr.f32.gmra.mrb[0].mxu0 %v5250
  %v5525 = vpop.f32.mrb[0].mxu0
  %v5526 = vadd.f32 %v1241, %v5525
  %v5527 = vpop.f32.mrb[0].mxu0
  %5528 = vmatprep.mubr.f32.mxu0 0.0
  %5529 = vmatmul.mubr.f32.gmra.mrb[0].mxu0 %v5253
  %v5530 = vpop.f32.mrb[0].mxu0
  %v5531 = vadd.f32 %v1241, %v5530
  %v5532 = vpop.f32.mrb[0].mxu0
  %5533 = vmatprep.mubr.f32.mxu0 0.0
  %5534 = vmatmul.mubr.f32.gmra.mrb[0].mxu0 %v5256
  %v5535 = vpop.f32.mrb[0].mxu0
  %v5536 = vadd.f32 %v1241, %v5535
  %v5537 = vpop.f32.mrb[0].mxu0
  %5538 = vmatprep.mubr.f32.mxu0 0.0
  %5539 = vmatmul.mubr.f32.gmra.mrb[0].mxu0 %v5259
  %v5540 = vpop.f32.mrb[0].mxu0
  %v5541 = vadd.f32 %v1241, %v5540
  %v5542 = vpop.f32.mrb[0].mxu0
  %5543 = vmatprep.mubr.f32.mxu0 0.0
  %5544 = vmatmul.mubr.f32.gmra.mrb[0].mxu0 %v5262
  %v5545 = vpop.f32.mrb[0].mxu0
  %v5546 = vadd.f32 %v1241, %v5545
  %v5547 = vpop.f32.mrb[0].mxu0
  %5548 = vmatprep.mubr.f32.mxu0 0.0
  %5549 = vmatmul.mubr.f32.gmra.mrb[0].mxu0 %v5265
  %v5550 = vpop.f32.mrb[0].mxu0
  %v5551 = vadd.f32 %v1241, %v5550
  %v5552 = vpop.f32.mrb[0].mxu0
  %5553 = vmatprep.mubr.f32.mxu0 0.0
  %5554 = vmatmul.mubr.f32.gmra.mrb[0].mxu0 %v5268
  %v5555 = vpop.f32.mrb[0].mxu0
  %v5556 = vadd.f32 %v1241, %v5555
  %v5557 = vpop.f32.mrb[0].mxu0
  %5558 = vmatprep.mubr.f32.mxu0 0.0
  %5559 = vmatmul.mubr.f32.gmra.mrb[0].mxu0 %v5271
  %v5560 = vpop.f32.mrb[0].mxu0
  %v5561 = vadd.f32 %v1241, %v5560
  %v5562 = vpop.f32.mrb[0].mxu0
  %5563 = vmatprep.mubr.f32.mxu0 0.0
  %5564 = vmatmul.mubr.f32.gmra.mrb[0].mxu0 %v5274
  %v5565 = vpop.f32.mrb[0].mxu0
  %v5566 = vadd.f32 %v1241, %v5565
  %v5567 = vpop.f32.mrb[0].mxu0
  %5568 = vmatprep.mubr.f32.mxu0 0.0
  %5569 = vmatmul.mubr.f32.gmra.mrb[0].mxu0 %v5277
  %v5570 = vpop.f32.mrb[0].mxu0
  %v5571 = vadd.f32 %v1241, %v5570
  %v5572 = vpop.f32.mrb[0].mxu0
  %5573 = vmatprep.mubr.f32.mxu0 0.0
  %5574 = vmatmul.mubr.f32.gmra.mrb[0].mxu0 %v5280
  %v5575 = vpop.f32.mrb[0].mxu0
  %v5576 = vadd.f32 %v1241, %v5575
  %v5577 = vpop.f32.mrb[0].mxu0
  %5578 = vmatprep.mubr.f32.mxu0 0.0
  %5579 = vmatmul.mubr.f32.gmra.mrb[0].mxu0 %v5283
  %v5580 = vpop.f32.mrb[0].mxu0
  %v5581 = vadd.f32 %v1241, %v5580
  %v5582 = vpop.f32.mrb[0].mxu0
  %5583 = vmatprep.mubr.f32.mxu0 0.0
  %5584 = vmatmul.mubr.f32.gmra.mrb[0].mxu0 %v5286
  %v5585 = vpop.f32.mrb[0].mxu0
  %v5586 = vadd.f32 %v1241, %v5585
  %v5587 = vpop.f32.mrb[0].mxu0
  %5588 = vmatprep.mubr.f32.mxu0 0.0
  %5589 = vmatmul.mubr.f32.gmra.mrb[0].mxu0 %v5289
  %v5590 = vpop.f32.mrb[0].mxu0
  %v5591 = vadd.f32 %v1241, %v5590
  %v5592 = vpop.f32.mrb[0].mxu0
  %5593 = vmatprep.mubr.f32.mxu0 0.0
  %5594 = vmatmul.mubr.f32.gmra.mrb[0].mxu0 %v5292
  %v5595 = vpop.f32.mrb[0].mxu0
  %v5596 = vadd.f32 %v1241, %v5595
  %v5597 = vpop.f32.mrb[0].mxu0
  %5598 = vmatprep.mubr.f32.mxu0 0.0
  %5599 = vmatmul.mubr.f32.gmra.mrb[0].mxu0 %v5295
  %v5600 = vpop.f32.mrb[0].mxu0
  %v5601 = vadd.f32 %v1241, %v5600
  %v5602 = vpop.f32.mrb[0].mxu0
  %5603 = vmatprep.mubr.f32.mxu0 0.0
  %5604 = vmatmul.mubr.f32.gmra.mrb[0].mxu0 %v5298
  %v5605 = vpop.f32.mrb[0].mxu0
  %v5606 = vadd.f32 %v1241, %v5605
  %v5607 = vpop.f32.mrb[0].mxu0
  %5608 = vmatprep.mubr.f32.mxu0 0.0
  %5609 = vmatmul.mubr.f32.gmra.mrb[0].mxu0 %v5301
  %v5610 = vpop.f32.mrb[0].mxu0
  %v5611 = vadd.f32 %v1241, %v5610
  %v5612 = vpop.f32.mrb[0].mxu0
  %5613 = vmatprep.mubr.f32.mxu0 0.0
  %5614 = vmatmul.mubr.f32.gmra.mrb[0].mxu0 %v5304
  %v5615 = vpop.f32.mrb[0].mxu0
  %v5616 = vadd.f32 %v1241, %v5615
  %v5617 = vpop.f32.mrb[0].mxu0
  %5618 = vmatprep.mubr.f32.mxu0 0.0
  %5619 = vmatmul.mubr.f32.gmra.mrb[0].mxu0 %v5307
  %v5620 = vpop.f32.mrb[0].mxu0
  %v5621 = vadd.f32 %v1241, %v5620
  %v5622 = vpop.f32.mrb[0].mxu0
  %5623 = vmatprep.mubr.f32.mxu0 0.0
  %5624 = vmatmul.mubr.f32.gmra.mrb[0].mxu0 %v5310
  %v5625 = vpop.f32.mrb[0].mxu0
  %v5626 = vadd.f32 %v1241, %v5625
  %v5627 = vpop.f32.mrb[0].mxu0
  %5628 = vmatprep.mubr.f32.mxu0 0.0
  %5629 = vmatmul.mubr.f32.gmra.mrb[0].mxu0 %v5313
  %v5630 = vpop.f32.mrb[0].mxu0
  %v5631 = vadd.f32 %v1241, %v5630
  %v5632 = vpop.f32.mrb[0].mxu0
  %5633 = vmatprep.mubr.f32.mxu0 0.0
  %5634 = vmatmul.mubr.f32.gmra.mrb[0].mxu0 %v5316
  %v5635 = vpop.f32.mrb[0].mxu0
  %v5636 = vadd.f32 %v1241, %v5635
  %v5637 = vpop.f32.mrb[0].mxu0
  %5638 = vmatprep.mubr.f32.mxu0 0.0
  %5639 = vmatmul.mubr.f32.gmra.mrb[0].mxu0 %v5319
  %v5640 = vpop.f32.mrb[0].mxu0
  %v5641 = vadd.f32 %v1241, %v5640
  %v5642 = vpop.f32.mrb[0].mxu0
  %5643 = vmatprep.mubr.f32.mxu0 0.0
  %5644 = vmatmul.mubr.f32.gmra.mrb[0].mxu0 %v5322
  %v5645 = vpop.f32.mrb[0].mxu0
  %v5646 = vadd.f32 %v1241, %v5645
  %v5647 = vpop.f32.mrb[0].mxu0
  %5648 = vmatprep.mubr.f32.mxu0 0.0
  %5649 = vmatmul.mubr.f32.gmra.mrb[0].mxu0 %v5325
  %v5650 = vpop.f32.mrb[0].mxu0
  %v5651 = vadd.f32 %v1241, %v5650
  %v5652 = vpop.f32.mrb[0].mxu0
  %5653 = vmatprep.mubr.f32.mxu0 0.0
  %5654 = vmatmul.mubr.f32.gmra.mrb[0].mxu0 %v5328
  %v5655 = vpop.f32.mrb[0].mxu0
  %v5656 = vadd.f32 %v1241, %v5655
  %v5657 = vpop.f32.mrb[0].mxu0
  %5658 = vmatprep.mubr.f32.mxu0 0.0
  %5659 = vmatmul.mubr.f32.gmra.mrb[0].mxu0 %v5331
  %v5660 = vpop.f32.mrb[0].mxu0
  %v5661 = vadd.f32 %v1241, %v5660
  %v5662 = vpop.f32.mrb[0].mxu0
  %5663 = vmatprep.mubr.f32.mxu0 0.0
  %5664 = vmatmul.mubr.f32.gmra.mrb[0].mxu0 %v5334
  %v5665 = vpop.f32.mrb[0].mxu0
  %v5666 = vadd.f32 %v1241, %v5665
  %v5667 = vpop.f32.mrb[0].mxu0
  %5668 = vmatprep.mubr.f32.mxu0 0.0
  %5669 = vmatmul.mubr.f32.gmra.mrb[0].mxu0 %v5337
  %v5670 = vpop.f32.mrb[0].mxu0
  %v5671 = vadd.f32 %v1241, %v5670
  %v5672 = vpop.f32.mrb[0].mxu0
  %5673 = vmatprep.mubr.f32.mxu0 0.0
  %5674 = vmatmul.mubr.f32.gmra.mrb[0].mxu0 %v5340
  %v5675 = vpop.f32.mrb[0].mxu0
  %v5676 = vadd.f32 %v1241, %v5675
  %v5677 = vpop.f32.mrb[0].mxu0
  %5678 = vmatprep.mubr.f32.mxu0 0.0
  %5679 = vmatmul.mubr.f32.gmra.mrb[0].mxu0 %v5343
  %v5680 = vpop.f32.mrb[0].mxu0
  %v5681 = vadd.f32 %v1241, %v5680
  %v5682 = vpop.f32.mrb[0].mxu0
  %5683 = vmatprep.mubr.f32.mxu0 0.0
  %5684 = vmatmul.mubr.f32.gmra.mrb[0].mxu0 %v5346
  %v5685 = vpop.f32.mrb[0].mxu0
  %v5686 = vadd.f32 %v1241, %v5685
  %v5687 = vpop.f32.mrb[0].mxu0
  %5688 = vmatprep.mubr.f32.mxu0 0.0
  %5689 = vmatmul.mubr.f32.gmra.mrb[0].mxu0 %v5349
  %v5690 = vpop.f32.mrb[0].mxu0
  %v5691 = vadd.f32 %v1241, %v5690
  %v5692 = vpop.f32.mrb[0].mxu0
  %5693 = vmatprep.mubr.f32.mxu0 0.0
  %5694 = vmatmul.mubr.f32.gmra.mrb[0].mxu0 %v5352
  %v5695 = vpop.f32.mrb[0].mxu0
  %v5696 = vadd.f32 %v1241, %v5695
  %v5697 = vpop.f32.mrb[0].mxu0
  %5698 = vmatprep.mubr.f32.mxu0 0.0
  %5699 = vmatmul.mubr.f32.gmra.mrb[0].mxu0 %v5355
  %v5700 = vpop.f32.mrb[0].mxu0
  %v5701 = vadd.f32 %v1241, %v5700
  %v5702 = vpop.f32.mrb[0].mxu0
  %5703 = vmatprep.mubr.f32.mxu0 0.0
  %5704 = vmatmul.mubr.f32.gmra.mrb[0].mxu0 %v5358
  %v5705 = vpop.f32.mrb[0].mxu0
  %v5706 = vadd.f32 %v1241, %v5705
  %v5707 = vpop.f32.mrb[0].mxu0
  %5708 = vmatprep.mubr.f32.mxu0 0.0
  %5709 = vmatmul.mubr.f32.gmra.mrb[0].mxu0 %v5361
  %v5710 = vpop.f32.mrb[0].mxu0
  %v5711 = vadd.f32 %v1241, %v5710
  %v5712 = vpop.f32.mrb[0].mxu0
  %5713 = vmatprep.mubr.f32.mxu0 0.0
  %5714 = vmatmul.mubr.f32.gmra.mrb[0].mxu0 %v5364
  %v5715 = vpop.f32.mrb[0].mxu0
  %v5716 = vadd.f32 %v1241, %v5715
  %v5717 = vpop.f32.mrb[0].mxu0
  %5718 = vmatprep.mubr.f32.mxu0 0.0
  %5719 = vmatmul.mubr.f32.gmra.mrb[0].mxu0 %v5367
  %v5720 = vpop.f32.mrb[0].mxu0
  %v5721 = vadd.f32 %v1241, %v5720
  %v5722 = vpop.f32.mrb[0].mxu0
  %5723 = vmatprep.mubr.f32.mxu0 0.0
  %5724 = vmatmul.mubr.f32.gmra.mrb[0].mxu0 %v5370
  %v5725 = vpop.f32.mrb[0].mxu0
  %v5726 = vadd.f32 %v1241, %v5725
  %v5727 = vpop.f32.mrb[0].mxu0
  %5728 = vmatprep.mubr.f32.mxu0 0.0
  %5729 = vmatmul.mubr.f32.gmra.mrb[0].mxu0 %v5373
  %v5730 = vpop.f32.mrb[0].mxu0
  %v5731 = vadd.f32 %v1241, %v5730
  %v5732 = vpop.f32.mrb[0].mxu0
  %5733 = vmatprep.mubr.f32.mxu0 0.0
  %5734 = vmatmul.mubr.f32.gmra.mrb[0].mxu0 %v5376
  %v5735 = vpop.f32.mrb[0].mxu0
  %v5736 = vadd.f32 %v1241, %v5735
  %v5737 = vpop.f32.mrb[0].mxu0
  %5738 = vmatprep.mubr.f32.mxu0 0.0
  %5739 = vmatmul.mubr.f32.gmra.mrb[0].mxu0 %v5379
  %v5740 = vpop.f32.mrb[0].mxu0
  %v5741 = vadd.f32 %v1241, %v5740
  %v5742 = vpop.f32.mrb[0].mxu0
  %5743 = vmatprep.mubr.f32.mxu0 0.0
  %5744 = vmatmul.mubr.f32.gmra.mrb[0].mxu0 %v5382
  %v5745 = vpop.f32.mrb[0].mxu0
  %v5746 = vadd.f32 %v1241, %v5745
  %v5747 = vpop.f32.mrb[0].mxu0
  %5748 = vmatprep.mubr.f32.mxu0 0.0
  %5749 = vmatmul.mubr.f32.gmra.mrb[0].mxu0 %v5385
  %v5750 = vpop.f32.mrb[0].mxu0
  %v5751 = vadd.f32 %v1241, %v5750
  %v5752 = vpop.f32.mrb[0].mxu0
  %5753 = vmatprep.mubr.f32.mxu0 0.0
  %5754 = vmatmul.mubr.f32.gmra.mrb[0].mxu0 %v5388
  %v5755 = vpop.f32.mrb[0].mxu0
  %v5756 = vadd.f32 %v1241, %v5755
  %v5757 = vpop.f32.mrb[0].mxu0
  %5758 = vmatprep.mubr.f32.mxu0 0.0
  %5759 = vmatmul.mubr.f32.gmra.mrb[0].mxu0 %v5391
  %v5760 = vpop.f32.mrb[0].mxu0
  %v5761 = vadd.f32 %v1241, %v5760
  %v5762 = vpop.f32.mrb[0].mxu0
  %5763 = vmatprep.mubr.f32.mxu0 0.0
  %5764 = vmatmul.mubr.f32.gmra.mrb[0].mxu0 %v5394
  %v5765 = vpop.f32.mrb[0].mxu0
  %v5766 = vadd.f32 %v1241, %v5765
  %v5767 = vpop.f32.mrb[0].mxu0
  %5768 = vmatprep.mubr.f32.mxu0 0.0
  %5769 = vmatmul.mubr.f32.gmra.mrb[0].mxu0 %v5397
  %v5770 = vpop.f32.mrb[0].mxu0
  %v5771 = vadd.f32 %v1241, %v5770
  %v5772 = vpop.f32.mrb[0].mxu0
  %5773 = vmatprep.mubr.f32.mxu0 0.0
  %5774 = vmatmul.mubr.f32.gmra.mrb[0].mxu0 %v5400
  %v5775 = vpop.f32.mrb[0].mxu0
  %v5776 = vadd.f32 %v1241, %v5775
  %v5777 = vpop.f32.mrb[0].mxu0
  %5778 = vmatprep.mubr.f32.mxu0 0.0
  %5779 = vmatmul.mubr.f32.gmra.mrb[0].mxu0 %v5403
  %v5780 = vpop.f32.mrb[0].mxu0
  %v5781 = vadd.f32 %v1241, %v5780
  %v5782 = vpop.f32.mrb[0].mxu0
  %5783 = vmatprep.mubr.f32.mxu0 0.0
  %5784 = vmatmul.mubr.f32.gmra.mrb[0].mxu0 %v5406
  %v5785 = vpop.f32.mrb[0].mxu0
  %v5786 = vadd.f32 %v1241, %v5785
  %v5787 = vpop.f32.mrb[0].mxu0
  %5788 = vmatprep.mubr.f32.mxu0 0.0
  %5789 = vmatmul.mubr.f32.gmra.mrb[0].mxu0 %v5409
  %v5790 = vpop.f32.mrb[0].mxu0
  %v5791 = vadd.f32 %v1241, %v5790
  %v5792 = vpop.f32.mrb[0].mxu0
  %5793 = vmatprep.mubr.f32.mxu0 0.0
  %5794 = vmatmul.mubr.f32.gmra.mrb[0].mxu0 %v5412
  %v5795 = vpop.f32.mrb[0].mxu0
  %v5796 = vadd.f32 %v1241, %v5795
  %v5797 = vpop.f32.mrb[0].mxu0
  %5798 = vdwg.mxu0
  %s5799 = scalar_lea.vmem %s3, 16
  %5800 = vst.msk [vmem:[%s5799] sm:$0xff] %vm1040, %v5481
  %5801 = vst.msk [vmem:[%s5799 + $0x8] sm:$0xff] %vm1040, %v5486
  %5802 = vst.msk [vmem:[%s5799 + $0x20] sm:$0xff] %vm1040, %v5491
  %5803 = vst.msk [vmem:[%s5799 + $0x28] sm:$0xff] %vm1040, %v5496
  %5804 = vst.msk [vmem:[%s5799 + $0x40] sm:$0xff] %vm1040, %v5501
  %5805 = vst.msk [vmem:[%s5799 + $0x48] sm:$0xff] %vm1040, %v5506
  %5806 = vst.msk [vmem:[%s5799 + $0x60] sm:$0xff] %vm1040, %v5511
  %5807 = vst.msk [vmem:[%s5799 + $0x68] sm:$0xff] %vm1040, %v5516
  %5808 = vst.msk [vmem:[%s5799 + $0x80] sm:$0xff] %vm1040, %v5521
  %5809 = vst.msk [vmem:[%s5799 + $0x88] sm:$0xff] %vm1040, %v5526
  %5810 = vst.msk [vmem:[%s5799 + $0xa0] sm:$0xff] %vm1040, %v5531
  %5811 = vst.msk [vmem:[%s5799 + $0xa8] sm:$0xff] %vm1040, %v5536
  %5812 = vst.msk [vmem:[%s5799 + $0xc0] sm:$0xff] %vm1040, %v5541
  %5813 = vst.msk [vmem:[%s5799 + $0xc8] sm:$0xff] %vm1040, %v5546
  %5814 = vst.msk [vmem:[%s5799 + $0xe0] sm:$0xff] %vm1040, %v5551
  %5815 = vst.msk [vmem:[%s5799 + $0xe8] sm:$0xff] %vm1040, %v5556
  %5816 = vst.msk [vmem:[%s5799 + $0x100] sm:$0xff] %vm1040, %v5561
  %5817 = vst.msk [vmem:[%s5799 + $0x108] sm:$0xff] %vm1040, %v5566
  %5818 = vst.msk [vmem:[%s5799 + $0x120] sm:$0xff] %vm1040, %v5571
  %5819 = vst.msk [vmem:[%s5799 + $0x128] sm:$0xff] %vm1040, %v5576
  %5820 = vst.msk [vmem:[%s5799 + $0x140] sm:$0xff] %vm1040, %v5581
  %5821 = vst.msk [vmem:[%s5799 + $0x148] sm:$0xff] %vm1040, %v5586
  %5822 = vst.msk [vmem:[%s5799 + $0x160] sm:$0xff] %vm1040, %v5591
  %5823 = vst.msk [vmem:[%s5799 + $0x168] sm:$0xff] %vm1040, %v5596
  %5824 = vst.msk [vmem:[%s5799 + $0x180] sm:$0xff] %vm1040, %v5601
  %5825 = vst.msk [vmem:[%s5799 + $0x188] sm:$0xff] %vm1040, %v5606
  %5826 = vst.msk [vmem:[%s5799 + $0x1a0] sm:$0xff] %vm1040, %v5611
  %5827 = vst.msk [vmem:[%s5799 + $0x1a8] sm:$0xff] %vm1040, %v5616
  %5828 = vst.msk [vmem:[%s5799 + $0x1c0] sm:$0xff] %vm1040, %v5621
  %5829 = vst.msk [vmem:[%s5799 + $0x1c8] sm:$0xff] %vm1040, %v5626
  %5830 = vst.msk [vmem:[%s5799 + $0x1e0] sm:$0xff] %vm1040, %v5631
  %5831 = vst.msk [vmem:[%s5799 + $0x1e8] sm:$0xff] %vm1040, %v5636
  %5832 = vst.msk [vmem:[%s5799 + $0x200] sm:$0xff] %vm1040, %v5641
  %5833 = vst.msk [vmem:[%s5799 + $0x208] sm:$0xff] %vm1040, %v5646
  %5834 = vst.msk [vmem:[%s5799 + $0x220] sm:$0xff] %vm1040, %v5651
  %5835 = vst.msk [vmem:[%s5799 + $0x228] sm:$0xff] %vm1040, %v5656
  %5836 = vst.msk [vmem:[%s5799 + $0x240] sm:$0xff] %vm1040, %v5661
  %5837 = vst.msk [vmem:[%s5799 + $0x248] sm:$0xff] %vm1040, %v5666
  %5838 = vst.msk [vmem:[%s5799 + $0x260] sm:$0xff] %vm1040, %v5671
  %5839 = vst.msk [vmem:[%s5799 + $0x268] sm:$0xff] %vm1040, %v5676
  %5840 = vst.msk [vmem:[%s5799 + $0x280] sm:$0xff] %vm1040, %v5681
  %5841 = vst.msk [vmem:[%s5799 + $0x288] sm:$0xff] %vm1040, %v5686
  %5842 = vst.msk [vmem:[%s5799 + $0x2a0] sm:$0xff] %vm1040, %v5691
  %5843 = vst.msk [vmem:[%s5799 + $0x2a8] sm:$0xff] %vm1040, %v5696
  %5844 = vst.msk [vmem:[%s5799 + $0x2c0] sm:$0xff] %vm1040, %v5701
  %5845 = vst.msk [vmem:[%s5799 + $0x2c8] sm:$0xff] %vm1040, %v5706
  %5846 = vst.msk [vmem:[%s5799 + $0x2e0] sm:$0xff] %vm1040, %v5711
  %5847 = vst.msk [vmem:[%s5799 + $0x2e8] sm:$0xff] %vm1040, %v5716
  %5848 = vst.msk [vmem:[%s5799 + $0x300] sm:$0xff] %vm1040, %v5721
  %5849 = vst.msk [vmem:[%s5799 + $0x308] sm:$0xff] %vm1040, %v5726
  %5850 = vst.msk [vmem:[%s5799 + $0x320] sm:$0xff] %vm1040, %v5731
  %5851 = vst.msk [vmem:[%s5799 + $0x328] sm:$0xff] %vm1040, %v5736
  %5852 = vst.msk [vmem:[%s5799 + $0x340] sm:$0xff] %vm1040, %v5741
  %5853 = vst.msk [vmem:[%s5799 + $0x348] sm:$0xff] %vm1040, %v5746
  %5854 = vst.msk [vmem:[%s5799 + $0x360] sm:$0xff] %vm1040, %v5751
  %5855 = vst.msk [vmem:[%s5799 + $0x368] sm:$0xff] %vm1040, %v5756
  %5856 = vst.msk [vmem:[%s5799 + $0x380] sm:$0xff] %vm1040, %v5761
  %5857 = vst.msk [vmem:[%s5799 + $0x388] sm:$0xff] %vm1040, %v5766
  %5858 = vst.msk [vmem:[%s5799 + $0x3a0] sm:$0xff] %vm1040, %v5771
  %5859 = vst.msk [vmem:[%s5799 + $0x3a8] sm:$0xff] %vm1040, %v5776
  %5860 = vst.msk [vmem:[%s5799 + $0x3c0] sm:$0xff] %vm1040, %v5781
  %5861 = vst.msk [vmem:[%s5799 + $0x3c8] sm:$0xff] %vm1040, %v5786
  %5862 = vst.msk [vmem:[%s5799 + $0x3e0] sm:$0xff] %vm1040, %v5791
  %5863 = vst.msk [vmem:[%s5799 + $0x3e8] sm:$0xff] %vm1040, %v5796
  %v5864 = vld [vmem:[%s143 + $0x1] sm:$0xff]
  %v5865 = vld [vmem:[%s143 + $0x9] sm:$0xff]
  %v5866 = vld [vmem:[%s143 + $0x19] sm:$0xff]
  %v5867 = vld [vmem:[%s143 + $0x21] sm:$0xff]
  %v5868 = vld [vmem:[%s143 + $0x31] sm:$0xff]
  %v5869 = vld [vmem:[%s143 + $0x39] sm:$0xff]
  %v5870 = vld [vmem:[%s143 + $0x49] sm:$0xff]
  %v5871 = vld [vmem:[%s143 + $0x51] sm:$0xff]
  %v5872 = vld [vmem:[%s143 + $0x61] sm:$0xff]
  %v5873 = vld [vmem:[%s143 + $0x69] sm:$0xff]
  %v5874 = vld [vmem:[%s143 + $0x79] sm:$0xff]
  %v5875 = vld [vmem:[%s143 + $0x81] sm:$0xff]
  %v5876 = vld [vmem:[%s143 + $0x91] sm:$0xff]
  %v5877 = vld [vmem:[%s143 + $0x99] sm:$0xff]
  %v5878 = vld [vmem:[%s143 + $0xa9] sm:$0xff]
  %v5879 = vld [vmem:[%s143 + $0xb1] sm:$0xff]
  %v5880 = vld [vmem:[%s143 + $0xc1] sm:$0xff]
  %v5881 = vld [vmem:[%s143 + $0xc9] sm:$0xff]
  %v5882 = vld [vmem:[%s143 + $0xd9] sm:$0xff]
  %v5883 = vld [vmem:[%s143 + $0xe1] sm:$0xff]
  %v5884 = vld [vmem:[%s143 + $0xf1] sm:$0xff]
  %v5885 = vld [vmem:[%s143 + $0xf9] sm:$0xff]
  %v5886 = vld [vmem:[%s143 + $0x109] sm:$0xff]
  %v5887 = vld [vmem:[%s143 + $0x111] sm:$0xff]
  %v5888 = vld [vmem:[%s143 + $0x121] sm:$0xff]
  %v5889 = vld [vmem:[%s143 + $0x129] sm:$0xff]
  %v5890 = vld [vmem:[%s143 + $0x139] sm:$0xff]
  %v5891 = vld [vmem:[%s143 + $0x141] sm:$0xff]
  %v5892 = vld [vmem:[%s143 + $0x151] sm:$0xff]
  %v5893 = vld [vmem:[%s143 + $0x159] sm:$0xff]
  %v5894 = vld [vmem:[%s143 + $0x169] sm:$0xff]
  %v5895 = vld [vmem:[%s143 + $0x171] sm:$0xff]
  %v5896 = vld [vmem:[%s143 + $0x1b1] sm:$0xff]
  %v5897 = vld [vmem:[%s143 + $0x1b9] sm:$0xff]
  %v5898 = vld [vmem:[%s143 + $0x1c9] sm:$0xff]
  %v5899 = vld [vmem:[%s143 + $0x1d1] sm:$0xff]
  %v5900 = vld [vmem:[%s143 + $0x1e1] sm:$0xff]
  %v5901 = vld [vmem:[%s143 + $0x1e9] sm:$0xff]
  %v5902 = vld [vmem:[%s143 + $0x1f9] sm:$0xff]
  %v5903 = vld [vmem:[%s143 + $0x201] sm:$0xff]
  %v5904 = vld [vmem:[%s143 + $0x211] sm:$0xff]
  %v5905 = vld [vmem:[%s143 + $0x219] sm:$0xff]
  %v5906 = vld [vmem:[%s143 + $0x229] sm:$0xff]
  %v5907 = vld [vmem:[%s143 + $0x231] sm:$0xff]
  %v5908 = vld [vmem:[%s143 + $0x241] sm:$0xff]
  %v5909 = vld [vmem:[%s143 + $0x249] sm:$0xff]
  %v5910 = vld [vmem:[%s143 + $0x259] sm:$0xff]
  %v5911 = vld [vmem:[%s143 + $0x261] sm:$0xff]
  %v5912 = vld [vmem:[%s143 + $0x271] sm:$0xff]
  %v5913 = vld [vmem:[%s143 + $0x279] sm:$0xff]
  %v5914 = vld [vmem:[%s143 + $0x289] sm:$0xff]
  %v5915 = vld [vmem:[%s143 + $0x291] sm:$0xff]
  %v5916 = vld [vmem:[%s143 + $0x2a1] sm:$0xff]
  %v5917 = vld [vmem:[%s143 + $0x2a9] sm:$0xff]
  %v5918 = vld [vmem:[%s143 + $0x2b9] sm:$0xff]
  %v5919 = vld [vmem:[%s143 + $0x2c1] sm:$0xff]
  %v5920 = vld [vmem:[%s143 + $0x2d1] sm:$0xff]
  %v5921 = vld [vmem:[%s143 + $0x2d9] sm:$0xff]
  %v5922 = vld [vmem:[%s143 + $0x2e9] sm:$0xff]
  %v5923 = vld [vmem:[%s143 + $0x2f1] sm:$0xff]
  %v5924 = vld [vmem:[%s143 + $0x301] sm:$0xff]
  %v5925 = vld [vmem:[%s143 + $0x309] sm:$0xff]
  %v5926 = vld [vmem:[%s143 + $0x319] sm:$0xff]
  %v5927 = vld [vmem:[%s143 + $0x321] sm:$0xff]
  %v5928 = vld [vmem:[%s143 + $0x2] sm:$0xff]
  %v5929 = vld [vmem:[%s143 + $0xa] sm:$0xff]
  %v5930 = vld [vmem:[%s143 + $0x1a] sm:$0xff]
  %v5931 = vld [vmem:[%s143 + $0x22] sm:$0xff]
  %v5932 = vld [vmem:[%s143 + $0x32] sm:$0xff]
  %v5933 = vld [vmem:[%s143 + $0x3a] sm:$0xff]
  %v5934 = vld [vmem:[%s143 + $0x4a] sm:$0xff]
  %v5935 = vld [vmem:[%s143 + $0x52] sm:$0xff]
  %v5936 = vld [vmem:[%s143 + $0x62] sm:$0xff]
  %v5937 = vld [vmem:[%s143 + $0x6a] sm:$0xff]
  %v5938 = vld [vmem:[%s143 + $0x7a] sm:$0xff]
  %v5939 = vld [vmem:[%s143 + $0x82] sm:$0xff]
  %v5940 = vld [vmem:[%s143 + $0x92] sm:$0xff]
  %v5941 = vld [vmem:[%s143 + $0x9a] sm:$0xff]
  %v5942 = vld [vmem:[%s143 + $0xaa] sm:$0xff]
  %v5943 = vld [vmem:[%s143 + $0xb2] sm:$0xff]
  %v5944 = vld [vmem:[%s143 + $0xc2] sm:$0xff]
  %v5945 = vld [vmem:[%s143 + $0xca] sm:$0xff]
  %v5946 = vld [vmem:[%s143 + $0xda] sm:$0xff]
  %v5947 = vld [vmem:[%s143 + $0xe2] sm:$0xff]
  %v5948 = vld [vmem:[%s143 + $0xf2] sm:$0xff]
  %v5949 = vld [vmem:[%s143 + $0xfa] sm:$0xff]
  %v5950 = vld [vmem:[%s143 + $0x10a] sm:$0xff]
  %v5951 = vld [vmem:[%s143 + $0x112] sm:$0xff]
  %v5952 = vld [vmem:[%s143 + $0x122] sm:$0xff]
  %v5953 = vld [vmem:[%s143 + $0x12a] sm:$0xff]
  %v5954 = vld [vmem:[%s143 + $0x13a] sm:$0xff]
  %v5955 = vld [vmem:[%s143 + $0x142] sm:$0xff]
  %v5956 = vld [vmem:[%s143 + $0x152] sm:$0xff]
  %v5957 = vld [vmem:[%s143 + $0x15a] sm:$0xff]
  %v5958 = vld [vmem:[%s143 + $0x16a] sm:$0xff]
  %v5959 = vld [vmem:[%s143 + $0x172] sm:$0xff]
  %v5960 = vld [vmem:[%s143 + $0x1b2] sm:$0xff]
  %v5961 = vld [vmem:[%s143 + $0x1ba] sm:$0xff]
  %v5962 = vld [vmem:[%s143 + $0x1ca] sm:$0xff]
  %v5963 = vld [vmem:[%s143 + $0x1d2] sm:$0xff]
  %v5964 = vld [vmem:[%s143 + $0x1e2] sm:$0xff]
  %v5965 = vld [vmem:[%s143 + $0x1ea] sm:$0xff]
  %v5966 = vld [vmem:[%s143 + $0x1fa] sm:$0xff]
  %v5967 = vld [vmem:[%s143 + $0x202] sm:$0xff]
  %v5968 = vld [vmem:[%s143 + $0x212] sm:$0xff]
  %v5969 = vld [vmem:[%s143 + $0x21a] sm:$0xff]
  %v5970 = vld [vmem:[%s143 + $0x22a] sm:$0xff]
  %v5971 = vld [vmem:[%s143 + $0x232] sm:$0xff]
  %v5972 = vld [vmem:[%s143 + $0x242] sm:$0xff]
  %v5973 = vld [vmem:[%s143 + $0x24a] sm:$0xff]
  %v5974 = vld [vmem:[%s143 + $0x25a] sm:$0xff]
  %v5975 = vld [vmem:[%s143 + $0x262] sm:$0xff]
  %v5976 = vld [vmem:[%s143 + $0x272] sm:$0xff]
  %v5977 = vld [vmem:[%s143 + $0x27a] sm:$0xff]
  %v5978 = vld [vmem:[%s143 + $0x28a] sm:$0xff]
  %v5979 = vld [vmem:[%s143 + $0x292] sm:$0xff]
  %v5980 = vld [vmem:[%s143 + $0x2a2] sm:$0xff]
  %v5981 = vld [vmem:[%s143 + $0x2aa] sm:$0xff]
  %v5982 = vld [vmem:[%s143 + $0x2ba] sm:$0xff]
  %v5983 = vld [vmem:[%s143 + $0x2c2] sm:$0xff]
  %v5984 = vld [vmem:[%s143 + $0x2d2] sm:$0xff]
  %v5985 = vld [vmem:[%s143 + $0x2da] sm:$0xff]
  %v5986 = vld [vmem:[%s143 + $0x2ea] sm:$0xff]
  %v5987 = vld [vmem:[%s143 + $0x2f2] sm:$0xff]
  %v5988 = vld [vmem:[%s143 + $0x302] sm:$0xff]
  %v5989 = vld [vmem:[%s143 + $0x30a] sm:$0xff]
  %v5990 = vld [vmem:[%s143 + $0x31a] sm:$0xff]
  %v5991 = vld [vmem:[%s143 + $0x322] sm:$0xff]
  %v5992 = vld [vmem:[%s4130 + $0x1] sm:$0xff]
  %v5993 = vld [vmem:[%s4130 + $0x9] sm:$0xff]
  %v5994 = vld [vmem:[%s4130 + $0x19] sm:$0xff]
  %v5995 = vld [vmem:[%s4130 + $0x21] sm:$0xff]
  %v5996 = vld [vmem:[%s4130 + $0x31] sm:$0xff]
  %v5997 = vld [vmem:[%s4130 + $0x39] sm:$0xff]
  %v5998 = vld [vmem:[%s4130 + $0x49] sm:$0xff]
  %v5999 = vld [vmem:[%s4130 + $0x51] sm:$0xff]
  %v6000 = vld [vmem:[%s4130 + $0x61] sm:$0xff]
  %v6001 = vld [vmem:[%s4130 + $0x69] sm:$0xff]
  %v6002 = vld [vmem:[%s4130 + $0x79] sm:$0xff]
  %v6003 = vld [vmem:[%s4130 + $0x81] sm:$0xff]
  %v6004 = vld [vmem:[%s4130 + $0x91] sm:$0xff]
  %v6005 = vld [vmem:[%s4130 + $0x99] sm:$0xff]
  %v6006 = vld [vmem:[%s4130 + $0xa9] sm:$0xff]
  %v6007 = vld [vmem:[%s4130 + $0xb1] sm:$0xff]
  %v6008 = vld [vmem:[%s4130 + $0xc1] sm:$0xff]
  %v6009 = vld [vmem:[%s4130 + $0xc9] sm:$0xff]
  %v6010 = vld [vmem:[%s4130 + $0xd9] sm:$0xff]
  %v6011 = vld [vmem:[%s4130 + $0xe1] sm:$0xff]
  %v6012 = vld [vmem:[%s4130 + $0xf1] sm:$0xff]
  %v6013 = vld [vmem:[%s4130 + $0xf9] sm:$0xff]
  %v6014 = vld [vmem:[%s4130 + $0x109] sm:$0xff]
  %v6015 = vld [vmem:[%s4130 + $0x111] sm:$0xff]
  %v6016 = vld [vmem:[%s4130 + $0x121] sm:$0xff]
  %v6017 = vld [vmem:[%s4130 + $0x129] sm:$0xff]
  %v6018 = vld [vmem:[%s4130 + $0x139] sm:$0xff]
  %v6019 = vld [vmem:[%s4130 + $0x141] sm:$0xff]
  %v6020 = vld [vmem:[%s4130 + $0x151] sm:$0xff]
  %v6021 = vld [vmem:[%s4130 + $0x159] sm:$0xff]
  %v6022 = vld [vmem:[%s4130 + $0x169] sm:$0xff]
  %v6023 = vld [vmem:[%s4130 + $0x171] sm:$0xff]
  %v6024 = vld [vmem:[%s4130 + $0x1b1] sm:$0xff]
  %v6025 = vld [vmem:[%s4130 + $0x1b9] sm:$0xff]
  %v6026 = vld [vmem:[%s4130 + $0x1c9] sm:$0xff]
  %v6027 = vld [vmem:[%s4130 + $0x1d1] sm:$0xff]
  %v6028 = vld [vmem:[%s4130 + $0x1e1] sm:$0xff]
  %v6029 = vld [vmem:[%s4130 + $0x1e9] sm:$0xff]
  %v6030 = vld [vmem:[%s4130 + $0x1f9] sm:$0xff]
  %v6031 = vld [vmem:[%s4130 + $0x201] sm:$0xff]
  %v6032 = vld [vmem:[%s4130 + $0x211] sm:$0xff]
  %v6033 = vld [vmem:[%s4130 + $0x219] sm:$0xff]
  %v6034 = vld [vmem:[%s4130 + $0x229] sm:$0xff]
  %v6035 = vld [vmem:[%s4130 + $0x231] sm:$0xff]
  %v6036 = vld [vmem:[%s4130 + $0x241] sm:$0xff]
  %v6037 = vld [vmem:[%s4130 + $0x249] sm:$0xff]
  %v6038 = vld [vmem:[%s4130 + $0x259] sm:$0xff]
  %v6039 = vld [vmem:[%s4130 + $0x261] sm:$0xff]
  %v6040 = vld [vmem:[%s4130 + $0x271] sm:$0xff]
  %v6041 = vld [vmem:[%s4130 + $0x279] sm:$0xff]
  %v6042 = vld [vmem:[%s4130 + $0x289] sm:$0xff]
  %v6043 = vld [vmem:[%s4130 + $0x291] sm:$0xff]
  %v6044 = vld [vmem:[%s4130 + $0x2a1] sm:$0xff]
  %v6045 = vld [vmem:[%s4130 + $0x2a9] sm:$0xff]
  %v6046 = vld [vmem:[%s4130 + $0x2b9] sm:$0xff]
  %v6047 = vld [vmem:[%s4130 + $0x2c1] sm:$0xff]
  %v6048 = vld [vmem:[%s4130 + $0x2d1] sm:$0xff]
  %v6049 = vld [vmem:[%s4130 + $0x2d9] sm:$0xff]
  %v6050 = vld [vmem:[%s4130 + $0x2e9] sm:$0xff]
  %v6051 = vld [vmem:[%s4130 + $0x2f1] sm:$0xff]
  %v6052 = vld [vmem:[%s4130 + $0x301] sm:$0xff]
  %v6053 = vld [vmem:[%s4130 + $0x309] sm:$0xff]
  %v6054 = vld [vmem:[%s4130 + $0x319] sm:$0xff]
  %v6055 = vld [vmem:[%s4130 + $0x321] sm:$0xff]
  %v6056 = vld [vmem:[%s4130 + $0x2] sm:$0xff]
  %v6057 = vld [vmem:[%s4130 + $0xa] sm:$0xff]
  %v6058 = vld [vmem:[%s4130 + $0x1a] sm:$0xff]
  %v6059 = vld [vmem:[%s4130 + $0x22] sm:$0xff]
  %v6060 = vld [vmem:[%s4130 + $0x32] sm:$0xff]
  %v6061 = vld [vmem:[%s4130 + $0x3a] sm:$0xff]
  %v6062 = vld [vmem:[%s4130 + $0x4a] sm:$0xff]
  %v6063 = vld [vmem:[%s4130 + $0x52] sm:$0xff]
  %v6064 = vld [vmem:[%s4130 + $0x62] sm:$0xff]
  %v6065 = vld [vmem:[%s4130 + $0x6a] sm:$0xff]
  %v6066 = vld [vmem:[%s4130 + $0x7a] sm:$0xff]
  %v6067 = vld [vmem:[%s4130 + $0x82] sm:$0xff]
  %v6068 = vld [vmem:[%s4130 + $0x92] sm:$0xff]
  %v6069 = vld [vmem:[%s4130 + $0x9a] sm:$0xff]
  %v6070 = vld [vmem:[%s4130 + $0xaa] sm:$0xff]
  %v6071 = vld [vmem:[%s4130 + $0xb2] sm:$0xff]
  %v6072 = vld [vmem:[%s4130 + $0xc2] sm:$0xff]
  %v6073 = vld [vmem:[%s4130 + $0xca] sm:$0xff]
  %v6074 = vld [vmem:[%s4130 + $0xda] sm:$0xff]
  %v6075 = vld [vmem:[%s4130 + $0xe2] sm:$0xff]
  %v6076 = vld [vmem:[%s4130 + $0xf2] sm:$0xff]
  %v6077 = vld [vmem:[%s4130 + $0xfa] sm:$0xff]
  %v6078 = vld [vmem:[%s4130 + $0x10a] sm:$0xff]
  %v6079 = vld [vmem:[%s4130 + $0x112] sm:$0xff]
  %v6080 = vld [vmem:[%s4130 + $0x122] sm:$0xff]
  %v6081 = vld [vmem:[%s4130 + $0x12a] sm:$0xff]
  %v6082 = vld [vmem:[%s4130 + $0x13a] sm:$0xff]
  %v6083 = vld [vmem:[%s4130 + $0x142] sm:$0xff]
  %v6084 = vld [vmem:[%s4130 + $0x152] sm:$0xff]
  %v6085 = vld [vmem:[%s4130 + $0x15a] sm:$0xff]
  %v6086 = vld [vmem:[%s4130 + $0x16a] sm:$0xff]
  %v6087 = vld [vmem:[%s4130 + $0x172] sm:$0xff]
  %v6088 = vld [vmem:[%s4130 + $0x1b2] sm:$0xff]
  %v6089 = vld [vmem:[%s4130 + $0x1ba] sm:$0xff]
  %v6090 = vld [vmem:[%s4130 + $0x1ca] sm:$0xff]
  %v6091 = vld [vmem:[%s4130 + $0x1d2] sm:$0xff]
  %v6092 = vld [vmem:[%s4130 + $0x1e2] sm:$0xff]
  %v6093 = vld [vmem:[%s4130 + $0x1ea] sm:$0xff]
  %v6094 = vld [vmem:[%s4130 + $0x1fa] sm:$0xff]
  %v6095 = vld [vmem:[%s4130 + $0x202] sm:$0xff]
  %v6096 = vld [vmem:[%s4130 + $0x212] sm:$0xff]
  %v6097 = vld [vmem:[%s4130 + $0x21a] sm:$0xff]
  %v6098 = vld [vmem:[%s4130 + $0x22a] sm:$0xff]
  %v6099 = vld [vmem:[%s4130 + $0x232] sm:$0xff]
  %v6100 = vld [vmem:[%s4130 + $0x242] sm:$0xff]
  %v6101 = vld [vmem:[%s4130 + $0x24a] sm:$0xff]
  %v6102 = vld [vmem:[%s4130 + $0x25a] sm:$0xff]
  %v6103 = vld [vmem:[%s4130 + $0x262] sm:$0xff]
  %v6104 = vld [vmem:[%s4130 + $0x272] sm:$0xff]
  %v6105 = vld [vmem:[%s4130 + $0x27a] sm:$0xff]
  %v6106 = vld [vmem:[%s4130 + $0x28a] sm:$0xff]
  %v6107 = vld [vmem:[%s4130 + $0x292] sm:$0xff]
  %v6108 = vld [vmem:[%s4130 + $0x2a2] sm:$0xff]
  %v6109 = vld [vmem:[%s4130 + $0x2aa] sm:$0xff]
  %v6110 = vld [vmem:[%s4130 + $0x2ba] sm:$0xff]
  %v6111 = vld [vmem:[%s4130 + $0x2c2] sm:$0xff]
  %v6112 = vld [vmem:[%s4130 + $0x2d2] sm:$0xff]
  %v6113 = vld [vmem:[%s4130 + $0x2da] sm:$0xff]
  %v6114 = vld [vmem:[%s4130 + $0x2ea] sm:$0xff]
  %v6115 = vld [vmem:[%s4130 + $0x2f2] sm:$0xff]
  %v6116 = vld [vmem:[%s4130 + $0x302] sm:$0xff]
  %v6117 = vld [vmem:[%s4130 + $0x30a] sm:$0xff]
  %v6118 = vld [vmem:[%s4130 + $0x31a] sm:$0xff]
  %v6119 = vld [vmem:[%s4130 + $0x322] sm:$0xff]
  %6184 = vrot.lane.b32.xlu0 %v5928, 4
  %v6185 = vpop.permute.xlu0 %6184
  %6186 = vrot.lane.b32.xlu0 %v5929, 4
  %v6187 = vpop.permute.xlu0 %6186
  %6188 = vrot.lane.b32.xlu0 %v5930, 4
  %v6189 = vpop.permute.xlu0 %6188
  %6190 = vrot.lane.b32.xlu0 %v5931, 4
  %v6191 = vpop.permute.xlu0 %6190
  %6192 = vrot.lane.b32.xlu0 %v5932, 4
  %v6193 = vpop.permute.xlu0 %6192
  %6194 = vrot.lane.b32.xlu0 %v5933, 4
  %v6195 = vpop.permute.xlu0 %6194
  %6196 = vrot.lane.b32.xlu0 %v5934, 4
  %v6197 = vpop.permute.xlu0 %6196
  %6198 = vrot.lane.b32.xlu0 %v5935, 4
  %v6199 = vpop.permute.xlu0 %6198
  %6200 = vrot.lane.b32.xlu0 %v5936, 4
  %v6201 = vpop.permute.xlu0 %6200
  %6202 = vrot.lane.b32.xlu0 %v5937, 4
  %v6203 = vpop.permute.xlu0 %6202
  %6204 = vrot.lane.b32.xlu0 %v5938, 4
  %v6205 = vpop.permute.xlu0 %6204
  %6206 = vrot.lane.b32.xlu0 %v5939, 4
  %v6207 = vpop.permute.xlu0 %6206
  %6208 = vrot.lane.b32.xlu0 %v5940, 4
  %v6209 = vpop.permute.xlu0 %6208
  %6210 = vrot.lane.b32.xlu0 %v5941, 4
  %v6211 = vpop.permute.xlu0 %6210
  %6212 = vrot.lane.b32.xlu0 %v5942, 4
  %v6213 = vpop.permute.xlu0 %6212
  %6214 = vrot.lane.b32.xlu0 %v5943, 4
  %v6215 = vpop.permute.xlu0 %6214
  %6216 = vrot.lane.b32.xlu0 %v5944, 4
  %v6217 = vpop.permute.xlu0 %6216
  %6218 = vrot.lane.b32.xlu0 %v5945, 4
  %v6219 = vpop.permute.xlu0 %6218
  %6220 = vrot.lane.b32.xlu0 %v5946, 4
  %v6221 = vpop.permute.xlu0 %6220
  %6222 = vrot.lane.b32.xlu0 %v5947, 4
  %v6223 = vpop.permute.xlu0 %6222
  %6224 = vrot.lane.b32.xlu0 %v5948, 4
  %v6225 = vpop.permute.xlu0 %6224
  %6226 = vrot.lane.b32.xlu0 %v5949, 4
  %v6227 = vpop.permute.xlu0 %6226
  %6228 = vrot.lane.b32.xlu0 %v5950, 4
  %v6229 = vpop.permute.xlu0 %6228
  %6230 = vrot.lane.b32.xlu0 %v5951, 4
  %v6231 = vpop.permute.xlu0 %6230
  %6232 = vrot.lane.b32.xlu0 %v5952, 4
  %v6233 = vpop.permute.xlu0 %6232
  %6234 = vrot.lane.b32.xlu0 %v5953, 4
  %v6235 = vpop.permute.xlu0 %6234
  %6236 = vrot.lane.b32.xlu0 %v5954, 4
  %v6237 = vpop.permute.xlu0 %6236
  %6238 = vrot.lane.b32.xlu0 %v5955, 4
  %v6239 = vpop.permute.xlu0 %6238
  %6240 = vrot.lane.b32.xlu0 %v5956, 4
  %v6241 = vpop.permute.xlu0 %6240
  %6242 = vrot.lane.b32.xlu0 %v5957, 4
  %v6243 = vpop.permute.xlu0 %6242
  %6244 = vrot.lane.b32.xlu0 %v5958, 4
  %v6245 = vpop.permute.xlu0 %6244
  %6246 = vrot.lane.b32.xlu0 %v5959, 4
  %v6247 = vpop.permute.xlu0 %6246
  %6248 = vrot.lane.b32.xlu0 %v5960, 4
  %v6249 = vpop.permute.xlu0 %6248
  %6250 = vrot.lane.b32.xlu0 %v5961, 4
  %v6251 = vpop.permute.xlu0 %6250
  %6252 = vrot.lane.b32.xlu0 %v5962, 4
  %v6253 = vpop.permute.xlu0 %6252
  %6254 = vrot.lane.b32.xlu0 %v5963, 4
  %v6255 = vpop.permute.xlu0 %6254
  %6256 = vrot.lane.b32.xlu0 %v5964, 4
  %v6257 = vpop.permute.xlu0 %6256
  %6258 = vrot.lane.b32.xlu0 %v5965, 4
  %v6259 = vpop.permute.xlu0 %6258
  %6260 = vrot.lane.b32.xlu0 %v5966, 4
  %v6261 = vpop.permute.xlu0 %6260
  %6262 = vrot.lane.b32.xlu0 %v5967, 4
  %v6263 = vpop.permute.xlu0 %6262
  %6264 = vrot.lane.b32.xlu0 %v5968, 4
  %v6265 = vpop.permute.xlu0 %6264
  %6266 = vrot.lane.b32.xlu0 %v5969, 4
  %v6267 = vpop.permute.xlu0 %6266
  %6268 = vrot.lane.b32.xlu0 %v5970, 4
  %v6269 = vpop.permute.xlu0 %6268
  %6270 = vrot.lane.b32.xlu0 %v5971, 4
  %v6271 = vpop.permute.xlu0 %6270
  %6272 = vrot.lane.b32.xlu0 %v5972, 4
  %v6273 = vpop.permute.xlu0 %6272
  %6274 = vrot.lane.b32.xlu0 %v5973, 4
  %v6275 = vpop.permute.xlu0 %6274
  %6276 = vrot.lane.b32.xlu0 %v5974, 4
  %v6277 = vpop.permute.xlu0 %6276
  %6278 = vrot.lane.b32.xlu0 %v5975, 4
  %v6279 = vpop.permute.xlu0 %6278
  %6280 = vrot.lane.b32.xlu0 %v5976, 4
  %v6281 = vpop.permute.xlu0 %6280
  %6282 = vrot.lane.b32.xlu0 %v5977, 4
  %v6283 = vpop.permute.xlu0 %6282
  %6284 = vrot.lane.b32.xlu0 %v5978, 4
  %v6285 = vpop.permute.xlu0 %6284
  %6286 = vrot.lane.b32.xlu0 %v5979, 4
  %v6287 = vpop.permute.xlu0 %6286
  %6288 = vrot.lane.b32.xlu0 %v5980, 4
  %v6289 = vpop.permute.xlu0 %6288
  %6290 = vrot.lane.b32.xlu0 %v5981, 4
  %v6291 = vpop.permute.xlu0 %6290
  %6292 = vrot.lane.b32.xlu0 %v5982, 4
  %v6293 = vpop.permute.xlu0 %6292
  %6294 = vrot.lane.b32.xlu0 %v5983, 4
  %v6295 = vpop.permute.xlu0 %6294
  %6296 = vrot.lane.b32.xlu0 %v5984, 4
  %v6297 = vpop.permute.xlu0 %6296
  %6298 = vrot.lane.b32.xlu0 %v5985, 4
  %v6299 = vpop.permute.xlu0 %6298
  %6300 = vrot.lane.b32.xlu0 %v5986, 4
  %v6301 = vpop.permute.xlu0 %6300
  %6302 = vrot.lane.b32.xlu0 %v5987, 4
  %v6303 = vpop.permute.xlu0 %6302
  %6304 = vrot.lane.b32.xlu0 %v5988, 4
  %v6305 = vpop.permute.xlu0 %6304
  %6306 = vrot.lane.b32.xlu0 %v5989, 4
  %v6307 = vpop.permute.xlu0 %6306
  %6308 = vrot.lane.b32.xlu0 %v5990, 4
  %v6309 = vpop.permute.xlu0 %6308
  %6310 = vrot.lane.b32.xlu0 %v5991, 4
  %v6311 = vpop.permute.xlu0 %6310
  %6440 = vrot.lane.b32.xlu0 %v5992, 8
  %v6441 = vpop.permute.xlu0 %6440
  %6442 = vrot.lane.b32.xlu0 %v5993, 8
  %v6443 = vpop.permute.xlu0 %6442
  %6444 = vrot.lane.b32.xlu0 %v5994, 8
  %v6445 = vpop.permute.xlu0 %6444
  %6446 = vrot.lane.b32.xlu0 %v5995, 8
  %v6447 = vpop.permute.xlu0 %6446
  %6448 = vrot.lane.b32.xlu0 %v5996, 8
  %v6449 = vpop.permute.xlu0 %6448
  %6450 = vrot.lane.b32.xlu0 %v5997, 8
  %v6451 = vpop.permute.xlu0 %6450
  %6452 = vrot.lane.b32.xlu0 %v5998, 8
  %v6453 = vpop.permute.xlu0 %6452
  %6454 = vrot.lane.b32.xlu0 %v5999, 8
  %v6455 = vpop.permute.xlu0 %6454
  %6456 = vrot.lane.b32.xlu0 %v6000, 8
  %v6457 = vpop.permute.xlu0 %6456
  %6458 = vrot.lane.b32.xlu0 %v6001, 8
  %v6459 = vpop.permute.xlu0 %6458
  %6460 = vrot.lane.b32.xlu0 %v6002, 8
  %v6461 = vpop.permute.xlu0 %6460
  %6462 = vrot.lane.b32.xlu0 %v6003, 8
  %v6463 = vpop.permute.xlu0 %6462
  %6464 = vrot.lane.b32.xlu0 %v6004, 8
  %v6465 = vpop.permute.xlu0 %6464
  %6466 = vrot.lane.b32.xlu0 %v6005, 8
  %v6467 = vpop.permute.xlu0 %6466
  %6468 = vrot.lane.b32.xlu0 %v6006, 8
  %v6469 = vpop.permute.xlu0 %6468
  %6470 = vrot.lane.b32.xlu0 %v6007, 8
  %v6471 = vpop.permute.xlu0 %6470
  %6472 = vrot.lane.b32.xlu0 %v6008, 8
  %v6473 = vpop.permute.xlu0 %6472
  %6474 = vrot.lane.b32.xlu0 %v6009, 8
  %v6475 = vpop.permute.xlu0 %6474
  %6476 = vrot.lane.b32.xlu0 %v6010, 8
  %v6477 = vpop.permute.xlu0 %6476
  %6478 = vrot.lane.b32.xlu0 %v6011, 8
  %v6479 = vpop.permute.xlu0 %6478
  %6480 = vrot.lane.b32.xlu0 %v6012, 8
  %v6481 = vpop.permute.xlu0 %6480
  %6482 = vrot.lane.b32.xlu0 %v6013, 8
  %v6483 = vpop.permute.xlu0 %6482
  %6484 = vrot.lane.b32.xlu0 %v6014, 8
  %v6485 = vpop.permute.xlu0 %6484
  %6486 = vrot.lane.b32.xlu0 %v6015, 8
  %v6487 = vpop.permute.xlu0 %6486
  %6488 = vrot.lane.b32.xlu0 %v6016, 8
  %v6489 = vpop.permute.xlu0 %6488
  %6490 = vrot.lane.b32.xlu0 %v6017, 8
  %v6491 = vpop.permute.xlu0 %6490
  %6492 = vrot.lane.b32.xlu0 %v6018, 8
  %v6493 = vpop.permute.xlu0 %6492
  %6494 = vrot.lane.b32.xlu0 %v6019, 8
  %v6495 = vpop.permute.xlu0 %6494
  %6496 = vrot.lane.b32.xlu0 %v6020, 8
  %v6497 = vpop.permute.xlu0 %6496
  %6498 = vrot.lane.b32.xlu0 %v6021, 8
  %v6499 = vpop.permute.xlu0 %6498
  %6500 = vrot.lane.b32.xlu0 %v6022, 8
  %v6501 = vpop.permute.xlu0 %6500
  %6502 = vrot.lane.b32.xlu0 %v6023, 8
  %v6503 = vpop.permute.xlu0 %6502
  %6504 = vrot.lane.b32.xlu0 %v6024, 8
  %v6505 = vpop.permute.xlu0 %6504
  %6506 = vrot.lane.b32.xlu0 %v6025, 8
  %v6507 = vpop.permute.xlu0 %6506
  %6508 = vrot.lane.b32.xlu0 %v6026, 8
  %v6509 = vpop.permute.xlu0 %6508
  %6510 = vrot.lane.b32.xlu0 %v6027, 8
  %v6511 = vpop.permute.xlu0 %6510
  %6512 = vrot.lane.b32.xlu0 %v6028, 8
  %v6513 = vpop.permute.xlu0 %6512
  %6514 = vrot.lane.b32.xlu0 %v6029, 8
  %v6515 = vpop.permute.xlu0 %6514
  %6516 = vrot.lane.b32.xlu0 %v6030, 8
  %v6517 = vpop.permute.xlu0 %6516
  %6518 = vrot.lane.b32.xlu0 %v6031, 8
  %v6519 = vpop.permute.xlu0 %6518
  %6520 = vrot.lane.b32.xlu0 %v6032, 8
  %v6521 = vpop.permute.xlu0 %6520
  %6522 = vrot.lane.b32.xlu0 %v6033, 8
  %v6523 = vpop.permute.xlu0 %6522
  %6524 = vrot.lane.b32.xlu0 %v6034, 8
  %v6525 = vpop.permute.xlu0 %6524
  %6526 = vrot.lane.b32.xlu0 %v6035, 8
  %v6527 = vpop.permute.xlu0 %6526
  %6528 = vrot.lane.b32.xlu0 %v6036, 8
  %v6529 = vpop.permute.xlu0 %6528
  %6530 = vrot.lane.b32.xlu0 %v6037, 8
  %v6531 = vpop.permute.xlu0 %6530
  %6532 = vrot.lane.b32.xlu0 %v6038, 8
  %v6533 = vpop.permute.xlu0 %6532
  %6534 = vrot.lane.b32.xlu0 %v6039, 8
  %v6535 = vpop.permute.xlu0 %6534
  %6536 = vrot.lane.b32.xlu0 %v6040, 8
  %v6537 = vpop.permute.xlu0 %6536
  %6538 = vrot.lane.b32.xlu0 %v6041, 8
  %v6539 = vpop.permute.xlu0 %6538
  %6540 = vrot.lane.b32.xlu0 %v6042, 8
  %v6541 = vpop.permute.xlu0 %6540
  %6542 = vrot.lane.b32.xlu0 %v6043, 8
  %v6543 = vpop.permute.xlu0 %6542
  %6544 = vrot.lane.b32.xlu0 %v6044, 8
  %v6545 = vpop.permute.xlu0 %6544
  %6546 = vrot.lane.b32.xlu0 %v6045, 8
  %v6547 = vpop.permute.xlu0 %6546
  %6548 = vrot.lane.b32.xlu0 %v6046, 8
  %v6549 = vpop.permute.xlu0 %6548
  %6550 = vrot.lane.b32.xlu0 %v6047, 8
  %v6551 = vpop.permute.xlu0 %6550
  %6552 = vrot.lane.b32.xlu0 %v6048, 8
  %v6553 = vpop.permute.xlu0 %6552
  %6554 = vrot.lane.b32.xlu0 %v6049, 8
  %v6555 = vpop.permute.xlu0 %6554
  %6556 = vrot.lane.b32.xlu0 %v6050, 8
  %v6557 = vpop.permute.xlu0 %6556
  %6558 = vrot.lane.b32.xlu0 %v6051, 8
  %v6559 = vpop.permute.xlu0 %6558
  %6560 = vrot.lane.b32.xlu0 %v6052, 8
  %v6561 = vpop.permute.xlu0 %6560
  %6562 = vrot.lane.b32.xlu0 %v6053, 8
  %v6563 = vpop.permute.xlu0 %6562
  %6564 = vrot.lane.b32.xlu0 %v6054, 8
  %v6565 = vpop.permute.xlu0 %6564
  %6566 = vrot.lane.b32.xlu0 %v6055, 8
  %v6567 = vpop.permute.xlu0 %6566
  %6696 = vrot.lane.b32.xlu0 %v6056, 12
  %v6697 = vpop.permute.xlu0 %6696
  %6698 = vrot.lane.b32.xlu0 %v6057, 12
  %v6699 = vpop.permute.xlu0 %6698
  %6700 = vrot.lane.b32.xlu0 %v6058, 12
  %v6701 = vpop.permute.xlu0 %6700
  %6702 = vrot.lane.b32.xlu0 %v6059, 12
  %v6703 = vpop.permute.xlu0 %6702
  %6704 = vrot.lane.b32.xlu0 %v6060, 12
  %v6705 = vpop.permute.xlu0 %6704
  %6706 = vrot.lane.b32.xlu0 %v6061, 12
  %v6707 = vpop.permute.xlu0 %6706
  %6708 = vrot.lane.b32.xlu0 %v6062, 12
  %v6709 = vpop.permute.xlu0 %6708
  %6710 = vrot.lane.b32.xlu0 %v6063, 12
  %v6711 = vpop.permute.xlu0 %6710
  %6712 = vrot.lane.b32.xlu0 %v6064, 12
  %v6713 = vpop.permute.xlu0 %6712
  %6714 = vrot.lane.b32.xlu0 %v6065, 12
  %v6715 = vpop.permute.xlu0 %6714
  %6716 = vrot.lane.b32.xlu0 %v6066, 12
  %v6717 = vpop.permute.xlu0 %6716
  %6718 = vrot.lane.b32.xlu0 %v6067, 12
  %v6719 = vpop.permute.xlu0 %6718
  %6720 = vrot.lane.b32.xlu0 %v6068, 12
  %v6721 = vpop.permute.xlu0 %6720
  %6722 = vrot.lane.b32.xlu0 %v6069, 12
  %v6723 = vpop.permute.xlu0 %6722
  %6724 = vrot.lane.b32.xlu0 %v6070, 12
  %v6725 = vpop.permute.xlu0 %6724
  %6726 = vrot.lane.b32.xlu0 %v6071, 12
  %v6727 = vpop.permute.xlu0 %6726
  %6728 = vrot.lane.b32.xlu0 %v6072, 12
  %v6729 = vpop.permute.xlu0 %6728
  %6730 = vrot.lane.b32.xlu0 %v6073, 12
  %v6731 = vpop.permute.xlu0 %6730
  %6732 = vrot.lane.b32.xlu0 %v6074, 12
  %v6733 = vpop.permute.xlu0 %6732
  %6734 = vrot.lane.b32.xlu0 %v6075, 12
  %v6735 = vpop.permute.xlu0 %6734
  %6736 = vrot.lane.b32.xlu0 %v6076, 12
  %v6737 = vpop.permute.xlu0 %6736
  %6738 = vrot.lane.b32.xlu0 %v6077, 12
  %v6739 = vpop.permute.xlu0 %6738
  %6740 = vrot.lane.b32.xlu0 %v6078, 12
  %v6741 = vpop.permute.xlu0 %6740
  %6742 = vrot.lane.b32.xlu0 %v6079, 12
  %v6743 = vpop.permute.xlu0 %6742
  %6744 = vrot.lane.b32.xlu0 %v6080, 12
  %v6745 = vpop.permute.xlu0 %6744
  %6746 = vrot.lane.b32.xlu0 %v6081, 12
  %v6747 = vpop.permute.xlu0 %6746
  %6748 = vrot.lane.b32.xlu0 %v6082, 12
  %v6749 = vpop.permute.xlu0 %6748
  %6750 = vrot.lane.b32.xlu0 %v6083, 12
  %v6751 = vpop.permute.xlu0 %6750
  %6752 = vrot.lane.b32.xlu0 %v6084, 12
  %v6753 = vpop.permute.xlu0 %6752
  %6754 = vrot.lane.b32.xlu0 %v6085, 12
  %v6755 = vpop.permute.xlu0 %6754
  %6756 = vrot.lane.b32.xlu0 %v6086, 12
  %v6757 = vpop.permute.xlu0 %6756
  %6758 = vrot.lane.b32.xlu0 %v6087, 12
  %v6759 = vpop.permute.xlu0 %6758
  %6760 = vrot.lane.b32.xlu0 %v6088, 12
  %v6761 = vpop.permute.xlu0 %6760
  %6762 = vrot.lane.b32.xlu0 %v6089, 12
  %v6763 = vpop.permute.xlu0 %6762
  %6764 = vrot.lane.b32.xlu0 %v6090, 12
  %v6765 = vpop.permute.xlu0 %6764
  %6766 = vrot.lane.b32.xlu0 %v6091, 12
  %v6767 = vpop.permute.xlu0 %6766
  %6768 = vrot.lane.b32.xlu0 %v6092, 12
  %v6769 = vpop.permute.xlu0 %6768
  %6770 = vrot.lane.b32.xlu0 %v6093, 12
  %v6771 = vpop.permute.xlu0 %6770
  %6772 = vrot.lane.b32.xlu0 %v6094, 12
  %v6773 = vpop.permute.xlu0 %6772
  %6774 = vrot.lane.b32.xlu0 %v6095, 12
  %v6775 = vpop.permute.xlu0 %6774
  %6776 = vrot.lane.b32.xlu0 %v6096, 12
  %v6777 = vpop.permute.xlu0 %6776
  %6778 = vrot.lane.b32.xlu0 %v6097, 12
  %v6779 = vpop.permute.xlu0 %6778
  %6780 = vrot.lane.b32.xlu0 %v6098, 12
  %v6781 = vpop.permute.xlu0 %6780
  %6782 = vrot.lane.b32.xlu0 %v6099, 12
  %v6783 = vpop.permute.xlu0 %6782
  %6784 = vrot.lane.b32.xlu0 %v6100, 12
  %v6785 = vpop.permute.xlu0 %6784
  %6786 = vrot.lane.b32.xlu0 %v6101, 12
  %v6787 = vpop.permute.xlu0 %6786
  %6788 = vrot.lane.b32.xlu0 %v6102, 12
  %v6789 = vpop.permute.xlu0 %6788
  %6790 = vrot.lane.b32.xlu0 %v6103, 12
  %v6791 = vpop.permute.xlu0 %6790
  %6792 = vrot.lane.b32.xlu0 %v6104, 12
  %v6793 = vpop.permute.xlu0 %6792
  %6794 = vrot.lane.b32.xlu0 %v6105, 12
  %v6795 = vpop.permute.xlu0 %6794
  %6796 = vrot.lane.b32.xlu0 %v6106, 12
  %v6797 = vpop.permute.xlu0 %6796
  %6798 = vrot.lane.b32.xlu0 %v6107, 12
  %v6799 = vpop.permute.xlu0 %6798
  %6800 = vrot.lane.b32.xlu0 %v6108, 12
  %v6801 = vpop.permute.xlu0 %6800
  %6802 = vrot.lane.b32.xlu0 %v6109, 12
  %v6803 = vpop.permute.xlu0 %6802
  %6804 = vrot.lane.b32.xlu0 %v6110, 12
  %v6805 = vpop.permute.xlu0 %6804
  %6806 = vrot.lane.b32.xlu0 %v6111, 12
  %v6807 = vpop.permute.xlu0 %6806
  %6808 = vrot.lane.b32.xlu0 %v6112, 12
  %v6809 = vpop.permute.xlu0 %6808
  %6810 = vrot.lane.b32.xlu0 %v6113, 12
  %v6811 = vpop.permute.xlu0 %6810
  %6812 = vrot.lane.b32.xlu0 %v6114, 12
  %v6813 = vpop.permute.xlu0 %6812
  %6814 = vrot.lane.b32.xlu0 %v6115, 12
  %v6815 = vpop.permute.xlu0 %6814
  %6816 = vrot.lane.b32.xlu0 %v6116, 12
  %v6817 = vpop.permute.xlu0 %6816
  %6818 = vrot.lane.b32.xlu0 %v6117, 12
  %v6819 = vpop.permute.xlu0 %6818
  %6820 = vrot.lane.b32.xlu0 %v6118, 12
  %v6821 = vpop.permute.xlu0 %6820
  %6822 = vrot.lane.b32.xlu0 %v6119, 12
  %v6823 = vpop.permute.xlu0 %6822
  %v6888 = vsel %vm1040, %v5864, %v6185
  %v6889 = vsel %vm1040, %v5865, %v6187
  %v6890 = vsel %vm1040, %v5866, %v6189
  %v6891 = vsel %vm1040, %v5867, %v6191
  %v6892 = vsel %vm1040, %v5868, %v6193
  %v6893 = vsel %vm1040, %v5869, %v6195
  %v6894 = vsel %vm1040, %v5870, %v6197
  %v6895 = vsel %vm1040, %v5871, %v6199
  %v6896 = vsel %vm1040, %v5872, %v6201
  %v6897 = vsel %vm1040, %v5873, %v6203
  %v6898 = vsel %vm1040, %v5874, %v6205
  %v6899 = vsel %vm1040, %v5875, %v6207
  %v6900 = vsel %vm1040, %v5876, %v6209
  %v6901 = vsel %vm1040, %v5877, %v6211
  %v6902 = vsel %vm1040, %v5878, %v6213
  %v6903 = vsel %vm1040, %v5879, %v6215
  %v6904 = vsel %vm1040, %v5880, %v6217
  %v6905 = vsel %vm1040, %v5881, %v6219
  %v6906 = vsel %vm1040, %v5882, %v6221
  %v6907 = vsel %vm1040, %v5883, %v6223
  %v6908 = vsel %vm1040, %v5884, %v6225
  %v6909 = vsel %vm1040, %v5885, %v6227
  %v6910 = vsel %vm1040, %v5886, %v6229
  %v6911 = vsel %vm1040, %v5887, %v6231
  %v6912 = vsel %vm1040, %v5888, %v6233
  %v6913 = vsel %vm1040, %v5889, %v6235
  %v6914 = vsel %vm1040, %v5890, %v6237
  %v6915 = vsel %vm1040, %v5891, %v6239
  %v6916 = vsel %vm1040, %v5892, %v6241
  %v6917 = vsel %vm1040, %v5893, %v6243
  %v6918 = vsel %vm1040, %v5894, %v6245
  %v6919 = vsel %vm1040, %v5895, %v6247
  %v6920 = vsel %vm1040, %v5896, %v6249
  %v6921 = vsel %vm1040, %v5897, %v6251
  %v6922 = vsel %vm1040, %v5898, %v6253
  %v6923 = vsel %vm1040, %v5899, %v6255
  %v6924 = vsel %vm1040, %v5900, %v6257
  %v6925 = vsel %vm1040, %v5901, %v6259
  %v6926 = vsel %vm1040, %v5902, %v6261
  %v6927 = vsel %vm1040, %v5903, %v6263
  %v6928 = vsel %vm1040, %v5904, %v6265
  %v6929 = vsel %vm1040, %v5905, %v6267
  %v6930 = vsel %vm1040, %v5906, %v6269
  %v6931 = vsel %vm1040, %v5907, %v6271
  %v6932 = vsel %vm1040, %v5908, %v6273
  %v6933 = vsel %vm1040, %v5909, %v6275
  %v6934 = vsel %vm1040, %v5910, %v6277
  %v6935 = vsel %vm1040, %v5911, %v6279
  %v6936 = vsel %vm1040, %v5912, %v6281
  %v6937 = vsel %vm1040, %v5913, %v6283
  %v6938 = vsel %vm1040, %v5914, %v6285
  %v6939 = vsel %vm1040, %v5915, %v6287
  %v6940 = vsel %vm1040, %v5916, %v6289
  %v6941 = vsel %vm1040, %v5917, %v6291
  %v6942 = vsel %vm1040, %v5918, %v6293
  %v6943 = vsel %vm1040, %v5919, %v6295
  %v6944 = vsel %vm1040, %v5920, %v6297
  %v6945 = vsel %vm1040, %v5921, %v6299
  %v6946 = vsel %vm1040, %v5922, %v6301
  %v6947 = vsel %vm1040, %v5923, %v6303
  %v6948 = vsel %vm1040, %v5924, %v6305
  %v6949 = vsel %vm1040, %v5925, %v6307
  %v6950 = vsel %vm1040, %v5926, %v6309
  %v6951 = vsel %vm1040, %v5927, %v6311
  %v6952 = vsel %vm1105, %v6888, %v6441
  %v6953 = vsel %vm1105, %v6889, %v6443
  %v6954 = vsel %vm1105, %v6890, %v6445
  %v6955 = vsel %vm1105, %v6891, %v6447
  %v6956 = vsel %vm1105, %v6892, %v6449
  %v6957 = vsel %vm1105, %v6893, %v6451
  %v6958 = vsel %vm1105, %v6894, %v6453
  %v6959 = vsel %vm1105, %v6895, %v6455
  %v6960 = vsel %vm1105, %v6896, %v6457
  %v6961 = vsel %vm1105, %v6897, %v6459
  %v6962 = vsel %vm1105, %v6898, %v6461
  %v6963 = vsel %vm1105, %v6899, %v6463
  %v6964 = vsel %vm1105, %v6900, %v6465
  %v6965 = vsel %vm1105, %v6901, %v6467
  %v6966 = vsel %vm1105, %v6902, %v6469
  %v6967 = vsel %vm1105, %v6903, %v6471
  %v6968 = vsel %vm1105, %v6904, %v6473
  %v6969 = vsel %vm1105, %v6905, %v6475
  %v6970 = vsel %vm1105, %v6906, %v6477
  %v6971 = vsel %vm1105, %v6907, %v6479
  %v6972 = vsel %vm1105, %v6908, %v6481
  %v6973 = vsel %vm1105, %v6909, %v6483
  %v6974 = vsel %vm1105, %v6910, %v6485
  %v6975 = vsel %vm1105, %v6911, %v6487
  %v6976 = vsel %vm1105, %v6912, %v6489
  %v6977 = vsel %vm1105, %v6913, %v6491
  %v6978 = vsel %vm1105, %v6914, %v6493
  %v6979 = vsel %vm1105, %v6915, %v6495
  %v6980 = vsel %vm1105, %v6916, %v6497
  %v6981 = vsel %vm1105, %v6917, %v6499
  %v6982 = vsel %vm1105, %v6918, %v6501
  %v6983 = vsel %vm1105, %v6919, %v6503
  %v6984 = vsel %vm1105, %v6920, %v6505
  %v6985 = vsel %vm1105, %v6921, %v6507
  %v6986 = vsel %vm1105, %v6922, %v6509
  %v6987 = vsel %vm1105, %v6923, %v6511
  %v6988 = vsel %vm1105, %v6924, %v6513
  %v6989 = vsel %vm1105, %v6925, %v6515
  %v6990 = vsel %vm1105, %v6926, %v6517
  %v6991 = vsel %vm1105, %v6927, %v6519
  %v6992 = vsel %vm1105, %v6928, %v6521
  %v6993 = vsel %vm1105, %v6929, %v6523
  %v6994 = vsel %vm1105, %v6930, %v6525
  %v6995 = vsel %vm1105, %v6931, %v6527
  %v6996 = vsel %vm1105, %v6932, %v6529
  %v6997 = vsel %vm1105, %v6933, %v6531
  %v6998 = vsel %vm1105, %v6934, %v6533
  %v6999 = vsel %vm1105, %v6935, %v6535
  %v7000 = vsel %vm1105, %v6936, %v6537
  %v7001 = vsel %vm1105, %v6937, %v6539
  %v7002 = vsel %vm1105, %v6938, %v6541
  %v7003 = vsel %vm1105, %v6939, %v6543
  %v7004 = vsel %vm1105, %v6940, %v6545
  %v7005 = vsel %vm1105, %v6941, %v6547
  %v7006 = vsel %vm1105, %v6942, %v6549
  %v7007 = vsel %vm1105, %v6943, %v6551
  %v7008 = vsel %vm1105, %v6944, %v6553
  %v7009 = vsel %vm1105, %v6945, %v6555
  %v7010 = vsel %vm1105, %v6946, %v6557
  %v7011 = vsel %vm1105, %v6947, %v6559
  %v7012 = vsel %vm1105, %v6948, %v6561
  %v7013 = vsel %vm1105, %v6949, %v6563
  %v7014 = vsel %vm1105, %v6950, %v6565
  %v7015 = vsel %vm1105, %v6951, %v6567
  %v7016 = vsel %vm1170, %v6952, %v6697
  %v7017 = vsel %vm1170, %v6953, %v6699
  %v7018 = vsel %vm1170, %v6954, %v6701
  %v7019 = vsel %vm1170, %v6955, %v6703
  %v7020 = vsel %vm1170, %v6956, %v6705
  %v7021 = vsel %vm1170, %v6957, %v6707
  %v7022 = vsel %vm1170, %v6958, %v6709
  %v7023 = vsel %vm1170, %v6959, %v6711
  %v7024 = vsel %vm1170, %v6960, %v6713
  %v7025 = vsel %vm1170, %v6961, %v6715
  %v7026 = vsel %vm1170, %v6962, %v6717
  %v7027 = vsel %vm1170, %v6963, %v6719
  %v7028 = vsel %vm1170, %v6964, %v6721
  %v7029 = vsel %vm1170, %v6965, %v6723
  %v7030 = vsel %vm1170, %v6966, %v6725
  %v7031 = vsel %vm1170, %v6967, %v6727
  %v7032 = vsel %vm1170, %v6968, %v6729
  %v7033 = vsel %vm1170, %v6969, %v6731
  %v7034 = vsel %vm1170, %v6970, %v6733
  %v7035 = vsel %vm1170, %v6971, %v6735
  %v7036 = vsel %vm1170, %v6972, %v6737
  %v7037 = vsel %vm1170, %v6973, %v6739
  %v7038 = vsel %vm1170, %v6974, %v6741
  %v7039 = vsel %vm1170, %v6975, %v6743
  %v7040 = vsel %vm1170, %v6976, %v6745
  %v7041 = vsel %vm1170, %v6977, %v6747
  %v7042 = vsel %vm1170, %v6978, %v6749
  %v7043 = vsel %vm1170, %v6979, %v6751
  %v7044 = vsel %vm1170, %v6980, %v6753
  %v7045 = vsel %vm1170, %v6981, %v6755
  %v7046 = vsel %vm1170, %v6982, %v6757
  %v7047 = vsel %vm1170, %v6983, %v6759
  %v7048 = vsel %vm1170, %v6984, %v6761
  %v7049 = vsel %vm1170, %v6985, %v6763
  %v7050 = vsel %vm1170, %v6986, %v6765
  %v7051 = vsel %vm1170, %v6987, %v6767
  %v7052 = vsel %vm1170, %v6988, %v6769
  %v7053 = vsel %vm1170, %v6989, %v6771
  %v7054 = vsel %vm1170, %v6990, %v6773
  %v7055 = vsel %vm1170, %v6991, %v6775
  %v7056 = vsel %vm1170, %v6992, %v6777
  %v7057 = vsel %vm1170, %v6993, %v6779
  %v7058 = vsel %vm1170, %v6994, %v6781
  %v7059 = vsel %vm1170, %v6995, %v6783
  %v7060 = vsel %vm1170, %v6996, %v6785
  %v7061 = vsel %vm1170, %v6997, %v6787
  %v7062 = vsel %vm1170, %v6998, %v6789
  %v7063 = vsel %vm1170, %v6999, %v6791
  %v7064 = vsel %vm1170, %v7000, %v6793
  %v7065 = vsel %vm1170, %v7001, %v6795
  %v7066 = vsel %vm1170, %v7002, %v6797
  %v7067 = vsel %vm1170, %v7003, %v6799
  %v7068 = vsel %vm1170, %v7004, %v6801
  %v7069 = vsel %vm1170, %v7005, %v6803
  %v7070 = vsel %vm1170, %v7006, %v6805
  %v7071 = vsel %vm1170, %v7007, %v6807
  %v7072 = vsel %vm1170, %v7008, %v6809
  %v7073 = vsel %vm1170, %v7009, %v6811
  %v7074 = vsel %vm1170, %v7010, %v6813
  %v7075 = vsel %vm1170, %v7011, %v6815
  %v7076 = vsel %vm1170, %v7012, %v6817
  %v7077 = vsel %vm1170, %v7013, %v6819
  %v7078 = vsel %vm1170, %v7014, %v6821
  %v7079 = vsel %vm1170, %v7015, %v6823
  %s7080 = scalar_lea.vmem %s1, 48
  %v7081 = vld [vmem:[%s7080] sm:$0xff]
  %v7082 = vld [vmem:[%s7080 + $0x8] sm:$0xff]
  %v7084 = vsel %vm1243, %v7016, 0
  %v7087 = vsel %vm1243, %v7017, 0
  %v7090 = vsel %vm1243, %v7018, 0
  %v7093 = vsel %vm1243, %v7019, 0
  %v7096 = vsel %vm1243, %v7020, 0
  %v7099 = vsel %vm1243, %v7021, 0
  %v7102 = vsel %vm1243, %v7022, 0
  %v7105 = vsel %vm1243, %v7023, 0
  %v7108 = vsel %vm1243, %v7024, 0
  %v7111 = vsel %vm1243, %v7025, 0
  %v7114 = vsel %vm1243, %v7026, 0
  %v7117 = vsel %vm1243, %v7027, 0
  %v7120 = vsel %vm1243, %v7028, 0
  %v7123 = vsel %vm1243, %v7029, 0
  %v7126 = vsel %vm1243, %v7030, 0
  %v7129 = vsel %vm1243, %v7031, 0
  %v7132 = vsel %vm1243, %v7032, 0
  %v7135 = vsel %vm1243, %v7033, 0
  %v7138 = vsel %vm1243, %v7034, 0
  %v7141 = vsel %vm1243, %v7035, 0
  %v7144 = vsel %vm1243, %v7036, 0
  %v7147 = vsel %vm1243, %v7037, 0
  %v7150 = vsel %vm1243, %v7038, 0
  %v7153 = vsel %vm1243, %v7039, 0
  %v7156 = vsel %vm1243, %v7040, 0
  %v7159 = vsel %vm1243, %v7041, 0
  %v7162 = vsel %vm1243, %v7042, 0
  %v7165 = vsel %vm1243, %v7043, 0
  %v7168 = vsel %vm1243, %v7044, 0
  %v7171 = vsel %vm1243, %v7045, 0
  %v7174 = vsel %vm1243, %v7046, 0
  %v7177 = vsel %vm1243, %v7047, 0
  %v7180 = vsel %vm1243, %v7048, 0
  %v7183 = vsel %vm1243, %v7049, 0
  %v7186 = vsel %vm1243, %v7050, 0
  %v7189 = vsel %vm1243, %v7051, 0
  %v7192 = vsel %vm1243, %v7052, 0
  %v7195 = vsel %vm1243, %v7053, 0
  %v7198 = vsel %vm1243, %v7054, 0
  %v7201 = vsel %vm1243, %v7055, 0
  %v7204 = vsel %vm1243, %v7056, 0
  %v7207 = vsel %vm1243, %v7057, 0
  %v7210 = vsel %vm1243, %v7058, 0
  %v7213 = vsel %vm1243, %v7059, 0
  %v7216 = vsel %vm1243, %v7060, 0
  %v7219 = vsel %vm1243, %v7061, 0
  %v7222 = vsel %vm1243, %v7062, 0
  %v7225 = vsel %vm1243, %v7063, 0
  %v7228 = vsel %vm1243, %v7064, 0
  %v7231 = vsel %vm1243, %v7065, 0
  %v7234 = vsel %vm1243, %v7066, 0
  %v7237 = vsel %vm1243, %v7067, 0
  %v7240 = vsel %vm1243, %v7068, 0
  %v7243 = vsel %vm1243, %v7069, 0
  %v7246 = vsel %vm1243, %v7070, 0
  %v7249 = vsel %vm1243, %v7071, 0
  %v7252 = vsel %vm1243, %v7072, 0
  %v7255 = vsel %vm1243, %v7073, 0
  %v7258 = vsel %vm1243, %v7074, 0
  %v7261 = vsel %vm1243, %v7075, 0
  %v7264 = vsel %vm1243, %v7076, 0
  %v7267 = vsel %vm1243, %v7077, 0
  %v7270 = vsel %vm1243, %v7078, 0
  %v7273 = vsel %vm1243, %v7079, 0
  %7275 = vmatprep.subr.mxu0 0.0
  %7276 = vmatpush1.msra.mxu0 %v7081
  %7277 = vmatprep.subr.mxu0 0.0
  %7278 = vmatpush1.msra.mxu0 %v7082
  %7279 = vmatprep.subr.mxu0 0.0
  %7280 = vmatpush1.msra.mxu0 0.0
  %7281 = vmatprep.subr.mxu0 0.0
  %7282 = vmatpush1.msra.mxu0 0.0
  %7283 = vmatprep.subr.mxu0 0.0
  %7284 = vmatpush1.msra.mxu0 0.0
  %7285 = vmatprep.subr.mxu0 0.0
  %7286 = vmatpush1.msra.mxu0 0.0
  %7287 = vmatprep.subr.mxu0 0.0
  %7288 = vmatpush1.msra.mxu0 0.0
  %7289 = vmatprep.subr.mxu0 0.0
  %7290 = vmatpush1.msra.mxu0 0.0
  %7291 = vmatprep.subr.mxu0 0.0
  %7292 = vmatpush1.msra.mxu0 0.0
  %7293 = vmatprep.subr.mxu0 0.0
  %7294 = vmatpush1.msra.mxu0 0.0
  %7295 = vmatprep.subr.mxu0 0.0
  %7296 = vmatpush1.msra.mxu0 0.0
  %7297 = vmatprep.subr.mxu0 0.0
  %7298 = vmatpush1.msra.mxu0 0.0
  %7299 = vmatprep.subr.mxu0 0.0
  %7300 = vmatpush1.msra.mxu0 0.0
  %7301 = vmatprep.subr.mxu0 0.0
  %7302 = vmatpush1.msra.mxu0 0.0
  %7303 = vmatprep.subr.mxu0 0.0
  %7304 = vmatpush1.msra.mxu0 0.0
  %7305 = vmatprep.subr.mxu0 0.0
  %7306 = vmatpush1.msra.mxu0 0.0
  %7307 = vmatprep.subr.mxu0 0.0
  %7308 = vmatpush1.msra.mxu0 0.0
  %7309 = vmatprep.subr.mxu0 0.0
  %7310 = vmatpush1.msra.mxu0 0.0
  %7311 = vmatprep.subr.mxu0 0.0
  %7312 = vmatpush1.msra.mxu0 0.0
  %7313 = vmatprep.subr.mxu0 0.0
  %7314 = vmatpush1.msra.mxu0 0.0
  %7315 = vmatprep.subr.mxu0 0.0
  %7316 = vmatpush1.msra.mxu0 0.0
  %7317 = vmatprep.subr.mxu0 0.0
  %7318 = vmatpush1.msra.mxu0 0.0
  %7319 = vmatprep.subr.mxu0 0.0
  %7320 = vmatpush1.msra.mxu0 0.0
  %7321 = vmatprep.subr.mxu0 0.0
  %7322 = vmatpush1.msra.mxu0 0.0
  %7323 = vmatprep.subr.mxu0 0.0
  %7324 = vmatpush1.msra.mxu0 0.0
  %7325 = vmatprep.subr.mxu0 0.0
  %7326 = vmatpush1.msra.mxu0 0.0
  %7327 = vmatprep.subr.mxu0 0.0
  %7328 = vmatpush1.msra.mxu0 0.0
  %7329 = vmatprep.subr.mxu0 0.0
  %7330 = vmatpush1.msra.mxu0 0.0
  %7331 = vmatprep.subr.mxu0 0.0
  %7332 = vmatpush1.msra.mxu0 0.0
  %7333 = vmatprep.subr.mxu0 0.0
  %7334 = vmatpush1.msra.mxu0 0.0
  %7335 = vmatprep.subr.mxu0 0.0
  %7336 = vmatpush1.msra.mxu0 0.0
  %7337 = vmatprep.subr.mxu0 0.0
  %7338 = vmatpush1.msra.mxu0 0.0
  %7339 = vmatprep.mubr.f32.mxu0 0.0
  %7340 = vmatmul.mubr.f32.gmra.mrb[0].mxu0 %v7084
  %v7341 = vpop.f32.mrb[0].mxu0
  %v7342 = vadd.f32 %v1241, %v7341
  %v7343 = vpop.f32.mrb[0].mxu0
  %7344 = vmatprep.mubr.f32.mxu0 0.0
  %7345 = vmatmul.mubr.f32.gmra.mrb[0].mxu0 %v7087
  %v7346 = vpop.f32.mrb[0].mxu0
  %v7347 = vadd.f32 %v1241, %v7346
  %v7348 = vpop.f32.mrb[0].mxu0
  %7349 = vmatprep.mubr.f32.mxu0 0.0
  %7350 = vmatmul.mubr.f32.gmra.mrb[0].mxu0 %v7090
  %v7351 = vpop.f32.mrb[0].mxu0
  %v7352 = vadd.f32 %v1241, %v7351
  %v7353 = vpop.f32.mrb[0].mxu0
  %7354 = vmatprep.mubr.f32.mxu0 0.0
  %7355 = vmatmul.mubr.f32.gmra.mrb[0].mxu0 %v7093
  %v7356 = vpop.f32.mrb[0].mxu0
  %v7357 = vadd.f32 %v1241, %v7356
  %v7358 = vpop.f32.mrb[0].mxu0
  %7359 = vmatprep.mubr.f32.mxu0 0.0
  %7360 = vmatmul.mubr.f32.gmra.mrb[0].mxu0 %v7096
  %v7361 = vpop.f32.mrb[0].mxu0
  %v7362 = vadd.f32 %v1241, %v7361
  %v7363 = vpop.f32.mrb[0].mxu0
  %7364 = vmatprep.mubr.f32.mxu0 0.0
  %7365 = vmatmul.mubr.f32.gmra.mrb[0].mxu0 %v7099
  %v7366 = vpop.f32.mrb[0].mxu0
  %v7367 = vadd.f32 %v1241, %v7366
  %v7368 = vpop.f32.mrb[0].mxu0
  %7369 = vmatprep.mubr.f32.mxu0 0.0
  %7370 = vmatmul.mubr.f32.gmra.mrb[0].mxu0 %v7102
  %v7371 = vpop.f32.mrb[0].mxu0
  %v7372 = vadd.f32 %v1241, %v7371
  %v7373 = vpop.f32.mrb[0].mxu0
  %7374 = vmatprep.mubr.f32.mxu0 0.0
  %7375 = vmatmul.mubr.f32.gmra.mrb[0].mxu0 %v7105
  %v7376 = vpop.f32.mrb[0].mxu0
  %v7377 = vadd.f32 %v1241, %v7376
  %v7378 = vpop.f32.mrb[0].mxu0
  %7379 = vmatprep.mubr.f32.mxu0 0.0
  %7380 = vmatmul.mubr.f32.gmra.mrb[0].mxu0 %v7108
  %v7381 = vpop.f32.mrb[0].mxu0
  %v7382 = vadd.f32 %v1241, %v7381
  %v7383 = vpop.f32.mrb[0].mxu0
  %7384 = vmatprep.mubr.f32.mxu0 0.0
  %7385 = vmatmul.mubr.f32.gmra.mrb[0].mxu0 %v7111
  %v7386 = vpop.f32.mrb[0].mxu0
  %v7387 = vadd.f32 %v1241, %v7386
  %v7388 = vpop.f32.mrb[0].mxu0
  %7389 = vmatprep.mubr.f32.mxu0 0.0
  %7390 = vmatmul.mubr.f32.gmra.mrb[0].mxu0 %v7114
  %v7391 = vpop.f32.mrb[0].mxu0
  %v7392 = vadd.f32 %v1241, %v7391
  %v7393 = vpop.f32.mrb[0].mxu0
  %7394 = vmatprep.mubr.f32.mxu0 0.0
  %7395 = vmatmul.mubr.f32.gmra.mrb[0].mxu0 %v7117
  %v7396 = vpop.f32.mrb[0].mxu0
  %v7397 = vadd.f32 %v1241, %v7396
  %v7398 = vpop.f32.mrb[0].mxu0
  %7399 = vmatprep.mubr.f32.mxu0 0.0
  %7400 = vmatmul.mubr.f32.gmra.mrb[0].mxu0 %v7120
  %v7401 = vpop.f32.mrb[0].mxu0
  %v7402 = vadd.f32 %v1241, %v7401
  %v7403 = vpop.f32.mrb[0].mxu0
  %7404 = vmatprep.mubr.f32.mxu0 0.0
  %7405 = vmatmul.mubr.f32.gmra.mrb[0].mxu0 %v7123
  %v7406 = vpop.f32.mrb[0].mxu0
  %v7407 = vadd.f32 %v1241, %v7406
  %v7408 = vpop.f32.mrb[0].mxu0
  %7409 = vmatprep.mubr.f32.mxu0 0.0
  %7410 = vmatmul.mubr.f32.gmra.mrb[0].mxu0 %v7126
  %v7411 = vpop.f32.mrb[0].mxu0
  %v7412 = vadd.f32 %v1241, %v7411
  %v7413 = vpop.f32.mrb[0].mxu0
  %7414 = vmatprep.mubr.f32.mxu0 0.0
  %7415 = vmatmul.mubr.f32.gmra.mrb[0].mxu0 %v7129
  %v7416 = vpop.f32.mrb[0].mxu0
  %v7417 = vadd.f32 %v1241, %v7416
  %v7418 = vpop.f32.mrb[0].mxu0
  %7419 = vmatprep.mubr.f32.mxu0 0.0
  %7420 = vmatmul.mubr.f32.gmra.mrb[0].mxu0 %v7132
  %v7421 = vpop.f32.mrb[0].mxu0
  %v7422 = vadd.f32 %v1241, %v7421
  %v7423 = vpop.f32.mrb[0].mxu0
  %7424 = vmatprep.mubr.f32.mxu0 0.0
  %7425 = vmatmul.mubr.f32.gmra.mrb[0].mxu0 %v7135
  %v7426 = vpop.f32.mrb[0].mxu0
  %v7427 = vadd.f32 %v1241, %v7426
  %v7428 = vpop.f32.mrb[0].mxu0
  %7429 = vmatprep.mubr.f32.mxu0 0.0
  %7430 = vmatmul.mubr.f32.gmra.mrb[0].mxu0 %v7138
  %v7431 = vpop.f32.mrb[0].mxu0
  %v7432 = vadd.f32 %v1241, %v7431
  %v7433 = vpop.f32.mrb[0].mxu0
  %7434 = vmatprep.mubr.f32.mxu0 0.0
  %7435 = vmatmul.mubr.f32.gmra.mrb[0].mxu0 %v7141
  %v7436 = vpop.f32.mrb[0].mxu0
  %v7437 = vadd.f32 %v1241, %v7436
  %v7438 = vpop.f32.mrb[0].mxu0
  %7439 = vmatprep.mubr.f32.mxu0 0.0
  %7440 = vmatmul.mubr.f32.gmra.mrb[0].mxu0 %v7144
  %v7441 = vpop.f32.mrb[0].mxu0
  %v7442 = vadd.f32 %v1241, %v7441
  %v7443 = vpop.f32.mrb[0].mxu0
  %7444 = vmatprep.mubr.f32.mxu0 0.0
  %7445 = vmatmul.mubr.f32.gmra.mrb[0].mxu0 %v7147
  %v7446 = vpop.f32.mrb[0].mxu0
  %v7447 = vadd.f32 %v1241, %v7446
  %v7448 = vpop.f32.mrb[0].mxu0
  %7449 = vmatprep.mubr.f32.mxu0 0.0
  %7450 = vmatmul.mubr.f32.gmra.mrb[0].mxu0 %v7150
  %v7451 = vpop.f32.mrb[0].mxu0
  %v7452 = vadd.f32 %v1241, %v7451
  %v7453 = vpop.f32.mrb[0].mxu0
  %7454 = vmatprep.mubr.f32.mxu0 0.0
  %7455 = vmatmul.mubr.f32.gmra.mrb[0].mxu0 %v7153
  %v7456 = vpop.f32.mrb[0].mxu0
  %v7457 = vadd.f32 %v1241, %v7456
  %v7458 = vpop.f32.mrb[0].mxu0
  %7459 = vmatprep.mubr.f32.mxu0 0.0
  %7460 = vmatmul.mubr.f32.gmra.mrb[0].mxu0 %v7156
  %v7461 = vpop.f32.mrb[0].mxu0
  %v7462 = vadd.f32 %v1241, %v7461
  %v7463 = vpop.f32.mrb[0].mxu0
  %7464 = vmatprep.mubr.f32.mxu0 0.0
  %7465 = vmatmul.mubr.f32.gmra.mrb[0].mxu0 %v7159
  %v7466 = vpop.f32.mrb[0].mxu0
  %v7467 = vadd.f32 %v1241, %v7466
  %v7468 = vpop.f32.mrb[0].mxu0
  %7469 = vmatprep.mubr.f32.mxu0 0.0
  %7470 = vmatmul.mubr.f32.gmra.mrb[0].mxu0 %v7162
  %v7471 = vpop.f32.mrb[0].mxu0
  %v7472 = vadd.f32 %v1241, %v7471
  %v7473 = vpop.f32.mrb[0].mxu0
  %7474 = vmatprep.mubr.f32.mxu0 0.0
  %7475 = vmatmul.mubr.f32.gmra.mrb[0].mxu0 %v7165
  %v7476 = vpop.f32.mrb[0].mxu0
  %v7477 = vadd.f32 %v1241, %v7476
  %v7478 = vpop.f32.mrb[0].mxu0
  %7479 = vmatprep.mubr.f32.mxu0 0.0
  %7480 = vmatmul.mubr.f32.gmra.mrb[0].mxu0 %v7168
  %v7481 = vpop.f32.mrb[0].mxu0
  %v7482 = vadd.f32 %v1241, %v7481
  %v7483 = vpop.f32.mrb[0].mxu0
  %7484 = vmatprep.mubr.f32.mxu0 0.0
  %7485 = vmatmul.mubr.f32.gmra.mrb[0].mxu0 %v7171
  %v7486 = vpop.f32.mrb[0].mxu0
  %v7487 = vadd.f32 %v1241, %v7486
  %v7488 = vpop.f32.mrb[0].mxu0
  %7489 = vmatprep.mubr.f32.mxu0 0.0
  %7490 = vmatmul.mubr.f32.gmra.mrb[0].mxu0 %v7174
  %v7491 = vpop.f32.mrb[0].mxu0
  %v7492 = vadd.f32 %v1241, %v7491
  %v7493 = vpop.f32.mrb[0].mxu0
  %7494 = vmatprep.mubr.f32.mxu0 0.0
  %7495 = vmatmul.mubr.f32.gmra.mrb[0].mxu0 %v7177
  %v7496 = vpop.f32.mrb[0].mxu0
  %v7497 = vadd.f32 %v1241, %v7496
  %v7498 = vpop.f32.mrb[0].mxu0
  %7499 = vmatprep.mubr.f32.mxu0 0.0
  %7500 = vmatmul.mubr.f32.gmra.mrb[0].mxu0 %v7180
  %v7501 = vpop.f32.mrb[0].mxu0
  %v7502 = vadd.f32 %v1241, %v7501
  %v7503 = vpop.f32.mrb[0].mxu0
  %7504 = vmatprep.mubr.f32.mxu0 0.0
  %7505 = vmatmul.mubr.f32.gmra.mrb[0].mxu0 %v7183
  %v7506 = vpop.f32.mrb[0].mxu0
  %v7507 = vadd.f32 %v1241, %v7506
  %v7508 = vpop.f32.mrb[0].mxu0
  %7509 = vmatprep.mubr.f32.mxu0 0.0
  %7510 = vmatmul.mubr.f32.gmra.mrb[0].mxu0 %v7186
  %v7511 = vpop.f32.mrb[0].mxu0
  %v7512 = vadd.f32 %v1241, %v7511
  %v7513 = vpop.f32.mrb[0].mxu0
  %7514 = vmatprep.mubr.f32.mxu0 0.0
  %7515 = vmatmul.mubr.f32.gmra.mrb[0].mxu0 %v7189
  %v7516 = vpop.f32.mrb[0].mxu0
  %v7517 = vadd.f32 %v1241, %v7516
  %v7518 = vpop.f32.mrb[0].mxu0
  %7519 = vmatprep.mubr.f32.mxu0 0.0
  %7520 = vmatmul.mubr.f32.gmra.mrb[0].mxu0 %v7192
  %v7521 = vpop.f32.mrb[0].mxu0
  %v7522 = vadd.f32 %v1241, %v7521
  %v7523 = vpop.f32.mrb[0].mxu0
  %7524 = vmatprep.mubr.f32.mxu0 0.0
  %7525 = vmatmul.mubr.f32.gmra.mrb[0].mxu0 %v7195
  %v7526 = vpop.f32.mrb[0].mxu0
  %v7527 = vadd.f32 %v1241, %v7526
  %v7528 = vpop.f32.mrb[0].mxu0
  %7529 = vmatprep.mubr.f32.mxu0 0.0
  %7530 = vmatmul.mubr.f32.gmra.mrb[0].mxu0 %v7198
  %v7531 = vpop.f32.mrb[0].mxu0
  %v7532 = vadd.f32 %v1241, %v7531
  %v7533 = vpop.f32.mrb[0].mxu0
  %7534 = vmatprep.mubr.f32.mxu0 0.0
  %7535 = vmatmul.mubr.f32.gmra.mrb[0].mxu0 %v7201
  %v7536 = vpop.f32.mrb[0].mxu0
  %v7537 = vadd.f32 %v1241, %v7536
  %v7538 = vpop.f32.mrb[0].mxu0
  %7539 = vmatprep.mubr.f32.mxu0 0.0
  %7540 = vmatmul.mubr.f32.gmra.mrb[0].mxu0 %v7204
  %v7541 = vpop.f32.mrb[0].mxu0
  %v7542 = vadd.f32 %v1241, %v7541
  %v7543 = vpop.f32.mrb[0].mxu0
  %7544 = vmatprep.mubr.f32.mxu0 0.0
  %7545 = vmatmul.mubr.f32.gmra.mrb[0].mxu0 %v7207
  %v7546 = vpop.f32.mrb[0].mxu0
  %v7547 = vadd.f32 %v1241, %v7546
  %v7548 = vpop.f32.mrb[0].mxu0
  %7549 = vmatprep.mubr.f32.mxu0 0.0
  %7550 = vmatmul.mubr.f32.gmra.mrb[0].mxu0 %v7210
  %v7551 = vpop.f32.mrb[0].mxu0
  %v7552 = vadd.f32 %v1241, %v7551
  %v7553 = vpop.f32.mrb[0].mxu0
  %7554 = vmatprep.mubr.f32.mxu0 0.0
  %7555 = vmatmul.mubr.f32.gmra.mrb[0].mxu0 %v7213
  %v7556 = vpop.f32.mrb[0].mxu0
  %v7557 = vadd.f32 %v1241, %v7556
  %v7558 = vpop.f32.mrb[0].mxu0
  %7559 = vmatprep.mubr.f32.mxu0 0.0
  %7560 = vmatmul.mubr.f32.gmra.mrb[0].mxu0 %v7216
  %v7561 = vpop.f32.mrb[0].mxu0
  %v7562 = vadd.f32 %v1241, %v7561
  %v7563 = vpop.f32.mrb[0].mxu0
  %7564 = vmatprep.mubr.f32.mxu0 0.0
  %7565 = vmatmul.mubr.f32.gmra.mrb[0].mxu0 %v7219
  %v7566 = vpop.f32.mrb[0].mxu0
  %v7567 = vadd.f32 %v1241, %v7566
  %v7568 = vpop.f32.mrb[0].mxu0
  %7569 = vmatprep.mubr.f32.mxu0 0.0
  %7570 = vmatmul.mubr.f32.gmra.mrb[0].mxu0 %v7222
  %v7571 = vpop.f32.mrb[0].mxu0
  %v7572 = vadd.f32 %v1241, %v7571
  %v7573 = vpop.f32.mrb[0].mxu0
  %7574 = vmatprep.mubr.f32.mxu0 0.0
  %7575 = vmatmul.mubr.f32.gmra.mrb[0].mxu0 %v7225
  %v7576 = vpop.f32.mrb[0].mxu0
  %v7577 = vadd.f32 %v1241, %v7576
  %v7578 = vpop.f32.mrb[0].mxu0
  %7579 = vmatprep.mubr.f32.mxu0 0.0
  %7580 = vmatmul.mubr.f32.gmra.mrb[0].mxu0 %v7228
  %v7581 = vpop.f32.mrb[0].mxu0
  %v7582 = vadd.f32 %v1241, %v7581
  %v7583 = vpop.f32.mrb[0].mxu0
  %7584 = vmatprep.mubr.f32.mxu0 0.0
  %7585 = vmatmul.mubr.f32.gmra.mrb[0].mxu0 %v7231
  %v7586 = vpop.f32.mrb[0].mxu0
  %v7587 = vadd.f32 %v1241, %v7586
  %v7588 = vpop.f32.mrb[0].mxu0
  %7589 = vmatprep.mubr.f32.mxu0 0.0
  %7590 = vmatmul.mubr.f32.gmra.mrb[0].mxu0 %v7234
  %v7591 = vpop.f32.mrb[0].mxu0
  %v7592 = vadd.f32 %v1241, %v7591
  %v7593 = vpop.f32.mrb[0].mxu0
  %7594 = vmatprep.mubr.f32.mxu0 0.0
  %7595 = vmatmul.mubr.f32.gmra.mrb[0].mxu0 %v7237
  %v7596 = vpop.f32.mrb[0].mxu0
  %v7597 = vadd.f32 %v1241, %v7596
  %v7598 = vpop.f32.mrb[0].mxu0
  %7599 = vmatprep.mubr.f32.mxu0 0.0
  %7600 = vmatmul.mubr.f32.gmra.mrb[0].mxu0 %v7240
  %v7601 = vpop.f32.mrb[0].mxu0
  %v7602 = vadd.f32 %v1241, %v7601
  %v7603 = vpop.f32.mrb[0].mxu0
  %7604 = vmatprep.mubr.f32.mxu0 0.0
  %7605 = vmatmul.mubr.f32.gmra.mrb[0].mxu0 %v7243
  %v7606 = vpop.f32.mrb[0].mxu0
  %v7607 = vadd.f32 %v1241, %v7606
  %v7608 = vpop.f32.mrb[0].mxu0
  %7609 = vmatprep.mubr.f32.mxu0 0.0
  %7610 = vmatmul.mubr.f32.gmra.mrb[0].mxu0 %v7246
  %v7611 = vpop.f32.mrb[0].mxu0
  %v7612 = vadd.f32 %v1241, %v7611
  %v7613 = vpop.f32.mrb[0].mxu0
  %7614 = vmatprep.mubr.f32.mxu0 0.0
  %7615 = vmatmul.mubr.f32.gmra.mrb[0].mxu0 %v7249
  %v7616 = vpop.f32.mrb[0].mxu0
  %v7617 = vadd.f32 %v1241, %v7616
  %v7618 = vpop.f32.mrb[0].mxu0
  %7619 = vmatprep.mubr.f32.mxu0 0.0
  %7620 = vmatmul.mubr.f32.gmra.mrb[0].mxu0 %v7252
  %v7621 = vpop.f32.mrb[0].mxu0
  %v7622 = vadd.f32 %v1241, %v7621
  %v7623 = vpop.f32.mrb[0].mxu0
  %7624 = vmatprep.mubr.f32.mxu0 0.0
  %7625 = vmatmul.mubr.f32.gmra.mrb[0].mxu0 %v7255
  %v7626 = vpop.f32.mrb[0].mxu0
  %v7627 = vadd.f32 %v1241, %v7626
  %v7628 = vpop.f32.mrb[0].mxu0
  %7629 = vmatprep.mubr.f32.mxu0 0.0
  %7630 = vmatmul.mubr.f32.gmra.mrb[0].mxu0 %v7258
  %v7631 = vpop.f32.mrb[0].mxu0
  %v7632 = vadd.f32 %v1241, %v7631
  %v7633 = vpop.f32.mrb[0].mxu0
  %7634 = vmatprep.mubr.f32.mxu0 0.0
  %7635 = vmatmul.mubr.f32.gmra.mrb[0].mxu0 %v7261
  %v7636 = vpop.f32.mrb[0].mxu0
  %v7637 = vadd.f32 %v1241, %v7636
  %v7638 = vpop.f32.mrb[0].mxu0
  %7639 = vmatprep.mubr.f32.mxu0 0.0
  %7640 = vmatmul.mubr.f32.gmra.mrb[0].mxu0 %v7264
  %v7641 = vpop.f32.mrb[0].mxu0
  %v7642 = vadd.f32 %v1241, %v7641
  %v7643 = vpop.f32.mrb[0].mxu0
  %7644 = vmatprep.mubr.f32.mxu0 0.0
  %7645 = vmatmul.mubr.f32.gmra.mrb[0].mxu0 %v7267
  %v7646 = vpop.f32.mrb[0].mxu0
  %v7647 = vadd.f32 %v1241, %v7646
  %v7648 = vpop.f32.mrb[0].mxu0
  %7649 = vmatprep.mubr.f32.mxu0 0.0
  %7650 = vmatmul.mubr.f32.gmra.mrb[0].mxu0 %v7270
  %v7651 = vpop.f32.mrb[0].mxu0
  %v7652 = vadd.f32 %v1241, %v7651
  %v7653 = vpop.f32.mrb[0].mxu0
  %7654 = vmatprep.mubr.f32.mxu0 0.0
  %7655 = vmatmul.mubr.f32.gmra.mrb[0].mxu0 %v7273
  %v7656 = vpop.f32.mrb[0].mxu0
  %v7657 = vadd.f32 %v1241, %v7656
  %v7658 = vpop.f32.mrb[0].mxu0
  %7659 = vdwg.mxu0
  %7724 = vrot.lane.b32.xlu0 %v7342, 4
  %v7725 = vpop.permute.xlu0 %7724
  %7726 = vrot.lane.b32.xlu0 %v7347, 4
  %v7727 = vpop.permute.xlu0 %7726
  %7728 = vrot.lane.b32.xlu0 %v7352, 4
  %v7729 = vpop.permute.xlu0 %7728
  %7730 = vrot.lane.b32.xlu0 %v7357, 4
  %v7731 = vpop.permute.xlu0 %7730
  %7732 = vrot.lane.b32.xlu0 %v7362, 4
  %v7733 = vpop.permute.xlu0 %7732
  %7734 = vrot.lane.b32.xlu0 %v7367, 4
  %v7735 = vpop.permute.xlu0 %7734
  %7736 = vrot.lane.b32.xlu0 %v7372, 4
  %v7737 = vpop.permute.xlu0 %7736
  %7738 = vrot.lane.b32.xlu0 %v7377, 4
  %v7739 = vpop.permute.xlu0 %7738
  %7740 = vrot.lane.b32.xlu0 %v7382, 4
  %v7741 = vpop.permute.xlu0 %7740
  %7742 = vrot.lane.b32.xlu0 %v7387, 4
  %v7743 = vpop.permute.xlu0 %7742
  %7744 = vrot.lane.b32.xlu0 %v7392, 4
  %v7745 = vpop.permute.xlu0 %7744
  %7746 = vrot.lane.b32.xlu0 %v7397, 4
  %v7747 = vpop.permute.xlu0 %7746
  %7748 = vrot.lane.b32.xlu0 %v7402, 4
  %v7749 = vpop.permute.xlu0 %7748
  %7750 = vrot.lane.b32.xlu0 %v7407, 4
  %v7751 = vpop.permute.xlu0 %7750
  %7752 = vrot.lane.b32.xlu0 %v7412, 4
  %v7753 = vpop.permute.xlu0 %7752
  %7754 = vrot.lane.b32.xlu0 %v7417, 4
  %v7755 = vpop.permute.xlu0 %7754
  %7756 = vrot.lane.b32.xlu0 %v7422, 4
  %v7757 = vpop.permute.xlu0 %7756
  %7758 = vrot.lane.b32.xlu0 %v7427, 4
  %v7759 = vpop.permute.xlu0 %7758
  %7760 = vrot.lane.b32.xlu0 %v7432, 4
  %v7761 = vpop.permute.xlu0 %7760
  %7762 = vrot.lane.b32.xlu0 %v7437, 4
  %v7763 = vpop.permute.xlu0 %7762
  %7764 = vrot.lane.b32.xlu0 %v7442, 4
  %v7765 = vpop.permute.xlu0 %7764
  %7766 = vrot.lane.b32.xlu0 %v7447, 4
  %v7767 = vpop.permute.xlu0 %7766
  %7768 = vrot.lane.b32.xlu0 %v7452, 4
  %v7769 = vpop.permute.xlu0 %7768
  %7770 = vrot.lane.b32.xlu0 %v7457, 4
  %v7771 = vpop.permute.xlu0 %7770
  %7772 = vrot.lane.b32.xlu0 %v7462, 4
  %v7773 = vpop.permute.xlu0 %7772
  %7774 = vrot.lane.b32.xlu0 %v7467, 4
  %v7775 = vpop.permute.xlu0 %7774
  %7776 = vrot.lane.b32.xlu0 %v7472, 4
  %v7777 = vpop.permute.xlu0 %7776
  %7778 = vrot.lane.b32.xlu0 %v7477, 4
  %v7779 = vpop.permute.xlu0 %7778
  %7780 = vrot.lane.b32.xlu0 %v7482, 4
  %v7781 = vpop.permute.xlu0 %7780
  %7782 = vrot.lane.b32.xlu0 %v7487, 4
  %v7783 = vpop.permute.xlu0 %7782
  %7784 = vrot.lane.b32.xlu0 %v7492, 4
  %v7785 = vpop.permute.xlu0 %7784
  %7786 = vrot.lane.b32.xlu0 %v7497, 4
  %v7787 = vpop.permute.xlu0 %7786
  %7788 = vrot.lane.b32.xlu0 %v7502, 4
  %v7789 = vpop.permute.xlu0 %7788
  %7790 = vrot.lane.b32.xlu0 %v7507, 4
  %v7791 = vpop.permute.xlu0 %7790
  %7792 = vrot.lane.b32.xlu0 %v7512, 4
  %v7793 = vpop.permute.xlu0 %7792
  %7794 = vrot.lane.b32.xlu0 %v7517, 4
  %v7795 = vpop.permute.xlu0 %7794
  %7796 = vrot.lane.b32.xlu0 %v7522, 4
  %v7797 = vpop.permute.xlu0 %7796
  %7798 = vrot.lane.b32.xlu0 %v7527, 4
  %v7799 = vpop.permute.xlu0 %7798
  %7800 = vrot.lane.b32.xlu0 %v7532, 4
  %v7801 = vpop.permute.xlu0 %7800
  %7802 = vrot.lane.b32.xlu0 %v7537, 4
  %v7803 = vpop.permute.xlu0 %7802
  %7804 = vrot.lane.b32.xlu0 %v7542, 4
  %v7805 = vpop.permute.xlu0 %7804
  %7806 = vrot.lane.b32.xlu0 %v7547, 4
  %v7807 = vpop.permute.xlu0 %7806
  %7808 = vrot.lane.b32.xlu0 %v7552, 4
  %v7809 = vpop.permute.xlu0 %7808
  %7810 = vrot.lane.b32.xlu0 %v7557, 4
  %v7811 = vpop.permute.xlu0 %7810
  %7812 = vrot.lane.b32.xlu0 %v7562, 4
  %v7813 = vpop.permute.xlu0 %7812
  %7814 = vrot.lane.b32.xlu0 %v7567, 4
  %v7815 = vpop.permute.xlu0 %7814
  %7816 = vrot.lane.b32.xlu0 %v7572, 4
  %v7817 = vpop.permute.xlu0 %7816
  %7818 = vrot.lane.b32.xlu0 %v7577, 4
  %v7819 = vpop.permute.xlu0 %7818
  %7820 = vrot.lane.b32.xlu0 %v7582, 4
  %v7821 = vpop.permute.xlu0 %7820
  %7822 = vrot.lane.b32.xlu0 %v7587, 4
  %v7823 = vpop.permute.xlu0 %7822
  %7824 = vrot.lane.b32.xlu0 %v7592, 4
  %v7825 = vpop.permute.xlu0 %7824
  %7826 = vrot.lane.b32.xlu0 %v7597, 4
  %v7827 = vpop.permute.xlu0 %7826
  %7828 = vrot.lane.b32.xlu0 %v7602, 4
  %v7829 = vpop.permute.xlu0 %7828
  %7830 = vrot.lane.b32.xlu0 %v7607, 4
  %v7831 = vpop.permute.xlu0 %7830
  %7832 = vrot.lane.b32.xlu0 %v7612, 4
  %v7833 = vpop.permute.xlu0 %7832
  %7834 = vrot.lane.b32.xlu0 %v7617, 4
  %v7835 = vpop.permute.xlu0 %7834
  %7836 = vrot.lane.b32.xlu0 %v7622, 4
  %v7837 = vpop.permute.xlu0 %7836
  %7838 = vrot.lane.b32.xlu0 %v7627, 4
  %v7839 = vpop.permute.xlu0 %7838
  %7840 = vrot.lane.b32.xlu0 %v7632, 4
  %v7841 = vpop.permute.xlu0 %7840
  %7842 = vrot.lane.b32.xlu0 %v7637, 4
  %v7843 = vpop.permute.xlu0 %7842
  %7844 = vrot.lane.b32.xlu0 %v7642, 4
  %v7845 = vpop.permute.xlu0 %7844
  %7846 = vrot.lane.b32.xlu0 %v7647, 4
  %v7847 = vpop.permute.xlu0 %7846
  %7848 = vrot.lane.b32.xlu0 %v7652, 4
  %v7849 = vpop.permute.xlu0 %7848
  %7850 = vrot.lane.b32.xlu0 %v7657, 4
  %v7851 = vpop.permute.xlu0 %7850
  %7916 = vst.msk [vmem:[%s5799] sm:$0xff] %vm3937, %v7725
  %7917 = vst.msk [vmem:[%s5799 + $0x8] sm:$0xff] %vm3937, %v7727
  %7918 = vst.msk [vmem:[%s5799 + $0x20] sm:$0xff] %vm3937, %v7729
  %7919 = vst.msk [vmem:[%s5799 + $0x28] sm:$0xff] %vm3937, %v7731
  %7920 = vst.msk [vmem:[%s5799 + $0x40] sm:$0xff] %vm3937, %v7733
  %7921 = vst.msk [vmem:[%s5799 + $0x48] sm:$0xff] %vm3937, %v7735
  %7922 = vst.msk [vmem:[%s5799 + $0x60] sm:$0xff] %vm3937, %v7737
  %7923 = vst.msk [vmem:[%s5799 + $0x68] sm:$0xff] %vm3937, %v7739
  %7924 = vst.msk [vmem:[%s5799 + $0x80] sm:$0xff] %vm3937, %v7741
  %7925 = vst.msk [vmem:[%s5799 + $0x88] sm:$0xff] %vm3937, %v7743
  %7926 = vst.msk [vmem:[%s5799 + $0xa0] sm:$0xff] %vm3937, %v7745
  %7927 = vst.msk [vmem:[%s5799 + $0xa8] sm:$0xff] %vm3937, %v7747
  %7928 = vst.msk [vmem:[%s5799 + $0xc0] sm:$0xff] %vm3937, %v7749
  %7929 = vst.msk [vmem:[%s5799 + $0xc8] sm:$0xff] %vm3937, %v7751
  %7930 = vst.msk [vmem:[%s5799 + $0xe0] sm:$0xff] %vm3937, %v7753
  %7931 = vst.msk [vmem:[%s5799 + $0xe8] sm:$0xff] %vm3937, %v7755
  %7932 = vst.msk [vmem:[%s5799 + $0x100] sm:$0xff] %vm3937, %v7757
  %7933 = vst.msk [vmem:[%s5799 + $0x108] sm:$0xff] %vm3937, %v7759
  %7934 = vst.msk [vmem:[%s5799 + $0x120] sm:$0xff] %vm3937, %v7761
  %7935 = vst.msk [vmem:[%s5799 + $0x128] sm:$0xff] %vm3937, %v7763
  %7936 = vst.msk [vmem:[%s5799 + $0x140] sm:$0xff] %vm3937, %v7765
  %7937 = vst.msk [vmem:[%s5799 + $0x148] sm:$0xff] %vm3937, %v7767
  %7938 = vst.msk [vmem:[%s5799 + $0x160] sm:$0xff] %vm3937, %v7769
  %7939 = vst.msk [vmem:[%s5799 + $0x168] sm:$0xff] %vm3937, %v7771
  %7940 = vst.msk [vmem:[%s5799 + $0x180] sm:$0xff] %vm3937, %v7773
  %7941 = vst.msk [vmem:[%s5799 + $0x188] sm:$0xff] %vm3937, %v7775
  %7942 = vst.msk [vmem:[%s5799 + $0x1a0] sm:$0xff] %vm3937, %v7777
  %7943 = vst.msk [vmem:[%s5799 + $0x1a8] sm:$0xff] %vm3937, %v7779
  %7944 = vst.msk [vmem:[%s5799 + $0x1c0] sm:$0xff] %vm3937, %v7781
  %7945 = vst.msk [vmem:[%s5799 + $0x1c8] sm:$0xff] %vm3937, %v7783
  %7946 = vst.msk [vmem:[%s5799 + $0x1e0] sm:$0xff] %vm3937, %v7785
  %7947 = vst.msk [vmem:[%s5799 + $0x1e8] sm:$0xff] %vm3937, %v7787
  %7948 = vst.msk [vmem:[%s5799 + $0x200] sm:$0xff] %vm3937, %v7789
  %7949 = vst.msk [vmem:[%s5799 + $0x208] sm:$0xff] %vm3937, %v7791
  %7950 = vst.msk [vmem:[%s5799 + $0x220] sm:$0xff] %vm3937, %v7793
  %7951 = vst.msk [vmem:[%s5799 + $0x228] sm:$0xff] %vm3937, %v7795
  %7952 = vst.msk [vmem:[%s5799 + $0x240] sm:$0xff] %vm3937, %v7797
  %7953 = vst.msk [vmem:[%s5799 + $0x248] sm:$0xff] %vm3937, %v7799
  %7954 = vst.msk [vmem:[%s5799 + $0x260] sm:$0xff] %vm3937, %v7801
  %7955 = vst.msk [vmem:[%s5799 + $0x268] sm:$0xff] %vm3937, %v7803
  %7956 = vst.msk [vmem:[%s5799 + $0x280] sm:$0xff] %vm3937, %v7805
  %7957 = vst.msk [vmem:[%s5799 + $0x288] sm:$0xff] %vm3937, %v7807
  %7958 = vst.msk [vmem:[%s5799 + $0x2a0] sm:$0xff] %vm3937, %v7809
  %7959 = vst.msk [vmem:[%s5799 + $0x2a8] sm:$0xff] %vm3937, %v7811
  %7960 = vst.msk [vmem:[%s5799 + $0x2c0] sm:$0xff] %vm3937, %v7813
  %7961 = vst.msk [vmem:[%s5799 + $0x2c8] sm:$0xff] %vm3937, %v7815
  %7962 = vst.msk [vmem:[%s5799 + $0x2e0] sm:$0xff] %vm3937, %v7817
  %7963 = vst.msk [vmem:[%s5799 + $0x2e8] sm:$0xff] %vm3937, %v7819
  %7964 = vst.msk [vmem:[%s5799 + $0x300] sm:$0xff] %vm3937, %v7821
  %7965 = vst.msk [vmem:[%s5799 + $0x308] sm:$0xff] %vm3937, %v7823
  %7966 = vst.msk [vmem:[%s5799 + $0x320] sm:$0xff] %vm3937, %v7825
  %7967 = vst.msk [vmem:[%s5799 + $0x328] sm:$0xff] %vm3937, %v7827
  %7968 = vst.msk [vmem:[%s5799 + $0x340] sm:$0xff] %vm3937, %v7829
  %7969 = vst.msk [vmem:[%s5799 + $0x348] sm:$0xff] %vm3937, %v7831
  %7970 = vst.msk [vmem:[%s5799 + $0x360] sm:$0xff] %vm3937, %v7833
  %7971 = vst.msk [vmem:[%s5799 + $0x368] sm:$0xff] %vm3937, %v7835
  %7972 = vst.msk [vmem:[%s5799 + $0x380] sm:$0xff] %vm3937, %v7837
  %7973 = vst.msk [vmem:[%s5799 + $0x388] sm:$0xff] %vm3937, %v7839
  %7974 = vst.msk [vmem:[%s5799 + $0x3a0] sm:$0xff] %vm3937, %v7841
  %7975 = vst.msk [vmem:[%s5799 + $0x3a8] sm:$0xff] %vm3937, %v7843
  %7976 = vst.msk [vmem:[%s5799 + $0x3c0] sm:$0xff] %vm3937, %v7845
  %7977 = vst.msk [vmem:[%s5799 + $0x3c8] sm:$0xff] %vm3937, %v7847
  %7978 = vst.msk [vmem:[%s5799 + $0x3e0] sm:$0xff] %vm3937, %v7849
  %7979 = vst.msk [vmem:[%s5799 + $0x3e8] sm:$0xff] %vm3937, %v7851
  // Predicated region
  $region14: #{tpu_custom_call.1} parent=0 // pred_check
    _
  $region15: #{tpu_custom_call.1} parent=0 // pred_check_branch
    %7981 = sbr.rel (0) target = $region17
  $region16: #{tpu_custom_call.1} parent=0 // pred_region
    _
  $region17: #{tpu_custom_call.1} parent=0 // pred_fallthru
    _
  // Predicated region
  $region18: #{tpu_custom_call.1} parent=0 // pred_check
    _
  $region19: #{tpu_custom_call.1} parent=0 // pred_check_branch
    %7983 = sbr.rel (0) target = $region21
  $region20: #{tpu_custom_call.1} parent=0 // pred_region
    _
  $region21: #{tpu_custom_call.1} parent=0 // pred_fallthru
    _

</llo_original>
